<compile_context>
chip_gen: v7x
topology: tpu7x:2x2x1
jax: 0.10.0
libtpu: 0.0.40
codegen_flags: <defaults>
</compile_context>

<pallas_src>
import functools
from types import SimpleNamespace

import jax
import jax.numpy as jnp
from jax.experimental import pallas as pl
from jax.experimental.pallas import tpu as pltpu


def _round_up(x, m):
    return (x + m - 1) // m * m


# ----------------------------------------------------------------------------
# In-kernel im2col of the 16 conv taps from the phase-merged padded tile.
#
# The padded NHWC input is reshaped XLA-side (free, row-major bitcast) to
#   merged[n, i, p*(Wo+1)+j, q*C+c] == x_pad[n, 2*i+p, 2*j+q, c]
# so every tap (kh=2a+p, kw=2b+q) of a row tile is a *contiguous* static slice.
# ----------------------------------------------------------------------------
def _pack_taps(x, ho, wo, c):
    """x: (ho+1, 2*(wo+1), 2*c) merged padded tile -> (ho*wo, 16*c) tap matrix.

    Column order is (kh, kw, ci), matching the packed weight matrix."""
    taps = []
    for kh in range(4):
        a, p = divmod(kh, 2)
        for kw in range(4):
            b, q = divmod(kw, 2)
            col0 = p * (wo + 1) + b
            taps.append(x[a:a + ho, col0:col0 + wo, q * c:(q + 1) * c])
    lhs = jnp.concatenate(taps, axis=-1)              # (ho, wo, 16*c)
    return lhs.reshape(ho * wo, 16 * c)


# ----------------------------------------------------------------------------
# Conv2d(k=4, s=2, p=1) + bias + optional LeakyReLU: one packed MXU matmul
# (K = 16*C) per (batch, row-tile) grid point.
# ----------------------------------------------------------------------------
def _conv_kernel(xm_ref, xh_ref, w_ref, b_ref, o_ref, *, tm, wo, c, act):
    # xm_ref: (1, tm, 2*(wo+1), 2*c)  main merged rows of the padded input (bf16)
    # xh_ref: (1, 1,  2*(wo+1), 2*c)  one-row halo (next merged row)       (bf16)
    # w_ref : (16*c, Cop)             packed tap weights                   (bf16)
    # b_ref : (1, Cop)                bias                                 (f32)
    # o_ref : (1, tm*wo, Cop)
    cop = w_ref.shape[-1]
    x = jnp.concatenate([xm_ref[0], xh_ref[0]], axis=0)       # (tm+1, 2*(wo+1), 2c)
    lhs = _pack_taps(x, tm, wo, c)                            # (tm*wo, 16c) bf16
    acc = jnp.dot(lhs, w_ref[...], preferred_element_type=jnp.float32)
    acc = acc + b_ref[...]
    if act == "leaky_relu":
        acc = jnp.where(acc > 0, acc, 0.2 * acc)
    o_ref[...] = acc.reshape(1, tm * wo, cop).astype(o_ref.dtype)


def _pick_row_tile(ho, wo, c, cop):
    """Largest power-of-two divisor row tile whose working set fits a VMEM
    budget (packed LHS + f32 accumulator + double-buffered in/out blocks)."""
    per_row = (wo * (16 * c * 2 + cop * 4 + 2 * cop * 2)
               + 2 * 2 * (wo + 1) * 2 * c * 2)
    budget = 12 * 1024 * 1024
    tm = ho
    while (tm % 2 == 0 and tm * per_row > budget
           and ((tm // 2) * wo) % 8 == 0):
        tm //= 2
    return tm


def conv2d_k4s2p1_pallas(x_nhwc, w_oihw, b, *, act="leaky_relu",
                         out_dtype=jnp.bfloat16):
    """PyTorch-equivalent Conv2d(k=4, s=2, p=1) + bias (+ LeakyReLU).

    The input channel dim may carry zero lane-padding from the previous layer
    (padded weight input rows are zero, so results are identical).  Returns an
    (N, Ho, Wo, Cop) array with Cop = round_up(C_out, 128); channels past
    C_out are exact zeros."""
    N, H, W, C = x_nhwc.shape
    C_out, C_in = w_oihw.shape[0], w_oihw.shape[1]
    assert H % 2 == 0 and W % 2 == 0 and C_in <= C
    Ho, Wo = H // 2, W // 2
    Cop = _round_up(C_out, 128)

    # Packed weights: OIHW -> (kh, kw, ci, co); zero-pad ci up to the (possibly
    # lane-padded) activation channel count and co up to Cop; flatten.
    w_t = jnp.transpose(w_oihw.astype(jnp.bfloat16), (2, 3, 1, 0))
    w_t = jnp.pad(w_t, ((0, 0), (0, 0), (0, C - C_in), (0, Cop - C_out)))
    w_t = w_t.reshape(16 * C, Cop)
    b_t = jnp.pad(b.astype(jnp.float32), (0, Cop - C_out)).reshape(1, Cop)

    # Spatial zero-pad, then a FREE row-major reshape that folds the 2x2 phase
    # structure into the minor dims (no phase-stack HBM round trip).
    xp = jnp.pad(x_nhwc.astype(jnp.bfloat16), ((0, 0), (1, 1), (1, 1), (0, 0)))
    xm = xp.reshape(N, Ho + 1, 2 * (Wo + 1), 2 * C)

    tm = _pick_row_tile(Ho, Wo, C, Cop)
    n_row = Ho // tm
    grid = (N, n_row)

    kernel = functools.partial(_conv_kernel, tm=tm, wo=Wo, c=C, act=act)
    flops = 2 * N * Ho * Wo * 16 * C * Cop
    bytes_accessed = int(xm.size * 2 + w_t.size * 2 + b_t.size * 4
                         + N * Ho * Wo * Cop * jnp.dtype(out_dtype).itemsize)

    out = pl.pallas_call(
        kernel,
        out_shape=jax.ShapeDtypeStruct((N, Ho * Wo, Cop), out_dtype),
        grid=grid,
        in_specs=[
            # main merged rows of the row tile
            pl.BlockSpec((1, tm, 2 * (Wo + 1), 2 * C),
                         lambda n, i: (n, i, 0, 0)),
            # one-row halo (same array passed a second time)
            pl.BlockSpec((1, 1, 2 * (Wo + 1), 2 * C),
                         lambda n, i: (n, tm * (i + 1), 0, 0)),
            # TODO(synk): grid-constant weight block; single-buffer it on v7x
            # (pl.Buffered(1)) if the 2x copy ever pressures the 64 MiB VMEM.
            pl.BlockSpec((16 * C, Cop), lambda n, i: (0, 0)),
            pl.BlockSpec((1, Cop), lambda n, i: (0, 0)),
        ],
        out_specs=pl.BlockSpec((1, tm * Wo, Cop), lambda n, i: (n, i, 0)),
        compiler_params=pltpu.CompilerParams(
            dimension_semantics=("parallel", "parallel"),
            vmem_limit_bytes=48 * 1024 * 1024),
        cost_estimate=pl.CostEstimate(flops=flops, transcendentals=0,
                                      bytes_accessed=bytes_accessed),
    )(xm, xm, w_t, b_t)
    return out.reshape(N, Ho, Wo, Cop)


# ----------------------------------------------------------------------------
# Fused epilogue: conv5 (C_out = 1) + bilinear resize (align_corners=True) as
# two MXU dots + sigmoid.  One kernel per batch element, no HBM round trip for
# the 1-channel conv output.
# ----------------------------------------------------------------------------
def _interp_matrix(out_size, in_size):
    """Interpolation matrix matching F.interpolate(mode='bilinear',
    align_corners=True) along one spatial axis."""
    if in_size == 1:
        return jnp.ones((out_size, 1), jnp.float32)
    src = (jnp.arange(out_size, dtype=jnp.float32)
           * (in_size - 1) / max(out_size - 1, 1))
    lo = jnp.clip(jnp.floor(src).astype(jnp.int32), 0, in_size - 2)
    hi = lo + 1
    w_hi = src - lo.astype(jnp.float32)
    w_lo = 1.0 - w_hi
    rows = jnp.arange(out_size)
    m = jnp.zeros((out_size, in_size), jnp.float32)
    return m.at[rows, lo].add(w_lo).at[rows, hi].add(w_hi)


def _conv5_bilinear_sigmoid_kernel(x_ref, w_ref, b_ref, rh_ref, rwt_ref, o_ref,
                                   *, h5, w5, c):
    H, W = o_ref.shape[1], o_ref.shape[2]
    x = x_ref[0]                                               # (h5+1, 2*(w5+1), 2c)
    lhs = _pack_taps(x, h5, w5, c)                             # (h5*w5, 16c) bf16
    v = jnp.dot(lhs, w_ref[...], preferred_element_type=jnp.float32)   # (h5*w5, 128)
    x5 = v[:, 0:1].reshape(h5, w5) + b_ref[0, 0]               # conv5 output (f32)
    t = jnp.dot(x5, rwt_ref[...], preferred_element_type=jnp.float32)  # (h5, W)
    y = jnp.dot(rh_ref[...], t, preferred_element_type=jnp.float32)    # (H, W)
    # TODO(synk): lane-dense (1, H*W) store would avoid masked vst when W is
    # not a multiple of 128; kept as (1, H, W) for lowering robustness.
    o_ref[...] = jax.nn.sigmoid(y).reshape(1, H, W)


def conv5_bilinear_sigmoid_pallas(h4, w5_oihw, b5, *, height, width):
    N, H4, W4, C = h4.shape
    C_in = w5_oihw.shape[1]
    assert H4 % 2 == 0 and W4 % 2 == 0 and C_in <= C
    h5, w5 = H4 // 2, W4 // 2
    Cop = 128  # lane-dense conv5 weight columns (only column 0 is non-zero)

    w_t = jnp.transpose(w5_oihw.astype(jnp.bfloat16), (2, 3, 1, 0))  # (4,4,Cin,1)
    w_t = jnp.pad(w_t, ((0, 0), (0, 0), (0, C - C_in), (0, Cop - 1)))
    w_t = w_t.reshape(16 * C, Cop)
    b_t = jnp.asarray(b5, jnp.float32).reshape(1, 1)

    xp = jnp.pad(h4.astype(jnp.bfloat16), ((0, 0), (1, 1), (1, 1), (0, 0)))
    xm = xp.reshape(N, h5 + 1, 2 * (w5 + 1), 2 * C)

    rh = _interp_matrix(height, h5)                  # (H, h5)
    rwt = _interp_matrix(width, w5).T                # (w5, W)

    kernel = functools.partial(_conv5_bilinear_sigmoid_kernel, h5=h5, w5=w5, c=C)
    out = pl.pallas_call(
        kernel,
        out_shape=jax.ShapeDtypeStruct((N, height, width), jnp.float32),
        grid=(N,),
        in_specs=[
            pl.BlockSpec((1, h5 + 1, 2 * (w5 + 1), 2 * C),
                         lambda n: (n, 0, 0, 0)),
            pl.BlockSpec((16 * C, Cop), lambda n: (0, 0)),
            pl.BlockSpec((1, 1), lambda n: (0, 0)),
            pl.BlockSpec((height, h5), lambda n: (0, 0)),
            pl.BlockSpec((w5, width), lambda n: (0, 0)),
        ],
        out_specs=pl.BlockSpec((1, height, width), lambda n: (n, 0, 0)),
        compiler_params=pltpu.CompilerParams(
            dimension_semantics=("parallel",),
            vmem_limit_bytes=48 * 1024 * 1024),
    )(xm, w_t, b_t, rh, rwt)
    return out.reshape(N, 1, height, width)


# ----------------------------------------------------------------------------
# Forward pass + module wrapper
# ----------------------------------------------------------------------------
def discriminator_forward(params, x_nchw, *, height, width):
    h = jnp.transpose(x_nchw, (0, 2, 3, 1))          # NCHW -> NHWC
    for (w, b) in params[:-1]:
        # Lane padding from the previous layer is carried forward; the packed
        # weight's extra input rows are zero, so the result is identical.
        h = conv2d_k4s2p1_pallas(h, w, b, act="leaky_relu",
                                 out_dtype=jnp.bfloat16)
    w5, b5 = params[-1]
    return conv5_bilinear_sigmoid_pallas(h, w5, b5, height=height, width=width)


class DiscriminatorPallas:
    def __init__(self, config, ndf=64, key=None):
        self.config = config
        c_in = config.n_classes + config.in_channel
        io = [(c_in, ndf), (ndf, ndf * 2), (ndf * 2, ndf * 4),
              (ndf * 4, ndf * 8), (ndf * 8, 1)]
        if key is None:
            key = jax.random.PRNGKey(0)
        self.params = []
        for (ci, co) in io:
            key, kw, kb = jax.random.split(key, 3)
            bound = 1.0 / jnp.sqrt(ci * 4.0 * 4.0)   # PyTorch default conv init
            w = jax.random.uniform(kw, (co, ci, 4, 4), jnp.float32, -bound, bound)
            b = jax.random.uniform(kb, (co,), jnp.float32, -bound, bound)
            self.params.append((w, b))
        self._fwd = jax.jit(functools.partial(
            discriminator_forward, height=config.height, width=config.width))

    def __call__(self, x_nchw):
        return self._fwd(self.params, x_nchw)


# ----------------------------------------------------------------------------
# Pure-JAX reference (f32) for a sanity check
# ----------------------------------------------------------------------------
def reference_forward(x, params, height, width):
    h = x
    for i, (w, b) in enumerate(params):
        h = jax.lax.conv_general_dilated(
            h, w, window_strides=(2, 2), padding=((1, 1), (1, 1)),
            dimension_numbers=("NCHW", "OIHW", "NCHW"))
        h = h + b.reshape(1, -1, 1, 1)
        if i < len(params) - 1:
            h = jnp.where(h > 0, h, 0.2 * h)
    rh = _interp_matrix(height, h.shape[2])
    rw = _interp_matrix(width, h.shape[3])
    out = jnp.einsum("Hh,nchw,Ww->ncHW", rh, h, rw)
    return jax.nn.sigmoid(out)


if __name__ == "__main__":
    # Five stride-2 convs need an input divisible by 32 -> 32x32 input.
    config = SimpleNamespace(n_classes=3, in_channel=1, height=32, width=32)
    ndf = 16  # small but structure-preserving

    key = jax.random.PRNGKey(0)
    kx, kp = jax.random.split(key)
    x = jax.random.normal(kx, (2, config.n_classes + config.in_channel, 32, 32),
                          dtype=jnp.float32)

    model = DiscriminatorPallas(config, ndf=ndf, key=kp)

    out = jax.block_until_ready(model(x))
    assert out.shape == (2, 1, config.height, config.width), out.shape

    ref = jax.block_until_ready(reference_forward(x, model.params,
                                                  config.height, config.width))
    max_err = float(jnp.max(jnp.abs(out - ref)))
    assert jnp.all(jnp.isfinite(out)), "non-finite output"
    # bf16 matmul operands (f32 accumulation) -> slightly looser tolerance.
    assert max_err < 3e-2, f"mismatch vs reference: {max_err}"

    print("KERNEL_OK")
</pallas_src>

<mosaic_0001>
module attributes {stable_mosaic.version = 11 : i64} {
  func.func @_conv_kernel(%arg0: i32, %arg1: i32, %arg2: memref<1x16x34x8xbf16, #tpu.memory_space<vmem>>, %arg3: memref<1x1x34x8xbf16, #tpu.memory_space<vmem>>, %arg4: memref<64x128xbf16, #tpu.memory_space<vmem>>, %arg5: memref<1x128xf32, #tpu.memory_space<vmem>>, %arg6: memref<1x256x128xbf16, #tpu.memory_space<vmem>>) attributes {dimension_semantics = [#tpu.dimension_semantics<parallel>, #tpu.dimension_semantics<parallel>], iteration_bounds = array<i64: 2, 1>, scalar_prefetch = 0 : i64, scratch_operands = 0 : i64, tpu.core_type = #tpu.core_type<tc>, window_params = [{transform_indices = @transform_0, window_bounds = array<i64: 1, 16, 34, 8>}, {transform_indices = @transform_1, window_bounds = array<i64: 1, 1, 34, 8>}, {pipeline_mode = #tpu.pipeline_mode<synchronous>, transform_indices = @transform_2, window_bounds = array<i64: 64, 128>}, {pipeline_mode = #tpu.pipeline_mode<synchronous>, transform_indices = @transform_3, window_bounds = array<i64: 1, 128>}, {transform_indices = @transform_4, window_bounds = array<i64: 1, 256, 128>}]} {
    %c0 = arith.constant 0 : index
    %c0_0 = arith.constant 0 : index
    %c0_1 = arith.constant 0 : index
    %c0_2 = arith.constant 0 : index
    %0 = vector.load %arg2[%c0, %c0_0, %c0_1, %c0_2] : memref<1x16x34x8xbf16, #tpu.memory_space<vmem>>, vector<1x16x34x8xbf16>
    %1 = vector.shape_cast %0 : vector<1x16x34x8xbf16> to vector<16x34x8xbf16>
    %c0_3 = arith.constant 0 : index
    %c0_4 = arith.constant 0 : index
    %c0_5 = arith.constant 0 : index
    %c0_6 = arith.constant 0 : index
    %2 = vector.load %arg3[%c0_3, %c0_4, %c0_5, %c0_6] : memref<1x1x34x8xbf16, #tpu.memory_space<vmem>>, vector<1x1x34x8xbf16>
    %3 = vector.shape_cast %2 : vector<1x1x34x8xbf16> to vector<1x34x8xbf16>
    %4 = tpu.concatenate %1, %3 in 0 : vector<16x34x8xbf16>, vector<1x34x8xbf16> -> vector<17x34x8xbf16>
    %5 = vector.extract_strided_slice %4 {offsets = [0, 0, 0], sizes = [16, 16, 4], strides = [1, 1, 1]} : vector<17x34x8xbf16> to vector<16x16x4xbf16>
    %6 = vector.extract_strided_slice %4 {offsets = [0, 0, 4], sizes = [16, 16, 4], strides = [1, 1, 1]} : vector<17x34x8xbf16> to vector<16x16x4xbf16>
    %7 = vector.extract_strided_slice %4 {offsets = [0, 1, 0], sizes = [16, 16, 4], strides = [1, 1, 1]} : vector<17x34x8xbf16> to vector<16x16x4xbf16>
    %8 = vector.extract_strided_slice %4 {offsets = [0, 1, 4], sizes = [16, 16, 4], strides = [1, 1, 1]} : vector<17x34x8xbf16> to vector<16x16x4xbf16>
    %9 = vector.extract_strided_slice %4 {offsets = [0, 17, 0], sizes = [16, 16, 4], strides = [1, 1, 1]} : vector<17x34x8xbf16> to vector<16x16x4xbf16>
    %10 = vector.extract_strided_slice %4 {offsets = [0, 17, 4], sizes = [16, 16, 4], strides = [1, 1, 1]} : vector<17x34x8xbf16> to vector<16x16x4xbf16>
    %11 = vector.extract_strided_slice %4 {offsets = [0, 18, 0], sizes = [16, 16, 4], strides = [1, 1, 1]} : vector<17x34x8xbf16> to vector<16x16x4xbf16>
    %12 = vector.extract_strided_slice %4 {offsets = [0, 18, 4], sizes = [16, 16, 4], strides = [1, 1, 1]} : vector<17x34x8xbf16> to vector<16x16x4xbf16>
    %13 = vector.extract_strided_slice %4 {offsets = [1, 0, 0], sizes = [16, 16, 4], strides = [1, 1, 1]} : vector<17x34x8xbf16> to vector<16x16x4xbf16>
    %14 = vector.extract_strided_slice %4 {offsets = [1, 0, 4], sizes = [16, 16, 4], strides = [1, 1, 1]} : vector<17x34x8xbf16> to vector<16x16x4xbf16>
    %15 = vector.extract_strided_slice %4 {offsets = [1, 1, 0], sizes = [16, 16, 4], strides = [1, 1, 1]} : vector<17x34x8xbf16> to vector<16x16x4xbf16>
    %16 = vector.extract_strided_slice %4 {offsets = [1, 1, 4], sizes = [16, 16, 4], strides = [1, 1, 1]} : vector<17x34x8xbf16> to vector<16x16x4xbf16>
    %17 = vector.extract_strided_slice %4 {offsets = [1, 17, 0], sizes = [16, 16, 4], strides = [1, 1, 1]} : vector<17x34x8xbf16> to vector<16x16x4xbf16>
    %18 = vector.extract_strided_slice %4 {offsets = [1, 17, 4], sizes = [16, 16, 4], strides = [1, 1, 1]} : vector<17x34x8xbf16> to vector<16x16x4xbf16>
    %19 = vector.extract_strided_slice %4 {offsets = [1, 18, 0], sizes = [16, 16, 4], strides = [1, 1, 1]} : vector<17x34x8xbf16> to vector<16x16x4xbf16>
    %20 = vector.extract_strided_slice %4 {offsets = [1, 18, 4], sizes = [16, 16, 4], strides = [1, 1, 1]} : vector<17x34x8xbf16> to vector<16x16x4xbf16>
    %21 = tpu.concatenate %5, %6, %7, %8, %9, %10, %11, %12, %13, %14, %15, %16, %17, %18, %19, %20 in 2 : vector<16x16x4xbf16>, vector<16x16x4xbf16>, vector<16x16x4xbf16>, vector<16x16x4xbf16>, vector<16x16x4xbf16>, vector<16x16x4xbf16>, vector<16x16x4xbf16>, vector<16x16x4xbf16>, vector<16x16x4xbf16>, vector<16x16x4xbf16>, vector<16x16x4xbf16>, vector<16x16x4xbf16>, vector<16x16x4xbf16>, vector<16x16x4xbf16>, vector<16x16x4xbf16>, vector<16x16x4xbf16> -> vector<16x16x64xbf16>
    %22 = vector.shape_cast %21 : vector<16x16x64xbf16> to vector<256x64xbf16>
    %c0_7 = arith.constant 0 : index
    %c0_8 = arith.constant 0 : index
    %23 = vector.load %arg4[%c0_7, %c0_8] : memref<64x128xbf16, #tpu.memory_space<vmem>>, vector<64x128xbf16>
    %cst = arith.constant dense<0.000000e+00> : vector<256x128xf32>
    %24 = tpu.matmul %22, %23, %cst {dimension_numbers = #tpu.dot_dimension_numbers<[1], [0], [0], [1], [0, 0, 1, 1], [], []>} : vector<256x64xbf16>, vector<64x128xbf16>, vector<256x128xf32> -> vector<256x128xf32>
    %c0_9 = arith.constant 0 : index
    %c0_10 = arith.constant 0 : index
    %25 = vector.load %arg5[%c0_9, %c0_10] : memref<1x128xf32, #tpu.memory_space<vmem>>, vector<1x128xf32>
    %26 = vector.broadcast %25 : vector<1x128xf32> to vector<256x128xf32>
    %27 = arith.addf %24, %26 : vector<256x128xf32>
    %cst_11 = arith.constant 0.000000e+00 : f32
    %28 = vector.broadcast %cst_11 : f32 to vector<256x128xf32>
    %29 = arith.cmpf ogt, %27, %28 : vector<256x128xf32>
    %cst_12 = arith.constant 2.000000e-01 : f32
    %30 = vector.broadcast %cst_12 : f32 to vector<256x128xf32>
    %31 = arith.mulf %30, %27 : vector<256x128xf32>
    %32 = arith.select %29, %27, %31 : vector<256x128xi1>, vector<256x128xf32>
    %33 = vector.shape_cast %32 : vector<256x128xf32> to vector<1x256x128xf32>
    %34 = arith.truncf %33 : vector<1x256x128xf32> to vector<1x256x128xbf16>
    %c0_13 = arith.constant 0 : index
    %c0_14 = arith.constant 0 : index
    %c0_15 = arith.constant 0 : index
    %35 = vector.load %arg6[%c0_13, %c0_14, %c0_15] : memref<1x256x128xbf16, #tpu.memory_space<vmem>>, vector<1x256x128xbf16>
    tpu.vector_store %arg6[%c0_13, %c0_14, %c0_15], %34 {strides = array<i32>} : memref<1x256x128xbf16, #tpu.memory_space<vmem>>, vector<1x256x128xbf16>,
    return
  }
  func.func @transform_0(%arg0: i32, %arg1: i32) -> (i32, i32, i32, i32) {
    %c0_i32 = arith.constant 0 : i32
    %c0_i32_0 = arith.constant 0 : i32
    %c0_i32_1 = arith.constant 0 : i32
    return %arg0, %arg1, %c0_i32, %c0_i32_0 : i32, i32, i32, i32
  }
  func.func @transform_1(%arg0: i32, %arg1: i32) -> (i32, i32, i32, i32) {
    %c1_i32 = arith.constant 1 : i32
    %0 = arith.addi %arg1, %c1_i32 : i32
    %c16_i32 = arith.constant 16 : i32
    %1 = arith.muli %c16_i32, %0 : i32
    %c0_i32 = arith.constant 0 : i32
    %c0_i32_0 = arith.constant 0 : i32
    %c0_i32_1 = arith.constant 0 : i32
    return %arg0, %1, %c0_i32, %c0_i32_0 : i32, i32, i32, i32
  }
  func.func @transform_2(%arg0: i32, %arg1: i32) -> (i32, i32) {
    %c0_i32 = arith.constant 0 : i32
    %c0_i32_0 = arith.constant 0 : i32
    %c0_i32_1 = arith.constant 0 : i32
    return %c0_i32, %c0_i32_0 : i32, i32
  }
  func.func @transform_3(%arg0: i32, %arg1: i32) -> (i32, i32) {
    %c0_i32 = arith.constant 0 : i32
    %c0_i32_0 = arith.constant 0 : i32
    %c0_i32_1 = arith.constant 0 : i32
    return %c0_i32, %c0_i32_0 : i32, i32
  }
  func.func @transform_4(%arg0: i32, %arg1: i32) -> (i32, i32, i32) {
    %c0_i32 = arith.constant 0 : i32
    %c0_i32_0 = arith.constant 0 : i32
    return %arg0, %arg1, %c0_i32 : i32, i32, i32
  }
}

module attributes {stable_mosaic.version = 11 : i64} {
  func.func @_conv_kernel(%arg0: i32, %arg1: i32, %arg2: memref<1x8x18x256xbf16, #tpu.memory_space<vmem>>, %arg3: memref<1x1x18x256xbf16, #tpu.memory_space<vmem>>, %arg4: memref<2048x128xbf16, #tpu.memory_space<vmem>>, %arg5: memref<1x128xf32, #tpu.memory_space<vmem>>, %arg6: memref<1x64x128xbf16, #tpu.memory_space<vmem>>) attributes {dimension_semantics = [#tpu.dimension_semantics<parallel>, #tpu.dimension_semantics<parallel>], iteration_bounds = array<i64: 2, 1>, scalar_prefetch = 0 : i64, scratch_operands = 0 : i64, tpu.core_type = #tpu.core_type<tc>, window_params = [{transform_indices = @transform_0, window_bounds = array<i64: 1, 8, 18, 256>}, {transform_indices = @transform_1, window_bounds = array<i64: 1, 1, 18, 256>}, {pipeline_mode = #tpu.pipeline_mode<synchronous>, transform_indices = @transform_2, window_bounds = array<i64: 2048, 128>}, {pipeline_mode = #tpu.pipeline_mode<synchronous>, transform_indices = @transform_3, window_bounds = array<i64: 1, 128>}, {transform_indices = @transform_4, window_bounds = array<i64: 1, 64, 128>}]} {
    %c0 = arith.constant 0 : index
    %c0_0 = arith.constant 0 : index
    %c0_1 = arith.constant 0 : index
    %c0_2 = arith.constant 0 : index
    %0 = vector.load %arg2[%c0, %c0_0, %c0_1, %c0_2] : memref<1x8x18x256xbf16, #tpu.memory_space<vmem>>, vector<1x8x18x256xbf16>
    %1 = vector.shape_cast %0 : vector<1x8x18x256xbf16> to vector<8x18x256xbf16>
    %c0_3 = arith.constant 0 : index
    %c0_4 = arith.constant 0 : index
    %c0_5 = arith.constant 0 : index
    %c0_6 = arith.constant 0 : index
    %2 = vector.load %arg3[%c0_3, %c0_4, %c0_5, %c0_6] : memref<1x1x18x256xbf16, #tpu.memory_space<vmem>>, vector<1x1x18x256xbf16>
    %3 = vector.shape_cast %2 : vector<1x1x18x256xbf16> to vector<1x18x256xbf16>
    %4 = tpu.concatenate %1, %3 in 0 : vector<8x18x256xbf16>, vector<1x18x256xbf16> -> vector<9x18x256xbf16>
    %5 = vector.extract_strided_slice %4 {offsets = [0, 0, 0], sizes = [8, 8, 128], strides = [1, 1, 1]} : vector<9x18x256xbf16> to vector<8x8x128xbf16>
    %6 = vector.extract_strided_slice %4 {offsets = [0, 0, 128], sizes = [8, 8, 128], strides = [1, 1, 1]} : vector<9x18x256xbf16> to vector<8x8x128xbf16>
    %7 = vector.extract_strided_slice %4 {offsets = [0, 1, 0], sizes = [8, 8, 128], strides = [1, 1, 1]} : vector<9x18x256xbf16> to vector<8x8x128xbf16>
    %8 = vector.extract_strided_slice %4 {offsets = [0, 1, 128], sizes = [8, 8, 128], strides = [1, 1, 1]} : vector<9x18x256xbf16> to vector<8x8x128xbf16>
    %9 = vector.extract_strided_slice %4 {offsets = [0, 9, 0], sizes = [8, 8, 128], strides = [1, 1, 1]} : vector<9x18x256xbf16> to vector<8x8x128xbf16>
    %10 = vector.extract_strided_slice %4 {offsets = [0, 9, 128], sizes = [8, 8, 128], strides = [1, 1, 1]} : vector<9x18x256xbf16> to vector<8x8x128xbf16>
    %11 = vector.extract_strided_slice %4 {offsets = [0, 10, 0], sizes = [8, 8, 128], strides = [1, 1, 1]} : vector<9x18x256xbf16> to vector<8x8x128xbf16>
    %12 = vector.extract_strided_slice %4 {offsets = [0, 10, 128], sizes = [8, 8, 128], strides = [1, 1, 1]} : vector<9x18x256xbf16> to vector<8x8x128xbf16>
    %13 = vector.extract_strided_slice %4 {offsets = [1, 0, 0], sizes = [8, 8, 128], strides = [1, 1, 1]} : vector<9x18x256xbf16> to vector<8x8x128xbf16>
    %14 = vector.extract_strided_slice %4 {offsets = [1, 0, 128], sizes = [8, 8, 128], strides = [1, 1, 1]} : vector<9x18x256xbf16> to vector<8x8x128xbf16>
    %15 = vector.extract_strided_slice %4 {offsets = [1, 1, 0], sizes = [8, 8, 128], strides = [1, 1, 1]} : vector<9x18x256xbf16> to vector<8x8x128xbf16>
    %16 = vector.extract_strided_slice %4 {offsets = [1, 1, 128], sizes = [8, 8, 128], strides = [1, 1, 1]} : vector<9x18x256xbf16> to vector<8x8x128xbf16>
    %17 = vector.extract_strided_slice %4 {offsets = [1, 9, 0], sizes = [8, 8, 128], strides = [1, 1, 1]} : vector<9x18x256xbf16> to vector<8x8x128xbf16>
    %18 = vector.extract_strided_slice %4 {offsets = [1, 9, 128], sizes = [8, 8, 128], strides = [1, 1, 1]} : vector<9x18x256xbf16> to vector<8x8x128xbf16>
    %19 = vector.extract_strided_slice %4 {offsets = [1, 10, 0], sizes = [8, 8, 128], strides = [1, 1, 1]} : vector<9x18x256xbf16> to vector<8x8x128xbf16>
    %20 = vector.extract_strided_slice %4 {offsets = [1, 10, 128], sizes = [8, 8, 128], strides = [1, 1, 1]} : vector<9x18x256xbf16> to vector<8x8x128xbf16>
    %21 = tpu.concatenate %5, %6, %7, %8, %9, %10, %11, %12, %13, %14, %15, %16, %17, %18, %19, %20 in 2 : vector<8x8x128xbf16>, vector<8x8x128xbf16>, vector<8x8x128xbf16>, vector<8x8x128xbf16>, vector<8x8x128xbf16>, vector<8x8x128xbf16>, vector<8x8x128xbf16>, vector<8x8x128xbf16>, vector<8x8x128xbf16>, vector<8x8x128xbf16>, vector<8x8x128xbf16>, vector<8x8x128xbf16>, vector<8x8x128xbf16>, vector<8x8x128xbf16>, vector<8x8x128xbf16>, vector<8x8x128xbf16> -> vector<8x8x2048xbf16>
    %22 = vector.shape_cast %21 : vector<8x8x2048xbf16> to vector<64x2048xbf16>
    %c0_7 = arith.constant 0 : index
    %c0_8 = arith.constant 0 : index
    %23 = vector.load %arg4[%c0_7, %c0_8] : memref<2048x128xbf16, #tpu.memory_space<vmem>>, vector<2048x128xbf16>
    %cst = arith.constant dense<0.000000e+00> : vector<64x128xf32>
    %24 = tpu.matmul %22, %23, %cst {dimension_numbers = #tpu.dot_dimension_numbers<[1], [0], [0], [1], [0, 0, 1, 1], [], []>} : vector<64x2048xbf16>, vector<2048x128xbf16>, vector<64x128xf32> -> vector<64x128xf32>
    %c0_9 = arith.constant 0 : index
    %c0_10 = arith.constant 0 : index
    %25 = vector.load %arg5[%c0_9, %c0_10] : memref<1x128xf32, #tpu.memory_space<vmem>>, vector<1x128xf32>
    %26 = vector.broadcast %25 : vector<1x128xf32> to vector<64x128xf32>
    %27 = arith.addf %24, %26 : vector<64x128xf32>
    %cst_11 = arith.constant 0.000000e+00 : f32
    %28 = vector.broadcast %cst_11 : f32 to vector<64x128xf32>
    %29 = arith.cmpf ogt, %27, %28 : vector<64x128xf32>
    %cst_12 = arith.constant 2.000000e-01 : f32
    %30 = vector.broadcast %cst_12 : f32 to vector<64x128xf32>
    %31 = arith.mulf %30, %27 : vector<64x128xf32>
    %32 = arith.select %29, %27, %31 : vector<64x128xi1>, vector<64x128xf32>
    %33 = vector.shape_cast %32 : vector<64x128xf32> to vector<1x64x128xf32>
    %34 = arith.truncf %33 : vector<1x64x128xf32> to vector<1x64x128xbf16>
    %c0_13 = arith.constant 0 : index
    %c0_14 = arith.constant 0 : index
    %c0_15 = arith.constant 0 : index
    %35 = vector.load %arg6[%c0_13, %c0_14, %c0_15] : memref<1x64x128xbf16, #tpu.memory_space<vmem>>, vector<1x64x128xbf16>
    tpu.vector_store %arg6[%c0_13, %c0_14, %c0_15], %34 {strides = array<i32>} : memref<1x64x128xbf16, #tpu.memory_space<vmem>>, vector<1x64x128xbf16>,
    return
  }
  func.func @transform_0(%arg0: i32, %arg1: i32) -> (i32, i32, i32, i32) {
    %c0_i32 = arith.constant 0 : i32
    %c0_i32_0 = arith.constant 0 : i32
    %c0_i32_1 = arith.constant 0 : i32
    return %arg0, %arg1, %c0_i32, %c0_i32_0 : i32, i32, i32, i32
  }
  func.func @transform_1(%arg0: i32, %arg1: i32) -> (i32, i32, i32, i32) {
    %c1_i32 = arith.constant 1 : i32
    %0 = arith.addi %arg1, %c1_i32 : i32
    %c8_i32 = arith.constant 8 : i32
    %1 = arith.muli %c8_i32, %0 : i32
    %c0_i32 = arith.constant 0 : i32
    %c0_i32_0 = arith.constant 0 : i32
    %c0_i32_1 = arith.constant 0 : i32
    return %arg0, %1, %c0_i32, %c0_i32_0 : i32, i32, i32, i32
  }
  func.func @transform_2(%arg0: i32, %arg1: i32) -> (i32, i32) {
    %c0_i32 = arith.constant 0 : i32
    %c0_i32_0 = arith.constant 0 : i32
    %c0_i32_1 = arith.constant 0 : i32
    return %c0_i32, %c0_i32_0 : i32, i32
  }
  func.func @transform_3(%arg0: i32, %arg1: i32) -> (i32, i32) {
    %c0_i32 = arith.constant 0 : i32
    %c0_i32_0 = arith.constant 0 : i32
    %c0_i32_1 = arith.constant 0 : i32
    return %c0_i32, %c0_i32_0 : i32, i32
  }
  func.func @transform_4(%arg0: i32, %arg1: i32) -> (i32, i32, i32) {
    %c0_i32 = arith.constant 0 : i32
    %c0_i32_0 = arith.constant 0 : i32
    return %arg0, %arg1, %c0_i32 : i32, i32, i32
  }
}

module attributes {stable_mosaic.version = 11 : i64} {
  func.func @_conv_kernel(%arg0: i32, %arg1: i32, %arg2: memref<1x4x10x256xbf16, #tpu.memory_space<vmem>>, %arg3: memref<1x1x10x256xbf16, #tpu.memory_space<vmem>>, %arg4: memref<2048x128xbf16, #tpu.memory_space<vmem>>, %arg5: memref<1x128xf32, #tpu.memory_space<vmem>>, %arg6: memref<1x16x128xbf16, #tpu.memory_space<vmem>>) attributes {dimension_semantics = [#tpu.dimension_semantics<parallel>, #tpu.dimension_semantics<parallel>], iteration_bounds = array<i64: 2, 1>, scalar_prefetch = 0 : i64, scratch_operands = 0 : i64, tpu.core_type = #tpu.core_type<tc>, window_params = [{transform_indices = @transform_0, window_bounds = array<i64: 1, 4, 10, 256>}, {transform_indices = @transform_1, window_bounds = array<i64: 1, 1, 10, 256>}, {pipeline_mode = #tpu.pipeline_mode<synchronous>, transform_indices = @transform_2, window_bounds = array<i64: 2048, 128>}, {pipeline_mode = #tpu.pipeline_mode<synchronous>, transform_indices = @transform_3, window_bounds = array<i64: 1, 128>}, {transform_indices = @transform_4, window_bounds = array<i64: 1, 16, 128>}]} {
    %c0 = arith.constant 0 : index
    %c0_0 = arith.constant 0 : index
    %c0_1 = arith.constant 0 : index
    %c0_2 = arith.constant 0 : index
    %0 = vector.load %arg2[%c0, %c0_0, %c0_1, %c0_2] : memref<1x4x10x256xbf16, #tpu.memory_space<vmem>>, vector<1x4x10x256xbf16>
    %1 = vector.shape_cast %0 : vector<1x4x10x256xbf16> to vector<4x10x256xbf16>
    %c0_3 = arith.constant 0 : index
    %c0_4 = arith.constant 0 : index
    %c0_5 = arith.constant 0 : index
    %c0_6 = arith.constant 0 : index
    %2 = vector.load %arg3[%c0_3, %c0_4, %c0_5, %c0_6] : memref<1x1x10x256xbf16, #tpu.memory_space<vmem>>, vector<1x1x10x256xbf16>
    %3 = vector.shape_cast %2 : vector<1x1x10x256xbf16> to vector<1x10x256xbf16>
    %4 = tpu.concatenate %1, %3 in 0 : vector<4x10x256xbf16>, vector<1x10x256xbf16> -> vector<5x10x256xbf16>
    %5 = vector.extract_strided_slice %4 {offsets = [0, 0, 0], sizes = [4, 4, 128], strides = [1, 1, 1]} : vector<5x10x256xbf16> to vector<4x4x128xbf16>
    %6 = vector.extract_strided_slice %4 {offsets = [0, 0, 128], sizes = [4, 4, 128], strides = [1, 1, 1]} : vector<5x10x256xbf16> to vector<4x4x128xbf16>
    %7 = vector.extract_strided_slice %4 {offsets = [0, 1, 0], sizes = [4, 4, 128], strides = [1, 1, 1]} : vector<5x10x256xbf16> to vector<4x4x128xbf16>
    %8 = vector.extract_strided_slice %4 {offsets = [0, 1, 128], sizes = [4, 4, 128], strides = [1, 1, 1]} : vector<5x10x256xbf16> to vector<4x4x128xbf16>
    %9 = vector.extract_strided_slice %4 {offsets = [0, 5, 0], sizes = [4, 4, 128], strides = [1, 1, 1]} : vector<5x10x256xbf16> to vector<4x4x128xbf16>
    %10 = vector.extract_strided_slice %4 {offsets = [0, 5, 128], sizes = [4, 4, 128], strides = [1, 1, 1]} : vector<5x10x256xbf16> to vector<4x4x128xbf16>
    %11 = vector.extract_strided_slice %4 {offsets = [0, 6, 0], sizes = [4, 4, 128], strides = [1, 1, 1]} : vector<5x10x256xbf16> to vector<4x4x128xbf16>
    %12 = vector.extract_strided_slice %4 {offsets = [0, 6, 128], sizes = [4, 4, 128], strides = [1, 1, 1]} : vector<5x10x256xbf16> to vector<4x4x128xbf16>
    %13 = vector.extract_strided_slice %4 {offsets = [1, 0, 0], sizes = [4, 4, 128], strides = [1, 1, 1]} : vector<5x10x256xbf16> to vector<4x4x128xbf16>
    %14 = vector.extract_strided_slice %4 {offsets = [1, 0, 128], sizes = [4, 4, 128], strides = [1, 1, 1]} : vector<5x10x256xbf16> to vector<4x4x128xbf16>
    %15 = vector.extract_strided_slice %4 {offsets = [1, 1, 0], sizes = [4, 4, 128], strides = [1, 1, 1]} : vector<5x10x256xbf16> to vector<4x4x128xbf16>
    %16 = vector.extract_strided_slice %4 {offsets = [1, 1, 128], sizes = [4, 4, 128], strides = [1, 1, 1]} : vector<5x10x256xbf16> to vector<4x4x128xbf16>
    %17 = vector.extract_strided_slice %4 {offsets = [1, 5, 0], sizes = [4, 4, 128], strides = [1, 1, 1]} : vector<5x10x256xbf16> to vector<4x4x128xbf16>
    %18 = vector.extract_strided_slice %4 {offsets = [1, 5, 128], sizes = [4, 4, 128], strides = [1, 1, 1]} : vector<5x10x256xbf16> to vector<4x4x128xbf16>
    %19 = vector.extract_strided_slice %4 {offsets = [1, 6, 0], sizes = [4, 4, 128], strides = [1, 1, 1]} : vector<5x10x256xbf16> to vector<4x4x128xbf16>
    %20 = vector.extract_strided_slice %4 {offsets = [1, 6, 128], sizes = [4, 4, 128], strides = [1, 1, 1]} : vector<5x10x256xbf16> to vector<4x4x128xbf16>
    %21 = tpu.concatenate %5, %6, %7, %8, %9, %10, %11, %12, %13, %14, %15, %16, %17, %18, %19, %20 in 2 : vector<4x4x128xbf16>, vector<4x4x128xbf16>, vector<4x4x128xbf16>, vector<4x4x128xbf16>, vector<4x4x128xbf16>, vector<4x4x128xbf16>, vector<4x4x128xbf16>, vector<4x4x128xbf16>, vector<4x4x128xbf16>, vector<4x4x128xbf16>, vector<4x4x128xbf16>, vector<4x4x128xbf16>, vector<4x4x128xbf16>, vector<4x4x128xbf16>, vector<4x4x128xbf16>, vector<4x4x128xbf16> -> vector<4x4x2048xbf16>
    %22 = vector.shape_cast %21 : vector<4x4x2048xbf16> to vector<16x2048xbf16>
    %c0_7 = arith.constant 0 : index
    %c0_8 = arith.constant 0 : index
    %23 = vector.load %arg4[%c0_7, %c0_8] : memref<2048x128xbf16, #tpu.memory_space<vmem>>, vector<2048x128xbf16>
    %cst = arith.constant dense<0.000000e+00> : vector<16x128xf32>
    %24 = tpu.matmul %22, %23, %cst {dimension_numbers = #tpu.dot_dimension_numbers<[1], [0], [0], [1], [0, 0, 1, 1], [], []>} : vector<16x2048xbf16>, vector<2048x128xbf16>, vector<16x128xf32> -> vector<16x128xf32>
    %c0_9 = arith.constant 0 : index
    %c0_10 = arith.constant 0 : index
    %25 = vector.load %arg5[%c0_9, %c0_10] : memref<1x128xf32, #tpu.memory_space<vmem>>, vector<1x128xf32>
    %26 = vector.broadcast %25 : vector<1x128xf32> to vector<16x128xf32>
    %27 = arith.addf %24, %26 : vector<16x128xf32>
    %cst_11 = arith.constant 0.000000e+00 : f32
    %28 = vector.broadcast %cst_11 : f32 to vector<16x128xf32>
    %29 = arith.cmpf ogt, %27, %28 : vector<16x128xf32>
    %cst_12 = arith.constant 2.000000e-01 : f32
    %30 = vector.broadcast %cst_12 : f32 to vector<16x128xf32>
    %31 = arith.mulf %30, %27 : vector<16x128xf32>
    %32 = arith.select %29, %27, %31 : vector<16x128xi1>, vector<16x128xf32>
    %33 = vector.shape_cast %32 : vector<16x128xf32> to vector<1x16x128xf32>
    %34 = arith.truncf %33 : vector<1x16x128xf32> to vector<1x16x128xbf16>
    %c0_13 = arith.constant 0 : index
    %c0_14 = arith.constant 0 : index
    %c0_15 = arith.constant 0 : index
    %35 = vector.load %arg6[%c0_13, %c0_14, %c0_15] : memref<1x16x128xbf16, #tpu.memory_space<vmem>>, vector<1x16x128xbf16>
    tpu.vector_store %arg6[%c0_13, %c0_14, %c0_15], %34 {strides = array<i32>} : memref<1x16x128xbf16, #tpu.memory_space<vmem>>, vector<1x16x128xbf16>,
    return
  }
  func.func @transform_0(%arg0: i32, %arg1: i32) -> (i32, i32, i32, i32) {
    %c0_i32 = arith.constant 0 : i32
    %c0_i32_0 = arith.constant 0 : i32
    %c0_i32_1 = arith.constant 0 : i32
    return %arg0, %arg1, %c0_i32, %c0_i32_0 : i32, i32, i32, i32
  }
  func.func @transform_1(%arg0: i32, %arg1: i32) -> (i32, i32, i32, i32) {
    %c1_i32 = arith.constant 1 : i32
    %0 = arith.addi %arg1, %c1_i32 : i32
    %c4_i32 = arith.constant 4 : i32
    %1 = arith.muli %c4_i32, %0 : i32
    %c0_i32 = arith.constant 0 : i32
    %c0_i32_0 = arith.constant 0 : i32
    %c0_i32_1 = arith.constant 0 : i32
    return %arg0, %1, %c0_i32, %c0_i32_0 : i32, i32, i32, i32
  }
  func.func @transform_2(%arg0: i32, %arg1: i32) -> (i32, i32) {
    %c0_i32 = arith.constant 0 : i32
    %c0_i32_0 = arith.constant 0 : i32
    %c0_i32_1 = arith.constant 0 : i32
    return %c0_i32, %c0_i32_0 : i32, i32
  }
  func.func @transform_3(%arg0: i32, %arg1: i32) -> (i32, i32) {
    %c0_i32 = arith.constant 0 : i32
    %c0_i32_0 = arith.constant 0 : i32
    %c0_i32_1 = arith.constant 0 : i32
    return %c0_i32, %c0_i32_0 : i32, i32
  }
  func.func @transform_4(%arg0: i32, %arg1: i32) -> (i32, i32, i32) {
    %c0_i32 = arith.constant 0 : i32
    %c0_i32_0 = arith.constant 0 : i32
    return %arg0, %arg1, %c0_i32 : i32, i32, i32
  }
}

module attributes {stable_mosaic.version = 11 : i64} {
  func.func @_conv_kernel(%arg0: i32, %arg1: i32, %arg2: memref<1x2x6x256xbf16, #tpu.memory_space<vmem>>, %arg3: memref<1x1x6x256xbf16, #tpu.memory_space<vmem>>, %arg4: memref<2048x128xbf16, #tpu.memory_space<vmem>>, %arg5: memref<1x128xf32, #tpu.memory_space<vmem>>, %arg6: memref<1x4x128xbf16, #tpu.memory_space<vmem>>) attributes {dimension_semantics = [#tpu.dimension_semantics<parallel>, #tpu.dimension_semantics<parallel>], iteration_bounds = array<i64: 2, 1>, scalar_prefetch = 0 : i64, scratch_operands = 0 : i64, tpu.core_type = #tpu.core_type<tc>, window_params = [{transform_indices = @transform_0, window_bounds = array<i64: 1, 2, 6, 256>}, {transform_indices = @transform_1, window_bounds = array<i64: 1, 1, 6, 256>}, {pipeline_mode = #tpu.pipeline_mode<synchronous>, transform_indices = @transform_2, window_bounds = array<i64: 2048, 128>}, {pipeline_mode = #tpu.pipeline_mode<synchronous>, transform_indices = @transform_3, window_bounds = array<i64: 1, 128>}, {transform_indices = @transform_4, window_bounds = array<i64: 1, 4, 128>}]} {
    %c0 = arith.constant 0 : index
    %c0_0 = arith.constant 0 : index
    %c0_1 = arith.constant 0 : index
    %c0_2 = arith.constant 0 : index
    %0 = vector.load %arg2[%c0, %c0_0, %c0_1, %c0_2] : memref<1x2x6x256xbf16, #tpu.memory_space<vmem>>, vector<1x2x6x256xbf16>
    %1 = vector.shape_cast %0 : vector<1x2x6x256xbf16> to vector<2x6x256xbf16>
    %c0_3 = arith.constant 0 : index
    %c0_4 = arith.constant 0 : index
    %c0_5 = arith.constant 0 : index
    %c0_6 = arith.constant 0 : index
    %2 = vector.load %arg3[%c0_3, %c0_4, %c0_5, %c0_6] : memref<1x1x6x256xbf16, #tpu.memory_space<vmem>>, vector<1x1x6x256xbf16>
    %3 = vector.shape_cast %2 : vector<1x1x6x256xbf16> to vector<1x6x256xbf16>
    %4 = tpu.concatenate %1, %3 in 0 : vector<2x6x256xbf16>, vector<1x6x256xbf16> -> vector<3x6x256xbf16>
    %5 = vector.extract_strided_slice %4 {offsets = [0, 0, 0], sizes = [2, 2, 128], strides = [1, 1, 1]} : vector<3x6x256xbf16> to vector<2x2x128xbf16>
    %6 = vector.extract_strided_slice %4 {offsets = [0, 0, 128], sizes = [2, 2, 128], strides = [1, 1, 1]} : vector<3x6x256xbf16> to vector<2x2x128xbf16>
    %7 = vector.extract_strided_slice %4 {offsets = [0, 1, 0], sizes = [2, 2, 128], strides = [1, 1, 1]} : vector<3x6x256xbf16> to vector<2x2x128xbf16>
    %8 = vector.extract_strided_slice %4 {offsets = [0, 1, 128], sizes = [2, 2, 128], strides = [1, 1, 1]} : vector<3x6x256xbf16> to vector<2x2x128xbf16>
    %9 = vector.extract_strided_slice %4 {offsets = [0, 3, 0], sizes = [2, 2, 128], strides = [1, 1, 1]} : vector<3x6x256xbf16> to vector<2x2x128xbf16>
    %10 = vector.extract_strided_slice %4 {offsets = [0, 3, 128], sizes = [2, 2, 128], strides = [1, 1, 1]} : vector<3x6x256xbf16> to vector<2x2x128xbf16>
    %11 = vector.extract_strided_slice %4 {offsets = [0, 4, 0], sizes = [2, 2, 128], strides = [1, 1, 1]} : vector<3x6x256xbf16> to vector<2x2x128xbf16>
    %12 = vector.extract_strided_slice %4 {offsets = [0, 4, 128], sizes = [2, 2, 128], strides = [1, 1, 1]} : vector<3x6x256xbf16> to vector<2x2x128xbf16>
    %13 = vector.extract_strided_slice %4 {offsets = [1, 0, 0], sizes = [2, 2, 128], strides = [1, 1, 1]} : vector<3x6x256xbf16> to vector<2x2x128xbf16>
    %14 = vector.extract_strided_slice %4 {offsets = [1, 0, 128], sizes = [2, 2, 128], strides = [1, 1, 1]} : vector<3x6x256xbf16> to vector<2x2x128xbf16>
    %15 = vector.extract_strided_slice %4 {offsets = [1, 1, 0], sizes = [2, 2, 128], strides = [1, 1, 1]} : vector<3x6x256xbf16> to vector<2x2x128xbf16>
    %16 = vector.extract_strided_slice %4 {offsets = [1, 1, 128], sizes = [2, 2, 128], strides = [1, 1, 1]} : vector<3x6x256xbf16> to vector<2x2x128xbf16>
    %17 = vector.extract_strided_slice %4 {offsets = [1, 3, 0], sizes = [2, 2, 128], strides = [1, 1, 1]} : vector<3x6x256xbf16> to vector<2x2x128xbf16>
    %18 = vector.extract_strided_slice %4 {offsets = [1, 3, 128], sizes = [2, 2, 128], strides = [1, 1, 1]} : vector<3x6x256xbf16> to vector<2x2x128xbf16>
    %19 = vector.extract_strided_slice %4 {offsets = [1, 4, 0], sizes = [2, 2, 128], strides = [1, 1, 1]} : vector<3x6x256xbf16> to vector<2x2x128xbf16>
    %20 = vector.extract_strided_slice %4 {offsets = [1, 4, 128], sizes = [2, 2, 128], strides = [1, 1, 1]} : vector<3x6x256xbf16> to vector<2x2x128xbf16>
    %21 = tpu.concatenate %5, %6, %7, %8, %9, %10, %11, %12, %13, %14, %15, %16, %17, %18, %19, %20 in 2 : vector<2x2x128xbf16>, vector<2x2x128xbf16>, vector<2x2x128xbf16>, vector<2x2x128xbf16>, vector<2x2x128xbf16>, vector<2x2x128xbf16>, vector<2x2x128xbf16>, vector<2x2x128xbf16>, vector<2x2x128xbf16>, vector<2x2x128xbf16>, vector<2x2x128xbf16>, vector<2x2x128xbf16>, vector<2x2x128xbf16>, vector<2x2x128xbf16>, vector<2x2x128xbf16>, vector<2x2x128xbf16> -> vector<2x2x2048xbf16>
    %22 = vector.shape_cast %21 : vector<2x2x2048xbf16> to vector<4x2048xbf16>
    %c0_7 = arith.constant 0 : index
    %c0_8 = arith.constant 0 : index
    %23 = vector.load %arg4[%c0_7, %c0_8] : memref<2048x128xbf16, #tpu.memory_space<vmem>>, vector<2048x128xbf16>
    %cst = arith.constant dense<0.000000e+00> : vector<4x128xf32>
    %24 = tpu.matmul %22, %23, %cst {dimension_numbers = #tpu.dot_dimension_numbers<[1], [0], [0], [1], [0, 0, 1, 1], [], []>} : vector<4x2048xbf16>, vector<2048x128xbf16>, vector<4x128xf32> -> vector<4x128xf32>
    %c0_9 = arith.constant 0 : index
    %c0_10 = arith.constant 0 : index
    %25 = vector.load %arg5[%c0_9, %c0_10] : memref<1x128xf32, #tpu.memory_space<vmem>>, vector<1x128xf32>
    %26 = vector.broadcast %25 : vector<1x128xf32> to vector<4x128xf32>
    %27 = arith.addf %24, %26 : vector<4x128xf32>
    %cst_11 = arith.constant 0.000000e+00 : f32
    %28 = vector.broadcast %cst_11 : f32 to vector<4x128xf32>
    %29 = arith.cmpf ogt, %27, %28 : vector<4x128xf32>
    %cst_12 = arith.constant 2.000000e-01 : f32
    %30 = vector.broadcast %cst_12 : f32 to vector<4x128xf32>
    %31 = arith.mulf %30, %27 : vector<4x128xf32>
    %32 = arith.select %29, %27, %31 : vector<4x128xi1>, vector<4x128xf32>
    %33 = vector.shape_cast %32 : vector<4x128xf32> to vector<1x4x128xf32>
    %34 = arith.truncf %33 : vector<1x4x128xf32> to vector<1x4x128xbf16>
    %c0_13 = arith.constant 0 : index
    %c0_14 = arith.constant 0 : index
    %c0_15 = arith.constant 0 : index
    %35 = vector.load %arg6[%c0_13, %c0_14, %c0_15] : memref<1x4x128xbf16, #tpu.memory_space<vmem>>, vector<1x4x128xbf16>
    tpu.vector_store %arg6[%c0_13, %c0_14, %c0_15], %34 {strides = array<i32>} : memref<1x4x128xbf16, #tpu.memory_space<vmem>>, vector<1x4x128xbf16>,
    return
  }
  func.func @transform_0(%arg0: i32, %arg1: i32) -> (i32, i32, i32, i32) {
    %c0_i32 = arith.constant 0 : i32
    %c0_i32_0 = arith.constant 0 : i32
    %c0_i32_1 = arith.constant 0 : i32
    return %arg0, %arg1, %c0_i32, %c0_i32_0 : i32, i32, i32, i32
  }
  func.func @transform_1(%arg0: i32, %arg1: i32) -> (i32, i32, i32, i32) {
    %c1_i32 = arith.constant 1 : i32
    %0 = arith.addi %arg1, %c1_i32 : i32
    %c2_i32 = arith.constant 2 : i32
    %1 = arith.muli %c2_i32, %0 : i32
    %c0_i32 = arith.constant 0 : i32
    %c0_i32_0 = arith.constant 0 : i32
    %c0_i32_1 = arith.constant 0 : i32
    return %arg0, %1, %c0_i32, %c0_i32_0 : i32, i32, i32, i32
  }
  func.func @transform_2(%arg0: i32, %arg1: i32) -> (i32, i32) {
    %c0_i32 = arith.constant 0 : i32
    %c0_i32_0 = arith.constant 0 : i32
    %c0_i32_1 = arith.constant 0 : i32
    return %c0_i32, %c0_i32_0 : i32, i32
  }
  func.func @transform_3(%arg0: i32, %arg1: i32) -> (i32, i32) {
    %c0_i32 = arith.constant 0 : i32
    %c0_i32_0 = arith.constant 0 : i32
    %c0_i32_1 = arith.constant 0 : i32
    return %c0_i32, %c0_i32_0 : i32, i32
  }
  func.func @transform_4(%arg0: i32, %arg1: i32) -> (i32, i32, i32) {
    %c0_i32 = arith.constant 0 : i32
    %c0_i32_0 = arith.constant 0 : i32
    return %arg0, %arg1, %c0_i32 : i32, i32, i32
  }
}

module attributes {stable_mosaic.version = 11 : i64} {
  func.func @_conv5_bilinear_sigmoid_kernel(%arg0: i32, %arg1: memref<1x2x4x256xbf16, #tpu.memory_space<vmem>>, %arg2: memref<2048x128xbf16, #tpu.memory_space<vmem>>, %arg3: memref<1x1xf32, #tpu.memory_space<vmem>>, %arg4: memref<32x1xf32, #tpu.memory_space<vmem>>, %arg5: memref<1x32xf32, #tpu.memory_space<vmem>>, %arg6: memref<1x32x32xf32, #tpu.memory_space<vmem>>) attributes {dimension_semantics = [#tpu.dimension_semantics<parallel>], iteration_bounds = array<i64: 2>, scalar_prefetch = 0 : i64, scratch_operands = 0 : i64, tpu.core_type = #tpu.core_type<tc>, window_params = [{transform_indices = @transform_0, window_bounds = array<i64: 1, 2, 4, 256>}, {pipeline_mode = #tpu.pipeline_mode<synchronous>, transform_indices = @transform_1, window_bounds = array<i64: 2048, 128>}, {pipeline_mode = #tpu.pipeline_mode<synchronous>, transform_indices = @transform_2, window_bounds = array<i64: 1, 1>}, {pipeline_mode = #tpu.pipeline_mode<synchronous>, transform_indices = @transform_3, window_bounds = array<i64: 32, 1>}, {pipeline_mode = #tpu.pipeline_mode<synchronous>, transform_indices = @transform_4, window_bounds = array<i64: 1, 32>}, {transform_indices = @transform_5, window_bounds = array<i64: 1, 32, 32>}]} {
    %c0 = arith.constant 0 : index
    %c0_0 = arith.constant 0 : index
    %c0_1 = arith.constant 0 : index
    %c0_2 = arith.constant 0 : index
    %0 = vector.load %arg1[%c0, %c0_0, %c0_1, %c0_2] : memref<1x2x4x256xbf16, #tpu.memory_space<vmem>>, vector<1x2x4x256xbf16>
    %1 = vector.shape_cast %0 : vector<1x2x4x256xbf16> to vector<2x4x256xbf16>
    %2 = vector.extract_strided_slice %1 {offsets = [0, 0, 0], sizes = [1, 1, 128], strides = [1, 1, 1]} : vector<2x4x256xbf16> to vector<1x1x128xbf16>
    %3 = vector.extract_strided_slice %1 {offsets = [0, 0, 128], sizes = [1, 1, 128], strides = [1, 1, 1]} : vector<2x4x256xbf16> to vector<1x1x128xbf16>
    %4 = vector.extract_strided_slice %1 {offsets = [0, 1, 0], sizes = [1, 1, 128], strides = [1, 1, 1]} : vector<2x4x256xbf16> to vector<1x1x128xbf16>
    %5 = vector.extract_strided_slice %1 {offsets = [0, 1, 128], sizes = [1, 1, 128], strides = [1, 1, 1]} : vector<2x4x256xbf16> to vector<1x1x128xbf16>
    %6 = vector.extract_strided_slice %1 {offsets = [0, 2, 0], sizes = [1, 1, 128], strides = [1, 1, 1]} : vector<2x4x256xbf16> to vector<1x1x128xbf16>
    %7 = vector.extract_strided_slice %1 {offsets = [0, 2, 128], sizes = [1, 1, 128], strides = [1, 1, 1]} : vector<2x4x256xbf16> to vector<1x1x128xbf16>
    %8 = vector.extract_strided_slice %1 {offsets = [0, 3, 0], sizes = [1, 1, 128], strides = [1, 1, 1]} : vector<2x4x256xbf16> to vector<1x1x128xbf16>
    %9 = vector.extract_strided_slice %1 {offsets = [0, 3, 128], sizes = [1, 1, 128], strides = [1, 1, 1]} : vector<2x4x256xbf16> to vector<1x1x128xbf16>
    %10 = vector.extract_strided_slice %1 {offsets = [1, 0, 0], sizes = [1, 1, 128], strides = [1, 1, 1]} : vector<2x4x256xbf16> to vector<1x1x128xbf16>
    %11 = vector.extract_strided_slice %1 {offsets = [1, 0, 128], sizes = [1, 1, 128], strides = [1, 1, 1]} : vector<2x4x256xbf16> to vector<1x1x128xbf16>
    %12 = vector.extract_strided_slice %1 {offsets = [1, 1, 0], sizes = [1, 1, 128], strides = [1, 1, 1]} : vector<2x4x256xbf16> to vector<1x1x128xbf16>
    %13 = vector.extract_strided_slice %1 {offsets = [1, 1, 128], sizes = [1, 1, 128], strides = [1, 1, 1]} : vector<2x4x256xbf16> to vector<1x1x128xbf16>
    %14 = vector.extract_strided_slice %1 {offsets = [1, 2, 0], sizes = [1, 1, 128], strides = [1, 1, 1]} : vector<2x4x256xbf16> to vector<1x1x128xbf16>
    %15 = vector.extract_strided_slice %1 {offsets = [1, 2, 128], sizes = [1, 1, 128], strides = [1, 1, 1]} : vector<2x4x256xbf16> to vector<1x1x128xbf16>
    %16 = vector.extract_strided_slice %1 {offsets = [1, 3, 0], sizes = [1, 1, 128], strides = [1, 1, 1]} : vector<2x4x256xbf16> to vector<1x1x128xbf16>
    %17 = vector.extract_strided_slice %1 {offsets = [1, 3, 128], sizes = [1, 1, 128], strides = [1, 1, 1]} : vector<2x4x256xbf16> to vector<1x1x128xbf16>
    %18 = tpu.concatenate %2, %3, %4, %5, %6, %7, %8, %9, %10, %11, %12, %13, %14, %15, %16, %17 in 2 : vector<1x1x128xbf16>, vector<1x1x128xbf16>, vector<1x1x128xbf16>, vector<1x1x128xbf16>, vector<1x1x128xbf16>, vector<1x1x128xbf16>, vector<1x1x128xbf16>, vector<1x1x128xbf16>, vector<1x1x128xbf16>, vector<1x1x128xbf16>, vector<1x1x128xbf16>, vector<1x1x128xbf16>, vector<1x1x128xbf16>, vector<1x1x128xbf16>, vector<1x1x128xbf16>, vector<1x1x128xbf16> -> vector<1x1x2048xbf16>
    %19 = vector.shape_cast %18 : vector<1x1x2048xbf16> to vector<1x2048xbf16>
    %c0_3 = arith.constant 0 : index
    %c0_4 = arith.constant 0 : index
    %20 = vector.load %arg2[%c0_3, %c0_4] : memref<2048x128xbf16, #tpu.memory_space<vmem>>, vector<2048x128xbf16>
    %cst = arith.constant dense<0.000000e+00> : vector<1x128xf32>
    %21 = tpu.matmul %19, %20, %cst {dimension_numbers = #tpu.dot_dimension_numbers<[1], [0], [0], [1], [0, 0, 1, 1], [], []>} : vector<1x2048xbf16>, vector<2048x128xbf16>, vector<1x128xf32> -> vector<1x128xf32>
    %22 = vector.extract_strided_slice %21 {offsets = [0, 0], sizes = [1, 1], strides = [1, 1]} : vector<1x128xf32> to vector<1x1xf32>
    %c0_5 = arith.constant 0 : index
    %c0_6 = arith.constant 0 : index
    %23 = vector.load %arg3[%c0_5, %c0_6] : memref<1x1xf32, #tpu.memory_space<vmem>>, vector<1x1xf32>
    %24 = vector.extract %23[0, 0] : f32 from vector<1x1xf32>
    %25 = vector.broadcast %24 : f32 to vector<1x1xf32>
    %26 = arith.addf %22, %25 : vector<1x1xf32>
    %c0_7 = arith.constant 0 : index
    %c0_8 = arith.constant 0 : index
    %27 = vector.load %arg5[%c0_7, %c0_8] : memref<1x32xf32, #tpu.memory_space<vmem>>, vector<1x32xf32>
    %cst_9 = arith.constant dense<0.000000e+00> : vector<1x32xf32>
    %28 = tpu.matmul %26, %27, %cst_9 {dimension_numbers = #tpu.dot_dimension_numbers<[1], [0], [0], [1], [0, 0, 1, 1], [], []>} : vector<1x1xf32>, vector<1x32xf32>, vector<1x32xf32> -> vector<1x32xf32>
    %c0_10 = arith.constant 0 : index
    %c0_11 = arith.constant 0 : index
    %29 = vector.load %arg4[%c0_10, %c0_11] : memref<32x1xf32, #tpu.memory_space<vmem>>, vector<32x1xf32>
    %cst_12 = arith.constant dense<0.000000e+00> : vector<32x32xf32>
    %30 = tpu.matmul %29, %28, %cst_12 {dimension_numbers = #tpu.dot_dimension_numbers<[1], [0], [0], [1], [0, 0, 1, 1], [], []>} : vector<32x1xf32>, vector<1x32xf32>, vector<32x32xf32> -> vector<32x32xf32>
    %31 = arith.negf %30 : vector<32x32xf32>
    %32 = math.exp %31 : vector<32x32xf32>
    %cst_13 = arith.constant 1.000000e+00 : f32
    %33 = vector.broadcast %cst_13 : f32 to vector<32x32xf32>
    %34 = arith.addf %33, %32 : vector<32x32xf32>
    %35 = arith.divf %33, %34 : vector<32x32xf32>
    %36 = vector.shape_cast %35 : vector<32x32xf32> to vector<1x32x32xf32>
    %c0_14 = arith.constant 0 : index
    %c0_15 = arith.constant 0 : index
    %c0_16 = arith.constant 0 : index
    %37 = vector.load %arg6[%c0_14, %c0_15, %c0_16] : memref<1x32x32xf32, #tpu.memory_space<vmem>>, vector<1x32x32xf32>
    tpu.vector_store %arg6[%c0_14, %c0_15, %c0_16], %36 {strides = array<i32>} : memref<1x32x32xf32, #tpu.memory_space<vmem>>, vector<1x32x32xf32>,
    return
  }
  func.func @transform_0(%arg0: i32) -> (i32, i32, i32, i32) {
    %c0_i32 = arith.constant 0 : i32
    %c0_i32_0 = arith.constant 0 : i32
    %c0_i32_1 = arith.constant 0 : i32
    %c0_i32_2 = arith.constant 0 : i32
    return %arg0, %c0_i32, %c0_i32_0, %c0_i32_1 : i32, i32, i32, i32
  }
  func.func @transform_1(%arg0: i32) -> (i32, i32) {
    %c0_i32 = arith.constant 0 : i32
    %c0_i32_0 = arith.constant 0 : i32
    %c0_i32_1 = arith.constant 0 : i32
    return %c0_i32, %c0_i32_0 : i32, i32
  }
  func.func @transform_2(%arg0: i32) -> (i32, i32) {
    %c0_i32 = arith.constant 0 : i32
    %c0_i32_0 = arith.constant 0 : i32
    %c0_i32_1 = arith.constant 0 : i32
    return %c0_i32, %c0_i32_0 : i32, i32
  }
  func.func @transform_3(%arg0: i32) -> (i32, i32) {
    %c0_i32 = arith.constant 0 : i32
    %c0_i32_0 = arith.constant 0 : i32
    %c0_i32_1 = arith.constant 0 : i32
    return %c0_i32, %c0_i32_0 : i32, i32
  }
  func.func @transform_4(%arg0: i32) -> (i32, i32) {
    %c0_i32 = arith.constant 0 : i32
    %c0_i32_0 = arith.constant 0 : i32
    %c0_i32_1 = arith.constant 0 : i32
    return %c0_i32, %c0_i32_0 : i32, i32
  }
  func.func @transform_5(%arg0: i32) -> (i32, i32, i32) {
    %c0_i32 = arith.constant 0 : i32
    %c0_i32_0 = arith.constant 0 : i32
    %c0_i32_1 = arith.constant 0 : i32
    return %arg0, %c0_i32, %c0_i32_0 : i32, i32, i32
  }
}

</mosaic_0001>

<llo_original>
// kernel: discriminator_forward.5
$region0: #{discriminator_forward.5}
  #allocation0 [shape = 'u32[]', space=smem, size = 0x4, offset = 0x4, fixed_abs, tag = 'smem constant byte address 0x4 - core index']
  #allocation1 [shape = 'u32[144,128]{1,0:T(1,128)}', space=vmem, size = 0x12000, scoped, tag = 'internal scratch']
  %s0 = inlined_call_operand.vmem [shape: bf16[2,17,34,8], index: 0, kind: input, shape index: {}, may-alias: {0,1}]
  %s1 = inlined_call_operand.vmem [shape: bf16[2,17,34,8], index: 1, kind: input, shape index: {}, may-alias: {0,1}]
  %s2 = inlined_call_operand.vmem [shape: bf16[64,128], index: 2, kind: input, shape index: {}]
  %s3 = inlined_call_operand.vmem [shape: f32[1,128], index: 3, kind: input, shape index: {}]
  %s4 = inlined_call_operand.vmem [shape: bf16[2,256,128], index: 4, kind: output, shape index: {}]
  %s5 = sld [smem:[#allocation0]]
  $region49: #{discriminator_forward.5} parent=0
    _
  %s7 = ssub.s32 1, %s5
  %s8 = scalar_select 0, %s7, %s5
  loop: start=0, step=1, limit=4
  $region2: #{discriminator_forward.5} parent=0 // loop_pre_header
    _
  $region3: #{discriminator_forward.5} parent=0 // loop_header
    %s10 = sphi 0, %s14
    %p11 = scmp.ge.s32.totalorder %s10, 4
    %s17 = sphi 0, %s29
    %s18 = sphi 0, %s25
    %s19 = sphi 0, %s17
    %s20 = sphi 0, %s18
    %s21 = sphi 0, %s19
    %s22 = sphi 0, %s20
    %s34 = sphi 0, %s36
    %s37 = sphi 0, %s34
    %s38 = sphi 0, %s37
    %s54 = sphi 0, %s38
    %s66 = sphi 0, %s68
    %s69 = sphi 0, %s66
    %s70 = sphi 0, %s69
    %s86 = sphi 0, %s70
    %s90 = sphi 0, %s90
    %s92 = sphi 0, %s90
    %s93 = sphi 0, %s92
    %s107 = sphi 0, %s93
    %s111 = sphi 0, %s111
    %s113 = sphi 0, %s111
    %s114 = sphi 0, %s113
    %s128 = sphi 0, %s114
    %s136 = sphi 0, %s138
    %s139 = sphi 0, %s136
    %s140 = sphi 0, %s139
    %s156 = sphi 0, %s140
  $region4: #{discriminator_forward.5} parent=0 // loop_header_branch
    %13 = sbr.rel (%p11) target = $region8
  $region5: #{discriminator_forward.5} parent=0 // loop_body
    %s15 = ssub.s32 %s10, 1
    %s16 = ssub.s32 %s10, 2
    %s23 = sadd.s32 1, %s18
    %p24 = scmp.ge.s32.totalorder %s23, 1
    %s25 = scalar_select %p24, 0, %s23
    %s26 = sadd.s32 1, %s17
    %s27 = scalar_select %p24, %s26, %s17
    %p28 = scmp.ge.s32.totalorder %s27, 2
    %s29 = scalar_select %p28, 0, %s27
    %s30 = ssub.s32 %s17, %s29
    %s31 = ssub.s32 %s18, %s25
    %s32 = sor.u32 %s30, %s31
    %p33 = scmp.eq.s32.totalorder %s32, 0
    %s35 = sadd.s32 %s34, 1
    %s36 = scalar_select %p33, %s34, %s35
    %p39 = pneg %p33
    %p40 = scmp.eq.s32.totalorder %s10, 1
    %p41 = por %p39, %p40
    %p42 = scmp.ne.s32.totalorder %s34, %s37
    %p43 = scmp.eq.s32.totalorder %s10, 0
    %p44 = por %p42, %p43
    %p45 = scmp.ne.s32.totalorder %s34, %s37
    %p46 = scmp.eq.s32.totalorder %s15, 1
    %p47 = por %p45, %p46
    %p48 = scmp.ne.s32.totalorder %s37, %s38
    %p49 = scmp.eq.s32.totalorder %s15, 0
    %p50 = por %p48, %p49
    %p51 = scmp.ne.s32.totalorder %s37, %s38
    %p52 = scmp.eq.s32.totalorder %s16, 1
    %p53 = por %p51, %p52
    %p55 = scmp.ne.s32.totalorder %s38, %s54
    %p56 = scmp.eq.s32.totalorder %s16, 0
    %p57 = por %p55, %p56
    %s58 = sadd.s32 %s18, 1
    %s59 = smul.u32 %s58, 16
    %s60 = sadd.s32 %s25, 1
    %s61 = smul.u32 %s60, 16
    %s62 = ssub.s32 %s17, %s29
    %s63 = ssub.s32 %s59, %s61
    %s64 = sor.u32 %s62, %s63
    %p65 = scmp.eq.s32.totalorder %s64, 0
    %s67 = sadd.s32 %s66, 1
    %s68 = scalar_select %p65, %s66, %s67
    %p71 = pneg %p65
    %p72 = scmp.eq.s32.totalorder %s10, 1
    %p73 = por %p71, %p72
    %p74 = scmp.ne.s32.totalorder %s66, %s69
    %p75 = scmp.eq.s32.totalorder %s10, 0
    %p76 = por %p74, %p75
    %p77 = scmp.ne.s32.totalorder %s66, %s69
    %p78 = scmp.eq.s32.totalorder %s15, 1
    %p79 = por %p77, %p78
    %p80 = scmp.ne.s32.totalorder %s69, %s70
    %p81 = scmp.eq.s32.totalorder %s15, 0
    %p82 = por %p80, %p81
    %p83 = scmp.ne.s32.totalorder %s69, %s70
    %p84 = scmp.eq.s32.totalorder %s16, 1
    %p85 = por %p83, %p84
    %p87 = scmp.ne.s32.totalorder %s70, %s86
    %p88 = scmp.eq.s32.totalorder %s16, 0
    %p89 = por %p87, %p88
    %s91 = sadd.s32 %s90, 1
    %p94 = scmp.eq.s32.totalorder %s10, 1
    %p95 = scmp.ne.s32.totalorder %s90, %s92
    %p96 = scmp.eq.s32.totalorder %s10, 0
    %p97 = por %p95, %p96
    %p98 = scmp.ne.s32.totalorder %s90, %s92
    %p99 = scmp.eq.s32.totalorder %s15, 1
    %p100 = por %p98, %p99
    %p101 = scmp.ne.s32.totalorder %s92, %s93
    %p102 = scmp.eq.s32.totalorder %s15, 0
    %p103 = por %p101, %p102
    %p104 = scmp.ne.s32.totalorder %s92, %s93
    %p105 = scmp.eq.s32.totalorder %s16, 1
    %p106 = por %p104, %p105
    %p108 = scmp.ne.s32.totalorder %s93, %s107
    %p109 = scmp.eq.s32.totalorder %s16, 0
    %p110 = por %p108, %p109
    %s112 = sadd.s32 %s111, 1
    %p115 = scmp.eq.s32.totalorder %s10, 1
    %p116 = scmp.ne.s32.totalorder %s111, %s113
    %p117 = scmp.eq.s32.totalorder %s10, 0
    %p118 = por %p116, %p117
    %p119 = scmp.ne.s32.totalorder %s111, %s113
    %p120 = scmp.eq.s32.totalorder %s15, 1
    %p121 = por %p119, %p120
    %p122 = scmp.ne.s32.totalorder %s113, %s114
    %p123 = scmp.eq.s32.totalorder %s15, 0
    %p124 = por %p122, %p123
    %p125 = scmp.ne.s32.totalorder %s113, %s114
    %p126 = scmp.eq.s32.totalorder %s16, 1
    %p127 = por %p125, %p126
    %p129 = scmp.ne.s32.totalorder %s114, %s128
    %p130 = scmp.eq.s32.totalorder %s16, 0
    %p131 = por %p129, %p130
    %s132 = ssub.s32 %s17, %s29
    %s133 = ssub.s32 %s18, %s25
    %s134 = sor.u32 %s132, %s133
    %p135 = scmp.eq.s32.totalorder %s134, 0
    %s137 = sadd.s32 %s136, 1
    %s138 = scalar_select %p135, %s136, %s137
    %p141 = pneg %p135
    %p142 = scmp.eq.s32.totalorder %s10, 1
    %p143 = por %p141, %p142
    %p144 = scmp.ne.s32.totalorder %s136, %s139
    %p145 = scmp.eq.s32.totalorder %s10, 0
    %p146 = por %p144, %p145
    %p147 = scmp.ne.s32.totalorder %s136, %s139
    %p148 = scmp.eq.s32.totalorder %s15, 1
    %p149 = por %p147, %p148
    %p150 = scmp.ne.s32.totalorder %s139, %s140
    %p151 = scmp.eq.s32.totalorder %s15, 0
    %p152 = por %p150, %p151
    %p153 = scmp.ne.s32.totalorder %s139, %s140
    %p154 = scmp.eq.s32.totalorder %s16, 1
    %p155 = por %p153, %p154
    %p157 = scmp.ne.s32.totalorder %s140, %s156
    %p158 = scmp.eq.s32.totalorder %s16, 0
    %p159 = por %p157, %p158
    %p160 = scmp.le.s32.totalorder 1, %s10
    %p161 = scmp.lt.s32.totalorder %s10, 3
    %p162 = pnand %p160, %p161
    %p163 = pneg %p162
    // Predicated region
    $region9: #{discriminator_forward.5} parent=5 // pred_check
      _
    $region10: #{discriminator_forward.5} parent=5 // pred_check_branch
      %165 = sbr.rel (%p162) target = $region12
    $region11: #{discriminator_forward.5} parent=5 // pred_region
      %s166 = ssub.s32 %s10, 1
      // Predicated region
      $region13: #{discriminator_forward.5} parent=11 // pred_check
        %p167 = pneg %p103
      $region14: #{discriminator_forward.5} parent=11 // pred_check_branch
        %169 = sbr.rel (%p167) target = $region16
      $region15: #{discriminator_forward.5} parent=11 // pred_region
        _
      $region16: #{discriminator_forward.5} parent=11 // pred_fallthru
        _
      // Predicated region
      $region17: #{discriminator_forward.5} parent=11 // pred_check
        %p170 = pneg %p124
      $region18: #{discriminator_forward.5} parent=11 // pred_check_branch
        %172 = sbr.rel (%p170) target = $region20
      $region19: #{discriminator_forward.5} parent=11 // pred_region
        _
      $region20: #{discriminator_forward.5} parent=11 // pred_fallthru
        _
    $region12: #{discriminator_forward.5} parent=5 // pred_fallthru
      _
    %p173 = scmp.lt.s32.totalorder %s10, 2
    // Predicated region
    $region21: #{discriminator_forward.5} parent=5 // pred_check
      %p174 = pneg %p173
    $region22: #{discriminator_forward.5} parent=5 // pred_check_branch
      %176 = sbr.rel (%p174) target = $region24
    $region23: #{discriminator_forward.5} parent=5 // pred_region
      // Predicated region
      $region25: #{discriminator_forward.5} parent=23 // pred_check
        %p177 = pneg %p44
      $region26: #{discriminator_forward.5} parent=23 // pred_check_branch
        %179 = sbr.rel (%p177) target = $region28
      $region27: #{discriminator_forward.5} parent=23 // pred_region
        %s180 = smul.u32 16, %s18
        %s181 = ssub.s32 17, %s180
        %p182 = scmp.lt.s32.totalorder %s181, 16
        %s183 = scalar_select %p182, %s181, 16
        %s184 = smul.u32 64, %s183
        %s185 = smul.u32 %s184, 5
        %p186 = scmp.lt.s32.totalorder %s17, 1
        %s187 = scalar_select %p186, %s17, 1
        %p188 = scmp.lt.s32.totalorder %s180, 16
        %s189 = scalar_select %p188, %s180, 16
        %s190 = smul.addr %s189, 5
        %s191 = smul.addr %s187, 85
        %s192 = sadd.s32 %s190, %s191
        %s193 = smul.addr %s192, 4
        %s194 = scalar_lea.vmem %s0, %s193
        %s195 = smul.u32 16, %s18
        %s196 = ssub.s32 17, %s195
        %p197 = scmp.lt.s32.totalorder %s196, 16
        %s198 = scalar_select %p197, %s196, 16
        %s199 = smul.u32 64, %s198
        %s200 = smul.u32 %s199, 5
      $region28: #{discriminator_forward.5} parent=23 // pred_fallthru
        _
      // Predicated region
      $region29: #{discriminator_forward.5} parent=23 // pred_check
        %p201 = pneg %p76
      $region30: #{discriminator_forward.5} parent=23 // pred_check_branch
        %203 = sbr.rel (%p201) target = $region32
      $region31: #{discriminator_forward.5} parent=23 // pred_region
        %s204 = sadd.s32 %s18, 1
        %s205 = smul.u32 %s204, 16
        %p206 = scmp.lt.s32.totalorder %s17, 1
        %s207 = scalar_select %p206, %s17, 1
        %p208 = scmp.lt.s32.totalorder %s205, 16
        %s209 = scalar_select %p208, %s205, 16
        %s210 = smul.addr %s209, 5
        %s211 = smul.addr %s207, 85
        %s212 = sadd.s32 %s210, %s211
        %s213 = smul.addr %s212, 4
        %s214 = scalar_lea.vmem %s1, %s213
        %s215 = sadd.s32 %s18, 1
        %s216 = smul.u32 %s215, 16
      $region32: #{discriminator_forward.5} parent=23 // pred_fallthru
        _
    $region24: #{discriminator_forward.5} parent=5 // pred_fallthru
      _
    %p217 = scmp.le.s32.totalorder 1, %s10
    %p218 = scmp.lt.s32.totalorder %s10, 3
    %p219 = pnand %p217, %p218
    %p220 = pneg %p219
    // Predicated region
    $region33: #{discriminator_forward.5} parent=5 // pred_check
      _
    $region34: #{discriminator_forward.5} parent=5 // pred_check_branch
      %222 = sbr.rel (%p219) target = $region36
    $region35: #{discriminator_forward.5} parent=5 // pred_region
      %s223 = ssub.s32 %s10, 1
      %s224 = smul.u32 16, %s20
      %s225 = ssub.s32 17, %s224
      %p226 = scmp.lt.s32.totalorder %s225, 16
      %s227 = scalar_select %p226, %s225, 16
      %s228 = smul.u32 64, %s227
      %s229 = smul.u32 %s228, 5
      %p230 = scmp.lt.s32.totalorder %s19, 1
      %s231 = scalar_select %p230, %s19, 1
      %p232 = scmp.lt.s32.totalorder %s224, 16
      %s233 = scalar_select %p232, %s224, 16
      %s234 = smul.addr %s233, 5
      %s235 = smul.addr %s231, 85
      %s236 = sadd.s32 %s234, %s235
      %s237 = smul.addr %s236, 4
      %s238 = scalar_lea.vmem %s0, %s237
      %p239 = pneg %p50
      %p240 = pneg %p47
      %s241 = sadd.s32 %s20, 1
      %s242 = smul.u32 %s241, 16
      %p243 = scmp.lt.s32.totalorder %s19, 1
      %s244 = scalar_select %p243, %s19, 1
      %p245 = scmp.lt.s32.totalorder %s242, 16
      %s246 = scalar_select %p245, %s242, 16
      %s247 = smul.addr %s246, 5
      %s248 = smul.addr %s244, 85
      %s249 = sadd.s32 %s247, %s248
      %s250 = smul.addr %s249, 4
      %s251 = scalar_lea.vmem %s1, %s250
      %p252 = pneg %p82
      %p253 = pneg %p79
      %p254 = pneg %p103
      %p255 = pneg %p100
      %p256 = pneg %p124
      %p257 = pneg %p121
      %p258 = pneg %p152
      %p259 = pneg %p149
      %s260 = smul.u32 32, %s20
      %p261 = scmp.lt.s32.totalorder %s19, 1
      %s262 = scalar_select %p261, %s19, 1
      %p263 = scmp.lt.s32.totalorder %s260, 31
      %s264 = scalar_select %p263, %s260, 31
      %s265 = smul.addr %s262, 32
      %s266 = sadd.s32 %s264, %s265
      %s267 = smul.addr %s266, 4
      %s268 = scalar_lea.vmem %s4, %s267
      %s269 = smul.u32 16, %s20
      %s270 = ssub.s32 17, %s269
      %p271 = scmp.lt.s32.totalorder %s270, 16
      %s272 = scalar_select %p271, %s270, 16
      %s273 = smul.u32 64, %s272
      %s274 = smul.u32 %s273, 5
      %p275 = scmp.lt.s32.totalorder %s19, 1
      %s276 = scalar_select %p275, %s19, 1
      %p277 = scmp.lt.s32.totalorder %s269, 16
      %s278 = scalar_select %p277, %s269, 16
      %s279 = smul.addr %s278, 5
      %s280 = smul.addr %s276, 85
      %s281 = sadd.s32 %s279, %s280
      %s282 = smul.addr %s281, 4
      %s283 = scalar_lea.vmem %s0, %s282
      %s284 = smul.u32 16, %s20
      %s285 = ssub.s32 17, %s284
      %p286 = scmp.lt.s32.totalorder %s285, 16
      %s287 = scalar_select %p286, %s285, 16
      %s288 = smul.u32 64, %s287
      %s289 = smul.u32 %s288, 5
      %s290 = sadd.s32 %s20, 1
      %s291 = smul.u32 %s290, 16
      %p292 = scmp.lt.s32.totalorder %s19, 1
      %s293 = scalar_select %p292, %s19, 1
      %p294 = scmp.lt.s32.totalorder %s291, 16
      %s295 = scalar_select %p294, %s291, 16
      %s296 = smul.addr %s295, 5
      %s297 = smul.addr %s293, 85
      %s298 = sadd.s32 %s296, %s297
      %s299 = smul.addr %s298, 4
      %s300 = scalar_lea.vmem %s1, %s299
      %s301 = sadd.s32 %s20, 1
      %s302 = smul.u32 %s301, 16
      %s303 = smul.u32 32, %s20
      %p304 = scmp.lt.s32.totalorder %s19, 1
      %s305 = scalar_select %p304, %s19, 1
      %p306 = scmp.lt.s32.totalorder %s303, 31
      %s307 = scalar_select %p306, %s303, 31
      %s308 = smul.addr %s305, 32
      %s309 = sadd.s32 %s307, %s308
      %s310 = smul.addr %s309, 4
      %s311 = scalar_lea.vmem %s4, %s310
      %s312 = smul.u32 32, %s20
      %v314 = vld [vmem:[%s283] sm:$0xf]
      %v315 = vld [vmem:[%s283 + $0x4] sm:$0xf]
      %v316 = vld [vmem:[%s283 + $0x8] sm:$0xf]
      %v317 = vld [vmem:[%s283 + $0xc] sm:$0xf]
      %v318 = vld [vmem:[%s283 + $0x10] sm:$0x1]
      %v319 = vld [vmem:[%s283 + $0x14] sm:$0xf]
      %v320 = vld [vmem:[%s283 + $0x18] sm:$0xf]
      %v321 = vld [vmem:[%s283 + $0x1c] sm:$0xf]
      %v322 = vld [vmem:[%s283 + $0x20] sm:$0xf]
      %v323 = vld [vmem:[%s283 + $0x24] sm:$0x1]
      %v324 = vld [vmem:[%s283 + $0x28] sm:$0xf]
      %v325 = vld [vmem:[%s283 + $0x2c] sm:$0xf]
      %v326 = vld [vmem:[%s283 + $0x30] sm:$0xf]
      %v327 = vld [vmem:[%s283 + $0x34] sm:$0xf]
      %v328 = vld [vmem:[%s283 + $0x38] sm:$0x1]
      %v329 = vld [vmem:[%s283 + $0x3c] sm:$0xf]
      %v330 = vld [vmem:[%s283 + $0x40] sm:$0xf]
      %v331 = vld [vmem:[%s283 + $0x44] sm:$0xf]
      %v332 = vld [vmem:[%s283 + $0x48] sm:$0xf]
      %v333 = vld [vmem:[%s283 + $0x4c] sm:$0x1]
      %v334 = vld [vmem:[%s283 + $0x50] sm:$0xf]
      %v335 = vld [vmem:[%s283 + $0x54] sm:$0xf]
      %v336 = vld [vmem:[%s283 + $0x58] sm:$0xf]
      %v337 = vld [vmem:[%s283 + $0x5c] sm:$0xf]
      %v338 = vld [vmem:[%s283 + $0x60] sm:$0x1]
      %v339 = vld [vmem:[%s283 + $0x64] sm:$0xf]
      %v340 = vld [vmem:[%s283 + $0x68] sm:$0xf]
      %v341 = vld [vmem:[%s283 + $0x6c] sm:$0xf]
      %v342 = vld [vmem:[%s283 + $0x70] sm:$0xf]
      %v343 = vld [vmem:[%s283 + $0x74] sm:$0x1]
      %v344 = vld [vmem:[%s283 + $0x78] sm:$0xf]
      %v345 = vld [vmem:[%s283 + $0x7c] sm:$0xf]
      %v346 = vld [vmem:[%s283 + $0x80] sm:$0xf]
      %v347 = vld [vmem:[%s283 + $0x84] sm:$0xf]
      %v348 = vld [vmem:[%s283 + $0x88] sm:$0x1]
      %v349 = vld [vmem:[%s283 + $0x8c] sm:$0xf]
      %v350 = vld [vmem:[%s283 + $0x90] sm:$0xf]
      %v351 = vld [vmem:[%s283 + $0x94] sm:$0xf]
      %v352 = vld [vmem:[%s283 + $0x98] sm:$0xf]
      %v353 = vld [vmem:[%s283 + $0x9c] sm:$0x1]
      %v354 = vld [vmem:[%s283 + $0xa0] sm:$0xf]
      %v355 = vld [vmem:[%s283 + $0xa4] sm:$0xf]
      %v356 = vld [vmem:[%s283 + $0xa8] sm:$0xf]
      %v357 = vld [vmem:[%s283 + $0xac] sm:$0xf]
      %v358 = vld [vmem:[%s283 + $0xb0] sm:$0x1]
      %v359 = vld [vmem:[%s283 + $0xb4] sm:$0xf]
      %v360 = vld [vmem:[%s283 + $0xb8] sm:$0xf]
      %v361 = vld [vmem:[%s283 + $0xbc] sm:$0xf]
      %v362 = vld [vmem:[%s283 + $0xc0] sm:$0xf]
      %v363 = vld [vmem:[%s283 + $0xc4] sm:$0x1]
      %v364 = vld [vmem:[%s283 + $0xc8] sm:$0xf]
      %v365 = vld [vmem:[%s283 + $0xcc] sm:$0xf]
      %v366 = vld [vmem:[%s283 + $0xd0] sm:$0xf]
      %v367 = vld [vmem:[%s283 + $0xd4] sm:$0xf]
      %v368 = vld [vmem:[%s283 + $0xd8] sm:$0x1]
      %v369 = vld [vmem:[%s283 + $0xdc] sm:$0xf]
      %v370 = vld [vmem:[%s283 + $0xe0] sm:$0xf]
      %v371 = vld [vmem:[%s283 + $0xe4] sm:$0xf]
      %v372 = vld [vmem:[%s283 + $0xe8] sm:$0xf]
      %v373 = vld [vmem:[%s283 + $0xec] sm:$0x1]
      %v374 = vld [vmem:[%s283 + $0xf0] sm:$0xf]
      %v375 = vld [vmem:[%s283 + $0xf4] sm:$0xf]
      %v376 = vld [vmem:[%s283 + $0xf8] sm:$0xf]
      %v377 = vld [vmem:[%s283 + $0xfc] sm:$0xf]
      %v378 = vld [vmem:[%s283 + $0x100] sm:$0x1]
      %v379 = vld [vmem:[%s283 + $0x104] sm:$0xf]
      %v380 = vld [vmem:[%s283 + $0x108] sm:$0xf]
      %v381 = vld [vmem:[%s283 + $0x10c] sm:$0xf]
      %v382 = vld [vmem:[%s283 + $0x110] sm:$0xf]
      %v383 = vld [vmem:[%s283 + $0x114] sm:$0x1]
      %v384 = vld [vmem:[%s283 + $0x118] sm:$0xf]
      %v385 = vld [vmem:[%s283 + $0x11c] sm:$0xf]
      %v386 = vld [vmem:[%s283 + $0x120] sm:$0xf]
      %v387 = vld [vmem:[%s283 + $0x124] sm:$0xf]
      %v388 = vld [vmem:[%s283 + $0x128] sm:$0x1]
      %v389 = vld [vmem:[%s283 + $0x12c] sm:$0xf]
      %v390 = vld [vmem:[%s283 + $0x130] sm:$0xf]
      %v391 = vld [vmem:[%s283 + $0x134] sm:$0xf]
      %v392 = vld [vmem:[%s283 + $0x138] sm:$0xf]
      %v393 = vld [vmem:[%s283 + $0x13c] sm:$0x1]
      %v394 = vld [vmem:[%s300] sm:$0xf]
      %v395 = vld [vmem:[%s300 + $0x4] sm:$0xf]
      %v396 = vld [vmem:[%s300 + $0x8] sm:$0xf]
      %v397 = vld [vmem:[%s300 + $0xc] sm:$0xf]
      %v398 = vld [vmem:[%s300 + $0x10] sm:$0x1]
      %v431 = vunpack.c.l.b16 %v314
      %v432 = vunpack.c.l.b16 %v315
      %v433 = vunpack.c.l.b16 %v319
      %v434 = vunpack.c.l.b16 %v320
      %v435 = vunpack.c.l.b16 %v324
      %v436 = vunpack.c.l.b16 %v325
      %v437 = vunpack.c.l.b16 %v329
      %v438 = vunpack.c.l.b16 %v330
      %v439 = vunpack.c.l.b16 %v334
      %v440 = vunpack.c.l.b16 %v335
      %v441 = vunpack.c.l.b16 %v339
      %v442 = vunpack.c.l.b16 %v340
      %v443 = vunpack.c.l.b16 %v344
      %v444 = vunpack.c.l.b16 %v345
      %v445 = vunpack.c.l.b16 %v349
      %v446 = vunpack.c.l.b16 %v350
      %v447 = vunpack.c.l.b16 %v354
      %v448 = vunpack.c.l.b16 %v355
      %v449 = vunpack.c.l.b16 %v359
      %v450 = vunpack.c.l.b16 %v360
      %v451 = vunpack.c.l.b16 %v364
      %v452 = vunpack.c.l.b16 %v365
      %v453 = vunpack.c.l.b16 %v369
      %v454 = vunpack.c.l.b16 %v370
      %v455 = vunpack.c.l.b16 %v374
      %v456 = vunpack.c.l.b16 %v375
      %v457 = vunpack.c.l.b16 %v379
      %v458 = vunpack.c.l.b16 %v380
      %v459 = vunpack.c.l.b16 %v384
      %v460 = vunpack.c.l.b16 %v385
      %v461 = vunpack.c.l.b16 %v389
      %v462 = vunpack.c.l.b16 %v390
      %v463 = vpack.c.b16 %v432, %v431
      %v464 = vpack.c.b16 %v434, %v433
      %v465 = vpack.c.b16 %v436, %v435
      %v466 = vpack.c.b16 %v438, %v437
      %v467 = vpack.c.b16 %v440, %v439
      %v468 = vpack.c.b16 %v442, %v441
      %v469 = vpack.c.b16 %v444, %v443
      %v470 = vpack.c.b16 %v446, %v445
      %v471 = vpack.c.b16 %v448, %v447
      %v472 = vpack.c.b16 %v450, %v449
      %v473 = vpack.c.b16 %v452, %v451
      %v474 = vpack.c.b16 %v454, %v453
      %v475 = vpack.c.b16 %v456, %v455
      %v476 = vpack.c.b16 %v458, %v457
      %v477 = vpack.c.b16 %v460, %v459
      %v478 = vpack.c.b16 %v462, %v461
      %v495 = vunpack.c.l.b16 %v316
      %v496 = vunpack.c.l.b16 %v321
      %v497 = vunpack.c.l.b16 %v326
      %v498 = vunpack.c.l.b16 %v331
      %v499 = vunpack.c.l.b16 %v336
      %v500 = vunpack.c.l.b16 %v341
      %v501 = vunpack.c.l.b16 %v346
      %v502 = vunpack.c.l.b16 %v351
      %v503 = vunpack.c.l.b16 %v356
      %v504 = vunpack.c.l.b16 %v361
      %v505 = vunpack.c.l.b16 %v366
      %v506 = vunpack.c.l.b16 %v371
      %v507 = vunpack.c.l.b16 %v376
      %v508 = vunpack.c.l.b16 %v381
      %v509 = vunpack.c.l.b16 %v386
      %v510 = vunpack.c.l.b16 %v391
      %v511 = vpack.c.b16 %v495, %v495
      %v512 = vpack.c.b16 %v496, %v496
      %v513 = vpack.c.b16 %v497, %v497
      %v514 = vpack.c.b16 %v498, %v498
      %v515 = vpack.c.b16 %v499, %v499
      %v516 = vpack.c.b16 %v500, %v500
      %v517 = vpack.c.b16 %v501, %v501
      %v518 = vpack.c.b16 %v502, %v502
      %v519 = vpack.c.b16 %v503, %v503
      %v520 = vpack.c.b16 %v504, %v504
      %v521 = vpack.c.b16 %v505, %v505
      %v522 = vpack.c.b16 %v506, %v506
      %v523 = vpack.c.b16 %v507, %v507
      %v524 = vpack.c.b16 %v508, %v508
      %v525 = vpack.c.b16 %v509, %v509
      %v526 = vpack.c.b16 %v510, %v510
      %vm527 = vsmask.f32 7424
      %v529 = vshrl.u32 %v463, 16
      %v531 = vshll.u32 %v463, 16
      %v533 = vrot.slane %v531, 1
      %v534 = vor.u32 %v529, %v533
      %v536 = vshll.u32 %v511, 16
      %v538 = vrot.slane %v536, 1
      %v539 = vsel %vm527, %v534, %v538
      %v541 = vshrl.u32 %v464, 16
      %v543 = vshll.u32 %v464, 16
      %v545 = vrot.slane %v543, 1
      %v546 = vor.u32 %v541, %v545
      %v548 = vshll.u32 %v512, 16
      %v550 = vrot.slane %v548, 1
      %v551 = vsel %vm527, %v546, %v550
      %v553 = vshrl.u32 %v465, 16
      %v555 = vshll.u32 %v465, 16
      %v557 = vrot.slane %v555, 1
      %v558 = vor.u32 %v553, %v557
      %v560 = vshll.u32 %v513, 16
      %v562 = vrot.slane %v560, 1
      %v563 = vsel %vm527, %v558, %v562
      %v565 = vshrl.u32 %v466, 16
      %v567 = vshll.u32 %v466, 16
      %v569 = vrot.slane %v567, 1
      %v570 = vor.u32 %v565, %v569
      %v572 = vshll.u32 %v514, 16
      %v574 = vrot.slane %v572, 1
      %v575 = vsel %vm527, %v570, %v574
      %v577 = vshrl.u32 %v467, 16
      %v579 = vshll.u32 %v467, 16
      %v581 = vrot.slane %v579, 1
      %v582 = vor.u32 %v577, %v581
      %v584 = vshll.u32 %v515, 16
      %v586 = vrot.slane %v584, 1
      %v587 = vsel %vm527, %v582, %v586
      %v589 = vshrl.u32 %v468, 16
      %v591 = vshll.u32 %v468, 16
      %v593 = vrot.slane %v591, 1
      %v594 = vor.u32 %v589, %v593
      %v596 = vshll.u32 %v516, 16
      %v598 = vrot.slane %v596, 1
      %v599 = vsel %vm527, %v594, %v598
      %v601 = vshrl.u32 %v469, 16
      %v603 = vshll.u32 %v469, 16
      %v605 = vrot.slane %v603, 1
      %v606 = vor.u32 %v601, %v605
      %v608 = vshll.u32 %v517, 16
      %v610 = vrot.slane %v608, 1
      %v611 = vsel %vm527, %v606, %v610
      %v613 = vshrl.u32 %v470, 16
      %v615 = vshll.u32 %v470, 16
      %v617 = vrot.slane %v615, 1
      %v618 = vor.u32 %v613, %v617
      %v620 = vshll.u32 %v518, 16
      %v622 = vrot.slane %v620, 1
      %v623 = vsel %vm527, %v618, %v622
      %v625 = vshrl.u32 %v471, 16
      %v627 = vshll.u32 %v471, 16
      %v629 = vrot.slane %v627, 1
      %v630 = vor.u32 %v625, %v629
      %v632 = vshll.u32 %v519, 16
      %v634 = vrot.slane %v632, 1
      %v635 = vsel %vm527, %v630, %v634
      %v637 = vshrl.u32 %v472, 16
      %v639 = vshll.u32 %v472, 16
      %v641 = vrot.slane %v639, 1
      %v642 = vor.u32 %v637, %v641
      %v644 = vshll.u32 %v520, 16
      %v646 = vrot.slane %v644, 1
      %v647 = vsel %vm527, %v642, %v646
      %v649 = vshrl.u32 %v473, 16
      %v651 = vshll.u32 %v473, 16
      %v653 = vrot.slane %v651, 1
      %v654 = vor.u32 %v649, %v653
      %v656 = vshll.u32 %v521, 16
      %v658 = vrot.slane %v656, 1
      %v659 = vsel %vm527, %v654, %v658
      %v661 = vshrl.u32 %v474, 16
      %v663 = vshll.u32 %v474, 16
      %v665 = vrot.slane %v663, 1
      %v666 = vor.u32 %v661, %v665
      %v668 = vshll.u32 %v522, 16
      %v670 = vrot.slane %v668, 1
      %v671 = vsel %vm527, %v666, %v670
      %v673 = vshrl.u32 %v475, 16
      %v675 = vshll.u32 %v475, 16
      %v677 = vrot.slane %v675, 1
      %v678 = vor.u32 %v673, %v677
      %v680 = vshll.u32 %v523, 16
      %v682 = vrot.slane %v680, 1
      %v683 = vsel %vm527, %v678, %v682
      %v685 = vshrl.u32 %v476, 16
      %v687 = vshll.u32 %v476, 16
      %v689 = vrot.slane %v687, 1
      %v690 = vor.u32 %v685, %v689
      %v692 = vshll.u32 %v524, 16
      %v694 = vrot.slane %v692, 1
      %v695 = vsel %vm527, %v690, %v694
      %v697 = vshrl.u32 %v477, 16
      %v699 = vshll.u32 %v477, 16
      %v701 = vrot.slane %v699, 1
      %v702 = vor.u32 %v697, %v701
      %v704 = vshll.u32 %v525, 16
      %v706 = vrot.slane %v704, 1
      %v707 = vsel %vm527, %v702, %v706
      %v709 = vshrl.u32 %v478, 16
      %v711 = vshll.u32 %v478, 16
      %v713 = vrot.slane %v711, 1
      %v714 = vor.u32 %v709, %v713
      %v716 = vshll.u32 %v526, 16
      %v718 = vrot.slane %v716, 1
      %v719 = vsel %vm527, %v714, %v718
      %720 = vrot.lane.b32.xlu0 %v539, 8
      %v721 = vpop.permute.xlu0 %720
      %722 = vrot.lane.b32.xlu0 %v551, 8
      %v723 = vpop.permute.xlu0 %722
      %724 = vrot.lane.b32.xlu0 %v563, 8
      %v725 = vpop.permute.xlu0 %724
      %726 = vrot.lane.b32.xlu0 %v575, 8
      %v727 = vpop.permute.xlu0 %726
      %728 = vrot.lane.b32.xlu0 %v587, 8
      %v729 = vpop.permute.xlu0 %728
      %730 = vrot.lane.b32.xlu0 %v599, 8
      %v731 = vpop.permute.xlu0 %730
      %732 = vrot.lane.b32.xlu0 %v611, 8
      %v733 = vpop.permute.xlu0 %732
      %734 = vrot.lane.b32.xlu0 %v623, 8
      %v735 = vpop.permute.xlu0 %734
      %736 = vrot.lane.b32.xlu0 %v635, 8
      %v737 = vpop.permute.xlu0 %736
      %738 = vrot.lane.b32.xlu0 %v647, 8
      %v739 = vpop.permute.xlu0 %738
      %740 = vrot.lane.b32.xlu0 %v659, 8
      %v741 = vpop.permute.xlu0 %740
      %742 = vrot.lane.b32.xlu0 %v671, 8
      %v743 = vpop.permute.xlu0 %742
      %744 = vrot.lane.b32.xlu0 %v683, 8
      %v745 = vpop.permute.xlu0 %744
      %746 = vrot.lane.b32.xlu0 %v695, 8
      %v747 = vpop.permute.xlu0 %746
      %748 = vrot.lane.b32.xlu0 %v707, 8
      %v749 = vpop.permute.xlu0 %748
      %750 = vrot.lane.b32.xlu0 %v719, 8
      %v751 = vpop.permute.xlu0 %750
      %v784 = vunpack.c.l.b16 %v317
      %v785 = vunpack.c.l.b16 %v318
      %v786 = vunpack.c.l.b16 %v322
      %v787 = vunpack.c.l.b16 %v323
      %v788 = vunpack.c.l.b16 %v327
      %v789 = vunpack.c.l.b16 %v328
      %v790 = vunpack.c.l.b16 %v332
      %v791 = vunpack.c.l.b16 %v333
      %v792 = vunpack.c.l.b16 %v337
      %v793 = vunpack.c.l.b16 %v338
      %v794 = vunpack.c.l.b16 %v342
      %v795 = vunpack.c.l.b16 %v343
      %v796 = vunpack.c.l.b16 %v347
      %v797 = vunpack.c.l.b16 %v348
      %v798 = vunpack.c.l.b16 %v352
      %v799 = vunpack.c.l.b16 %v353
      %v800 = vunpack.c.l.b16 %v357
      %v801 = vunpack.c.l.b16 %v358
      %v802 = vunpack.c.l.b16 %v362
      %v803 = vunpack.c.l.b16 %v363
      %v804 = vunpack.c.l.b16 %v367
      %v805 = vunpack.c.l.b16 %v368
      %v806 = vunpack.c.l.b16 %v372
      %v807 = vunpack.c.l.b16 %v373
      %v808 = vunpack.c.l.b16 %v377
      %v809 = vunpack.c.l.b16 %v378
      %v810 = vunpack.c.l.b16 %v382
      %v811 = vunpack.c.l.b16 %v383
      %v812 = vunpack.c.l.b16 %v387
      %v813 = vunpack.c.l.b16 %v388
      %v814 = vunpack.c.l.b16 %v392
      %v815 = vunpack.c.l.b16 %v393
      %v816 = vpack.c.b16 %v784, %v495
      %v817 = vpack.c.b16 %v785, %v785
      %v818 = vpack.c.b16 %v786, %v496
      %v819 = vpack.c.b16 %v787, %v787
      %v820 = vpack.c.b16 %v788, %v497
      %v821 = vpack.c.b16 %v789, %v789
      %v822 = vpack.c.b16 %v790, %v498
      %v823 = vpack.c.b16 %v791, %v791
      %v824 = vpack.c.b16 %v792, %v499
      %v825 = vpack.c.b16 %v793, %v793
      %v826 = vpack.c.b16 %v794, %v500
      %v827 = vpack.c.b16 %v795, %v795
      %v828 = vpack.c.b16 %v796, %v501
      %v829 = vpack.c.b16 %v797, %v797
      %v830 = vpack.c.b16 %v798, %v502
      %v831 = vpack.c.b16 %v799, %v799
      %v832 = vpack.c.b16 %v800, %v503
      %v833 = vpack.c.b16 %v801, %v801
      %v834 = vpack.c.b16 %v802, %v504
      %v835 = vpack.c.b16 %v803, %v803
      %v836 = vpack.c.b16 %v804, %v505
      %v837 = vpack.c.b16 %v805, %v805
      %v838 = vpack.c.b16 %v806, %v506
      %v839 = vpack.c.b16 %v807, %v807
      %v840 = vpack.c.b16 %v808, %v507
      %v841 = vpack.c.b16 %v809, %v809
      %v842 = vpack.c.b16 %v810, %v508
      %v843 = vpack.c.b16 %v811, %v811
      %v844 = vpack.c.b16 %v812, %v509
      %v845 = vpack.c.b16 %v813, %v813
      %v846 = vpack.c.b16 %v814, %v510
      %v847 = vpack.c.b16 %v815, %v815
      %v849 = vshrl.u32 %v816, 16
      %v851 = vshll.u32 %v816, 16
      %v853 = vrot.slane %v851, 1
      %v854 = vor.u32 %v849, %v853
      %v856 = vshll.u32 %v817, 16
      %v858 = vrot.slane %v856, 1
      %v859 = vsel %vm527, %v854, %v858
      %v861 = vshrl.u32 %v818, 16
      %v863 = vshll.u32 %v818, 16
      %v865 = vrot.slane %v863, 1
      %v866 = vor.u32 %v861, %v865
      %v868 = vshll.u32 %v819, 16
      %v870 = vrot.slane %v868, 1
      %v871 = vsel %vm527, %v866, %v870
      %v873 = vshrl.u32 %v820, 16
      %v875 = vshll.u32 %v820, 16
      %v877 = vrot.slane %v875, 1
      %v878 = vor.u32 %v873, %v877
      %v880 = vshll.u32 %v821, 16
      %v882 = vrot.slane %v880, 1
      %v883 = vsel %vm527, %v878, %v882
      %v885 = vshrl.u32 %v822, 16
      %v887 = vshll.u32 %v822, 16
      %v889 = vrot.slane %v887, 1
      %v890 = vor.u32 %v885, %v889
      %v892 = vshll.u32 %v823, 16
      %v894 = vrot.slane %v892, 1
      %v895 = vsel %vm527, %v890, %v894
      %v897 = vshrl.u32 %v824, 16
      %v899 = vshll.u32 %v824, 16
      %v901 = vrot.slane %v899, 1
      %v902 = vor.u32 %v897, %v901
      %v904 = vshll.u32 %v825, 16
      %v906 = vrot.slane %v904, 1
      %v907 = vsel %vm527, %v902, %v906
      %v909 = vshrl.u32 %v826, 16
      %v911 = vshll.u32 %v826, 16
      %v913 = vrot.slane %v911, 1
      %v914 = vor.u32 %v909, %v913
      %v916 = vshll.u32 %v827, 16
      %v918 = vrot.slane %v916, 1
      %v919 = vsel %vm527, %v914, %v918
      %v921 = vshrl.u32 %v828, 16
      %v923 = vshll.u32 %v828, 16
      %v925 = vrot.slane %v923, 1
      %v926 = vor.u32 %v921, %v925
      %v928 = vshll.u32 %v829, 16
      %v930 = vrot.slane %v928, 1
      %v931 = vsel %vm527, %v926, %v930
      %v933 = vshrl.u32 %v830, 16
      %v935 = vshll.u32 %v830, 16
      %v937 = vrot.slane %v935, 1
      %v938 = vor.u32 %v933, %v937
      %v940 = vshll.u32 %v831, 16
      %v942 = vrot.slane %v940, 1
      %v943 = vsel %vm527, %v938, %v942
      %v945 = vshrl.u32 %v832, 16
      %v947 = vshll.u32 %v832, 16
      %v949 = vrot.slane %v947, 1
      %v950 = vor.u32 %v945, %v949
      %v952 = vshll.u32 %v833, 16
      %v954 = vrot.slane %v952, 1
      %v955 = vsel %vm527, %v950, %v954
      %v957 = vshrl.u32 %v834, 16
      %v959 = vshll.u32 %v834, 16
      %v961 = vrot.slane %v959, 1
      %v962 = vor.u32 %v957, %v961
      %v964 = vshll.u32 %v835, 16
      %v966 = vrot.slane %v964, 1
      %v967 = vsel %vm527, %v962, %v966
      %v969 = vshrl.u32 %v836, 16
      %v971 = vshll.u32 %v836, 16
      %v973 = vrot.slane %v971, 1
      %v974 = vor.u32 %v969, %v973
      %v976 = vshll.u32 %v837, 16
      %v978 = vrot.slane %v976, 1
      %v979 = vsel %vm527, %v974, %v978
      %v981 = vshrl.u32 %v838, 16
      %v983 = vshll.u32 %v838, 16
      %v985 = vrot.slane %v983, 1
      %v986 = vor.u32 %v981, %v985
      %v988 = vshll.u32 %v839, 16
      %v990 = vrot.slane %v988, 1
      %v991 = vsel %vm527, %v986, %v990
      %v993 = vshrl.u32 %v840, 16
      %v995 = vshll.u32 %v840, 16
      %v997 = vrot.slane %v995, 1
      %v998 = vor.u32 %v993, %v997
      %v1000 = vshll.u32 %v841, 16
      %v1002 = vrot.slane %v1000, 1
      %v1003 = vsel %vm527, %v998, %v1002
      %v1005 = vshrl.u32 %v842, 16
      %v1007 = vshll.u32 %v842, 16
      %v1009 = vrot.slane %v1007, 1
      %v1010 = vor.u32 %v1005, %v1009
      %v1012 = vshll.u32 %v843, 16
      %v1014 = vrot.slane %v1012, 1
      %v1015 = vsel %vm527, %v1010, %v1014
      %v1017 = vshrl.u32 %v844, 16
      %v1019 = vshll.u32 %v844, 16
      %v1021 = vrot.slane %v1019, 1
      %v1022 = vor.u32 %v1017, %v1021
      %v1024 = vshll.u32 %v845, 16
      %v1026 = vrot.slane %v1024, 1
      %v1027 = vsel %vm527, %v1022, %v1026
      %v1029 = vshrl.u32 %v846, 16
      %v1031 = vshll.u32 %v846, 16
      %v1033 = vrot.slane %v1031, 1
      %v1034 = vor.u32 %v1029, %v1033
      %v1036 = vshll.u32 %v847, 16
      %v1038 = vrot.slane %v1036, 1
      %v1039 = vsel %vm527, %v1034, %v1038
      %1040 = vrot.lane.b32.xlu0 %v859, 16
      %v1041 = vpop.permute.xlu0 %1040
      %1042 = vrot.lane.b32.xlu0 %v871, 16
      %v1043 = vpop.permute.xlu0 %1042
      %1044 = vrot.lane.b32.xlu0 %v883, 16
      %v1045 = vpop.permute.xlu0 %1044
      %1046 = vrot.lane.b32.xlu0 %v895, 16
      %v1047 = vpop.permute.xlu0 %1046
      %1048 = vrot.lane.b32.xlu0 %v907, 16
      %v1049 = vpop.permute.xlu0 %1048
      %1050 = vrot.lane.b32.xlu0 %v919, 16
      %v1051 = vpop.permute.xlu0 %1050
      %1052 = vrot.lane.b32.xlu0 %v931, 16
      %v1053 = vpop.permute.xlu0 %1052
      %1054 = vrot.lane.b32.xlu0 %v943, 16
      %v1055 = vpop.permute.xlu0 %1054
      %1056 = vrot.lane.b32.xlu0 %v955, 16
      %v1057 = vpop.permute.xlu0 %1056
      %1058 = vrot.lane.b32.xlu0 %v967, 16
      %v1059 = vpop.permute.xlu0 %1058
      %1060 = vrot.lane.b32.xlu0 %v979, 16
      %v1061 = vpop.permute.xlu0 %1060
      %1062 = vrot.lane.b32.xlu0 %v991, 16
      %v1063 = vpop.permute.xlu0 %1062
      %1064 = vrot.lane.b32.xlu0 %v1003, 16
      %v1065 = vpop.permute.xlu0 %1064
      %1066 = vrot.lane.b32.xlu0 %v1015, 16
      %v1067 = vpop.permute.xlu0 %1066
      %1068 = vrot.lane.b32.xlu0 %v1027, 16
      %v1069 = vpop.permute.xlu0 %1068
      %1070 = vrot.lane.b32.xlu0 %v1039, 16
      %v1071 = vpop.permute.xlu0 %1070
      %vm1072 = vcmask 1046528
      %v1073 = vrot.slane %v816, 1
      %v1074 = vrot.slane %v817, 1
      %v1075 = vsel %vm1072, %v1073, %v1074
      %v1076 = vrot.slane %v818, 1
      %v1077 = vrot.slane %v819, 1
      %v1078 = vsel %vm1072, %v1076, %v1077
      %v1079 = vrot.slane %v820, 1
      %v1080 = vrot.slane %v821, 1
      %v1081 = vsel %vm1072, %v1079, %v1080
      %v1082 = vrot.slane %v822, 1
      %v1083 = vrot.slane %v823, 1
      %v1084 = vsel %vm1072, %v1082, %v1083
      %v1085 = vrot.slane %v824, 1
      %v1086 = vrot.slane %v825, 1
      %v1087 = vsel %vm1072, %v1085, %v1086
      %v1088 = vrot.slane %v826, 1
      %v1089 = vrot.slane %v827, 1
      %v1090 = vsel %vm1072, %v1088, %v1089
      %v1091 = vrot.slane %v828, 1
      %v1092 = vrot.slane %v829, 1
      %v1093 = vsel %vm1072, %v1091, %v1092
      %v1094 = vrot.slane %v830, 1
      %v1095 = vrot.slane %v831, 1
      %v1096 = vsel %vm1072, %v1094, %v1095
      %v1097 = vrot.slane %v832, 1
      %v1098 = vrot.slane %v833, 1
      %v1099 = vsel %vm1072, %v1097, %v1098
      %v1100 = vrot.slane %v834, 1
      %v1101 = vrot.slane %v835, 1
      %v1102 = vsel %vm1072, %v1100, %v1101
      %v1103 = vrot.slane %v836, 1
      %v1104 = vrot.slane %v837, 1
      %v1105 = vsel %vm1072, %v1103, %v1104
      %v1106 = vrot.slane %v838, 1
      %v1107 = vrot.slane %v839, 1
      %v1108 = vsel %vm1072, %v1106, %v1107
      %v1109 = vrot.slane %v840, 1
      %v1110 = vrot.slane %v841, 1
      %v1111 = vsel %vm1072, %v1109, %v1110
      %v1112 = vrot.slane %v842, 1
      %v1113 = vrot.slane %v843, 1
      %v1114 = vsel %vm1072, %v1112, %v1113
      %v1115 = vrot.slane %v844, 1
      %v1116 = vrot.slane %v845, 1
      %v1117 = vsel %vm1072, %v1115, %v1116
      %v1118 = vrot.slane %v846, 1
      %v1119 = vrot.slane %v847, 1
      %v1120 = vsel %vm1072, %v1118, %v1119
      %1121 = vrot.lane.b32.xlu0 %v1075, 24
      %v1122 = vpop.permute.xlu0 %1121
      %1123 = vrot.lane.b32.xlu0 %v1078, 24
      %v1124 = vpop.permute.xlu0 %1123
      %1125 = vrot.lane.b32.xlu0 %v1081, 24
      %v1126 = vpop.permute.xlu0 %1125
      %1127 = vrot.lane.b32.xlu0 %v1084, 24
      %v1128 = vpop.permute.xlu0 %1127
      %1129 = vrot.lane.b32.xlu0 %v1087, 24
      %v1130 = vpop.permute.xlu0 %1129
      %1131 = vrot.lane.b32.xlu0 %v1090, 24
      %v1132 = vpop.permute.xlu0 %1131
      %1133 = vrot.lane.b32.xlu0 %v1093, 24
      %v1134 = vpop.permute.xlu0 %1133
      %1135 = vrot.lane.b32.xlu0 %v1096, 24
      %v1136 = vpop.permute.xlu0 %1135
      %1137 = vrot.lane.b32.xlu0 %v1099, 24
      %v1138 = vpop.permute.xlu0 %1137
      %1139 = vrot.lane.b32.xlu0 %v1102, 24
      %v1140 = vpop.permute.xlu0 %1139
      %1141 = vrot.lane.b32.xlu0 %v1105, 24
      %v1142 = vpop.permute.xlu0 %1141
      %1143 = vrot.lane.b32.xlu0 %v1108, 24
      %v1144 = vpop.permute.xlu0 %1143
      %1145 = vrot.lane.b32.xlu0 %v1111, 24
      %v1146 = vpop.permute.xlu0 %1145
      %1147 = vrot.lane.b32.xlu0 %v1114, 24
      %v1148 = vpop.permute.xlu0 %1147
      %1149 = vrot.lane.b32.xlu0 %v1117, 24
      %v1150 = vpop.permute.xlu0 %1149
      %1151 = vrot.lane.b32.xlu0 %v1120, 24
      %v1152 = vpop.permute.xlu0 %1151
      %v1155 = vunpack.c.l.b16 %v394
      %v1156 = vunpack.c.l.b16 %v395
      %v1157 = vpack.c.b16 %v1156, %v1155
      %1158 = vrot.lane.b32.xlu0 %v464, 32
      %v1159 = vpop.permute.xlu0 %1158
      %1160 = vrot.lane.b32.xlu0 %v465, 32
      %v1161 = vpop.permute.xlu0 %1160
      %1162 = vrot.lane.b32.xlu0 %v466, 32
      %v1163 = vpop.permute.xlu0 %1162
      %1164 = vrot.lane.b32.xlu0 %v467, 32
      %v1165 = vpop.permute.xlu0 %1164
      %1166 = vrot.lane.b32.xlu0 %v468, 32
      %v1167 = vpop.permute.xlu0 %1166
      %1168 = vrot.lane.b32.xlu0 %v469, 32
      %v1169 = vpop.permute.xlu0 %1168
      %1170 = vrot.lane.b32.xlu0 %v470, 32
      %v1171 = vpop.permute.xlu0 %1170
      %1172 = vrot.lane.b32.xlu0 %v471, 32
      %v1173 = vpop.permute.xlu0 %1172
      %1174 = vrot.lane.b32.xlu0 %v472, 32
      %v1175 = vpop.permute.xlu0 %1174
      %1176 = vrot.lane.b32.xlu0 %v473, 32
      %v1177 = vpop.permute.xlu0 %1176
      %1178 = vrot.lane.b32.xlu0 %v474, 32
      %v1179 = vpop.permute.xlu0 %1178
      %1180 = vrot.lane.b32.xlu0 %v475, 32
      %v1181 = vpop.permute.xlu0 %1180
      %1182 = vrot.lane.b32.xlu0 %v476, 32
      %v1183 = vpop.permute.xlu0 %1182
      %1184 = vrot.lane.b32.xlu0 %v477, 32
      %v1185 = vpop.permute.xlu0 %1184
      %1186 = vrot.lane.b32.xlu0 %v478, 32
      %v1187 = vpop.permute.xlu0 %1186
      %1188 = vrot.lane.b32.xlu0 %v1157, 32
      %v1189 = vpop.permute.xlu0 %1188
      %v1191 = vunpack.c.l.b16 %v396
      %v1192 = vpack.c.b16 %v1191, %v1191
      %v1194 = vshrl.u32 %v1157, 16
      %v1196 = vshll.u32 %v1157, 16
      %v1198 = vrot.slane %v1196, 1
      %v1199 = vor.u32 %v1194, %v1198
      %v1201 = vshll.u32 %v1192, 16
      %v1203 = vrot.slane %v1201, 1
      %v1204 = vsel %vm527, %v1199, %v1203
      %1205 = vrot.lane.b32.xlu0 %v551, 40
      %v1206 = vpop.permute.xlu0 %1205
      %1207 = vrot.lane.b32.xlu0 %v563, 40
      %v1208 = vpop.permute.xlu0 %1207
      %1209 = vrot.lane.b32.xlu0 %v575, 40
      %v1210 = vpop.permute.xlu0 %1209
      %1211 = vrot.lane.b32.xlu0 %v587, 40
      %v1212 = vpop.permute.xlu0 %1211
      %1213 = vrot.lane.b32.xlu0 %v599, 40
      %v1214 = vpop.permute.xlu0 %1213
      %1215 = vrot.lane.b32.xlu0 %v611, 40
      %v1216 = vpop.permute.xlu0 %1215
      %1217 = vrot.lane.b32.xlu0 %v623, 40
      %v1218 = vpop.permute.xlu0 %1217
      %1219 = vrot.lane.b32.xlu0 %v635, 40
      %v1220 = vpop.permute.xlu0 %1219
      %1221 = vrot.lane.b32.xlu0 %v647, 40
      %v1222 = vpop.permute.xlu0 %1221
      %1223 = vrot.lane.b32.xlu0 %v659, 40
      %v1224 = vpop.permute.xlu0 %1223
      %1225 = vrot.lane.b32.xlu0 %v671, 40
      %v1226 = vpop.permute.xlu0 %1225
      %1227 = vrot.lane.b32.xlu0 %v683, 40
      %v1228 = vpop.permute.xlu0 %1227
      %1229 = vrot.lane.b32.xlu0 %v695, 40
      %v1230 = vpop.permute.xlu0 %1229
      %1231 = vrot.lane.b32.xlu0 %v707, 40
      %v1232 = vpop.permute.xlu0 %1231
      %1233 = vrot.lane.b32.xlu0 %v719, 40
      %v1234 = vpop.permute.xlu0 %1233
      %1235 = vrot.lane.b32.xlu0 %v1204, 40
      %v1236 = vpop.permute.xlu0 %1235
      %v1239 = vunpack.c.l.b16 %v397
      %v1240 = vunpack.c.l.b16 %v398
      %v1241 = vpack.c.b16 %v1239, %v1191
      %v1242 = vpack.c.b16 %v1240, %v1240
      %v1244 = vshrl.u32 %v1241, 16
      %v1246 = vshll.u32 %v1241, 16
      %v1248 = vrot.slane %v1246, 1
      %v1249 = vor.u32 %v1244, %v1248
      %v1251 = vshll.u32 %v1242, 16
      %v1253 = vrot.slane %v1251, 1
      %v1254 = vsel %vm527, %v1249, %v1253
      %1255 = vrot.lane.b32.xlu0 %v871, 48
      %v1256 = vpop.permute.xlu0 %1255
      %1257 = vrot.lane.b32.xlu0 %v883, 48
      %v1258 = vpop.permute.xlu0 %1257
      %1259 = vrot.lane.b32.xlu0 %v895, 48
      %v1260 = vpop.permute.xlu0 %1259
      %1261 = vrot.lane.b32.xlu0 %v907, 48
      %v1262 = vpop.permute.xlu0 %1261
      %1263 = vrot.lane.b32.xlu0 %v919, 48
      %v1264 = vpop.permute.xlu0 %1263
      %1265 = vrot.lane.b32.xlu0 %v931, 48
      %v1266 = vpop.permute.xlu0 %1265
      %1267 = vrot.lane.b32.xlu0 %v943, 48
      %v1268 = vpop.permute.xlu0 %1267
      %1269 = vrot.lane.b32.xlu0 %v955, 48
      %v1270 = vpop.permute.xlu0 %1269
      %1271 = vrot.lane.b32.xlu0 %v967, 48
      %v1272 = vpop.permute.xlu0 %1271
      %1273 = vrot.lane.b32.xlu0 %v979, 48
      %v1274 = vpop.permute.xlu0 %1273
      %1275 = vrot.lane.b32.xlu0 %v991, 48
      %v1276 = vpop.permute.xlu0 %1275
      %1277 = vrot.lane.b32.xlu0 %v1003, 48
      %v1278 = vpop.permute.xlu0 %1277
      %1279 = vrot.lane.b32.xlu0 %v1015, 48
      %v1280 = vpop.permute.xlu0 %1279
      %1281 = vrot.lane.b32.xlu0 %v1027, 48
      %v1282 = vpop.permute.xlu0 %1281
      %1283 = vrot.lane.b32.xlu0 %v1039, 48
      %v1284 = vpop.permute.xlu0 %1283
      %1285 = vrot.lane.b32.xlu0 %v1254, 48
      %v1286 = vpop.permute.xlu0 %1285
      %v1287 = vrot.slane %v1241, 1
      %v1288 = vrot.slane %v1242, 1
      %v1289 = vsel %vm1072, %v1287, %v1288
      %1290 = vrot.lane.b32.xlu0 %v1078, 56
      %v1291 = vpop.permute.xlu0 %1290
      %1292 = vrot.lane.b32.xlu0 %v1081, 56
      %v1293 = vpop.permute.xlu0 %1292
      %1294 = vrot.lane.b32.xlu0 %v1084, 56
      %v1295 = vpop.permute.xlu0 %1294
      %1296 = vrot.lane.b32.xlu0 %v1087, 56
      %v1297 = vpop.permute.xlu0 %1296
      %1298 = vrot.lane.b32.xlu0 %v1090, 56
      %v1299 = vpop.permute.xlu0 %1298
      %1300 = vrot.lane.b32.xlu0 %v1093, 56
      %v1301 = vpop.permute.xlu0 %1300
      %1302 = vrot.lane.b32.xlu0 %v1096, 56
      %v1303 = vpop.permute.xlu0 %1302
      %1304 = vrot.lane.b32.xlu0 %v1099, 56
      %v1305 = vpop.permute.xlu0 %1304
      %1306 = vrot.lane.b32.xlu0 %v1102, 56
      %v1307 = vpop.permute.xlu0 %1306
      %1308 = vrot.lane.b32.xlu0 %v1105, 56
      %v1309 = vpop.permute.xlu0 %1308
      %1310 = vrot.lane.b32.xlu0 %v1108, 56
      %v1311 = vpop.permute.xlu0 %1310
      %1312 = vrot.lane.b32.xlu0 %v1111, 56
      %v1313 = vpop.permute.xlu0 %1312
      %1314 = vrot.lane.b32.xlu0 %v1114, 56
      %v1315 = vpop.permute.xlu0 %1314
      %1316 = vrot.lane.b32.xlu0 %v1117, 56
      %v1317 = vpop.permute.xlu0 %1316
      %1318 = vrot.lane.b32.xlu0 %v1120, 56
      %v1319 = vpop.permute.xlu0 %1318
      %1320 = vrot.lane.b32.xlu0 %v1289, 56
      %v1321 = vpop.permute.xlu0 %1320
      %vm1322 = vcmask 64512
      %v1324 = vsel %vm1322, %v463, %v721
      %v1326 = vsel %vm1322, %v464, %v723
      %v1328 = vsel %vm1322, %v465, %v725
      %v1330 = vsel %vm1322, %v466, %v727
      %v1332 = vsel %vm1322, %v467, %v729
      %v1334 = vsel %vm1322, %v468, %v731
      %v1336 = vsel %vm1322, %v469, %v733
      %v1338 = vsel %vm1322, %v470, %v735
      %v1340 = vsel %vm1322, %v471, %v737
      %v1342 = vsel %vm1322, %v472, %v739
      %v1344 = vsel %vm1322, %v473, %v741
      %v1346 = vsel %vm1322, %v474, %v743
      %v1348 = vsel %vm1322, %v475, %v745
      %v1350 = vsel %vm1322, %v476, %v747
      %v1352 = vsel %vm1322, %v477, %v749
      %v1354 = vsel %vm1322, %v478, %v751
      %vm1355 = vcmask 97280
      %v1356 = vsel %vm1355, %v1324, %v721
      %v1357 = vsel %vm1355, %v1326, %v723
      %v1358 = vsel %vm1355, %v1328, %v725
      %v1359 = vsel %vm1355, %v1330, %v727
      %v1360 = vsel %vm1355, %v1332, %v729
      %v1361 = vsel %vm1355, %v1334, %v731
      %v1362 = vsel %vm1355, %v1336, %v733
      %v1363 = vsel %vm1355, %v1338, %v735
      %v1364 = vsel %vm1355, %v1340, %v737
      %v1365 = vsel %vm1355, %v1342, %v739
      %v1366 = vsel %vm1355, %v1344, %v741
      %v1367 = vsel %vm1355, %v1346, %v743
      %v1368 = vsel %vm1355, %v1348, %v745
      %v1369 = vsel %vm1355, %v1350, %v747
      %v1370 = vsel %vm1355, %v1352, %v749
      %v1371 = vsel %vm1355, %v1354, %v751
      %vm1372 = vcmask 130048
      %v1374 = vsel %vm1372, %v1356, %v1041
      %v1376 = vsel %vm1372, %v1357, %v1043
      %v1378 = vsel %vm1372, %v1358, %v1045
      %v1380 = vsel %vm1372, %v1359, %v1047
      %v1382 = vsel %vm1372, %v1360, %v1049
      %v1384 = vsel %vm1372, %v1361, %v1051
      %v1386 = vsel %vm1372, %v1362, %v1053
      %v1388 = vsel %vm1372, %v1363, %v1055
      %v1390 = vsel %vm1372, %v1364, %v1057
      %v1392 = vsel %vm1372, %v1365, %v1059
      %v1394 = vsel %vm1372, %v1366, %v1061
      %v1396 = vsel %vm1372, %v1367, %v1063
      %v1398 = vsel %vm1372, %v1368, %v1065
      %v1400 = vsel %vm1372, %v1369, %v1067
      %v1402 = vsel %vm1372, %v1370, %v1069
      %v1404 = vsel %vm1372, %v1371, %v1071
      %vm1405 = vcmask 162816
      %v1406 = vsel %vm1405, %v1374, %v1041
      %v1407 = vsel %vm1405, %v1376, %v1043
      %v1408 = vsel %vm1405, %v1378, %v1045
      %v1409 = vsel %vm1405, %v1380, %v1047
      %v1410 = vsel %vm1405, %v1382, %v1049
      %v1411 = vsel %vm1405, %v1384, %v1051
      %v1412 = vsel %vm1405, %v1386, %v1053
      %v1413 = vsel %vm1405, %v1388, %v1055
      %v1414 = vsel %vm1405, %v1390, %v1057
      %v1415 = vsel %vm1405, %v1392, %v1059
      %v1416 = vsel %vm1405, %v1394, %v1061
      %v1417 = vsel %vm1405, %v1396, %v1063
      %v1418 = vsel %vm1405, %v1398, %v1065
      %v1419 = vsel %vm1405, %v1400, %v1067
      %v1420 = vsel %vm1405, %v1402, %v1069
      %v1421 = vsel %vm1405, %v1404, %v1071
      %vm1422 = vcmask 195584
      %v1424 = vsel %vm1422, %v1406, %v1122
      %v1426 = vsel %vm1422, %v1407, %v1124
      %v1428 = vsel %vm1422, %v1408, %v1126
      %v1430 = vsel %vm1422, %v1409, %v1128
      %v1432 = vsel %vm1422, %v1410, %v1130
      %v1434 = vsel %vm1422, %v1411, %v1132
      %v1436 = vsel %vm1422, %v1412, %v1134
      %v1438 = vsel %vm1422, %v1413, %v1136
      %v1440 = vsel %vm1422, %v1414, %v1138
      %v1442 = vsel %vm1422, %v1415, %v1140
      %v1444 = vsel %vm1422, %v1416, %v1142
      %v1446 = vsel %vm1422, %v1417, %v1144
      %v1448 = vsel %vm1422, %v1418, %v1146
      %v1450 = vsel %vm1422, %v1419, %v1148
      %v1452 = vsel %vm1422, %v1420, %v1150
      %v1454 = vsel %vm1422, %v1421, %v1152
      %vm1455 = vcmask 228352
      %v1456 = vsel %vm1455, %v1424, %v1122
      %v1457 = vsel %vm1455, %v1426, %v1124
      %v1458 = vsel %vm1455, %v1428, %v1126
      %v1459 = vsel %vm1455, %v1430, %v1128
      %v1460 = vsel %vm1455, %v1432, %v1130
      %v1461 = vsel %vm1455, %v1434, %v1132
      %v1462 = vsel %vm1455, %v1436, %v1134
      %v1463 = vsel %vm1455, %v1438, %v1136
      %v1464 = vsel %vm1455, %v1440, %v1138
      %v1465 = vsel %vm1455, %v1442, %v1140
      %v1466 = vsel %vm1455, %v1444, %v1142
      %v1467 = vsel %vm1455, %v1446, %v1144
      %v1468 = vsel %vm1455, %v1448, %v1146
      %v1469 = vsel %vm1455, %v1450, %v1148
      %v1470 = vsel %vm1455, %v1452, %v1150
      %v1471 = vsel %vm1455, %v1454, %v1152
      %vm1472 = vcmask 261120
      %v1474 = vsel %vm1472, %v1456, %v1159
      %v1476 = vsel %vm1472, %v1457, %v1161
      %v1478 = vsel %vm1472, %v1458, %v1163
      %v1480 = vsel %vm1472, %v1459, %v1165
      %v1482 = vsel %vm1472, %v1460, %v1167
      %v1484 = vsel %vm1472, %v1461, %v1169
      %v1486 = vsel %vm1472, %v1462, %v1171
      %v1488 = vsel %vm1472, %v1463, %v1173
      %v1490 = vsel %vm1472, %v1464, %v1175
      %v1492 = vsel %vm1472, %v1465, %v1177
      %v1494 = vsel %vm1472, %v1466, %v1179
      %v1496 = vsel %vm1472, %v1467, %v1181
      %v1498 = vsel %vm1472, %v1468, %v1183
      %v1500 = vsel %vm1472, %v1469, %v1185
      %v1502 = vsel %vm1472, %v1470, %v1187
      %v1504 = vsel %vm1472, %v1471, %v1189
      %vm1505 = vcmask 293888
      %v1506 = vsel %vm1505, %v1474, %v1159
      %v1507 = vsel %vm1505, %v1476, %v1161
      %v1508 = vsel %vm1505, %v1478, %v1163
      %v1509 = vsel %vm1505, %v1480, %v1165
      %v1510 = vsel %vm1505, %v1482, %v1167
      %v1511 = vsel %vm1505, %v1484, %v1169
      %v1512 = vsel %vm1505, %v1486, %v1171
      %v1513 = vsel %vm1505, %v1488, %v1173
      %v1514 = vsel %vm1505, %v1490, %v1175
      %v1515 = vsel %vm1505, %v1492, %v1177
      %v1516 = vsel %vm1505, %v1494, %v1179
      %v1517 = vsel %vm1505, %v1496, %v1181
      %v1518 = vsel %vm1505, %v1498, %v1183
      %v1519 = vsel %vm1505, %v1500, %v1185
      %v1520 = vsel %vm1505, %v1502, %v1187
      %v1521 = vsel %vm1505, %v1504, %v1189
      %vm1522 = vcmask 326656
      %v1524 = vsel %vm1522, %v1506, %v1206
      %v1526 = vsel %vm1522, %v1507, %v1208
      %v1528 = vsel %vm1522, %v1508, %v1210
      %v1530 = vsel %vm1522, %v1509, %v1212
      %v1532 = vsel %vm1522, %v1510, %v1214
      %v1534 = vsel %vm1522, %v1511, %v1216
      %v1536 = vsel %vm1522, %v1512, %v1218
      %v1538 = vsel %vm1522, %v1513, %v1220
      %v1540 = vsel %vm1522, %v1514, %v1222
      %v1542 = vsel %vm1522, %v1515, %v1224
      %v1544 = vsel %vm1522, %v1516, %v1226
      %v1546 = vsel %vm1522, %v1517, %v1228
      %v1548 = vsel %vm1522, %v1518, %v1230
      %v1550 = vsel %vm1522, %v1519, %v1232
      %v1552 = vsel %vm1522, %v1520, %v1234
      %v1554 = vsel %vm1522, %v1521, %v1236
      %vm1555 = vcmask 359424
      %v1556 = vsel %vm1555, %v1524, %v1206
      %v1557 = vsel %vm1555, %v1526, %v1208
      %v1558 = vsel %vm1555, %v1528, %v1210
      %v1559 = vsel %vm1555, %v1530, %v1212
      %v1560 = vsel %vm1555, %v1532, %v1214
      %v1561 = vsel %vm1555, %v1534, %v1216
      %v1562 = vsel %vm1555, %v1536, %v1218
      %v1563 = vsel %vm1555, %v1538, %v1220
      %v1564 = vsel %vm1555, %v1540, %v1222
      %v1565 = vsel %vm1555, %v1542, %v1224
      %v1566 = vsel %vm1555, %v1544, %v1226
      %v1567 = vsel %vm1555, %v1546, %v1228
      %v1568 = vsel %vm1555, %v1548, %v1230
      %v1569 = vsel %vm1555, %v1550, %v1232
      %v1570 = vsel %vm1555, %v1552, %v1234
      %v1571 = vsel %vm1555, %v1554, %v1236
      %vm1572 = vcmask 392192
      %v1574 = vsel %vm1572, %v1556, %v1256
      %v1576 = vsel %vm1572, %v1557, %v1258
      %v1578 = vsel %vm1572, %v1558, %v1260
      %v1580 = vsel %vm1572, %v1559, %v1262
      %v1582 = vsel %vm1572, %v1560, %v1264
      %v1584 = vsel %vm1572, %v1561, %v1266
      %v1586 = vsel %vm1572, %v1562, %v1268
      %v1588 = vsel %vm1572, %v1563, %v1270
      %v1590 = vsel %vm1572, %v1564, %v1272
      %v1592 = vsel %vm1572, %v1565, %v1274
      %v1594 = vsel %vm1572, %v1566, %v1276
      %v1596 = vsel %vm1572, %v1567, %v1278
      %v1598 = vsel %vm1572, %v1568, %v1280
      %v1600 = vsel %vm1572, %v1569, %v1282
      %v1602 = vsel %vm1572, %v1570, %v1284
      %v1604 = vsel %vm1572, %v1571, %v1286
      %vm1605 = vcmask 424960
      %v1606 = vsel %vm1605, %v1574, %v1256
      %v1607 = vsel %vm1605, %v1576, %v1258
      %v1608 = vsel %vm1605, %v1578, %v1260
      %v1609 = vsel %vm1605, %v1580, %v1262
      %v1610 = vsel %vm1605, %v1582, %v1264
      %v1611 = vsel %vm1605, %v1584, %v1266
      %v1612 = vsel %vm1605, %v1586, %v1268
      %v1613 = vsel %vm1605, %v1588, %v1270
      %v1614 = vsel %vm1605, %v1590, %v1272
      %v1615 = vsel %vm1605, %v1592, %v1274
      %v1616 = vsel %vm1605, %v1594, %v1276
      %v1617 = vsel %vm1605, %v1596, %v1278
      %v1618 = vsel %vm1605, %v1598, %v1280
      %v1619 = vsel %vm1605, %v1600, %v1282
      %v1620 = vsel %vm1605, %v1602, %v1284
      %v1621 = vsel %vm1605, %v1604, %v1286
      %vm1622 = vcmask 457728
      %v1624 = vsel %vm1622, %v1606, %v1291
      %v1626 = vsel %vm1622, %v1607, %v1293
      %v1628 = vsel %vm1622, %v1608, %v1295
      %v1630 = vsel %vm1622, %v1609, %v1297
      %v1632 = vsel %vm1622, %v1610, %v1299
      %v1634 = vsel %vm1622, %v1611, %v1301
      %v1636 = vsel %vm1622, %v1612, %v1303
      %v1638 = vsel %vm1622, %v1613, %v1305
      %v1640 = vsel %vm1622, %v1614, %v1307
      %v1642 = vsel %vm1622, %v1615, %v1309
      %v1644 = vsel %vm1622, %v1616, %v1311
      %v1646 = vsel %vm1622, %v1617, %v1313
      %v1648 = vsel %vm1622, %v1618, %v1315
      %v1650 = vsel %vm1622, %v1619, %v1317
      %v1652 = vsel %vm1622, %v1620, %v1319
      %v1654 = vsel %vm1622, %v1621, %v1321
      %vm1655 = vcmask 490496
      %v1656 = vsel %vm1655, %v1624, %v1291
      %v1657 = vsel %vm1655, %v1626, %v1293
      %v1658 = vsel %vm1655, %v1628, %v1295
      %v1659 = vsel %vm1655, %v1630, %v1297
      %v1660 = vsel %vm1655, %v1632, %v1299
      %v1661 = vsel %vm1655, %v1634, %v1301
      %v1662 = vsel %vm1655, %v1636, %v1303
      %v1663 = vsel %vm1655, %v1638, %v1305
      %v1664 = vsel %vm1655, %v1640, %v1307
      %v1665 = vsel %vm1655, %v1642, %v1309
      %v1666 = vsel %vm1655, %v1644, %v1311
      %v1667 = vsel %vm1655, %v1646, %v1313
      %v1668 = vsel %vm1655, %v1648, %v1315
      %v1669 = vsel %vm1655, %v1650, %v1317
      %v1670 = vsel %vm1655, %v1652, %v1319
      %v1671 = vsel %vm1655, %v1654, %v1321
      %v1672 = vld [vmem:[%s2] sm:$0xf]
      %v1673 = vld [vmem:[%s2 + $0x4] sm:$0xf]
      %v1674 = vld [vmem:[%s2 + $0x8] sm:$0xf]
      %v1675 = vld [vmem:[%s2 + $0xc] sm:$0xf]
      %v1676 = vld [vmem:[%s2 + $0x10] sm:$0xf]
      %v1677 = vld [vmem:[%s2 + $0x14] sm:$0xf]
      %v1678 = vld [vmem:[%s2 + $0x18] sm:$0xf]
      %v1679 = vld [vmem:[%s2 + $0x1c] sm:$0xf]
      %v1680 = vld [vmem:[%s3] sm:$0x1]
      %v1682 = vlaneseq
      %v1683 = vshrl.u32 %v1682, 7
      %v1684 = vsub.s32 0, %v1683
      %v1685 = vrot.slane %v1680, %v1684
      %v1695 = vunpack.c.l.b16 %v1672
      %v1696 = vunpack.c.l.b16 %v1673
      %v1697 = vunpack.c.l.b16 %v1674
      %v1698 = vunpack.c.l.b16 %v1675
      %v1699 = vunpack.c.l.b16 %v1676
      %v1700 = vunpack.c.l.b16 %v1677
      %v1701 = vunpack.c.l.b16 %v1678
      %v1702 = vunpack.c.l.b16 %v1679
      %v1703 = vpack.c.b16 %v1696, %v1695
      %v1704 = vpack.c.b16 %v1698, %v1697
      %v1705 = vpack.c.b16 %v1700, %v1699
      %v1706 = vpack.c.b16 %v1702, %v1701
      %vm1711 = vcmask 523264
      %v1712 = vsel %vm1711, %v1656, 0
      %v1714 = vsel %vm1711, %v1657, 0
      %v1716 = vsel %vm1711, %v1658, 0
      %v1718 = vsel %vm1711, %v1659, 0
      %v1720 = vsel %vm1711, %v1660, 0
      %v1722 = vsel %vm1711, %v1661, 0
      %v1724 = vsel %vm1711, %v1662, 0
      %v1726 = vsel %vm1711, %v1663, 0
      %v1728 = vsel %vm1711, %v1664, 0
      %v1730 = vsel %vm1711, %v1665, 0
      %v1732 = vsel %vm1711, %v1666, 0
      %v1734 = vsel %vm1711, %v1667, 0
      %v1736 = vsel %vm1711, %v1668, 0
      %v1738 = vsel %vm1711, %v1669, 0
      %v1740 = vsel %vm1711, %v1670, 0
      %v1742 = vsel %vm1711, %v1671, 0
      %1744 = vmatprep.subr.bf16.mxu0 0
      %1745 = vmatpush1.bf16.msra.mxu0 %v1703
      %1746 = vmatprep.subr.bf16.mxu0 0
      %1747 = vmatpush1.bf16.msra.mxu0 %v1704
      %1748 = vmatprep.subr.bf16.mxu0 0
      %1749 = vmatpush1.bf16.msra.mxu0 %v1705
      %1750 = vmatprep.subr.bf16.mxu0 0
      %1751 = vmatpush1.bf16.msra.mxu0 %v1706
      %1752 = vmatprep.subr.bf16.mxu0 0
      %1753 = vmatpush1.bf16.msra.mxu0 0
      %1754 = vmatprep.subr.bf16.mxu0 0
      %1755 = vmatpush1.bf16.msra.mxu0 0
      %1756 = vmatprep.subr.bf16.mxu0 0
      %1757 = vmatpush1.bf16.msra.mxu0 0
      %1758 = vmatprep.subr.bf16.mxu0 0
      %1759 = vmatpush1.bf16.msra.mxu0 0
      %1760 = vmatprep.subr.bf16.mxu0 0
      %1761 = vmatpush1.bf16.msra.mxu0 0
      %1762 = vmatprep.subr.bf16.mxu0 0
      %1763 = vmatpush1.bf16.msra.mxu0 0
      %1764 = vmatprep.subr.bf16.mxu0 0
      %1765 = vmatpush1.bf16.msra.mxu0 0
      %1766 = vmatprep.subr.bf16.mxu0 0
      %1767 = vmatpush1.bf16.msra.mxu0 0
      %1768 = vmatprep.subr.bf16.mxu0 0
      %1769 = vmatpush1.bf16.msra.mxu0 0
      %1770 = vmatprep.subr.bf16.mxu0 0
      %1771 = vmatpush1.bf16.msra.mxu0 0
      %1772 = vmatprep.subr.bf16.mxu0 0
      %1773 = vmatpush1.bf16.msra.mxu0 0
      %1774 = vmatprep.subr.bf16.mxu0 0
      %1775 = vmatpush1.bf16.msra.mxu0 0
      %1776 = vmatprep.mubr.bf16.mxu0 0
      %1777 = vmatmul.mubr.bf16.gmra.mrb[0].mxu0 %v1712
      %v1778 = vpop.f32.mrb[0].mxu0
      %v1779 = vadd.f32 %v1685, %v1778
      %v1780 = vpop.f32.mrb[0].mxu0
      %v1781 = vpop.f32.mrb[0].mxu0
      %v1782 = vadd.f32 %v1685, %v1781
      %v1783 = vpop.f32.mrb[0].mxu0
      %1784 = vmatprep.mubr.bf16.mxu0 0
      %1785 = vmatmul.mubr.bf16.gmra.mrb[0].mxu0 %v1714
      %v1786 = vpop.f32.mrb[0].mxu0
      %v1787 = vadd.f32 %v1685, %v1786
      %v1788 = vpop.f32.mrb[0].mxu0
      %v1789 = vpop.f32.mrb[0].mxu0
      %v1790 = vadd.f32 %v1685, %v1789
      %v1791 = vpop.f32.mrb[0].mxu0
      %1792 = vmatprep.mubr.bf16.mxu0 0
      %1793 = vmatmul.mubr.bf16.gmra.mrb[0].mxu0 %v1716
      %v1794 = vpop.f32.mrb[0].mxu0
      %v1795 = vadd.f32 %v1685, %v1794
      %v1796 = vpop.f32.mrb[0].mxu0
      %v1797 = vpop.f32.mrb[0].mxu0
      %v1798 = vadd.f32 %v1685, %v1797
      %v1799 = vpop.f32.mrb[0].mxu0
      %1800 = vmatprep.mubr.bf16.mxu0 0
      %1801 = vmatmul.mubr.bf16.gmra.mrb[0].mxu0 %v1718
      %v1802 = vpop.f32.mrb[0].mxu0
      %v1803 = vadd.f32 %v1685, %v1802
      %v1804 = vpop.f32.mrb[0].mxu0
      %v1805 = vpop.f32.mrb[0].mxu0
      %v1806 = vadd.f32 %v1685, %v1805
      %v1807 = vpop.f32.mrb[0].mxu0
      %1808 = vmatprep.mubr.bf16.mxu0 0
      %1809 = vmatmul.mubr.bf16.gmra.mrb[0].mxu0 %v1720
      %v1810 = vpop.f32.mrb[0].mxu0
      %v1811 = vadd.f32 %v1685, %v1810
      %v1812 = vpop.f32.mrb[0].mxu0
      %v1813 = vpop.f32.mrb[0].mxu0
      %v1814 = vadd.f32 %v1685, %v1813
      %v1815 = vpop.f32.mrb[0].mxu0
      %1816 = vmatprep.mubr.bf16.mxu0 0
      %1817 = vmatmul.mubr.bf16.gmra.mrb[0].mxu0 %v1722
      %v1818 = vpop.f32.mrb[0].mxu0
      %v1819 = vadd.f32 %v1685, %v1818
      %v1820 = vpop.f32.mrb[0].mxu0
      %v1821 = vpop.f32.mrb[0].mxu0
      %v1822 = vadd.f32 %v1685, %v1821
      %v1823 = vpop.f32.mrb[0].mxu0
      %1824 = vmatprep.mubr.bf16.mxu0 0
      %1825 = vmatmul.mubr.bf16.gmra.mrb[0].mxu0 %v1724
      %v1826 = vpop.f32.mrb[0].mxu0
      %v1827 = vadd.f32 %v1685, %v1826
      %v1828 = vpop.f32.mrb[0].mxu0
      %v1829 = vpop.f32.mrb[0].mxu0
      %v1830 = vadd.f32 %v1685, %v1829
      %v1831 = vpop.f32.mrb[0].mxu0
      %1832 = vmatprep.mubr.bf16.mxu0 0
      %1833 = vmatmul.mubr.bf16.gmra.mrb[0].mxu0 %v1726
      %v1834 = vpop.f32.mrb[0].mxu0
      %v1835 = vadd.f32 %v1685, %v1834
      %v1836 = vpop.f32.mrb[0].mxu0
      %v1837 = vpop.f32.mrb[0].mxu0
      %v1838 = vadd.f32 %v1685, %v1837
      %v1839 = vpop.f32.mrb[0].mxu0
      %1840 = vmatprep.mubr.bf16.mxu0 0
      %1841 = vmatmul.mubr.bf16.gmra.mrb[0].mxu0 %v1728
      %v1842 = vpop.f32.mrb[0].mxu0
      %v1843 = vadd.f32 %v1685, %v1842
      %v1844 = vpop.f32.mrb[0].mxu0
      %v1845 = vpop.f32.mrb[0].mxu0
      %v1846 = vadd.f32 %v1685, %v1845
      %v1847 = vpop.f32.mrb[0].mxu0
      %1848 = vmatprep.mubr.bf16.mxu0 0
      %1849 = vmatmul.mubr.bf16.gmra.mrb[0].mxu0 %v1730
      %v1850 = vpop.f32.mrb[0].mxu0
      %v1851 = vadd.f32 %v1685, %v1850
      %v1852 = vpop.f32.mrb[0].mxu0
      %v1853 = vpop.f32.mrb[0].mxu0
      %v1854 = vadd.f32 %v1685, %v1853
      %v1855 = vpop.f32.mrb[0].mxu0
      %1856 = vmatprep.mubr.bf16.mxu0 0
      %1857 = vmatmul.mubr.bf16.gmra.mrb[0].mxu0 %v1732
      %v1858 = vpop.f32.mrb[0].mxu0
      %v1859 = vadd.f32 %v1685, %v1858
      %v1860 = vpop.f32.mrb[0].mxu0
      %v1861 = vpop.f32.mrb[0].mxu0
      %v1862 = vadd.f32 %v1685, %v1861
      %v1863 = vpop.f32.mrb[0].mxu0
      %1864 = vmatprep.mubr.bf16.mxu0 0
      %1865 = vmatmul.mubr.bf16.gmra.mrb[0].mxu0 %v1734
      %v1866 = vpop.f32.mrb[0].mxu0
      %v1867 = vadd.f32 %v1685, %v1866
      %v1868 = vpop.f32.mrb[0].mxu0
      %v1869 = vpop.f32.mrb[0].mxu0
      %v1870 = vadd.f32 %v1685, %v1869
      %v1871 = vpop.f32.mrb[0].mxu0
      %1872 = vmatprep.mubr.bf16.mxu0 0
      %1873 = vmatmul.mubr.bf16.gmra.mrb[0].mxu0 %v1736
      %v1874 = vpop.f32.mrb[0].mxu0
      %v1875 = vadd.f32 %v1685, %v1874
      %v1876 = vpop.f32.mrb[0].mxu0
      %v1877 = vpop.f32.mrb[0].mxu0
      %v1878 = vadd.f32 %v1685, %v1877
      %v1879 = vpop.f32.mrb[0].mxu0
      %1880 = vmatprep.mubr.bf16.mxu0 0
      %1881 = vmatmul.mubr.bf16.gmra.mrb[0].mxu0 %v1738
      %v1882 = vpop.f32.mrb[0].mxu0
      %v1883 = vadd.f32 %v1685, %v1882
      %v1884 = vpop.f32.mrb[0].mxu0
      %v1885 = vpop.f32.mrb[0].mxu0
      %v1886 = vadd.f32 %v1685, %v1885
      %v1887 = vpop.f32.mrb[0].mxu0
      %1888 = vmatprep.mubr.bf16.mxu0 0
      %1889 = vmatmul.mubr.bf16.gmra.mrb[0].mxu0 %v1740
      %v1890 = vpop.f32.mrb[0].mxu0
      %v1891 = vadd.f32 %v1685, %v1890
      %v1892 = vpop.f32.mrb[0].mxu0
      %v1893 = vpop.f32.mrb[0].mxu0
      %v1894 = vadd.f32 %v1685, %v1893
      %v1895 = vpop.f32.mrb[0].mxu0
      %1896 = vmatprep.mubr.bf16.mxu0 0
      %1897 = vmatmul.mubr.bf16.gmra.mrb[0].mxu0 %v1742
      %v1898 = vpop.f32.mrb[0].mxu0
      %v1899 = vadd.f32 %v1685, %v1898
      %v1900 = vpop.f32.mrb[0].mxu0
      %v1901 = vpop.f32.mrb[0].mxu0
      %v1902 = vadd.f32 %v1685, %v1901
      %v1903 = vpop.f32.mrb[0].mxu0
      %1904 = vdwg.mxu0
      %vm1905 = vcmp.gt.f32.partialorder %v1779, 0.0
      %vm1906 = vcmp.gt.f32.partialorder %v1782, 0.0
      %vm1907 = vcmp.gt.f32.partialorder %v1787, 0.0
      %vm1908 = vcmp.gt.f32.partialorder %v1790, 0.0
      %vm1909 = vcmp.gt.f32.partialorder %v1795, 0.0
      %vm1910 = vcmp.gt.f32.partialorder %v1798, 0.0
      %vm1911 = vcmp.gt.f32.partialorder %v1803, 0.0
      %vm1912 = vcmp.gt.f32.partialorder %v1806, 0.0
      %vm1913 = vcmp.gt.f32.partialorder %v1811, 0.0
      %vm1914 = vcmp.gt.f32.partialorder %v1814, 0.0
      %vm1915 = vcmp.gt.f32.partialorder %v1819, 0.0
      %vm1916 = vcmp.gt.f32.partialorder %v1822, 0.0
      %vm1917 = vcmp.gt.f32.partialorder %v1827, 0.0
      %vm1918 = vcmp.gt.f32.partialorder %v1830, 0.0
      %vm1919 = vcmp.gt.f32.partialorder %v1835, 0.0
      %vm1920 = vcmp.gt.f32.partialorder %v1838, 0.0
      %vm1921 = vcmp.gt.f32.partialorder %v1843, 0.0
      %vm1922 = vcmp.gt.f32.partialorder %v1846, 0.0
      %vm1923 = vcmp.gt.f32.partialorder %v1851, 0.0
      %vm1924 = vcmp.gt.f32.partialorder %v1854, 0.0
      %vm1925 = vcmp.gt.f32.partialorder %v1859, 0.0
      %vm1926 = vcmp.gt.f32.partialorder %v1862, 0.0
      %vm1927 = vcmp.gt.f32.partialorder %v1867, 0.0
      %vm1928 = vcmp.gt.f32.partialorder %v1870, 0.0
      %vm1929 = vcmp.gt.f32.partialorder %v1875, 0.0
      %vm1930 = vcmp.gt.f32.partialorder %v1878, 0.0
      %vm1931 = vcmp.gt.f32.partialorder %v1883, 0.0
      %vm1932 = vcmp.gt.f32.partialorder %v1886, 0.0
      %vm1933 = vcmp.gt.f32.partialorder %v1891, 0.0
      %vm1934 = vcmp.gt.f32.partialorder %v1894, 0.0
      %vm1935 = vcmp.gt.f32.partialorder %v1899, 0.0
      %vm1936 = vcmp.gt.f32.partialorder %v1902, 0.0
      %v1937 = vmul.f32 %v1779, 0.2
      %v1938 = vmul.f32 %v1782, 0.2
      %v1939 = vmul.f32 %v1787, 0.2
      %v1940 = vmul.f32 %v1790, 0.2
      %v1941 = vmul.f32 %v1795, 0.2
      %v1942 = vmul.f32 %v1798, 0.2
      %v1943 = vmul.f32 %v1803, 0.2
      %v1944 = vmul.f32 %v1806, 0.2
      %v1945 = vmul.f32 %v1811, 0.2
      %v1946 = vmul.f32 %v1814, 0.2
      %v1947 = vmul.f32 %v1819, 0.2
      %v1948 = vmul.f32 %v1822, 0.2
      %v1949 = vmul.f32 %v1827, 0.2
      %v1950 = vmul.f32 %v1830, 0.2
      %v1951 = vmul.f32 %v1835, 0.2
      %v1952 = vmul.f32 %v1838, 0.2
      %v1953 = vmul.f32 %v1843, 0.2
      %v1954 = vmul.f32 %v1846, 0.2
      %v1955 = vmul.f32 %v1851, 0.2
      %v1956 = vmul.f32 %v1854, 0.2
      %v1957 = vmul.f32 %v1859, 0.2
      %v1958 = vmul.f32 %v1862, 0.2
      %v1959 = vmul.f32 %v1867, 0.2
      %v1960 = vmul.f32 %v1870, 0.2
      %v1961 = vmul.f32 %v1875, 0.2
      %v1962 = vmul.f32 %v1878, 0.2
      %v1963 = vmul.f32 %v1883, 0.2
      %v1964 = vmul.f32 %v1886, 0.2
      %v1965 = vmul.f32 %v1891, 0.2
      %v1966 = vmul.f32 %v1894, 0.2
      %v1967 = vmul.f32 %v1899, 0.2
      %v1968 = vmul.f32 %v1902, 0.2
      %v1969 = vsel %vm1905, %v1779, %v1937
      %v1970 = vsel %vm1906, %v1782, %v1938
      %v1971 = vsel %vm1907, %v1787, %v1939
      %v1972 = vsel %vm1908, %v1790, %v1940
      %v1973 = vsel %vm1909, %v1795, %v1941
      %v1974 = vsel %vm1910, %v1798, %v1942
      %v1975 = vsel %vm1911, %v1803, %v1943
      %v1976 = vsel %vm1912, %v1806, %v1944
      %v1977 = vsel %vm1913, %v1811, %v1945
      %v1978 = vsel %vm1914, %v1814, %v1946
      %v1979 = vsel %vm1915, %v1819, %v1947
      %v1980 = vsel %vm1916, %v1822, %v1948
      %v1981 = vsel %vm1917, %v1827, %v1949
      %v1982 = vsel %vm1918, %v1830, %v1950
      %v1983 = vsel %vm1919, %v1835, %v1951
      %v1984 = vsel %vm1920, %v1838, %v1952
      %v1985 = vsel %vm1921, %v1843, %v1953
      %v1986 = vsel %vm1922, %v1846, %v1954
      %v1987 = vsel %vm1923, %v1851, %v1955
      %v1988 = vsel %vm1924, %v1854, %v1956
      %v1989 = vsel %vm1925, %v1859, %v1957
      %v1990 = vsel %vm1926, %v1862, %v1958
      %v1991 = vsel %vm1927, %v1867, %v1959
      %v1992 = vsel %vm1928, %v1870, %v1960
      %v1993 = vsel %vm1929, %v1875, %v1961
      %v1994 = vsel %vm1930, %v1878, %v1962
      %v1995 = vsel %vm1931, %v1883, %v1963
      %v1996 = vsel %vm1932, %v1886, %v1964
      %v1997 = vsel %vm1933, %v1891, %v1965
      %v1998 = vsel %vm1934, %v1894, %v1966
      %v1999 = vsel %vm1935, %v1899, %v1967
      %v2000 = vsel %vm1936, %v1902, %v1968
      %v2001 = vpack.c.bf16 %v1970, %v1969
      %v2002 = vpack.c.bf16 %v1972, %v1971
      %v2003 = vpack.c.bf16 %v1974, %v1973
      %v2004 = vpack.c.bf16 %v1976, %v1975
      %v2005 = vpack.c.bf16 %v1978, %v1977
      %v2006 = vpack.c.bf16 %v1980, %v1979
      %v2007 = vpack.c.bf16 %v1982, %v1981
      %v2008 = vpack.c.bf16 %v1984, %v1983
      %v2009 = vpack.c.bf16 %v1986, %v1985
      %v2010 = vpack.c.bf16 %v1988, %v1987
      %v2011 = vpack.c.bf16 %v1990, %v1989
      %v2012 = vpack.c.bf16 %v1992, %v1991
      %v2013 = vpack.c.bf16 %v1994, %v1993
      %v2014 = vpack.c.bf16 %v1996, %v1995
      %v2015 = vpack.c.bf16 %v1998, %v1997
      %v2016 = vpack.c.bf16 %v2000, %v1999
      %v2033 = vunpack.c.l.b16 %v2001
      %v2034 = vunpack.c.h.b16 %v2001
      %v2035 = vunpack.c.l.b16 %v2002
      %v2036 = vunpack.c.h.b16 %v2002
      %v2037 = vunpack.c.l.b16 %v2003
      %v2038 = vunpack.c.h.b16 %v2003
      %v2039 = vunpack.c.l.b16 %v2004
      %v2040 = vunpack.c.h.b16 %v2004
      %v2041 = vunpack.c.l.b16 %v2005
      %v2042 = vunpack.c.h.b16 %v2005
      %v2043 = vunpack.c.l.b16 %v2006
      %v2044 = vunpack.c.h.b16 %v2006
      %v2045 = vunpack.c.l.b16 %v2007
      %v2046 = vunpack.c.h.b16 %v2007
      %v2047 = vunpack.c.l.b16 %v2008
      %v2048 = vunpack.c.h.b16 %v2008
      %v2049 = vunpack.c.l.b16 %v2009
      %v2050 = vunpack.c.h.b16 %v2009
      %v2051 = vunpack.c.l.b16 %v2010
      %v2052 = vunpack.c.h.b16 %v2010
      %v2053 = vunpack.c.l.b16 %v2011
      %v2054 = vunpack.c.h.b16 %v2011
      %v2055 = vunpack.c.l.b16 %v2012
      %v2056 = vunpack.c.h.b16 %v2012
      %v2057 = vunpack.c.l.b16 %v2013
      %v2058 = vunpack.c.h.b16 %v2013
      %v2059 = vunpack.c.l.b16 %v2014
      %v2060 = vunpack.c.h.b16 %v2014
      %v2061 = vunpack.c.l.b16 %v2015
      %v2062 = vunpack.c.h.b16 %v2015
      %v2063 = vunpack.c.l.b16 %v2016
      %v2064 = vunpack.c.h.b16 %v2016
      %v2065 = vpack.c.b16 %v2033, %v2033
      %v2066 = vpack.c.b16 %v2034, %v2034
      %v2067 = vpack.c.b16 %v2035, %v2035
      %v2068 = vpack.c.b16 %v2036, %v2036
      %v2069 = vpack.c.b16 %v2037, %v2037
      %v2070 = vpack.c.b16 %v2038, %v2038
      %v2071 = vpack.c.b16 %v2039, %v2039
      %v2072 = vpack.c.b16 %v2040, %v2040
      %v2073 = vpack.c.b16 %v2041, %v2041
      %v2074 = vpack.c.b16 %v2042, %v2042
      %v2075 = vpack.c.b16 %v2043, %v2043
      %v2076 = vpack.c.b16 %v2044, %v2044
      %v2077 = vpack.c.b16 %v2045, %v2045
      %v2078 = vpack.c.b16 %v2046, %v2046
      %v2079 = vpack.c.b16 %v2047, %v2047
      %v2080 = vpack.c.b16 %v2048, %v2048
      %v2081 = vpack.c.b16 %v2049, %v2049
      %v2082 = vpack.c.b16 %v2050, %v2050
      %v2083 = vpack.c.b16 %v2051, %v2051
      %v2084 = vpack.c.b16 %v2052, %v2052
      %v2085 = vpack.c.b16 %v2053, %v2053
      %v2086 = vpack.c.b16 %v2054, %v2054
      %v2087 = vpack.c.b16 %v2055, %v2055
      %v2088 = vpack.c.b16 %v2056, %v2056
      %v2089 = vpack.c.b16 %v2057, %v2057
      %v2090 = vpack.c.b16 %v2058, %v2058
      %v2091 = vpack.c.b16 %v2059, %v2059
      %v2092 = vpack.c.b16 %v2060, %v2060
      %v2093 = vpack.c.b16 %v2061, %v2061
      %v2094 = vpack.c.b16 %v2062, %v2062
      %v2095 = vpack.c.b16 %v2063, %v2063
      %v2096 = vpack.c.b16 %v2064, %v2064
      %2129 = vst [vmem:[%s311] sm:$0xf] %v2065
      %2130 = vst [vmem:[%s311 + $0x4] sm:$0xf] %v2066
      %2131 = vst [vmem:[%s311 + $0x8] sm:$0xf] %v2067
      %2132 = vst [vmem:[%s311 + $0xc] sm:$0xf] %v2068
      %2133 = vst [vmem:[%s311 + $0x10] sm:$0xf] %v2069
      %2134 = vst [vmem:[%s311 + $0x14] sm:$0xf] %v2070
      %2135 = vst [vmem:[%s311 + $0x18] sm:$0xf] %v2071
      %2136 = vst [vmem:[%s311 + $0x1c] sm:$0xf] %v2072
      %2137 = vst [vmem:[%s311 + $0x20] sm:$0xf] %v2073
      %2138 = vst [vmem:[%s311 + $0x24] sm:$0xf] %v2074
      %2139 = vst [vmem:[%s311 + $0x28] sm:$0xf] %v2075
      %2140 = vst [vmem:[%s311 + $0x2c] sm:$0xf] %v2076
      %2141 = vst [vmem:[%s311 + $0x30] sm:$0xf] %v2077
      %2142 = vst [vmem:[%s311 + $0x34] sm:$0xf] %v2078
      %2143 = vst [vmem:[%s311 + $0x38] sm:$0xf] %v2079
      %2144 = vst [vmem:[%s311 + $0x3c] sm:$0xf] %v2080
      %2145 = vst [vmem:[%s311 + $0x40] sm:$0xf] %v2081
      %2146 = vst [vmem:[%s311 + $0x44] sm:$0xf] %v2082
      %2147 = vst [vmem:[%s311 + $0x48] sm:$0xf] %v2083
      %2148 = vst [vmem:[%s311 + $0x4c] sm:$0xf] %v2084
      %2149 = vst [vmem:[%s311 + $0x50] sm:$0xf] %v2085
      %2150 = vst [vmem:[%s311 + $0x54] sm:$0xf] %v2086
      %2151 = vst [vmem:[%s311 + $0x58] sm:$0xf] %v2087
      %2152 = vst [vmem:[%s311 + $0x5c] sm:$0xf] %v2088
      %2153 = vst [vmem:[%s311 + $0x60] sm:$0xf] %v2089
      %2154 = vst [vmem:[%s311 + $0x64] sm:$0xf] %v2090
      %2155 = vst [vmem:[%s311 + $0x68] sm:$0xf] %v2091
      %2156 = vst [vmem:[%s311 + $0x6c] sm:$0xf] %v2092
      %2157 = vst [vmem:[%s311 + $0x70] sm:$0xf] %v2093
      %2158 = vst [vmem:[%s311 + $0x74] sm:$0xf] %v2094
      %2159 = vst [vmem:[%s311 + $0x78] sm:$0xf] %v2095
      %2160 = vst [vmem:[%s311 + $0x7c] sm:$0xf] %v2096
      %s2161 = smul.u32 32, %s20
      %p2162 = scmp.lt.s32.totalorder %s19, 1
      %s2163 = scalar_select %p2162, %s19, 1
      %p2164 = scmp.lt.s32.totalorder %s2161, 31
      %s2165 = scalar_select %p2164, %s2161, 31
      %s2166 = smul.addr %s2163, 32
      %s2167 = sadd.s32 %s2165, %s2166
      %s2168 = smul.addr %s2167, 4
      %s2169 = scalar_lea.vmem %s4, %s2168
      // Predicated region
      $region37: #{discriminator_forward.5} parent=35 // pred_check
        %p2170 = pneg %p149
      $region38: #{discriminator_forward.5} parent=35 // pred_check_branch
        %2172 = sbr.rel (%p2170) target = $region40
      $region39: #{discriminator_forward.5} parent=35 // pred_region
        %s2173 = smul.u32 32, %s20
      $region40: #{discriminator_forward.5} parent=35 // pred_fallthru
        _
    $region36: #{discriminator_forward.5} parent=5 // pred_fallthru
      _
    %p2174 = scmp.le.s32.totalorder 2, %s10
    // Predicated region
    $region41: #{discriminator_forward.5} parent=5 // pred_check
      %p2175 = pneg %p2174
    $region42: #{discriminator_forward.5} parent=5 // pred_check_branch
      %2177 = sbr.rel (%p2175) target = $region44
    $region43: #{discriminator_forward.5} parent=5 // pred_region
      %s2178 = ssub.s32 %s10, 2
      // Predicated region
      $region45: #{discriminator_forward.5} parent=43 // pred_check
        %p2179 = pneg %p155
      $region46: #{discriminator_forward.5} parent=43 // pred_check_branch
        %2181 = sbr.rel (%p2179) target = $region48
      $region47: #{discriminator_forward.5} parent=43 // pred_region
        %s2182 = smul.u32 32, %s22
        %p2183 = scmp.lt.s32.totalorder %s21, 1
        %s2184 = scalar_select %p2183, %s21, 1
        %p2185 = scmp.lt.s32.totalorder %s2182, 31
        %s2186 = scalar_select %p2185, %s2182, 31
        %s2187 = smul.addr %s2184, 32
        %s2188 = sadd.s32 %s2186, %s2187
        %s2189 = smul.addr %s2188, 4
        %s2190 = scalar_lea.vmem %s4, %s2189
      $region48: #{discriminator_forward.5} parent=43 // pred_fallthru
        _
    $region44: #{discriminator_forward.5} parent=5 // pred_fallthru
      _
  $region6: #{discriminator_forward.5} parent=0 // loop_footer
    %s14 = sadd.s32 1, %s10
  $region7: #{discriminator_forward.5} parent=0 // loop_footer_branch
    %9 = sbr.rel target = $region3
  $region8: #{discriminator_forward.5} parent=0 // loop_exit
    _

// kernel: discriminator_forward.6
$region0: #{discriminator_forward.6}
  #allocation0 [shape = 'u32[]', space=smem, size = 0x4, offset = 0x4, fixed_abs, tag = 'smem constant byte address 0x4 - core index']
  #allocation1 [shape = 'u32[144,128]{1,0:T(1,128)}', space=vmem, size = 0x12000, scoped, tag = 'internal scratch']
  %s0 = inlined_call_operand.vmem [shape: bf16[2,9,18,256], index: 0, kind: input, shape index: {}, may-alias: {0,1}]
  %s1 = inlined_call_operand.vmem [shape: bf16[2,9,18,256], index: 1, kind: input, shape index: {}, may-alias: {0,1}]
  %s2 = inlined_call_operand.vmem [shape: bf16[2048,128], index: 2, kind: input, shape index: {}]
  %s3 = inlined_call_operand.vmem [shape: f32[1,128], index: 3, kind: input, shape index: {}]
  %s4 = inlined_call_operand.vmem [shape: bf16[2,64,128], index: 4, kind: output, shape index: {}]
  %s5 = sld [smem:[#allocation0]]
  $region49: #{discriminator_forward.6} parent=0
    _
  %s7 = ssub.s32 1, %s5
  %s8 = scalar_select 0, %s7, %s5
  loop: start=0, step=1, limit=4
  $region2: #{discriminator_forward.6} parent=0 // loop_pre_header
    _
  $region3: #{discriminator_forward.6} parent=0 // loop_header
    %s10 = sphi 0, %s14
    %p11 = scmp.ge.s32.totalorder %s10, 4
    %s17 = sphi 0, %s29
    %s18 = sphi 0, %s25
    %s19 = sphi 0, %s17
    %s20 = sphi 0, %s18
    %s21 = sphi 0, %s19
    %s22 = sphi 0, %s20
    %s34 = sphi 0, %s36
    %s37 = sphi 0, %s34
    %s38 = sphi 0, %s37
    %s54 = sphi 0, %s38
    %s66 = sphi 0, %s68
    %s69 = sphi 0, %s66
    %s70 = sphi 0, %s69
    %s86 = sphi 0, %s70
    %s90 = sphi 0, %s90
    %s92 = sphi 0, %s90
    %s93 = sphi 0, %s92
    %s107 = sphi 0, %s93
    %s111 = sphi 0, %s111
    %s113 = sphi 0, %s111
    %s114 = sphi 0, %s113
    %s128 = sphi 0, %s114
    %s136 = sphi 0, %s138
    %s139 = sphi 0, %s136
    %s140 = sphi 0, %s139
    %s156 = sphi 0, %s140
  $region4: #{discriminator_forward.6} parent=0 // loop_header_branch
    %13 = sbr.rel (%p11) target = $region8
  $region5: #{discriminator_forward.6} parent=0 // loop_body
    %s15 = ssub.s32 %s10, 1
    %s16 = ssub.s32 %s10, 2
    %s23 = sadd.s32 1, %s18
    %p24 = scmp.ge.s32.totalorder %s23, 1
    %s25 = scalar_select %p24, 0, %s23
    %s26 = sadd.s32 1, %s17
    %s27 = scalar_select %p24, %s26, %s17
    %p28 = scmp.ge.s32.totalorder %s27, 2
    %s29 = scalar_select %p28, 0, %s27
    %s30 = ssub.s32 %s17, %s29
    %s31 = ssub.s32 %s18, %s25
    %s32 = sor.u32 %s30, %s31
    %p33 = scmp.eq.s32.totalorder %s32, 0
    %s35 = sadd.s32 %s34, 1
    %s36 = scalar_select %p33, %s34, %s35
    %p39 = pneg %p33
    %p40 = scmp.eq.s32.totalorder %s10, 1
    %p41 = por %p39, %p40
    %p42 = scmp.ne.s32.totalorder %s34, %s37
    %p43 = scmp.eq.s32.totalorder %s10, 0
    %p44 = por %p42, %p43
    %p45 = scmp.ne.s32.totalorder %s34, %s37
    %p46 = scmp.eq.s32.totalorder %s15, 1
    %p47 = por %p45, %p46
    %p48 = scmp.ne.s32.totalorder %s37, %s38
    %p49 = scmp.eq.s32.totalorder %s15, 0
    %p50 = por %p48, %p49
    %p51 = scmp.ne.s32.totalorder %s37, %s38
    %p52 = scmp.eq.s32.totalorder %s16, 1
    %p53 = por %p51, %p52
    %p55 = scmp.ne.s32.totalorder %s38, %s54
    %p56 = scmp.eq.s32.totalorder %s16, 0
    %p57 = por %p55, %p56
    %s58 = sadd.s32 %s18, 1
    %s59 = smul.u32 %s58, 8
    %s60 = sadd.s32 %s25, 1
    %s61 = smul.u32 %s60, 8
    %s62 = ssub.s32 %s17, %s29
    %s63 = ssub.s32 %s59, %s61
    %s64 = sor.u32 %s62, %s63
    %p65 = scmp.eq.s32.totalorder %s64, 0
    %s67 = sadd.s32 %s66, 1
    %s68 = scalar_select %p65, %s66, %s67
    %p71 = pneg %p65
    %p72 = scmp.eq.s32.totalorder %s10, 1
    %p73 = por %p71, %p72
    %p74 = scmp.ne.s32.totalorder %s66, %s69
    %p75 = scmp.eq.s32.totalorder %s10, 0
    %p76 = por %p74, %p75
    %p77 = scmp.ne.s32.totalorder %s66, %s69
    %p78 = scmp.eq.s32.totalorder %s15, 1
    %p79 = por %p77, %p78
    %p80 = scmp.ne.s32.totalorder %s69, %s70
    %p81 = scmp.eq.s32.totalorder %s15, 0
    %p82 = por %p80, %p81
    %p83 = scmp.ne.s32.totalorder %s69, %s70
    %p84 = scmp.eq.s32.totalorder %s16, 1
    %p85 = por %p83, %p84
    %p87 = scmp.ne.s32.totalorder %s70, %s86
    %p88 = scmp.eq.s32.totalorder %s16, 0
    %p89 = por %p87, %p88
    %s91 = sadd.s32 %s90, 1
    %p94 = scmp.eq.s32.totalorder %s10, 1
    %p95 = scmp.ne.s32.totalorder %s90, %s92
    %p96 = scmp.eq.s32.totalorder %s10, 0
    %p97 = por %p95, %p96
    %p98 = scmp.ne.s32.totalorder %s90, %s92
    %p99 = scmp.eq.s32.totalorder %s15, 1
    %p100 = por %p98, %p99
    %p101 = scmp.ne.s32.totalorder %s92, %s93
    %p102 = scmp.eq.s32.totalorder %s15, 0
    %p103 = por %p101, %p102
    %p104 = scmp.ne.s32.totalorder %s92, %s93
    %p105 = scmp.eq.s32.totalorder %s16, 1
    %p106 = por %p104, %p105
    %p108 = scmp.ne.s32.totalorder %s93, %s107
    %p109 = scmp.eq.s32.totalorder %s16, 0
    %p110 = por %p108, %p109
    %s112 = sadd.s32 %s111, 1
    %p115 = scmp.eq.s32.totalorder %s10, 1
    %p116 = scmp.ne.s32.totalorder %s111, %s113
    %p117 = scmp.eq.s32.totalorder %s10, 0
    %p118 = por %p116, %p117
    %p119 = scmp.ne.s32.totalorder %s111, %s113
    %p120 = scmp.eq.s32.totalorder %s15, 1
    %p121 = por %p119, %p120
    %p122 = scmp.ne.s32.totalorder %s113, %s114
    %p123 = scmp.eq.s32.totalorder %s15, 0
    %p124 = por %p122, %p123
    %p125 = scmp.ne.s32.totalorder %s113, %s114
    %p126 = scmp.eq.s32.totalorder %s16, 1
    %p127 = por %p125, %p126
    %p129 = scmp.ne.s32.totalorder %s114, %s128
    %p130 = scmp.eq.s32.totalorder %s16, 0
    %p131 = por %p129, %p130
    %s132 = ssub.s32 %s17, %s29
    %s133 = ssub.s32 %s18, %s25
    %s134 = sor.u32 %s132, %s133
    %p135 = scmp.eq.s32.totalorder %s134, 0
    %s137 = sadd.s32 %s136, 1
    %s138 = scalar_select %p135, %s136, %s137
    %p141 = pneg %p135
    %p142 = scmp.eq.s32.totalorder %s10, 1
    %p143 = por %p141, %p142
    %p144 = scmp.ne.s32.totalorder %s136, %s139
    %p145 = scmp.eq.s32.totalorder %s10, 0
    %p146 = por %p144, %p145
    %p147 = scmp.ne.s32.totalorder %s136, %s139
    %p148 = scmp.eq.s32.totalorder %s15, 1
    %p149 = por %p147, %p148
    %p150 = scmp.ne.s32.totalorder %s139, %s140
    %p151 = scmp.eq.s32.totalorder %s15, 0
    %p152 = por %p150, %p151
    %p153 = scmp.ne.s32.totalorder %s139, %s140
    %p154 = scmp.eq.s32.totalorder %s16, 1
    %p155 = por %p153, %p154
    %p157 = scmp.ne.s32.totalorder %s140, %s156
    %p158 = scmp.eq.s32.totalorder %s16, 0
    %p159 = por %p157, %p158
    %p160 = scmp.le.s32.totalorder 1, %s10
    %p161 = scmp.lt.s32.totalorder %s10, 3
    %p162 = pnand %p160, %p161
    %p163 = pneg %p162
    // Predicated region
    $region9: #{discriminator_forward.6} parent=5 // pred_check
      _
    $region10: #{discriminator_forward.6} parent=5 // pred_check_branch
      %165 = sbr.rel (%p162) target = $region12
    $region11: #{discriminator_forward.6} parent=5 // pred_region
      %s166 = ssub.s32 %s10, 1
      // Predicated region
      $region13: #{discriminator_forward.6} parent=11 // pred_check
        %p167 = pneg %p103
      $region14: #{discriminator_forward.6} parent=11 // pred_check_branch
        %169 = sbr.rel (%p167) target = $region16
      $region15: #{discriminator_forward.6} parent=11 // pred_region
        _
      $region16: #{discriminator_forward.6} parent=11 // pred_fallthru
        _
      // Predicated region
      $region17: #{discriminator_forward.6} parent=11 // pred_check
        %p170 = pneg %p124
      $region18: #{discriminator_forward.6} parent=11 // pred_check_branch
        %172 = sbr.rel (%p170) target = $region20
      $region19: #{discriminator_forward.6} parent=11 // pred_region
        _
      $region20: #{discriminator_forward.6} parent=11 // pred_fallthru
        _
    $region12: #{discriminator_forward.6} parent=5 // pred_fallthru
      _
    %p173 = scmp.lt.s32.totalorder %s10, 2
    // Predicated region
    $region21: #{discriminator_forward.6} parent=5 // pred_check
      %p174 = pneg %p173
    $region22: #{discriminator_forward.6} parent=5 // pred_check_branch
      %176 = sbr.rel (%p174) target = $region24
    $region23: #{discriminator_forward.6} parent=5 // pred_region
      // Predicated region
      $region25: #{discriminator_forward.6} parent=23 // pred_check
        %p177 = pneg %p44
      $region26: #{discriminator_forward.6} parent=23 // pred_check_branch
        %179 = sbr.rel (%p177) target = $region28
      $region27: #{discriminator_forward.6} parent=23 // pred_region
        %s180 = smul.u32 8, %s18
        %s181 = ssub.s32 9, %s180
        %p182 = scmp.lt.s32.totalorder %s181, 8
        %s183 = scalar_select %p182, %s181, 8
        %s184 = smul.u32 64, %s183
        %s185 = smul.u32 %s184, 3
        %s186 = smul.u32 %s185, 2
        %p187 = scmp.lt.s32.totalorder %s17, 1
        %s188 = scalar_select %p187, %s17, 1
        %p189 = scmp.lt.s32.totalorder %s180, 8
        %s190 = scalar_select %p189, %s180, 8
        %s191 = smul.addr %s190, 6
        %s192 = smul.addr %s188, 54
        %s193 = sadd.s32 %s191, %s192
        %s194 = smul.addr %s193, 4
        %s195 = scalar_lea.vmem %s0, %s194
        %s196 = smul.u32 8, %s18
        %s197 = ssub.s32 9, %s196
        %p198 = scmp.lt.s32.totalorder %s197, 8
        %s199 = scalar_select %p198, %s197, 8
        %s200 = smul.u32 64, %s199
        %s201 = smul.u32 %s200, 3
        %s202 = smul.u32 %s201, 2
      $region28: #{discriminator_forward.6} parent=23 // pred_fallthru
        _
      // Predicated region
      $region29: #{discriminator_forward.6} parent=23 // pred_check
        %p203 = pneg %p76
      $region30: #{discriminator_forward.6} parent=23 // pred_check_branch
        %205 = sbr.rel (%p203) target = $region32
      $region31: #{discriminator_forward.6} parent=23 // pred_region
        %s206 = sadd.s32 %s18, 1
        %s207 = smul.u32 %s206, 8
        %p208 = scmp.lt.s32.totalorder %s17, 1
        %s209 = scalar_select %p208, %s17, 1
        %p210 = scmp.lt.s32.totalorder %s207, 8
        %s211 = scalar_select %p210, %s207, 8
        %s212 = smul.addr %s211, 6
        %s213 = smul.addr %s209, 54
        %s214 = sadd.s32 %s212, %s213
        %s215 = smul.addr %s214, 4
        %s216 = scalar_lea.vmem %s1, %s215
        %s217 = sadd.s32 %s18, 1
        %s218 = smul.u32 %s217, 8
      $region32: #{discriminator_forward.6} parent=23 // pred_fallthru
        _
    $region24: #{discriminator_forward.6} parent=5 // pred_fallthru
      _
    %p219 = scmp.le.s32.totalorder 1, %s10
    %p220 = scmp.lt.s32.totalorder %s10, 3
    %p221 = pnand %p219, %p220
    %p222 = pneg %p221
    // Predicated region
    $region33: #{discriminator_forward.6} parent=5 // pred_check
      _
    $region34: #{discriminator_forward.6} parent=5 // pred_check_branch
      %224 = sbr.rel (%p221) target = $region36
    $region35: #{discriminator_forward.6} parent=5 // pred_region
      %s225 = ssub.s32 %s10, 1
      %s226 = smul.u32 8, %s20
      %s227 = ssub.s32 9, %s226
      %p228 = scmp.lt.s32.totalorder %s227, 8
      %s229 = scalar_select %p228, %s227, 8
      %s230 = smul.u32 64, %s229
      %s231 = smul.u32 %s230, 3
      %s232 = smul.u32 %s231, 2
      %p233 = scmp.lt.s32.totalorder %s19, 1
      %s234 = scalar_select %p233, %s19, 1
      %p235 = scmp.lt.s32.totalorder %s226, 8
      %s236 = scalar_select %p235, %s226, 8
      %s237 = smul.addr %s236, 6
      %s238 = smul.addr %s234, 54
      %s239 = sadd.s32 %s237, %s238
      %s240 = smul.addr %s239, 4
      %s241 = scalar_lea.vmem %s0, %s240
      %p242 = pneg %p50
      %p243 = pneg %p47
      %s244 = sadd.s32 %s20, 1
      %s245 = smul.u32 %s244, 8
      %p246 = scmp.lt.s32.totalorder %s19, 1
      %s247 = scalar_select %p246, %s19, 1
      %p248 = scmp.lt.s32.totalorder %s245, 8
      %s249 = scalar_select %p248, %s245, 8
      %s250 = smul.addr %s249, 6
      %s251 = smul.addr %s247, 54
      %s252 = sadd.s32 %s250, %s251
      %s253 = smul.addr %s252, 4
      %s254 = scalar_lea.vmem %s1, %s253
      %p255 = pneg %p82
      %p256 = pneg %p79
      %p257 = pneg %p103
      %p258 = pneg %p100
      %p259 = pneg %p124
      %p260 = pneg %p121
      %p261 = pneg %p152
      %p262 = pneg %p149
      %s263 = smul.u32 8, %s20
      %p264 = scmp.lt.s32.totalorder %s19, 1
      %s265 = scalar_select %p264, %s19, 1
      %p266 = scmp.lt.s32.totalorder %s263, 7
      %s267 = scalar_select %p266, %s263, 7
      %s268 = smul.addr %s265, 8
      %s269 = sadd.s32 %s267, %s268
      %s270 = smul.addr %s269, 4
      %s271 = scalar_lea.vmem %s4, %s270
      %s272 = smul.u32 8, %s20
      %s273 = ssub.s32 9, %s272
      %p274 = scmp.lt.s32.totalorder %s273, 8
      %s275 = scalar_select %p274, %s273, 8
      %s276 = smul.u32 64, %s275
      %s277 = smul.u32 %s276, 3
      %s278 = smul.u32 %s277, 2
      %p279 = scmp.lt.s32.totalorder %s19, 1
      %s280 = scalar_select %p279, %s19, 1
      %p281 = scmp.lt.s32.totalorder %s272, 8
      %s282 = scalar_select %p281, %s272, 8
      %s283 = smul.addr %s282, 6
      %s284 = smul.addr %s280, 54
      %s285 = sadd.s32 %s283, %s284
      %s286 = smul.addr %s285, 4
      %s287 = scalar_lea.vmem %s0, %s286
      %s288 = smul.u32 8, %s20
      %s289 = ssub.s32 9, %s288
      %p290 = scmp.lt.s32.totalorder %s289, 8
      %s291 = scalar_select %p290, %s289, 8
      %s292 = smul.u32 64, %s291
      %s293 = smul.u32 %s292, 3
      %s294 = smul.u32 %s293, 2
      %s295 = sadd.s32 %s20, 1
      %s296 = smul.u32 %s295, 8
      %p297 = scmp.lt.s32.totalorder %s19, 1
      %s298 = scalar_select %p297, %s19, 1
      %p299 = scmp.lt.s32.totalorder %s296, 8
      %s300 = scalar_select %p299, %s296, 8
      %s301 = smul.addr %s300, 6
      %s302 = smul.addr %s298, 54
      %s303 = sadd.s32 %s301, %s302
      %s304 = smul.addr %s303, 4
      %s305 = scalar_lea.vmem %s1, %s304
      %s306 = sadd.s32 %s20, 1
      %s307 = smul.u32 %s306, 8
      %s308 = smul.u32 8, %s20
      %p309 = scmp.lt.s32.totalorder %s19, 1
      %s310 = scalar_select %p309, %s19, 1
      %p311 = scmp.lt.s32.totalorder %s308, 7
      %s312 = scalar_select %p311, %s308, 7
      %s313 = smul.addr %s310, 8
      %s314 = sadd.s32 %s312, %s313
      %s315 = smul.addr %s314, 4
      %s316 = scalar_lea.vmem %s4, %s315
      %s317 = smul.u32 8, %s20
      %v319 = vld [vmem:[%s287] sm:$0xff]
      %v320 = vld [vmem:[%s287 + $0x8] sm:$0xff]
      %v321 = vld [vmem:[%s287 + $0x10] sm:$0x11]
      %v322 = vld [vmem:[%s287 + $0x18] sm:$0xff]
      %v323 = vld [vmem:[%s287 + $0x20] sm:$0xff]
      %v324 = vld [vmem:[%s287 + $0x28] sm:$0x11]
      %v325 = vld [vmem:[%s287 + $0x30] sm:$0xff]
      %v326 = vld [vmem:[%s287 + $0x38] sm:$0xff]
      %v327 = vld [vmem:[%s287 + $0x40] sm:$0x11]
      %v328 = vld [vmem:[%s287 + $0x48] sm:$0xff]
      %v329 = vld [vmem:[%s287 + $0x50] sm:$0xff]
      %v330 = vld [vmem:[%s287 + $0x58] sm:$0x11]
      %v331 = vld [vmem:[%s287 + $0x60] sm:$0xff]
      %v332 = vld [vmem:[%s287 + $0x68] sm:$0xff]
      %v333 = vld [vmem:[%s287 + $0x70] sm:$0x11]
      %v334 = vld [vmem:[%s287 + $0x78] sm:$0xff]
      %v335 = vld [vmem:[%s287 + $0x80] sm:$0xff]
      %v336 = vld [vmem:[%s287 + $0x88] sm:$0x11]
      %v337 = vld [vmem:[%s287 + $0x90] sm:$0xff]
      %v338 = vld [vmem:[%s287 + $0x98] sm:$0xff]
      %v339 = vld [vmem:[%s287 + $0xa0] sm:$0x11]
      %v340 = vld [vmem:[%s287 + $0xa8] sm:$0xff]
      %v341 = vld [vmem:[%s287 + $0xb0] sm:$0xff]
      %v342 = vld [vmem:[%s287 + $0xb8] sm:$0x11]
      %v343 = vld [vmem:[%s305] sm:$0xff]
      %v344 = vld [vmem:[%s305 + $0x8] sm:$0xff]
      %v345 = vld [vmem:[%s305 + $0x10] sm:$0x11]
      %v354 = vunpack.c.h.b16 %v319
      %v355 = vunpack.c.h.b16 %v322
      %v356 = vunpack.c.h.b16 %v325
      %v357 = vunpack.c.h.b16 %v328
      %v358 = vunpack.c.h.b16 %v331
      %v359 = vunpack.c.h.b16 %v334
      %v360 = vunpack.c.h.b16 %v337
      %v361 = vunpack.c.h.b16 %v340
      %v370 = vunpack.c.l.b16 %v319
      %v371 = vunpack.c.l.b16 %v320
      %v372 = vunpack.c.l.b16 %v322
      %v373 = vunpack.c.l.b16 %v323
      %v374 = vunpack.c.l.b16 %v325
      %v375 = vunpack.c.l.b16 %v326
      %v376 = vunpack.c.l.b16 %v328
      %v377 = vunpack.c.l.b16 %v329
      %v378 = vunpack.c.l.b16 %v331
      %v379 = vunpack.c.l.b16 %v332
      %v380 = vunpack.c.l.b16 %v334
      %v381 = vunpack.c.l.b16 %v335
      %v382 = vunpack.c.l.b16 %v337
      %v383 = vunpack.c.l.b16 %v338
      %v384 = vunpack.c.l.b16 %v340
      %v385 = vunpack.c.l.b16 %v341
      %v386 = vpack.c.b16 %v371, %v370
      %v387 = vpack.c.b16 %v373, %v372
      %v388 = vpack.c.b16 %v375, %v374
      %v389 = vpack.c.b16 %v377, %v376
      %v390 = vpack.c.b16 %v379, %v378
      %v391 = vpack.c.b16 %v381, %v380
      %v392 = vpack.c.b16 %v383, %v382
      %v393 = vpack.c.b16 %v385, %v384
      %v395 = vshrl.u32 %v386, 16
      %v397 = vshll.u32 %v386, 16
      %v399 = vrot.slane %v397, 1
      %v400 = vor.u32 %v395, %v399
      %v402 = vshrl.u32 %v387, 16
      %v404 = vshll.u32 %v387, 16
      %v406 = vrot.slane %v404, 1
      %v407 = vor.u32 %v402, %v406
      %v409 = vshrl.u32 %v388, 16
      %v411 = vshll.u32 %v388, 16
      %v413 = vrot.slane %v411, 1
      %v414 = vor.u32 %v409, %v413
      %v416 = vshrl.u32 %v389, 16
      %v418 = vshll.u32 %v389, 16
      %v420 = vrot.slane %v418, 1
      %v421 = vor.u32 %v416, %v420
      %v423 = vshrl.u32 %v390, 16
      %v425 = vshll.u32 %v390, 16
      %v427 = vrot.slane %v425, 1
      %v428 = vor.u32 %v423, %v427
      %v430 = vshrl.u32 %v391, 16
      %v432 = vshll.u32 %v391, 16
      %v434 = vrot.slane %v432, 1
      %v435 = vor.u32 %v430, %v434
      %v437 = vshrl.u32 %v392, 16
      %v439 = vshll.u32 %v392, 16
      %v441 = vrot.slane %v439, 1
      %v442 = vor.u32 %v437, %v441
      %v444 = vshrl.u32 %v393, 16
      %v446 = vshll.u32 %v393, 16
      %v448 = vrot.slane %v446, 1
      %v449 = vor.u32 %v444, %v448
      %v450 = vunpack.c.h.b16 %v320
      %v451 = vunpack.c.h.b16 %v323
      %v452 = vunpack.c.h.b16 %v326
      %v453 = vunpack.c.h.b16 %v329
      %v454 = vunpack.c.h.b16 %v332
      %v455 = vunpack.c.h.b16 %v335
      %v456 = vunpack.c.h.b16 %v338
      %v457 = vunpack.c.h.b16 %v341
      %v458 = vpack.c.b16 %v450, %v354
      %v459 = vpack.c.b16 %v451, %v355
      %v460 = vpack.c.b16 %v452, %v356
      %v461 = vpack.c.b16 %v453, %v357
      %v462 = vpack.c.b16 %v454, %v358
      %v463 = vpack.c.b16 %v455, %v359
      %v464 = vpack.c.b16 %v456, %v360
      %v465 = vpack.c.b16 %v457, %v361
      %v467 = vshrl.u32 %v458, 16
      %v469 = vshll.u32 %v458, 16
      %v471 = vrot.slane %v469, 1
      %v472 = vor.u32 %v467, %v471
      %v474 = vshrl.u32 %v459, 16
      %v476 = vshll.u32 %v459, 16
      %v478 = vrot.slane %v476, 1
      %v479 = vor.u32 %v474, %v478
      %v481 = vshrl.u32 %v460, 16
      %v483 = vshll.u32 %v460, 16
      %v485 = vrot.slane %v483, 1
      %v486 = vor.u32 %v481, %v485
      %v488 = vshrl.u32 %v461, 16
      %v490 = vshll.u32 %v461, 16
      %v492 = vrot.slane %v490, 1
      %v493 = vor.u32 %v488, %v492
      %v495 = vshrl.u32 %v462, 16
      %v497 = vshll.u32 %v462, 16
      %v499 = vrot.slane %v497, 1
      %v500 = vor.u32 %v495, %v499
      %v502 = vshrl.u32 %v463, 16
      %v504 = vshll.u32 %v463, 16
      %v506 = vrot.slane %v504, 1
      %v507 = vor.u32 %v502, %v506
      %v509 = vshrl.u32 %v464, 16
      %v511 = vshll.u32 %v464, 16
      %v513 = vrot.slane %v511, 1
      %v514 = vor.u32 %v509, %v513
      %v516 = vshrl.u32 %v465, 16
      %v518 = vshll.u32 %v465, 16
      %v520 = vrot.slane %v518, 1
      %v521 = vor.u32 %v516, %v520
      %v530 = vunpack.c.l.b16 %v321
      %v531 = vunpack.c.l.b16 %v324
      %v532 = vunpack.c.l.b16 %v327
      %v533 = vunpack.c.l.b16 %v330
      %v534 = vunpack.c.l.b16 %v333
      %v535 = vunpack.c.l.b16 %v336
      %v536 = vunpack.c.l.b16 %v339
      %v537 = vunpack.c.l.b16 %v342
      %v538 = vpack.c.b16 %v530, %v371
      %v539 = vpack.c.b16 %v531, %v373
      %v540 = vpack.c.b16 %v532, %v375
      %v541 = vpack.c.b16 %v533, %v377
      %v542 = vpack.c.b16 %v534, %v379
      %v543 = vpack.c.b16 %v535, %v381
      %v544 = vpack.c.b16 %v536, %v383
      %v545 = vpack.c.b16 %v537, %v385
      %v547 = vshrl.u32 %v538, 16
      %v549 = vshll.u32 %v538, 16
      %v551 = vrot.slane %v549, 1
      %v552 = vor.u32 %v547, %v551
      %v554 = vshrl.u32 %v539, 16
      %v556 = vshll.u32 %v539, 16
      %v558 = vrot.slane %v556, 1
      %v559 = vor.u32 %v554, %v558
      %v561 = vshrl.u32 %v540, 16
      %v563 = vshll.u32 %v540, 16
      %v565 = vrot.slane %v563, 1
      %v566 = vor.u32 %v561, %v565
      %v568 = vshrl.u32 %v541, 16
      %v570 = vshll.u32 %v541, 16
      %v572 = vrot.slane %v570, 1
      %v573 = vor.u32 %v568, %v572
      %v575 = vshrl.u32 %v542, 16
      %v577 = vshll.u32 %v542, 16
      %v579 = vrot.slane %v577, 1
      %v580 = vor.u32 %v575, %v579
      %v582 = vshrl.u32 %v543, 16
      %v584 = vshll.u32 %v543, 16
      %v586 = vrot.slane %v584, 1
      %v587 = vor.u32 %v582, %v586
      %v589 = vshrl.u32 %v544, 16
      %v591 = vshll.u32 %v544, 16
      %v593 = vrot.slane %v591, 1
      %v594 = vor.u32 %v589, %v593
      %v596 = vshrl.u32 %v545, 16
      %v598 = vshll.u32 %v545, 16
      %v600 = vrot.slane %v598, 1
      %v601 = vor.u32 %v596, %v600
      %v602 = vunpack.c.h.b16 %v321
      %v603 = vunpack.c.h.b16 %v324
      %v604 = vunpack.c.h.b16 %v327
      %v605 = vunpack.c.h.b16 %v330
      %v606 = vunpack.c.h.b16 %v333
      %v607 = vunpack.c.h.b16 %v336
      %v608 = vunpack.c.h.b16 %v339
      %v609 = vunpack.c.h.b16 %v342
      %v610 = vpack.c.b16 %v602, %v450
      %v611 = vpack.c.b16 %v603, %v451
      %v612 = vpack.c.b16 %v604, %v452
      %v613 = vpack.c.b16 %v605, %v453
      %v614 = vpack.c.b16 %v606, %v454
      %v615 = vpack.c.b16 %v607, %v455
      %v616 = vpack.c.b16 %v608, %v456
      %v617 = vpack.c.b16 %v609, %v457
      %v619 = vshrl.u32 %v610, 16
      %v621 = vshll.u32 %v610, 16
      %v623 = vrot.slane %v621, 1
      %v624 = vor.u32 %v619, %v623
      %v626 = vshrl.u32 %v611, 16
      %v628 = vshll.u32 %v611, 16
      %v630 = vrot.slane %v628, 1
      %v631 = vor.u32 %v626, %v630
      %v633 = vshrl.u32 %v612, 16
      %v635 = vshll.u32 %v612, 16
      %v637 = vrot.slane %v635, 1
      %v638 = vor.u32 %v633, %v637
      %v640 = vshrl.u32 %v613, 16
      %v642 = vshll.u32 %v613, 16
      %v644 = vrot.slane %v642, 1
      %v645 = vor.u32 %v640, %v644
      %v647 = vshrl.u32 %v614, 16
      %v649 = vshll.u32 %v614, 16
      %v651 = vrot.slane %v649, 1
      %v652 = vor.u32 %v647, %v651
      %v654 = vshrl.u32 %v615, 16
      %v656 = vshll.u32 %v615, 16
      %v658 = vrot.slane %v656, 1
      %v659 = vor.u32 %v654, %v658
      %v661 = vshrl.u32 %v616, 16
      %v663 = vshll.u32 %v616, 16
      %v665 = vrot.slane %v663, 1
      %v666 = vor.u32 %v661, %v665
      %v668 = vshrl.u32 %v617, 16
      %v670 = vshll.u32 %v617, 16
      %v672 = vrot.slane %v670, 1
      %v673 = vor.u32 %v668, %v672
      %v674 = vrot.slane %v538, 1
      %v675 = vrot.slane %v539, 1
      %v676 = vrot.slane %v540, 1
      %v677 = vrot.slane %v541, 1
      %v678 = vrot.slane %v542, 1
      %v679 = vrot.slane %v543, 1
      %v680 = vrot.slane %v544, 1
      %v681 = vrot.slane %v545, 1
      %v682 = vrot.slane %v610, 1
      %v683 = vrot.slane %v611, 1
      %v684 = vrot.slane %v612, 1
      %v685 = vrot.slane %v613, 1
      %v686 = vrot.slane %v614, 1
      %v687 = vrot.slane %v615, 1
      %v688 = vrot.slane %v616, 1
      %v689 = vrot.slane %v617, 1
      %v691 = vunpack.c.h.b16 %v343
      %v693 = vunpack.c.l.b16 %v343
      %v694 = vunpack.c.l.b16 %v344
      %v695 = vpack.c.b16 %v694, %v693
      %v697 = vshrl.u32 %v695, 16
      %v699 = vshll.u32 %v695, 16
      %v701 = vrot.slane %v699, 1
      %v702 = vor.u32 %v697, %v701
      %v703 = vunpack.c.h.b16 %v344
      %v704 = vpack.c.b16 %v703, %v691
      %v706 = vshrl.u32 %v704, 16
      %v708 = vshll.u32 %v704, 16
      %v710 = vrot.slane %v708, 1
      %v711 = vor.u32 %v706, %v710
      %v713 = vunpack.c.l.b16 %v345
      %v714 = vpack.c.b16 %v713, %v694
      %v716 = vshrl.u32 %v714, 16
      %v718 = vshll.u32 %v714, 16
      %v720 = vrot.slane %v718, 1
      %v721 = vor.u32 %v716, %v720
      %v722 = vunpack.c.h.b16 %v345
      %v723 = vpack.c.b16 %v722, %v703
      %v725 = vshrl.u32 %v723, 16
      %v727 = vshll.u32 %v723, 16
      %v729 = vrot.slane %v727, 1
      %v730 = vor.u32 %v725, %v729
      %v731 = vrot.slane %v714, 1
      %v732 = vrot.slane %v723, 1
      %v733 = vunpack.c.l.b16 %v400
      %v734 = vunpack.c.l.b16 %v472
      %v735 = vunpack.c.l.b16 %v552
      %v736 = vunpack.c.l.b16 %v624
      %v737 = vunpack.c.l.b16 %v674
      %v738 = vunpack.c.l.b16 %v682
      %v739 = vunpack.c.l.b16 %v407
      %v740 = vunpack.c.l.b16 %v479
      %v741 = vunpack.c.l.b16 %v559
      %v742 = vunpack.c.l.b16 %v631
      %v743 = vunpack.c.l.b16 %v675
      %v744 = vunpack.c.l.b16 %v683
      %v745 = vunpack.c.l.b16 %v414
      %v746 = vunpack.c.l.b16 %v486
      %v747 = vunpack.c.l.b16 %v566
      %v748 = vunpack.c.l.b16 %v638
      %v749 = vunpack.c.l.b16 %v676
      %v750 = vunpack.c.l.b16 %v684
      %v751 = vunpack.c.l.b16 %v421
      %v752 = vunpack.c.l.b16 %v493
      %v753 = vunpack.c.l.b16 %v573
      %v754 = vunpack.c.l.b16 %v645
      %v755 = vunpack.c.l.b16 %v677
      %v756 = vunpack.c.l.b16 %v685
      %v757 = vunpack.c.l.b16 %v428
      %v758 = vunpack.c.l.b16 %v500
      %v759 = vunpack.c.l.b16 %v580
      %v760 = vunpack.c.l.b16 %v652
      %v761 = vunpack.c.l.b16 %v678
      %v762 = vunpack.c.l.b16 %v686
      %v763 = vunpack.c.l.b16 %v435
      %v764 = vunpack.c.l.b16 %v507
      %v765 = vunpack.c.l.b16 %v587
      %v766 = vunpack.c.l.b16 %v659
      %v767 = vunpack.c.l.b16 %v679
      %v768 = vunpack.c.l.b16 %v687
      %v769 = vunpack.c.l.b16 %v442
      %v770 = vunpack.c.l.b16 %v514
      %v771 = vunpack.c.l.b16 %v594
      %v772 = vunpack.c.l.b16 %v666
      %v773 = vunpack.c.l.b16 %v680
      %v774 = vunpack.c.l.b16 %v688
      %v775 = vunpack.c.l.b16 %v449
      %v776 = vunpack.c.l.b16 %v521
      %v777 = vunpack.c.l.b16 %v601
      %v778 = vunpack.c.l.b16 %v673
      %v779 = vunpack.c.l.b16 %v681
      %v780 = vunpack.c.l.b16 %v689
      %v781 = vunpack.c.l.b16 %v702
      %v782 = vunpack.c.l.b16 %v711
      %v783 = vunpack.c.l.b16 %v721
      %v784 = vunpack.c.l.b16 %v730
      %v785 = vunpack.c.l.b16 %v731
      %v786 = vunpack.c.l.b16 %v732
      %v787 = vld [vmem:[%s2] sm:$0xf]
      %v788 = vld [vmem:[%s2 + $0x4] sm:$0xf]
      %v789 = vld [vmem:[%s2 + $0x8] sm:$0xf]
      %v790 = vld [vmem:[%s2 + $0xc] sm:$0xf]
      %v791 = vld [vmem:[%s2 + $0x10] sm:$0xf]
      %v792 = vld [vmem:[%s2 + $0x14] sm:$0xf]
      %v793 = vld [vmem:[%s2 + $0x18] sm:$0xf]
      %v794 = vld [vmem:[%s2 + $0x1c] sm:$0xf]
      %v795 = vld [vmem:[%s2 + $0x20] sm:$0xf]
      %v796 = vld [vmem:[%s2 + $0x24] sm:$0xf]
      %v797 = vld [vmem:[%s2 + $0x28] sm:$0xf]
      %v798 = vld [vmem:[%s2 + $0x2c] sm:$0xf]
      %v799 = vld [vmem:[%s2 + $0x30] sm:$0xf]
      %v800 = vld [vmem:[%s2 + $0x34] sm:$0xf]
      %v801 = vld [vmem:[%s2 + $0x38] sm:$0xf]
      %v802 = vld [vmem:[%s2 + $0x3c] sm:$0xf]
      %v803 = vld [vmem:[%s2 + $0x40] sm:$0xf]
      %v804 = vld [vmem:[%s2 + $0x44] sm:$0xf]
      %v805 = vld [vmem:[%s2 + $0x48] sm:$0xf]
      %v806 = vld [vmem:[%s2 + $0x4c] sm:$0xf]
      %v807 = vld [vmem:[%s2 + $0x50] sm:$0xf]
      %v808 = vld [vmem:[%s2 + $0x54] sm:$0xf]
      %v809 = vld [vmem:[%s2 + $0x58] sm:$0xf]
      %v810 = vld [vmem:[%s2 + $0x5c] sm:$0xf]
      %v811 = vld [vmem:[%s2 + $0x60] sm:$0xf]
      %v812 = vld [vmem:[%s2 + $0x64] sm:$0xf]
      %v813 = vld [vmem:[%s2 + $0x68] sm:$0xf]
      %v814 = vld [vmem:[%s2 + $0x6c] sm:$0xf]
      %v815 = vld [vmem:[%s2 + $0x70] sm:$0xf]
      %v816 = vld [vmem:[%s2 + $0x74] sm:$0xf]
      %v817 = vld [vmem:[%s2 + $0x78] sm:$0xf]
      %v818 = vld [vmem:[%s2 + $0x7c] sm:$0xf]
      %v819 = vld [vmem:[%s2 + $0x80] sm:$0xf]
      %v820 = vld [vmem:[%s2 + $0x84] sm:$0xf]
      %v821 = vld [vmem:[%s2 + $0x88] sm:$0xf]
      %v822 = vld [vmem:[%s2 + $0x8c] sm:$0xf]
      %v823 = vld [vmem:[%s2 + $0x90] sm:$0xf]
      %v824 = vld [vmem:[%s2 + $0x94] sm:$0xf]
      %v825 = vld [vmem:[%s2 + $0x98] sm:$0xf]
      %v826 = vld [vmem:[%s2 + $0x9c] sm:$0xf]
      %v827 = vld [vmem:[%s2 + $0xa0] sm:$0xf]
      %v828 = vld [vmem:[%s2 + $0xa4] sm:$0xf]
      %v829 = vld [vmem:[%s2 + $0xa8] sm:$0xf]
      %v830 = vld [vmem:[%s2 + $0xac] sm:$0xf]
      %v831 = vld [vmem:[%s2 + $0xb0] sm:$0xf]
      %v832 = vld [vmem:[%s2 + $0xb4] sm:$0xf]
      %v833 = vld [vmem:[%s2 + $0xb8] sm:$0xf]
      %v834 = vld [vmem:[%s2 + $0xbc] sm:$0xf]
      %v835 = vld [vmem:[%s2 + $0xc0] sm:$0xf]
      %v836 = vld [vmem:[%s2 + $0xc4] sm:$0xf]
      %v837 = vld [vmem:[%s2 + $0xc8] sm:$0xf]
      %v838 = vld [vmem:[%s2 + $0xcc] sm:$0xf]
      %v839 = vld [vmem:[%s2 + $0xd0] sm:$0xf]
      %v840 = vld [vmem:[%s2 + $0xd4] sm:$0xf]
      %v841 = vld [vmem:[%s2 + $0xd8] sm:$0xf]
      %v842 = vld [vmem:[%s2 + $0xdc] sm:$0xf]
      %v843 = vld [vmem:[%s2 + $0xe0] sm:$0xf]
      %v844 = vld [vmem:[%s2 + $0xe4] sm:$0xf]
      %v845 = vld [vmem:[%s2 + $0xe8] sm:$0xf]
      %v846 = vld [vmem:[%s2 + $0xec] sm:$0xf]
      %v847 = vld [vmem:[%s2 + $0xf0] sm:$0xf]
      %v848 = vld [vmem:[%s2 + $0xf4] sm:$0xf]
      %v849 = vld [vmem:[%s2 + $0xf8] sm:$0xf]
      %v850 = vld [vmem:[%s2 + $0xfc] sm:$0xf]
      %v851 = vld [vmem:[%s2 + $0x100] sm:$0xf]
      %v852 = vld [vmem:[%s2 + $0x104] sm:$0xf]
      %v853 = vld [vmem:[%s2 + $0x108] sm:$0xf]
      %v854 = vld [vmem:[%s2 + $0x10c] sm:$0xf]
      %v855 = vld [vmem:[%s2 + $0x110] sm:$0xf]
      %v856 = vld [vmem:[%s2 + $0x114] sm:$0xf]
      %v857 = vld [vmem:[%s2 + $0x118] sm:$0xf]
      %v858 = vld [vmem:[%s2 + $0x11c] sm:$0xf]
      %v859 = vld [vmem:[%s2 + $0x120] sm:$0xf]
      %v860 = vld [vmem:[%s2 + $0x124] sm:$0xf]
      %v861 = vld [vmem:[%s2 + $0x128] sm:$0xf]
      %v862 = vld [vmem:[%s2 + $0x12c] sm:$0xf]
      %v863 = vld [vmem:[%s2 + $0x130] sm:$0xf]
      %v864 = vld [vmem:[%s2 + $0x134] sm:$0xf]
      %v865 = vld [vmem:[%s2 + $0x138] sm:$0xf]
      %v866 = vld [vmem:[%s2 + $0x13c] sm:$0xf]
      %v867 = vld [vmem:[%s2 + $0x140] sm:$0xf]
      %v868 = vld [vmem:[%s2 + $0x144] sm:$0xf]
      %v869 = vld [vmem:[%s2 + $0x148] sm:$0xf]
      %v870 = vld [vmem:[%s2 + $0x14c] sm:$0xf]
      %v871 = vld [vmem:[%s2 + $0x150] sm:$0xf]
      %v872 = vld [vmem:[%s2 + $0x154] sm:$0xf]
      %v873 = vld [vmem:[%s2 + $0x158] sm:$0xf]
      %v874 = vld [vmem:[%s2 + $0x15c] sm:$0xf]
      %v875 = vld [vmem:[%s2 + $0x160] sm:$0xf]
      %v876 = vld [vmem:[%s2 + $0x164] sm:$0xf]
      %v877 = vld [vmem:[%s2 + $0x168] sm:$0xf]
      %v878 = vld [vmem:[%s2 + $0x16c] sm:$0xf]
      %v879 = vld [vmem:[%s2 + $0x170] sm:$0xf]
      %v880 = vld [vmem:[%s2 + $0x174] sm:$0xf]
      %v881 = vld [vmem:[%s2 + $0x178] sm:$0xf]
      %v882 = vld [vmem:[%s2 + $0x17c] sm:$0xf]
      %v883 = vld [vmem:[%s2 + $0x180] sm:$0xf]
      %v884 = vld [vmem:[%s2 + $0x184] sm:$0xf]
      %v885 = vld [vmem:[%s2 + $0x188] sm:$0xf]
      %v886 = vld [vmem:[%s2 + $0x18c] sm:$0xf]
      %v887 = vld [vmem:[%s2 + $0x190] sm:$0xf]
      %v888 = vld [vmem:[%s2 + $0x194] sm:$0xf]
      %v889 = vld [vmem:[%s2 + $0x198] sm:$0xf]
      %v890 = vld [vmem:[%s2 + $0x19c] sm:$0xf]
      %v891 = vld [vmem:[%s2 + $0x1a0] sm:$0xf]
      %v892 = vld [vmem:[%s2 + $0x1a4] sm:$0xf]
      %v893 = vld [vmem:[%s2 + $0x1a8] sm:$0xf]
      %v894 = vld [vmem:[%s2 + $0x1ac] sm:$0xf]
      %v895 = vld [vmem:[%s2 + $0x1b0] sm:$0xf]
      %v896 = vld [vmem:[%s2 + $0x1b4] sm:$0xf]
      %v897 = vld [vmem:[%s2 + $0x1b8] sm:$0xf]
      %v898 = vld [vmem:[%s2 + $0x1bc] sm:$0xf]
      %v899 = vld [vmem:[%s2 + $0x1c0] sm:$0xf]
      %v900 = vld [vmem:[%s2 + $0x1c4] sm:$0xf]
      %v901 = vld [vmem:[%s2 + $0x1c8] sm:$0xf]
      %v902 = vld [vmem:[%s2 + $0x1cc] sm:$0xf]
      %v903 = vld [vmem:[%s2 + $0x1d0] sm:$0xf]
      %v904 = vld [vmem:[%s2 + $0x1d4] sm:$0xf]
      %v905 = vld [vmem:[%s2 + $0x1d8] sm:$0xf]
      %v906 = vld [vmem:[%s2 + $0x1dc] sm:$0xf]
      %v907 = vld [vmem:[%s2 + $0x1e0] sm:$0xf]
      %v908 = vld [vmem:[%s2 + $0x1e4] sm:$0xf]
      %v909 = vld [vmem:[%s2 + $0x1e8] sm:$0xf]
      %v910 = vld [vmem:[%s2 + $0x1ec] sm:$0xf]
      %v911 = vld [vmem:[%s2 + $0x1f0] sm:$0xf]
      %v912 = vld [vmem:[%s2 + $0x1f4] sm:$0xf]
      %v913 = vld [vmem:[%s2 + $0x1f8] sm:$0xf]
      %v914 = vld [vmem:[%s2 + $0x1fc] sm:$0xf]
      %v915 = vld [vmem:[%s2 + $0x200] sm:$0xf]
      %v916 = vld [vmem:[%s2 + $0x204] sm:$0xf]
      %v917 = vld [vmem:[%s2 + $0x208] sm:$0xf]
      %v918 = vld [vmem:[%s2 + $0x20c] sm:$0xf]
      %v919 = vld [vmem:[%s2 + $0x210] sm:$0xf]
      %v920 = vld [vmem:[%s2 + $0x214] sm:$0xf]
      %v921 = vld [vmem:[%s2 + $0x218] sm:$0xf]
      %v922 = vld [vmem:[%s2 + $0x21c] sm:$0xf]
      %v923 = vld [vmem:[%s2 + $0x220] sm:$0xf]
      %v924 = vld [vmem:[%s2 + $0x224] sm:$0xf]
      %v925 = vld [vmem:[%s2 + $0x228] sm:$0xf]
      %v926 = vld [vmem:[%s2 + $0x22c] sm:$0xf]
      %v927 = vld [vmem:[%s2 + $0x230] sm:$0xf]
      %v928 = vld [vmem:[%s2 + $0x234] sm:$0xf]
      %v929 = vld [vmem:[%s2 + $0x238] sm:$0xf]
      %v930 = vld [vmem:[%s2 + $0x23c] sm:$0xf]
      %v931 = vld [vmem:[%s2 + $0x240] sm:$0xf]
      %v932 = vld [vmem:[%s2 + $0x244] sm:$0xf]
      %v933 = vld [vmem:[%s2 + $0x248] sm:$0xf]
      %v934 = vld [vmem:[%s2 + $0x24c] sm:$0xf]
      %v935 = vld [vmem:[%s2 + $0x250] sm:$0xf]
      %v936 = vld [vmem:[%s2 + $0x254] sm:$0xf]
      %v937 = vld [vmem:[%s2 + $0x258] sm:$0xf]
      %v938 = vld [vmem:[%s2 + $0x25c] sm:$0xf]
      %v939 = vld [vmem:[%s2 + $0x260] sm:$0xf]
      %v940 = vld [vmem:[%s2 + $0x264] sm:$0xf]
      %v941 = vld [vmem:[%s2 + $0x268] sm:$0xf]
      %v942 = vld [vmem:[%s2 + $0x26c] sm:$0xf]
      %v943 = vld [vmem:[%s2 + $0x270] sm:$0xf]
      %v944 = vld [vmem:[%s2 + $0x274] sm:$0xf]
      %v945 = vld [vmem:[%s2 + $0x278] sm:$0xf]
      %v946 = vld [vmem:[%s2 + $0x27c] sm:$0xf]
      %v947 = vld [vmem:[%s2 + $0x280] sm:$0xf]
      %v948 = vld [vmem:[%s2 + $0x284] sm:$0xf]
      %v949 = vld [vmem:[%s2 + $0x288] sm:$0xf]
      %v950 = vld [vmem:[%s2 + $0x28c] sm:$0xf]
      %v951 = vld [vmem:[%s2 + $0x290] sm:$0xf]
      %v952 = vld [vmem:[%s2 + $0x294] sm:$0xf]
      %v953 = vld [vmem:[%s2 + $0x298] sm:$0xf]
      %v954 = vld [vmem:[%s2 + $0x29c] sm:$0xf]
      %v955 = vld [vmem:[%s2 + $0x2a0] sm:$0xf]
      %v956 = vld [vmem:[%s2 + $0x2a4] sm:$0xf]
      %v957 = vld [vmem:[%s2 + $0x2a8] sm:$0xf]
      %v958 = vld [vmem:[%s2 + $0x2ac] sm:$0xf]
      %v959 = vld [vmem:[%s2 + $0x2b0] sm:$0xf]
      %v960 = vld [vmem:[%s2 + $0x2b4] sm:$0xf]
      %v961 = vld [vmem:[%s2 + $0x2b8] sm:$0xf]
      %v962 = vld [vmem:[%s2 + $0x2bc] sm:$0xf]
      %v963 = vld [vmem:[%s2 + $0x2c0] sm:$0xf]
      %v964 = vld [vmem:[%s2 + $0x2c4] sm:$0xf]
      %v965 = vld [vmem:[%s2 + $0x2c8] sm:$0xf]
      %v966 = vld [vmem:[%s2 + $0x2cc] sm:$0xf]
      %v967 = vld [vmem:[%s2 + $0x2d0] sm:$0xf]
      %v968 = vld [vmem:[%s2 + $0x2d4] sm:$0xf]
      %v969 = vld [vmem:[%s2 + $0x2d8] sm:$0xf]
      %v970 = vld [vmem:[%s2 + $0x2dc] sm:$0xf]
      %v971 = vld [vmem:[%s2 + $0x2e0] sm:$0xf]
      %v972 = vld [vmem:[%s2 + $0x2e4] sm:$0xf]
      %v973 = vld [vmem:[%s2 + $0x2e8] sm:$0xf]
      %v974 = vld [vmem:[%s2 + $0x2ec] sm:$0xf]
      %v975 = vld [vmem:[%s2 + $0x2f0] sm:$0xf]
      %v976 = vld [vmem:[%s2 + $0x2f4] sm:$0xf]
      %v977 = vld [vmem:[%s2 + $0x2f8] sm:$0xf]
      %v978 = vld [vmem:[%s2 + $0x2fc] sm:$0xf]
      %v979 = vld [vmem:[%s2 + $0x300] sm:$0xf]
      %v980 = vld [vmem:[%s2 + $0x304] sm:$0xf]
      %v981 = vld [vmem:[%s2 + $0x308] sm:$0xf]
      %v982 = vld [vmem:[%s2 + $0x30c] sm:$0xf]
      %v983 = vld [vmem:[%s2 + $0x310] sm:$0xf]
      %v984 = vld [vmem:[%s2 + $0x314] sm:$0xf]
      %v985 = vld [vmem:[%s2 + $0x318] sm:$0xf]
      %v986 = vld [vmem:[%s2 + $0x31c] sm:$0xf]
      %v987 = vld [vmem:[%s2 + $0x320] sm:$0xf]
      %v988 = vld [vmem:[%s2 + $0x324] sm:$0xf]
      %v989 = vld [vmem:[%s2 + $0x328] sm:$0xf]
      %v990 = vld [vmem:[%s2 + $0x32c] sm:$0xf]
      %v991 = vld [vmem:[%s2 + $0x330] sm:$0xf]
      %v992 = vld [vmem:[%s2 + $0x334] sm:$0xf]
      %v993 = vld [vmem:[%s2 + $0x338] sm:$0xf]
      %v994 = vld [vmem:[%s2 + $0x33c] sm:$0xf]
      %v995 = vld [vmem:[%s2 + $0x340] sm:$0xf]
      %v996 = vld [vmem:[%s2 + $0x344] sm:$0xf]
      %v997 = vld [vmem:[%s2 + $0x348] sm:$0xf]
      %v998 = vld [vmem:[%s2 + $0x34c] sm:$0xf]
      %v999 = vld [vmem:[%s2 + $0x350] sm:$0xf]
      %v1000 = vld [vmem:[%s2 + $0x354] sm:$0xf]
      %v1001 = vld [vmem:[%s2 + $0x358] sm:$0xf]
      %v1002 = vld [vmem:[%s2 + $0x35c] sm:$0xf]
      %v1003 = vld [vmem:[%s2 + $0x360] sm:$0xf]
      %v1004 = vld [vmem:[%s2 + $0x364] sm:$0xf]
      %v1005 = vld [vmem:[%s2 + $0x368] sm:$0xf]
      %v1006 = vld [vmem:[%s2 + $0x36c] sm:$0xf]
      %v1007 = vld [vmem:[%s2 + $0x370] sm:$0xf]
      %v1008 = vld [vmem:[%s2 + $0x374] sm:$0xf]
      %v1009 = vld [vmem:[%s2 + $0x378] sm:$0xf]
      %v1010 = vld [vmem:[%s2 + $0x37c] sm:$0xf]
      %v1011 = vld [vmem:[%s2 + $0x380] sm:$0xf]
      %v1012 = vld [vmem:[%s2 + $0x384] sm:$0xf]
      %v1013 = vld [vmem:[%s2 + $0x388] sm:$0xf]
      %v1014 = vld [vmem:[%s2 + $0x38c] sm:$0xf]
      %v1015 = vld [vmem:[%s2 + $0x390] sm:$0xf]
      %v1016 = vld [vmem:[%s2 + $0x394] sm:$0xf]
      %v1017 = vld [vmem:[%s2 + $0x398] sm:$0xf]
      %v1018 = vld [vmem:[%s2 + $0x39c] sm:$0xf]
      %v1019 = vld [vmem:[%s2 + $0x3a0] sm:$0xf]
      %v1020 = vld [vmem:[%s2 + $0x3a4] sm:$0xf]
      %v1021 = vld [vmem:[%s2 + $0x3a8] sm:$0xf]
      %v1022 = vld [vmem:[%s2 + $0x3ac] sm:$0xf]
      %v1023 = vld [vmem:[%s2 + $0x3b0] sm:$0xf]
      %v1024 = vld [vmem:[%s2 + $0x3b4] sm:$0xf]
      %v1025 = vld [vmem:[%s2 + $0x3b8] sm:$0xf]
      %v1026 = vld [vmem:[%s2 + $0x3bc] sm:$0xf]
      %v1027 = vld [vmem:[%s2 + $0x3c0] sm:$0xf]
      %v1028 = vld [vmem:[%s2 + $0x3c4] sm:$0xf]
      %v1029 = vld [vmem:[%s2 + $0x3c8] sm:$0xf]
      %v1030 = vld [vmem:[%s2 + $0x3cc] sm:$0xf]
      %v1031 = vld [vmem:[%s2 + $0x3d0] sm:$0xf]
      %v1032 = vld [vmem:[%s2 + $0x3d4] sm:$0xf]
      %v1033 = vld [vmem:[%s2 + $0x3d8] sm:$0xf]
      %v1034 = vld [vmem:[%s2 + $0x3dc] sm:$0xf]
      %v1035 = vld [vmem:[%s2 + $0x3e0] sm:$0xf]
      %v1036 = vld [vmem:[%s2 + $0x3e4] sm:$0xf]
      %v1037 = vld [vmem:[%s2 + $0x3e8] sm:$0xf]
      %v1038 = vld [vmem:[%s2 + $0x3ec] sm:$0xf]
      %v1039 = vld [vmem:[%s2 + $0x3f0] sm:$0xf]
      %v1040 = vld [vmem:[%s2 + $0x3f4] sm:$0xf]
      %v1041 = vld [vmem:[%s2 + $0x3f8] sm:$0xf]
      %v1042 = vld [vmem:[%s2 + $0x3fc] sm:$0xf]
      %v1043 = vld [vmem:[%s3] sm:$0x1]
      %v1045 = vlaneseq
      %v1046 = vshrl.u32 %v1045, 7
      %v1047 = vsub.s32 0, %v1046
      %v1048 = vrot.slane %v1043, %v1047
      %v1050 = vpack.c.b16 %v372, %v370
      %v1051 = vpack.c.b16 %v355, %v354
      %v1052 = vpack.c.b16 %v739, %v733
      %v1053 = vpack.c.b16 %v740, %v734
      %v1054 = vpack.c.b16 %v741, %v735
      %v1055 = vpack.c.b16 %v742, %v736
      %v1056 = vpack.c.b16 %v743, %v737
      %v1057 = vpack.c.b16 %v744, %v738
      %v1058 = vpack.c.b16 %v374, %v372
      %v1059 = vpack.c.b16 %v356, %v355
      %v1060 = vpack.c.b16 %v745, %v739
      %v1061 = vpack.c.b16 %v746, %v740
      %v1062 = vpack.c.b16 %v747, %v741
      %v1063 = vpack.c.b16 %v748, %v742
      %v1064 = vpack.c.b16 %v749, %v743
      %v1065 = vpack.c.b16 %v750, %v744
      %v1066 = vpack.c.b16 %v376, %v374
      %v1067 = vpack.c.b16 %v357, %v356
      %v1068 = vpack.c.b16 %v751, %v745
      %v1069 = vpack.c.b16 %v752, %v746
      %v1070 = vpack.c.b16 %v753, %v747
      %v1071 = vpack.c.b16 %v754, %v748
      %v1072 = vpack.c.b16 %v755, %v749
      %v1073 = vpack.c.b16 %v756, %v750
      %v1074 = vpack.c.b16 %v378, %v376
      %v1075 = vpack.c.b16 %v358, %v357
      %v1076 = vpack.c.b16 %v757, %v751
      %v1077 = vpack.c.b16 %v758, %v752
      %v1078 = vpack.c.b16 %v759, %v753
      %v1079 = vpack.c.b16 %v760, %v754
      %v1080 = vpack.c.b16 %v761, %v755
      %v1081 = vpack.c.b16 %v762, %v756
      %v1082 = vpack.c.b16 %v380, %v378
      %v1083 = vpack.c.b16 %v359, %v358
      %v1084 = vpack.c.b16 %v763, %v757
      %v1085 = vpack.c.b16 %v764, %v758
      %v1086 = vpack.c.b16 %v765, %v759
      %v1087 = vpack.c.b16 %v766, %v760
      %v1088 = vpack.c.b16 %v767, %v761
      %v1089 = vpack.c.b16 %v768, %v762
      %v1090 = vpack.c.b16 %v382, %v380
      %v1091 = vpack.c.b16 %v360, %v359
      %v1092 = vpack.c.b16 %v769, %v763
      %v1093 = vpack.c.b16 %v770, %v764
      %v1094 = vpack.c.b16 %v771, %v765
      %v1095 = vpack.c.b16 %v772, %v766
      %v1096 = vpack.c.b16 %v773, %v767
      %v1097 = vpack.c.b16 %v774, %v768
      %v1098 = vpack.c.b16 %v384, %v382
      %v1099 = vpack.c.b16 %v361, %v360
      %v1100 = vpack.c.b16 %v775, %v769
      %v1101 = vpack.c.b16 %v776, %v770
      %v1102 = vpack.c.b16 %v777, %v771
      %v1103 = vpack.c.b16 %v778, %v772
      %v1104 = vpack.c.b16 %v779, %v773
      %v1105 = vpack.c.b16 %v780, %v774
      %v1106 = vpack.c.b16 %v693, %v384
      %v1107 = vpack.c.b16 %v691, %v361
      %v1108 = vpack.c.b16 %v781, %v775
      %v1109 = vpack.c.b16 %v782, %v776
      %v1110 = vpack.c.b16 %v783, %v777
      %v1111 = vpack.c.b16 %v784, %v778
      %v1112 = vpack.c.b16 %v785, %v779
      %v1113 = vpack.c.b16 %v786, %v780
      %v1434 = vunpack.c.l.b16 %v787
      %v1435 = vunpack.c.l.b16 %v788
      %v1436 = vunpack.c.l.b16 %v789
      %v1437 = vunpack.c.l.b16 %v790
      %v1438 = vunpack.c.l.b16 %v791
      %v1439 = vunpack.c.l.b16 %v792
      %v1440 = vunpack.c.l.b16 %v793
      %v1441 = vunpack.c.l.b16 %v794
      %v1442 = vunpack.c.l.b16 %v795
      %v1443 = vunpack.c.l.b16 %v796
      %v1444 = vunpack.c.l.b16 %v797
      %v1445 = vunpack.c.l.b16 %v798
      %v1446 = vunpack.c.l.b16 %v799
      %v1447 = vunpack.c.l.b16 %v800
      %v1448 = vunpack.c.l.b16 %v801
      %v1449 = vunpack.c.l.b16 %v802
      %v1450 = vunpack.c.l.b16 %v803
      %v1451 = vunpack.c.l.b16 %v804
      %v1452 = vunpack.c.l.b16 %v805
      %v1453 = vunpack.c.l.b16 %v806
      %v1454 = vunpack.c.l.b16 %v807
      %v1455 = vunpack.c.l.b16 %v808
      %v1456 = vunpack.c.l.b16 %v809
      %v1457 = vunpack.c.l.b16 %v810
      %v1458 = vunpack.c.l.b16 %v811
      %v1459 = vunpack.c.l.b16 %v812
      %v1460 = vunpack.c.l.b16 %v813
      %v1461 = vunpack.c.l.b16 %v814
      %v1462 = vunpack.c.l.b16 %v815
      %v1463 = vunpack.c.l.b16 %v816
      %v1464 = vunpack.c.l.b16 %v817
      %v1465 = vunpack.c.l.b16 %v818
      %v1466 = vunpack.c.l.b16 %v819
      %v1467 = vunpack.c.l.b16 %v820
      %v1468 = vunpack.c.l.b16 %v821
      %v1469 = vunpack.c.l.b16 %v822
      %v1470 = vunpack.c.l.b16 %v823
      %v1471 = vunpack.c.l.b16 %v824
      %v1472 = vunpack.c.l.b16 %v825
      %v1473 = vunpack.c.l.b16 %v826
      %v1474 = vunpack.c.l.b16 %v827
      %v1475 = vunpack.c.l.b16 %v828
      %v1476 = vunpack.c.l.b16 %v829
      %v1477 = vunpack.c.l.b16 %v830
      %v1478 = vunpack.c.l.b16 %v831
      %v1479 = vunpack.c.l.b16 %v832
      %v1480 = vunpack.c.l.b16 %v833
      %v1481 = vunpack.c.l.b16 %v834
      %v1482 = vunpack.c.l.b16 %v835
      %v1483 = vunpack.c.l.b16 %v836
      %v1484 = vunpack.c.l.b16 %v837
      %v1485 = vunpack.c.l.b16 %v838
      %v1486 = vunpack.c.l.b16 %v839
      %v1487 = vunpack.c.l.b16 %v840
      %v1488 = vunpack.c.l.b16 %v841
      %v1489 = vunpack.c.l.b16 %v842
      %v1490 = vunpack.c.l.b16 %v843
      %v1491 = vunpack.c.l.b16 %v844
      %v1492 = vunpack.c.l.b16 %v845
      %v1493 = vunpack.c.l.b16 %v846
      %v1494 = vunpack.c.l.b16 %v847
      %v1495 = vunpack.c.l.b16 %v848
      %v1496 = vunpack.c.l.b16 %v849
      %v1497 = vunpack.c.l.b16 %v850
      %v1498 = vunpack.c.l.b16 %v851
      %v1499 = vunpack.c.l.b16 %v852
      %v1500 = vunpack.c.l.b16 %v853
      %v1501 = vunpack.c.l.b16 %v854
      %v1502 = vunpack.c.l.b16 %v855
      %v1503 = vunpack.c.l.b16 %v856
      %v1504 = vunpack.c.l.b16 %v857
      %v1505 = vunpack.c.l.b16 %v858
      %v1506 = vunpack.c.l.b16 %v859
      %v1507 = vunpack.c.l.b16 %v860
      %v1508 = vunpack.c.l.b16 %v861
      %v1509 = vunpack.c.l.b16 %v862
      %v1510 = vunpack.c.l.b16 %v863
      %v1511 = vunpack.c.l.b16 %v864
      %v1512 = vunpack.c.l.b16 %v865
      %v1513 = vunpack.c.l.b16 %v866
      %v1514 = vunpack.c.l.b16 %v867
      %v1515 = vunpack.c.l.b16 %v868
      %v1516 = vunpack.c.l.b16 %v869
      %v1517 = vunpack.c.l.b16 %v870
      %v1518 = vunpack.c.l.b16 %v871
      %v1519 = vunpack.c.l.b16 %v872
      %v1520 = vunpack.c.l.b16 %v873
      %v1521 = vunpack.c.l.b16 %v874
      %v1522 = vunpack.c.l.b16 %v875
      %v1523 = vunpack.c.l.b16 %v876
      %v1524 = vunpack.c.l.b16 %v877
      %v1525 = vunpack.c.l.b16 %v878
      %v1526 = vunpack.c.l.b16 %v879
      %v1527 = vunpack.c.l.b16 %v880
      %v1528 = vunpack.c.l.b16 %v881
      %v1529 = vunpack.c.l.b16 %v882
      %v1530 = vunpack.c.l.b16 %v883
      %v1531 = vunpack.c.l.b16 %v884
      %v1532 = vunpack.c.l.b16 %v885
      %v1533 = vunpack.c.l.b16 %v886
      %v1534 = vunpack.c.l.b16 %v887
      %v1535 = vunpack.c.l.b16 %v888
      %v1536 = vunpack.c.l.b16 %v889
      %v1537 = vunpack.c.l.b16 %v890
      %v1538 = vunpack.c.l.b16 %v891
      %v1539 = vunpack.c.l.b16 %v892
      %v1540 = vunpack.c.l.b16 %v893
      %v1541 = vunpack.c.l.b16 %v894
      %v1542 = vunpack.c.l.b16 %v895
      %v1543 = vunpack.c.l.b16 %v896
      %v1544 = vunpack.c.l.b16 %v897
      %v1545 = vunpack.c.l.b16 %v898
      %v1546 = vunpack.c.l.b16 %v899
      %v1547 = vunpack.c.l.b16 %v900
      %v1548 = vunpack.c.l.b16 %v901
      %v1549 = vunpack.c.l.b16 %v902
      %v1550 = vunpack.c.l.b16 %v903
      %v1551 = vunpack.c.l.b16 %v904
      %v1552 = vunpack.c.l.b16 %v905
      %v1553 = vunpack.c.l.b16 %v906
      %v1554 = vunpack.c.l.b16 %v907
      %v1555 = vunpack.c.l.b16 %v908
      %v1556 = vunpack.c.l.b16 %v909
      %v1557 = vunpack.c.l.b16 %v910
      %v1558 = vunpack.c.l.b16 %v911
      %v1559 = vunpack.c.l.b16 %v912
      %v1560 = vunpack.c.l.b16 %v913
      %v1561 = vunpack.c.l.b16 %v914
      %v1562 = vunpack.c.l.b16 %v915
      %v1563 = vunpack.c.l.b16 %v916
      %v1564 = vunpack.c.l.b16 %v917
      %v1565 = vunpack.c.l.b16 %v918
      %v1566 = vunpack.c.l.b16 %v919
      %v1567 = vunpack.c.l.b16 %v920
      %v1568 = vunpack.c.l.b16 %v921
      %v1569 = vunpack.c.l.b16 %v922
      %v1570 = vunpack.c.l.b16 %v923
      %v1571 = vunpack.c.l.b16 %v924
      %v1572 = vunpack.c.l.b16 %v925
      %v1573 = vunpack.c.l.b16 %v926
      %v1574 = vunpack.c.l.b16 %v927
      %v1575 = vunpack.c.l.b16 %v928
      %v1576 = vunpack.c.l.b16 %v929
      %v1577 = vunpack.c.l.b16 %v930
      %v1578 = vunpack.c.l.b16 %v931
      %v1579 = vunpack.c.l.b16 %v932
      %v1580 = vunpack.c.l.b16 %v933
      %v1581 = vunpack.c.l.b16 %v934
      %v1582 = vunpack.c.l.b16 %v935
      %v1583 = vunpack.c.l.b16 %v936
      %v1584 = vunpack.c.l.b16 %v937
      %v1585 = vunpack.c.l.b16 %v938
      %v1586 = vunpack.c.l.b16 %v939
      %v1587 = vunpack.c.l.b16 %v940
      %v1588 = vunpack.c.l.b16 %v941
      %v1589 = vunpack.c.l.b16 %v942
      %v1590 = vunpack.c.l.b16 %v943
      %v1591 = vunpack.c.l.b16 %v944
      %v1592 = vunpack.c.l.b16 %v945
      %v1593 = vunpack.c.l.b16 %v946
      %v1594 = vunpack.c.l.b16 %v947
      %v1595 = vunpack.c.l.b16 %v948
      %v1596 = vunpack.c.l.b16 %v949
      %v1597 = vunpack.c.l.b16 %v950
      %v1598 = vunpack.c.l.b16 %v951
      %v1599 = vunpack.c.l.b16 %v952
      %v1600 = vunpack.c.l.b16 %v953
      %v1601 = vunpack.c.l.b16 %v954
      %v1602 = vunpack.c.l.b16 %v955
      %v1603 = vunpack.c.l.b16 %v956
      %v1604 = vunpack.c.l.b16 %v957
      %v1605 = vunpack.c.l.b16 %v958
      %v1606 = vunpack.c.l.b16 %v959
      %v1607 = vunpack.c.l.b16 %v960
      %v1608 = vunpack.c.l.b16 %v961
      %v1609 = vunpack.c.l.b16 %v962
      %v1610 = vunpack.c.l.b16 %v963
      %v1611 = vunpack.c.l.b16 %v964
      %v1612 = vunpack.c.l.b16 %v965
      %v1613 = vunpack.c.l.b16 %v966
      %v1614 = vunpack.c.l.b16 %v967
      %v1615 = vunpack.c.l.b16 %v968
      %v1616 = vunpack.c.l.b16 %v969
      %v1617 = vunpack.c.l.b16 %v970
      %v1618 = vunpack.c.l.b16 %v971
      %v1619 = vunpack.c.l.b16 %v972
      %v1620 = vunpack.c.l.b16 %v973
      %v1621 = vunpack.c.l.b16 %v974
      %v1622 = vunpack.c.l.b16 %v975
      %v1623 = vunpack.c.l.b16 %v976
      %v1624 = vunpack.c.l.b16 %v977
      %v1625 = vunpack.c.l.b16 %v978
      %v1626 = vunpack.c.l.b16 %v979
      %v1627 = vunpack.c.l.b16 %v980
      %v1628 = vunpack.c.l.b16 %v981
      %v1629 = vunpack.c.l.b16 %v982
      %v1630 = vunpack.c.l.b16 %v983
      %v1631 = vunpack.c.l.b16 %v984
      %v1632 = vunpack.c.l.b16 %v985
      %v1633 = vunpack.c.l.b16 %v986
      %v1634 = vunpack.c.l.b16 %v987
      %v1635 = vunpack.c.l.b16 %v988
      %v1636 = vunpack.c.l.b16 %v989
      %v1637 = vunpack.c.l.b16 %v990
      %v1638 = vunpack.c.l.b16 %v991
      %v1639 = vunpack.c.l.b16 %v992
      %v1640 = vunpack.c.l.b16 %v993
      %v1641 = vunpack.c.l.b16 %v994
      %v1642 = vunpack.c.l.b16 %v995
      %v1643 = vunpack.c.l.b16 %v996
      %v1644 = vunpack.c.l.b16 %v997
      %v1645 = vunpack.c.l.b16 %v998
      %v1646 = vunpack.c.l.b16 %v999
      %v1647 = vunpack.c.l.b16 %v1000
      %v1648 = vunpack.c.l.b16 %v1001
      %v1649 = vunpack.c.l.b16 %v1002
      %v1650 = vunpack.c.l.b16 %v1003
      %v1651 = vunpack.c.l.b16 %v1004
      %v1652 = vunpack.c.l.b16 %v1005
      %v1653 = vunpack.c.l.b16 %v1006
      %v1654 = vunpack.c.l.b16 %v1007
      %v1655 = vunpack.c.l.b16 %v1008
      %v1656 = vunpack.c.l.b16 %v1009
      %v1657 = vunpack.c.l.b16 %v1010
      %v1658 = vunpack.c.l.b16 %v1011
      %v1659 = vunpack.c.l.b16 %v1012
      %v1660 = vunpack.c.l.b16 %v1013
      %v1661 = vunpack.c.l.b16 %v1014
      %v1662 = vunpack.c.l.b16 %v1015
      %v1663 = vunpack.c.l.b16 %v1016
      %v1664 = vunpack.c.l.b16 %v1017
      %v1665 = vunpack.c.l.b16 %v1018
      %v1666 = vunpack.c.l.b16 %v1019
      %v1667 = vunpack.c.l.b16 %v1020
      %v1668 = vunpack.c.l.b16 %v1021
      %v1669 = vunpack.c.l.b16 %v1022
      %v1670 = vunpack.c.l.b16 %v1023
      %v1671 = vunpack.c.l.b16 %v1024
      %v1672 = vunpack.c.l.b16 %v1025
      %v1673 = vunpack.c.l.b16 %v1026
      %v1674 = vunpack.c.l.b16 %v1027
      %v1675 = vunpack.c.l.b16 %v1028
      %v1676 = vunpack.c.l.b16 %v1029
      %v1677 = vunpack.c.l.b16 %v1030
      %v1678 = vunpack.c.l.b16 %v1031
      %v1679 = vunpack.c.l.b16 %v1032
      %v1680 = vunpack.c.l.b16 %v1033
      %v1681 = vunpack.c.l.b16 %v1034
      %v1682 = vunpack.c.l.b16 %v1035
      %v1683 = vunpack.c.l.b16 %v1036
      %v1684 = vunpack.c.l.b16 %v1037
      %v1685 = vunpack.c.l.b16 %v1038
      %v1686 = vunpack.c.l.b16 %v1039
      %v1687 = vunpack.c.l.b16 %v1040
      %v1688 = vunpack.c.l.b16 %v1041
      %v1689 = vunpack.c.l.b16 %v1042
      %v1690 = vpack.c.b16 %v1435, %v1434
      %v1691 = vpack.c.b16 %v1437, %v1436
      %v1692 = vpack.c.b16 %v1439, %v1438
      %v1693 = vpack.c.b16 %v1441, %v1440
      %v1694 = vpack.c.b16 %v1443, %v1442
      %v1695 = vpack.c.b16 %v1445, %v1444
      %v1696 = vpack.c.b16 %v1447, %v1446
      %v1697 = vpack.c.b16 %v1449, %v1448
      %v1698 = vpack.c.b16 %v1451, %v1450
      %v1699 = vpack.c.b16 %v1453, %v1452
      %v1700 = vpack.c.b16 %v1455, %v1454
      %v1701 = vpack.c.b16 %v1457, %v1456
      %v1702 = vpack.c.b16 %v1459, %v1458
      %v1703 = vpack.c.b16 %v1461, %v1460
      %v1704 = vpack.c.b16 %v1463, %v1462
      %v1705 = vpack.c.b16 %v1465, %v1464
      %v1706 = vpack.c.b16 %v1467, %v1466
      %v1707 = vpack.c.b16 %v1469, %v1468
      %v1708 = vpack.c.b16 %v1471, %v1470
      %v1709 = vpack.c.b16 %v1473, %v1472
      %v1710 = vpack.c.b16 %v1475, %v1474
      %v1711 = vpack.c.b16 %v1477, %v1476
      %v1712 = vpack.c.b16 %v1479, %v1478
      %v1713 = vpack.c.b16 %v1481, %v1480
      %v1714 = vpack.c.b16 %v1483, %v1482
      %v1715 = vpack.c.b16 %v1485, %v1484
      %v1716 = vpack.c.b16 %v1487, %v1486
      %v1717 = vpack.c.b16 %v1489, %v1488
      %v1718 = vpack.c.b16 %v1491, %v1490
      %v1719 = vpack.c.b16 %v1493, %v1492
      %v1720 = vpack.c.b16 %v1495, %v1494
      %v1721 = vpack.c.b16 %v1497, %v1496
      %v1722 = vpack.c.b16 %v1499, %v1498
      %v1723 = vpack.c.b16 %v1501, %v1500
      %v1724 = vpack.c.b16 %v1503, %v1502
      %v1725 = vpack.c.b16 %v1505, %v1504
      %v1726 = vpack.c.b16 %v1507, %v1506
      %v1727 = vpack.c.b16 %v1509, %v1508
      %v1728 = vpack.c.b16 %v1511, %v1510
      %v1729 = vpack.c.b16 %v1513, %v1512
      %v1730 = vpack.c.b16 %v1515, %v1514
      %v1731 = vpack.c.b16 %v1517, %v1516
      %v1732 = vpack.c.b16 %v1519, %v1518
      %v1733 = vpack.c.b16 %v1521, %v1520
      %v1734 = vpack.c.b16 %v1523, %v1522
      %v1735 = vpack.c.b16 %v1525, %v1524
      %v1736 = vpack.c.b16 %v1527, %v1526
      %v1737 = vpack.c.b16 %v1529, %v1528
      %v1738 = vpack.c.b16 %v1531, %v1530
      %v1739 = vpack.c.b16 %v1533, %v1532
      %v1740 = vpack.c.b16 %v1535, %v1534
      %v1741 = vpack.c.b16 %v1537, %v1536
      %v1742 = vpack.c.b16 %v1539, %v1538
      %v1743 = vpack.c.b16 %v1541, %v1540
      %v1744 = vpack.c.b16 %v1543, %v1542
      %v1745 = vpack.c.b16 %v1545, %v1544
      %v1746 = vpack.c.b16 %v1547, %v1546
      %v1747 = vpack.c.b16 %v1549, %v1548
      %v1748 = vpack.c.b16 %v1551, %v1550
      %v1749 = vpack.c.b16 %v1553, %v1552
      %v1750 = vpack.c.b16 %v1555, %v1554
      %v1751 = vpack.c.b16 %v1557, %v1556
      %v1752 = vpack.c.b16 %v1559, %v1558
      %v1753 = vpack.c.b16 %v1561, %v1560
      %v1754 = vpack.c.b16 %v1563, %v1562
      %v1755 = vpack.c.b16 %v1565, %v1564
      %v1756 = vpack.c.b16 %v1567, %v1566
      %v1757 = vpack.c.b16 %v1569, %v1568
      %v1758 = vpack.c.b16 %v1571, %v1570
      %v1759 = vpack.c.b16 %v1573, %v1572
      %v1760 = vpack.c.b16 %v1575, %v1574
      %v1761 = vpack.c.b16 %v1577, %v1576
      %v1762 = vpack.c.b16 %v1579, %v1578
      %v1763 = vpack.c.b16 %v1581, %v1580
      %v1764 = vpack.c.b16 %v1583, %v1582
      %v1765 = vpack.c.b16 %v1585, %v1584
      %v1766 = vpack.c.b16 %v1587, %v1586
      %v1767 = vpack.c.b16 %v1589, %v1588
      %v1768 = vpack.c.b16 %v1591, %v1590
      %v1769 = vpack.c.b16 %v1593, %v1592
      %v1770 = vpack.c.b16 %v1595, %v1594
      %v1771 = vpack.c.b16 %v1597, %v1596
      %v1772 = vpack.c.b16 %v1599, %v1598
      %v1773 = vpack.c.b16 %v1601, %v1600
      %v1774 = vpack.c.b16 %v1603, %v1602
      %v1775 = vpack.c.b16 %v1605, %v1604
      %v1776 = vpack.c.b16 %v1607, %v1606
      %v1777 = vpack.c.b16 %v1609, %v1608
      %v1778 = vpack.c.b16 %v1611, %v1610
      %v1779 = vpack.c.b16 %v1613, %v1612
      %v1780 = vpack.c.b16 %v1615, %v1614
      %v1781 = vpack.c.b16 %v1617, %v1616
      %v1782 = vpack.c.b16 %v1619, %v1618
      %v1783 = vpack.c.b16 %v1621, %v1620
      %v1784 = vpack.c.b16 %v1623, %v1622
      %v1785 = vpack.c.b16 %v1625, %v1624
      %v1786 = vpack.c.b16 %v1627, %v1626
      %v1787 = vpack.c.b16 %v1629, %v1628
      %v1788 = vpack.c.b16 %v1631, %v1630
      %v1789 = vpack.c.b16 %v1633, %v1632
      %v1790 = vpack.c.b16 %v1635, %v1634
      %v1791 = vpack.c.b16 %v1637, %v1636
      %v1792 = vpack.c.b16 %v1639, %v1638
      %v1793 = vpack.c.b16 %v1641, %v1640
      %v1794 = vpack.c.b16 %v1643, %v1642
      %v1795 = vpack.c.b16 %v1645, %v1644
      %v1796 = vpack.c.b16 %v1647, %v1646
      %v1797 = vpack.c.b16 %v1649, %v1648
      %v1798 = vpack.c.b16 %v1651, %v1650
      %v1799 = vpack.c.b16 %v1653, %v1652
      %v1800 = vpack.c.b16 %v1655, %v1654
      %v1801 = vpack.c.b16 %v1657, %v1656
      %v1802 = vpack.c.b16 %v1659, %v1658
      %v1803 = vpack.c.b16 %v1661, %v1660
      %v1804 = vpack.c.b16 %v1663, %v1662
      %v1805 = vpack.c.b16 %v1665, %v1664
      %v1806 = vpack.c.b16 %v1667, %v1666
      %v1807 = vpack.c.b16 %v1669, %v1668
      %v1808 = vpack.c.b16 %v1671, %v1670
      %v1809 = vpack.c.b16 %v1673, %v1672
      %v1810 = vpack.c.b16 %v1675, %v1674
      %v1811 = vpack.c.b16 %v1677, %v1676
      %v1812 = vpack.c.b16 %v1679, %v1678
      %v1813 = vpack.c.b16 %v1681, %v1680
      %v1814 = vpack.c.b16 %v1683, %v1682
      %v1815 = vpack.c.b16 %v1685, %v1684
      %v1816 = vpack.c.b16 %v1687, %v1686
      %v1817 = vpack.c.b16 %v1689, %v1688
      %1946 = vmatprep.subr.bf16.mxu0 0
      %1947 = vmatpush1.bf16.msra.mxu0 %v1690
      %1948 = vmatprep.subr.bf16.mxu0 0
      %1949 = vmatpush1.bf16.msra.mxu0 %v1691
      %1950 = vmatprep.subr.bf16.mxu0 0
      %1951 = vmatpush1.bf16.msra.mxu0 %v1692
      %1952 = vmatprep.subr.bf16.mxu0 0
      %1953 = vmatpush1.bf16.msra.mxu0 %v1693
      %1954 = vmatprep.subr.bf16.mxu0 0
      %1955 = vmatpush1.bf16.msra.mxu0 %v1694
      %1956 = vmatprep.subr.bf16.mxu0 0
      %1957 = vmatpush1.bf16.msra.mxu0 %v1695
      %1958 = vmatprep.subr.bf16.mxu0 0
      %1959 = vmatpush1.bf16.msra.mxu0 %v1696
      %1960 = vmatprep.subr.bf16.mxu0 0
      %1961 = vmatpush1.bf16.msra.mxu0 %v1697
      %1962 = vmatprep.subr.bf16.mxu0 0
      %1963 = vmatpush1.bf16.msra.mxu0 %v1698
      %1964 = vmatprep.subr.bf16.mxu0 0
      %1965 = vmatpush1.bf16.msra.mxu0 %v1699
      %1966 = vmatprep.subr.bf16.mxu0 0
      %1967 = vmatpush1.bf16.msra.mxu0 %v1700
      %1968 = vmatprep.subr.bf16.mxu0 0
      %1969 = vmatpush1.bf16.msra.mxu0 %v1701
      %1970 = vmatprep.subr.bf16.mxu0 0
      %1971 = vmatpush1.bf16.msra.mxu0 %v1702
      %1972 = vmatprep.subr.bf16.mxu0 0
      %1973 = vmatpush1.bf16.msra.mxu0 %v1703
      %1974 = vmatprep.subr.bf16.mxu0 0
      %1975 = vmatpush1.bf16.msra.mxu0 %v1704
      %1976 = vmatprep.subr.bf16.mxu0 0
      %1977 = vmatpush1.bf16.msra.mxu0 %v1705
      %1978 = vmatprep.mubr.bf16.mxu0 %v1051
      %1979 = vmatmul.mubr.bf16.gmra.mrb[0].mxu0 %v1050
      %v1980 = vpop.f32.mrb[0].mxu0
      %v1981 = vadd.f32 %v1048, %v1980
      %v1982 = vpop.f32.mrb[0].mxu0
      %v1983 = vpop.f32.mrb[0].mxu0
      %v1984 = vadd.f32 %v1048, %v1983
      %v1985 = vpop.f32.mrb[0].mxu0
      %1986 = vmatprep.mubr.bf16.mxu0 %v1067
      %1987 = vmatmul.mubr.bf16.gmra.mrb[0].mxu0 %v1066
      %v1988 = vpop.f32.mrb[0].mxu0
      %v1989 = vadd.f32 %v1048, %v1988
      %v1990 = vpop.f32.mrb[0].mxu0
      %v1991 = vpop.f32.mrb[0].mxu0
      %v1992 = vadd.f32 %v1048, %v1991
      %v1993 = vpop.f32.mrb[0].mxu0
      %1994 = vmatprep.mubr.bf16.mxu0 %v1083
      %1995 = vmatmul.mubr.bf16.gmra.mrb[0].mxu0 %v1082
      %v1996 = vpop.f32.mrb[0].mxu0
      %v1997 = vadd.f32 %v1048, %v1996
      %v1998 = vpop.f32.mrb[0].mxu0
      %v1999 = vpop.f32.mrb[0].mxu0
      %v2000 = vadd.f32 %v1048, %v1999
      %v2001 = vpop.f32.mrb[0].mxu0
      %2002 = vmatprep.mubr.bf16.mxu0 %v1099
      %2003 = vmatmul.mubr.bf16.gmra.mrb[0].mxu0 %v1098
      %v2004 = vpop.f32.mrb[0].mxu0
      %v2005 = vadd.f32 %v1048, %v2004
      %v2006 = vpop.f32.mrb[0].mxu0
      %v2007 = vpop.f32.mrb[0].mxu0
      %v2008 = vadd.f32 %v1048, %v2007
      %v2009 = vpop.f32.mrb[0].mxu0
      %2010 = vdwg.mxu0
      %2011 = vmatprep.subr.bf16.mxu0 0
      %2012 = vmatpush1.bf16.msra.mxu0 %v1706
      %2013 = vmatprep.subr.bf16.mxu0 0
      %2014 = vmatpush1.bf16.msra.mxu0 %v1707
      %2015 = vmatprep.subr.bf16.mxu0 0
      %2016 = vmatpush1.bf16.msra.mxu0 %v1708
      %2017 = vmatprep.subr.bf16.mxu0 0
      %2018 = vmatpush1.bf16.msra.mxu0 %v1709
      %2019 = vmatprep.subr.bf16.mxu0 0
      %2020 = vmatpush1.bf16.msra.mxu0 %v1710
      %2021 = vmatprep.subr.bf16.mxu0 0
      %2022 = vmatpush1.bf16.msra.mxu0 %v1711
      %2023 = vmatprep.subr.bf16.mxu0 0
      %2024 = vmatpush1.bf16.msra.mxu0 %v1712
      %2025 = vmatprep.subr.bf16.mxu0 0
      %2026 = vmatpush1.bf16.msra.mxu0 %v1713
      %2027 = vmatprep.subr.bf16.mxu0 0
      %2028 = vmatpush1.bf16.msra.mxu0 %v1714
      %2029 = vmatprep.subr.bf16.mxu0 0
      %2030 = vmatpush1.bf16.msra.mxu0 %v1715
      %2031 = vmatprep.subr.bf16.mxu0 0
      %2032 = vmatpush1.bf16.msra.mxu0 %v1716
      %2033 = vmatprep.subr.bf16.mxu0 0
      %2034 = vmatpush1.bf16.msra.mxu0 %v1717
      %2035 = vmatprep.subr.bf16.mxu0 0
      %2036 = vmatpush1.bf16.msra.mxu0 %v1718
      %2037 = vmatprep.subr.bf16.mxu0 0
      %2038 = vmatpush1.bf16.msra.mxu0 %v1719
      %2039 = vmatprep.subr.bf16.mxu0 0
      %2040 = vmatpush1.bf16.msra.mxu0 %v1720
      %2041 = vmatprep.subr.bf16.mxu0 0
      %2042 = vmatpush1.bf16.msra.mxu0 %v1721
      %2043 = vmatprep.mubr.bf16.mxu0 %v1053
      %2044 = vmatmul.mubr.bf16.gmra.mrb[0].mxu0 %v1052
      %v2045 = vpop.f32.mrb[0].mxu0
      %v2046 = vadd.f32 %v1981, %v2045
      %v2047 = vpop.f32.mrb[0].mxu0
      %v2048 = vpop.f32.mrb[0].mxu0
      %v2049 = vadd.f32 %v1984, %v2048
      %v2050 = vpop.f32.mrb[0].mxu0
      %2051 = vmatprep.mubr.bf16.mxu0 %v1069
      %2052 = vmatmul.mubr.bf16.gmra.mrb[0].mxu0 %v1068
      %v2053 = vpop.f32.mrb[0].mxu0
      %v2054 = vadd.f32 %v1989, %v2053
      %v2055 = vpop.f32.mrb[0].mxu0
      %v2056 = vpop.f32.mrb[0].mxu0
      %v2057 = vadd.f32 %v1992, %v2056
      %v2058 = vpop.f32.mrb[0].mxu0
      %2059 = vmatprep.mubr.bf16.mxu0 %v1085
      %2060 = vmatmul.mubr.bf16.gmra.mrb[0].mxu0 %v1084
      %v2061 = vpop.f32.mrb[0].mxu0
      %v2062 = vadd.f32 %v1997, %v2061
      %v2063 = vpop.f32.mrb[0].mxu0
      %v2064 = vpop.f32.mrb[0].mxu0
      %v2065 = vadd.f32 %v2000, %v2064
      %v2066 = vpop.f32.mrb[0].mxu0
      %2067 = vmatprep.mubr.bf16.mxu0 %v1101
      %2068 = vmatmul.mubr.bf16.gmra.mrb[0].mxu0 %v1100
      %v2069 = vpop.f32.mrb[0].mxu0
      %v2070 = vadd.f32 %v2005, %v2069
      %v2071 = vpop.f32.mrb[0].mxu0
      %v2072 = vpop.f32.mrb[0].mxu0
      %v2073 = vadd.f32 %v2008, %v2072
      %v2074 = vpop.f32.mrb[0].mxu0
      %2075 = vdwg.mxu0
      %2076 = vmatprep.subr.bf16.mxu0 0
      %2077 = vmatpush1.bf16.msra.mxu0 %v1722
      %2078 = vmatprep.subr.bf16.mxu0 0
      %2079 = vmatpush1.bf16.msra.mxu0 %v1723
      %2080 = vmatprep.subr.bf16.mxu0 0
      %2081 = vmatpush1.bf16.msra.mxu0 %v1724
      %2082 = vmatprep.subr.bf16.mxu0 0
      %2083 = vmatpush1.bf16.msra.mxu0 %v1725
      %2084 = vmatprep.subr.bf16.mxu0 0
      %2085 = vmatpush1.bf16.msra.mxu0 %v1726
      %2086 = vmatprep.subr.bf16.mxu0 0
      %2087 = vmatpush1.bf16.msra.mxu0 %v1727
      %2088 = vmatprep.subr.bf16.mxu0 0
      %2089 = vmatpush1.bf16.msra.mxu0 %v1728
      %2090 = vmatprep.subr.bf16.mxu0 0
      %2091 = vmatpush1.bf16.msra.mxu0 %v1729
      %2092 = vmatprep.subr.bf16.mxu0 0
      %2093 = vmatpush1.bf16.msra.mxu0 %v1730
      %2094 = vmatprep.subr.bf16.mxu0 0
      %2095 = vmatpush1.bf16.msra.mxu0 %v1731
      %2096 = vmatprep.subr.bf16.mxu0 0
      %2097 = vmatpush1.bf16.msra.mxu0 %v1732
      %2098 = vmatprep.subr.bf16.mxu0 0
      %2099 = vmatpush1.bf16.msra.mxu0 %v1733
      %2100 = vmatprep.subr.bf16.mxu0 0
      %2101 = vmatpush1.bf16.msra.mxu0 %v1734
      %2102 = vmatprep.subr.bf16.mxu0 0
      %2103 = vmatpush1.bf16.msra.mxu0 %v1735
      %2104 = vmatprep.subr.bf16.mxu0 0
      %2105 = vmatpush1.bf16.msra.mxu0 %v1736
      %2106 = vmatprep.subr.bf16.mxu0 0
      %2107 = vmatpush1.bf16.msra.mxu0 %v1737
      %2108 = vmatprep.mubr.bf16.mxu0 %v1055
      %2109 = vmatmul.mubr.bf16.gmra.mrb[0].mxu0 %v1054
      %v2110 = vpop.f32.mrb[0].mxu0
      %v2111 = vadd.f32 %v2046, %v2110
      %v2112 = vpop.f32.mrb[0].mxu0
      %v2113 = vpop.f32.mrb[0].mxu0
      %v2114 = vadd.f32 %v2049, %v2113
      %v2115 = vpop.f32.mrb[0].mxu0
      %2116 = vmatprep.mubr.bf16.mxu0 %v1071
      %2117 = vmatmul.mubr.bf16.gmra.mrb[0].mxu0 %v1070
      %v2118 = vpop.f32.mrb[0].mxu0
      %v2119 = vadd.f32 %v2054, %v2118
      %v2120 = vpop.f32.mrb[0].mxu0
      %v2121 = vpop.f32.mrb[0].mxu0
      %v2122 = vadd.f32 %v2057, %v2121
      %v2123 = vpop.f32.mrb[0].mxu0
      %2124 = vmatprep.mubr.bf16.mxu0 %v1087
      %2125 = vmatmul.mubr.bf16.gmra.mrb[0].mxu0 %v1086
      %v2126 = vpop.f32.mrb[0].mxu0
      %v2127 = vadd.f32 %v2062, %v2126
      %v2128 = vpop.f32.mrb[0].mxu0
      %v2129 = vpop.f32.mrb[0].mxu0
      %v2130 = vadd.f32 %v2065, %v2129
      %v2131 = vpop.f32.mrb[0].mxu0
      %2132 = vmatprep.mubr.bf16.mxu0 %v1103
      %2133 = vmatmul.mubr.bf16.gmra.mrb[0].mxu0 %v1102
      %v2134 = vpop.f32.mrb[0].mxu0
      %v2135 = vadd.f32 %v2070, %v2134
      %v2136 = vpop.f32.mrb[0].mxu0
      %v2137 = vpop.f32.mrb[0].mxu0
      %v2138 = vadd.f32 %v2073, %v2137
      %v2139 = vpop.f32.mrb[0].mxu0
      %2140 = vdwg.mxu0
      %2141 = vmatprep.subr.bf16.mxu0 0
      %2142 = vmatpush1.bf16.msra.mxu0 %v1738
      %2143 = vmatprep.subr.bf16.mxu0 0
      %2144 = vmatpush1.bf16.msra.mxu0 %v1739
      %2145 = vmatprep.subr.bf16.mxu0 0
      %2146 = vmatpush1.bf16.msra.mxu0 %v1740
      %2147 = vmatprep.subr.bf16.mxu0 0
      %2148 = vmatpush1.bf16.msra.mxu0 %v1741
      %2149 = vmatprep.subr.bf16.mxu0 0
      %2150 = vmatpush1.bf16.msra.mxu0 %v1742
      %2151 = vmatprep.subr.bf16.mxu0 0
      %2152 = vmatpush1.bf16.msra.mxu0 %v1743
      %2153 = vmatprep.subr.bf16.mxu0 0
      %2154 = vmatpush1.bf16.msra.mxu0 %v1744
      %2155 = vmatprep.subr.bf16.mxu0 0
      %2156 = vmatpush1.bf16.msra.mxu0 %v1745
      %2157 = vmatprep.subr.bf16.mxu0 0
      %2158 = vmatpush1.bf16.msra.mxu0 %v1746
      %2159 = vmatprep.subr.bf16.mxu0 0
      %2160 = vmatpush1.bf16.msra.mxu0 %v1747
      %2161 = vmatprep.subr.bf16.mxu0 0
      %2162 = vmatpush1.bf16.msra.mxu0 %v1748
      %2163 = vmatprep.subr.bf16.mxu0 0
      %2164 = vmatpush1.bf16.msra.mxu0 %v1749
      %2165 = vmatprep.subr.bf16.mxu0 0
      %2166 = vmatpush1.bf16.msra.mxu0 %v1750
      %2167 = vmatprep.subr.bf16.mxu0 0
      %2168 = vmatpush1.bf16.msra.mxu0 %v1751
      %2169 = vmatprep.subr.bf16.mxu0 0
      %2170 = vmatpush1.bf16.msra.mxu0 %v1752
      %2171 = vmatprep.subr.bf16.mxu0 0
      %2172 = vmatpush1.bf16.msra.mxu0 %v1753
      %2173 = vmatprep.mubr.bf16.mxu0 %v1057
      %2174 = vmatmul.mubr.bf16.gmra.mrb[0].mxu0 %v1056
      %v2175 = vpop.f32.mrb[0].mxu0
      %v2176 = vadd.f32 %v2111, %v2175
      %v2177 = vpop.f32.mrb[0].mxu0
      %v2178 = vpop.f32.mrb[0].mxu0
      %v2179 = vadd.f32 %v2114, %v2178
      %v2180 = vpop.f32.mrb[0].mxu0
      %2181 = vmatprep.mubr.bf16.mxu0 %v1073
      %2182 = vmatmul.mubr.bf16.gmra.mrb[0].mxu0 %v1072
      %v2183 = vpop.f32.mrb[0].mxu0
      %v2184 = vadd.f32 %v2119, %v2183
      %v2185 = vpop.f32.mrb[0].mxu0
      %v2186 = vpop.f32.mrb[0].mxu0
      %v2187 = vadd.f32 %v2122, %v2186
      %v2188 = vpop.f32.mrb[0].mxu0
      %2189 = vmatprep.mubr.bf16.mxu0 %v1089
      %2190 = vmatmul.mubr.bf16.gmra.mrb[0].mxu0 %v1088
      %v2191 = vpop.f32.mrb[0].mxu0
      %v2192 = vadd.f32 %v2127, %v2191
      %v2193 = vpop.f32.mrb[0].mxu0
      %v2194 = vpop.f32.mrb[0].mxu0
      %v2195 = vadd.f32 %v2130, %v2194
      %v2196 = vpop.f32.mrb[0].mxu0
      %2197 = vmatprep.mubr.bf16.mxu0 %v1105
      %2198 = vmatmul.mubr.bf16.gmra.mrb[0].mxu0 %v1104
      %v2199 = vpop.f32.mrb[0].mxu0
      %v2200 = vadd.f32 %v2135, %v2199
      %v2201 = vpop.f32.mrb[0].mxu0
      %v2202 = vpop.f32.mrb[0].mxu0
      %v2203 = vadd.f32 %v2138, %v2202
      %v2204 = vpop.f32.mrb[0].mxu0
      %2205 = vdwg.mxu0
      %2206 = vmatprep.subr.bf16.mxu0 0
      %2207 = vmatpush1.bf16.msra.mxu0 %v1754
      %2208 = vmatprep.subr.bf16.mxu0 0
      %2209 = vmatpush1.bf16.msra.mxu0 %v1755
      %2210 = vmatprep.subr.bf16.mxu0 0
      %2211 = vmatpush1.bf16.msra.mxu0 %v1756
      %2212 = vmatprep.subr.bf16.mxu0 0
      %2213 = vmatpush1.bf16.msra.mxu0 %v1757
      %2214 = vmatprep.subr.bf16.mxu0 0
      %2215 = vmatpush1.bf16.msra.mxu0 %v1758
      %2216 = vmatprep.subr.bf16.mxu0 0
      %2217 = vmatpush1.bf16.msra.mxu0 %v1759
      %2218 = vmatprep.subr.bf16.mxu0 0
      %2219 = vmatpush1.bf16.msra.mxu0 %v1760
      %2220 = vmatprep.subr.bf16.mxu0 0
      %2221 = vmatpush1.bf16.msra.mxu0 %v1761
      %2222 = vmatprep.subr.bf16.mxu0 0
      %2223 = vmatpush1.bf16.msra.mxu0 %v1762
      %2224 = vmatprep.subr.bf16.mxu0 0
      %2225 = vmatpush1.bf16.msra.mxu0 %v1763
      %2226 = vmatprep.subr.bf16.mxu0 0
      %2227 = vmatpush1.bf16.msra.mxu0 %v1764
      %2228 = vmatprep.subr.bf16.mxu0 0
      %2229 = vmatpush1.bf16.msra.mxu0 %v1765
      %2230 = vmatprep.subr.bf16.mxu0 0
      %2231 = vmatpush1.bf16.msra.mxu0 %v1766
      %2232 = vmatprep.subr.bf16.mxu0 0
      %2233 = vmatpush1.bf16.msra.mxu0 %v1767
      %2234 = vmatprep.subr.bf16.mxu0 0
      %2235 = vmatpush1.bf16.msra.mxu0 %v1768
      %2236 = vmatprep.subr.bf16.mxu0 0
      %2237 = vmatpush1.bf16.msra.mxu0 %v1769
      %2238 = vmatprep.mubr.bf16.mxu0 %v1059
      %2239 = vmatmul.mubr.bf16.gmra.mrb[0].mxu0 %v1058
      %v2240 = vpop.f32.mrb[0].mxu0
      %v2241 = vadd.f32 %v2176, %v2240
      %v2242 = vpop.f32.mrb[0].mxu0
      %v2243 = vpop.f32.mrb[0].mxu0
      %v2244 = vadd.f32 %v2179, %v2243
      %v2245 = vpop.f32.mrb[0].mxu0
      %2246 = vmatprep.mubr.bf16.mxu0 %v1075
      %2247 = vmatmul.mubr.bf16.gmra.mrb[0].mxu0 %v1074
      %v2248 = vpop.f32.mrb[0].mxu0
      %v2249 = vadd.f32 %v2184, %v2248
      %v2250 = vpop.f32.mrb[0].mxu0
      %v2251 = vpop.f32.mrb[0].mxu0
      %v2252 = vadd.f32 %v2187, %v2251
      %v2253 = vpop.f32.mrb[0].mxu0
      %2254 = vmatprep.mubr.bf16.mxu0 %v1091
      %2255 = vmatmul.mubr.bf16.gmra.mrb[0].mxu0 %v1090
      %v2256 = vpop.f32.mrb[0].mxu0
      %v2257 = vadd.f32 %v2192, %v2256
      %v2258 = vpop.f32.mrb[0].mxu0
      %v2259 = vpop.f32.mrb[0].mxu0
      %v2260 = vadd.f32 %v2195, %v2259
      %v2261 = vpop.f32.mrb[0].mxu0
      %2262 = vmatprep.mubr.bf16.mxu0 %v1107
      %2263 = vmatmul.mubr.bf16.gmra.mrb[0].mxu0 %v1106
      %v2264 = vpop.f32.mrb[0].mxu0
      %v2265 = vadd.f32 %v2200, %v2264
      %v2266 = vpop.f32.mrb[0].mxu0
      %v2267 = vpop.f32.mrb[0].mxu0
      %v2268 = vadd.f32 %v2203, %v2267
      %v2269 = vpop.f32.mrb[0].mxu0
      %2270 = vdwg.mxu0
      %2271 = vmatprep.subr.bf16.mxu0 0
      %2272 = vmatpush1.bf16.msra.mxu0 %v1770
      %2273 = vmatprep.subr.bf16.mxu0 0
      %2274 = vmatpush1.bf16.msra.mxu0 %v1771
      %2275 = vmatprep.subr.bf16.mxu0 0
      %2276 = vmatpush1.bf16.msra.mxu0 %v1772
      %2277 = vmatprep.subr.bf16.mxu0 0
      %2278 = vmatpush1.bf16.msra.mxu0 %v1773
      %2279 = vmatprep.subr.bf16.mxu0 0
      %2280 = vmatpush1.bf16.msra.mxu0 %v1774
      %2281 = vmatprep.subr.bf16.mxu0 0
      %2282 = vmatpush1.bf16.msra.mxu0 %v1775
      %2283 = vmatprep.subr.bf16.mxu0 0
      %2284 = vmatpush1.bf16.msra.mxu0 %v1776
      %2285 = vmatprep.subr.bf16.mxu0 0
      %2286 = vmatpush1.bf16.msra.mxu0 %v1777
      %2287 = vmatprep.subr.bf16.mxu0 0
      %2288 = vmatpush1.bf16.msra.mxu0 %v1778
      %2289 = vmatprep.subr.bf16.mxu0 0
      %2290 = vmatpush1.bf16.msra.mxu0 %v1779
      %2291 = vmatprep.subr.bf16.mxu0 0
      %2292 = vmatpush1.bf16.msra.mxu0 %v1780
      %2293 = vmatprep.subr.bf16.mxu0 0
      %2294 = vmatpush1.bf16.msra.mxu0 %v1781
      %2295 = vmatprep.subr.bf16.mxu0 0
      %2296 = vmatpush1.bf16.msra.mxu0 %v1782
      %2297 = vmatprep.subr.bf16.mxu0 0
      %2298 = vmatpush1.bf16.msra.mxu0 %v1783
      %2299 = vmatprep.subr.bf16.mxu0 0
      %2300 = vmatpush1.bf16.msra.mxu0 %v1784
      %2301 = vmatprep.subr.bf16.mxu0 0
      %2302 = vmatpush1.bf16.msra.mxu0 %v1785
      %2303 = vmatprep.mubr.bf16.mxu0 %v1061
      %2304 = vmatmul.mubr.bf16.gmra.mrb[0].mxu0 %v1060
      %v2305 = vpop.f32.mrb[0].mxu0
      %v2306 = vadd.f32 %v2241, %v2305
      %v2307 = vpop.f32.mrb[0].mxu0
      %v2308 = vpop.f32.mrb[0].mxu0
      %v2309 = vadd.f32 %v2244, %v2308
      %v2310 = vpop.f32.mrb[0].mxu0
      %2311 = vmatprep.mubr.bf16.mxu0 %v1077
      %2312 = vmatmul.mubr.bf16.gmra.mrb[0].mxu0 %v1076
      %v2313 = vpop.f32.mrb[0].mxu0
      %v2314 = vadd.f32 %v2249, %v2313
      %v2315 = vpop.f32.mrb[0].mxu0
      %v2316 = vpop.f32.mrb[0].mxu0
      %v2317 = vadd.f32 %v2252, %v2316
      %v2318 = vpop.f32.mrb[0].mxu0
      %2319 = vmatprep.mubr.bf16.mxu0 %v1093
      %2320 = vmatmul.mubr.bf16.gmra.mrb[0].mxu0 %v1092
      %v2321 = vpop.f32.mrb[0].mxu0
      %v2322 = vadd.f32 %v2257, %v2321
      %v2323 = vpop.f32.mrb[0].mxu0
      %v2324 = vpop.f32.mrb[0].mxu0
      %v2325 = vadd.f32 %v2260, %v2324
      %v2326 = vpop.f32.mrb[0].mxu0
      %2327 = vmatprep.mubr.bf16.mxu0 %v1109
      %2328 = vmatmul.mubr.bf16.gmra.mrb[0].mxu0 %v1108
      %v2329 = vpop.f32.mrb[0].mxu0
      %v2330 = vadd.f32 %v2265, %v2329
      %v2331 = vpop.f32.mrb[0].mxu0
      %v2332 = vpop.f32.mrb[0].mxu0
      %v2333 = vadd.f32 %v2268, %v2332
      %v2334 = vpop.f32.mrb[0].mxu0
      %2335 = vdwg.mxu0
      %2336 = vmatprep.subr.bf16.mxu0 0
      %2337 = vmatpush1.bf16.msra.mxu0 %v1786
      %2338 = vmatprep.subr.bf16.mxu0 0
      %2339 = vmatpush1.bf16.msra.mxu0 %v1787
      %2340 = vmatprep.subr.bf16.mxu0 0
      %2341 = vmatpush1.bf16.msra.mxu0 %v1788
      %2342 = vmatprep.subr.bf16.mxu0 0
      %2343 = vmatpush1.bf16.msra.mxu0 %v1789
      %2344 = vmatprep.subr.bf16.mxu0 0
      %2345 = vmatpush1.bf16.msra.mxu0 %v1790
      %2346 = vmatprep.subr.bf16.mxu0 0
      %2347 = vmatpush1.bf16.msra.mxu0 %v1791
      %2348 = vmatprep.subr.bf16.mxu0 0
      %2349 = vmatpush1.bf16.msra.mxu0 %v1792
      %2350 = vmatprep.subr.bf16.mxu0 0
      %2351 = vmatpush1.bf16.msra.mxu0 %v1793
      %2352 = vmatprep.subr.bf16.mxu0 0
      %2353 = vmatpush1.bf16.msra.mxu0 %v1794
      %2354 = vmatprep.subr.bf16.mxu0 0
      %2355 = vmatpush1.bf16.msra.mxu0 %v1795
      %2356 = vmatprep.subr.bf16.mxu0 0
      %2357 = vmatpush1.bf16.msra.mxu0 %v1796
      %2358 = vmatprep.subr.bf16.mxu0 0
      %2359 = vmatpush1.bf16.msra.mxu0 %v1797
      %2360 = vmatprep.subr.bf16.mxu0 0
      %2361 = vmatpush1.bf16.msra.mxu0 %v1798
      %2362 = vmatprep.subr.bf16.mxu0 0
      %2363 = vmatpush1.bf16.msra.mxu0 %v1799
      %2364 = vmatprep.subr.bf16.mxu0 0
      %2365 = vmatpush1.bf16.msra.mxu0 %v1800
      %2366 = vmatprep.subr.bf16.mxu0 0
      %2367 = vmatpush1.bf16.msra.mxu0 %v1801
      %2368 = vmatprep.mubr.bf16.mxu0 %v1063
      %2369 = vmatmul.mubr.bf16.gmra.mrb[0].mxu0 %v1062
      %v2370 = vpop.f32.mrb[0].mxu0
      %v2371 = vadd.f32 %v2306, %v2370
      %v2372 = vpop.f32.mrb[0].mxu0
      %v2373 = vpop.f32.mrb[0].mxu0
      %v2374 = vadd.f32 %v2309, %v2373
      %v2375 = vpop.f32.mrb[0].mxu0
      %2376 = vmatprep.mubr.bf16.mxu0 %v1079
      %2377 = vmatmul.mubr.bf16.gmra.mrb[0].mxu0 %v1078
      %v2378 = vpop.f32.mrb[0].mxu0
      %v2379 = vadd.f32 %v2314, %v2378
      %v2380 = vpop.f32.mrb[0].mxu0
      %v2381 = vpop.f32.mrb[0].mxu0
      %v2382 = vadd.f32 %v2317, %v2381
      %v2383 = vpop.f32.mrb[0].mxu0
      %2384 = vmatprep.mubr.bf16.mxu0 %v1095
      %2385 = vmatmul.mubr.bf16.gmra.mrb[0].mxu0 %v1094
      %v2386 = vpop.f32.mrb[0].mxu0
      %v2387 = vadd.f32 %v2322, %v2386
      %v2388 = vpop.f32.mrb[0].mxu0
      %v2389 = vpop.f32.mrb[0].mxu0
      %v2390 = vadd.f32 %v2325, %v2389
      %v2391 = vpop.f32.mrb[0].mxu0
      %2392 = vmatprep.mubr.bf16.mxu0 %v1111
      %2393 = vmatmul.mubr.bf16.gmra.mrb[0].mxu0 %v1110
      %v2394 = vpop.f32.mrb[0].mxu0
      %v2395 = vadd.f32 %v2330, %v2394
      %v2396 = vpop.f32.mrb[0].mxu0
      %v2397 = vpop.f32.mrb[0].mxu0
      %v2398 = vadd.f32 %v2333, %v2397
      %v2399 = vpop.f32.mrb[0].mxu0
      %2400 = vdwg.mxu0
      %2401 = vmatprep.subr.bf16.mxu0 0
      %2402 = vmatpush1.bf16.msra.mxu0 %v1802
      %2403 = vmatprep.subr.bf16.mxu0 0
      %2404 = vmatpush1.bf16.msra.mxu0 %v1803
      %2405 = vmatprep.subr.bf16.mxu0 0
      %2406 = vmatpush1.bf16.msra.mxu0 %v1804
      %2407 = vmatprep.subr.bf16.mxu0 0
      %2408 = vmatpush1.bf16.msra.mxu0 %v1805
      %2409 = vmatprep.subr.bf16.mxu0 0
      %2410 = vmatpush1.bf16.msra.mxu0 %v1806
      %2411 = vmatprep.subr.bf16.mxu0 0
      %2412 = vmatpush1.bf16.msra.mxu0 %v1807
      %2413 = vmatprep.subr.bf16.mxu0 0
      %2414 = vmatpush1.bf16.msra.mxu0 %v1808
      %2415 = vmatprep.subr.bf16.mxu0 0
      %2416 = vmatpush1.bf16.msra.mxu0 %v1809
      %2417 = vmatprep.subr.bf16.mxu0 0
      %2418 = vmatpush1.bf16.msra.mxu0 %v1810
      %2419 = vmatprep.subr.bf16.mxu0 0
      %2420 = vmatpush1.bf16.msra.mxu0 %v1811
      %2421 = vmatprep.subr.bf16.mxu0 0
      %2422 = vmatpush1.bf16.msra.mxu0 %v1812
      %2423 = vmatprep.subr.bf16.mxu0 0
      %2424 = vmatpush1.bf16.msra.mxu0 %v1813
      %2425 = vmatprep.subr.bf16.mxu0 0
      %2426 = vmatpush1.bf16.msra.mxu0 %v1814
      %2427 = vmatprep.subr.bf16.mxu0 0
      %2428 = vmatpush1.bf16.msra.mxu0 %v1815
      %2429 = vmatprep.subr.bf16.mxu0 0
      %2430 = vmatpush1.bf16.msra.mxu0 %v1816
      %2431 = vmatprep.subr.bf16.mxu0 0
      %2432 = vmatpush1.bf16.msra.mxu0 %v1817
      %2433 = vmatprep.mubr.bf16.mxu0 %v1065
      %2434 = vmatmul.mubr.bf16.gmra.mrb[0].mxu0 %v1064
      %v2435 = vpop.f32.mrb[0].mxu0
      %v2436 = vadd.f32 %v2371, %v2435
      %v2437 = vpop.f32.mrb[0].mxu0
      %v2438 = vpop.f32.mrb[0].mxu0
      %v2439 = vadd.f32 %v2374, %v2438
      %v2440 = vpop.f32.mrb[0].mxu0
      %2441 = vmatprep.mubr.bf16.mxu0 %v1081
      %2442 = vmatmul.mubr.bf16.gmra.mrb[0].mxu0 %v1080
      %v2443 = vpop.f32.mrb[0].mxu0
      %v2444 = vadd.f32 %v2379, %v2443
      %v2445 = vpop.f32.mrb[0].mxu0
      %v2446 = vpop.f32.mrb[0].mxu0
      %v2447 = vadd.f32 %v2382, %v2446
      %v2448 = vpop.f32.mrb[0].mxu0
      %2449 = vmatprep.mubr.bf16.mxu0 %v1097
      %2450 = vmatmul.mubr.bf16.gmra.mrb[0].mxu0 %v1096
      %v2451 = vpop.f32.mrb[0].mxu0
      %v2452 = vadd.f32 %v2387, %v2451
      %v2453 = vpop.f32.mrb[0].mxu0
      %v2454 = vpop.f32.mrb[0].mxu0
      %v2455 = vadd.f32 %v2390, %v2454
      %v2456 = vpop.f32.mrb[0].mxu0
      %2457 = vmatprep.mubr.bf16.mxu0 %v1113
      %2458 = vmatmul.mubr.bf16.gmra.mrb[0].mxu0 %v1112
      %v2459 = vpop.f32.mrb[0].mxu0
      %v2460 = vadd.f32 %v2395, %v2459
      %v2461 = vpop.f32.mrb[0].mxu0
      %v2462 = vpop.f32.mrb[0].mxu0
      %v2463 = vadd.f32 %v2398, %v2462
      %v2464 = vpop.f32.mrb[0].mxu0
      %2465 = vdwg.mxu0
      %vm2466 = vcmp.gt.f32.partialorder %v2436, 0.0
      %vm2467 = vcmp.gt.f32.partialorder %v2439, 0.0
      %vm2468 = vcmp.gt.f32.partialorder %v2444, 0.0
      %vm2469 = vcmp.gt.f32.partialorder %v2447, 0.0
      %vm2470 = vcmp.gt.f32.partialorder %v2452, 0.0
      %vm2471 = vcmp.gt.f32.partialorder %v2455, 0.0
      %vm2472 = vcmp.gt.f32.partialorder %v2460, 0.0
      %vm2473 = vcmp.gt.f32.partialorder %v2463, 0.0
      %v2474 = vmul.f32 %v2436, 0.2
      %v2475 = vmul.f32 %v2439, 0.2
      %v2476 = vmul.f32 %v2444, 0.2
      %v2477 = vmul.f32 %v2447, 0.2
      %v2478 = vmul.f32 %v2452, 0.2
      %v2479 = vmul.f32 %v2455, 0.2
      %v2480 = vmul.f32 %v2460, 0.2
      %v2481 = vmul.f32 %v2463, 0.2
      %v2482 = vsel %vm2466, %v2436, %v2474
      %v2483 = vsel %vm2467, %v2439, %v2475
      %v2484 = vsel %vm2468, %v2444, %v2476
      %v2485 = vsel %vm2469, %v2447, %v2477
      %v2486 = vsel %vm2470, %v2452, %v2478
      %v2487 = vsel %vm2471, %v2455, %v2479
      %v2488 = vsel %vm2472, %v2460, %v2480
      %v2489 = vsel %vm2473, %v2463, %v2481
      %v2490 = vpack.c.bf16 %v2483, %v2482
      %v2491 = vpack.c.bf16 %v2485, %v2484
      %v2492 = vpack.c.bf16 %v2487, %v2486
      %v2493 = vpack.c.bf16 %v2489, %v2488
      %v2498 = vunpack.c.l.b16 %v2490
      %v2499 = vunpack.c.h.b16 %v2490
      %v2500 = vunpack.c.l.b16 %v2491
      %v2501 = vunpack.c.h.b16 %v2491
      %v2502 = vunpack.c.l.b16 %v2492
      %v2503 = vunpack.c.h.b16 %v2492
      %v2504 = vunpack.c.l.b16 %v2493
      %v2505 = vunpack.c.h.b16 %v2493
      %v2506 = vpack.c.b16 %v2498, %v2498
      %v2507 = vpack.c.b16 %v2499, %v2499
      %v2508 = vpack.c.b16 %v2500, %v2500
      %v2509 = vpack.c.b16 %v2501, %v2501
      %v2510 = vpack.c.b16 %v2502, %v2502
      %v2511 = vpack.c.b16 %v2503, %v2503
      %v2512 = vpack.c.b16 %v2504, %v2504
      %v2513 = vpack.c.b16 %v2505, %v2505
      %2522 = vst [vmem:[%s316] sm:$0xf] %v2506
      %2523 = vst [vmem:[%s316 + $0x4] sm:$0xf] %v2507
      %2524 = vst [vmem:[%s316 + $0x8] sm:$0xf] %v2508
      %2525 = vst [vmem:[%s316 + $0xc] sm:$0xf] %v2509
      %2526 = vst [vmem:[%s316 + $0x10] sm:$0xf] %v2510
      %2527 = vst [vmem:[%s316 + $0x14] sm:$0xf] %v2511
      %2528 = vst [vmem:[%s316 + $0x18] sm:$0xf] %v2512
      %2529 = vst [vmem:[%s316 + $0x1c] sm:$0xf] %v2513
      %s2530 = smul.u32 8, %s20
      %p2531 = scmp.lt.s32.totalorder %s19, 1
      %s2532 = scalar_select %p2531, %s19, 1
      %p2533 = scmp.lt.s32.totalorder %s2530, 7
      %s2534 = scalar_select %p2533, %s2530, 7
      %s2535 = smul.addr %s2532, 8
      %s2536 = sadd.s32 %s2534, %s2535
      %s2537 = smul.addr %s2536, 4
      %s2538 = scalar_lea.vmem %s4, %s2537
      // Predicated region
      $region37: #{discriminator_forward.6} parent=35 // pred_check
        %p2539 = pneg %p149
      $region38: #{discriminator_forward.6} parent=35 // pred_check_branch
        %2541 = sbr.rel (%p2539) target = $region40
      $region39: #{discriminator_forward.6} parent=35 // pred_region
        %s2542 = smul.u32 8, %s20
      $region40: #{discriminator_forward.6} parent=35 // pred_fallthru
        _
    $region36: #{discriminator_forward.6} parent=5 // pred_fallthru
      _
    %p2543 = scmp.le.s32.totalorder 2, %s10
    // Predicated region
    $region41: #{discriminator_forward.6} parent=5 // pred_check
      %p2544 = pneg %p2543
    $region42: #{discriminator_forward.6} parent=5 // pred_check_branch
      %2546 = sbr.rel (%p2544) target = $region44
    $region43: #{discriminator_forward.6} parent=5 // pred_region
      %s2547 = ssub.s32 %s10, 2
      // Predicated region
      $region45: #{discriminator_forward.6} parent=43 // pred_check
        %p2548 = pneg %p155
      $region46: #{discriminator_forward.6} parent=43 // pred_check_branch
        %2550 = sbr.rel (%p2548) target = $region48
      $region47: #{discriminator_forward.6} parent=43 // pred_region
        %s2551 = smul.u32 8, %s22
        %p2552 = scmp.lt.s32.totalorder %s21, 1
        %s2553 = scalar_select %p2552, %s21, 1
        %p2554 = scmp.lt.s32.totalorder %s2551, 7
        %s2555 = scalar_select %p2554, %s2551, 7
        %s2556 = smul.addr %s2553, 8
        %s2557 = sadd.s32 %s2555, %s2556
        %s2558 = smul.addr %s2557, 4
        %s2559 = scalar_lea.vmem %s4, %s2558
      $region48: #{discriminator_forward.6} parent=43 // pred_fallthru
        _
    $region44: #{discriminator_forward.6} parent=5 // pred_fallthru
      _
  $region6: #{discriminator_forward.6} parent=0 // loop_footer
    %s14 = sadd.s32 1, %s10
  $region7: #{discriminator_forward.6} parent=0 // loop_footer_branch
    %9 = sbr.rel target = $region3
  $region8: #{discriminator_forward.6} parent=0 // loop_exit
    _

// kernel: discriminator_forward.7
$region0: #{discriminator_forward.7}
  #allocation0 [shape = 'u32[]', space=smem, size = 0x4, offset = 0x4, fixed_abs, tag = 'smem constant byte address 0x4 - core index']
  #allocation1 [shape = 'u32[144,128]{1,0:T(1,128)}', space=vmem, size = 0x12000, scoped, tag = 'internal scratch']
  %s0 = inlined_call_operand.vmem [shape: bf16[2,5,10,256], index: 0, kind: input, shape index: {}, may-alias: {0,1}]
  %s1 = inlined_call_operand.vmem [shape: bf16[2,5,10,256], index: 1, kind: input, shape index: {}, may-alias: {0,1}]
  %s2 = inlined_call_operand.vmem [shape: bf16[2048,128], index: 2, kind: input, shape index: {}]
  %s3 = inlined_call_operand.vmem [shape: f32[1,128], index: 3, kind: input, shape index: {}]
  %s4 = inlined_call_operand.vmem [shape: bf16[2,16,128], index: 4, kind: output, shape index: {}]
  %s5 = sld [smem:[#allocation0]]
  $region49: #{discriminator_forward.7} parent=0
    _
  %s7 = ssub.s32 1, %s5
  %s8 = scalar_select 0, %s7, %s5
  loop: start=0, step=1, limit=4
  $region2: #{discriminator_forward.7} parent=0 // loop_pre_header
    _
  $region3: #{discriminator_forward.7} parent=0 // loop_header
    %s10 = sphi 0, %s14
    %p11 = scmp.ge.s32.totalorder %s10, 4
    %s17 = sphi 0, %s29
    %s18 = sphi 0, %s25
    %s19 = sphi 0, %s17
    %s20 = sphi 0, %s18
    %s21 = sphi 0, %s19
    %s22 = sphi 0, %s20
    %s34 = sphi 0, %s36
    %s37 = sphi 0, %s34
    %s38 = sphi 0, %s37
    %s54 = sphi 0, %s38
    %s66 = sphi 0, %s68
    %s69 = sphi 0, %s66
    %s70 = sphi 0, %s69
    %s86 = sphi 0, %s70
    %s90 = sphi 0, %s90
    %s92 = sphi 0, %s90
    %s93 = sphi 0, %s92
    %s107 = sphi 0, %s93
    %s111 = sphi 0, %s111
    %s113 = sphi 0, %s111
    %s114 = sphi 0, %s113
    %s128 = sphi 0, %s114
    %s136 = sphi 0, %s138
    %s139 = sphi 0, %s136
    %s140 = sphi 0, %s139
    %s156 = sphi 0, %s140
  $region4: #{discriminator_forward.7} parent=0 // loop_header_branch
    %13 = sbr.rel (%p11) target = $region8
  $region5: #{discriminator_forward.7} parent=0 // loop_body
    %s15 = ssub.s32 %s10, 1
    %s16 = ssub.s32 %s10, 2
    %s23 = sadd.s32 1, %s18
    %p24 = scmp.ge.s32.totalorder %s23, 1
    %s25 = scalar_select %p24, 0, %s23
    %s26 = sadd.s32 1, %s17
    %s27 = scalar_select %p24, %s26, %s17
    %p28 = scmp.ge.s32.totalorder %s27, 2
    %s29 = scalar_select %p28, 0, %s27
    %s30 = ssub.s32 %s17, %s29
    %s31 = ssub.s32 %s18, %s25
    %s32 = sor.u32 %s30, %s31
    %p33 = scmp.eq.s32.totalorder %s32, 0
    %s35 = sadd.s32 %s34, 1
    %s36 = scalar_select %p33, %s34, %s35
    %p39 = pneg %p33
    %p40 = scmp.eq.s32.totalorder %s10, 1
    %p41 = por %p39, %p40
    %p42 = scmp.ne.s32.totalorder %s34, %s37
    %p43 = scmp.eq.s32.totalorder %s10, 0
    %p44 = por %p42, %p43
    %p45 = scmp.ne.s32.totalorder %s34, %s37
    %p46 = scmp.eq.s32.totalorder %s15, 1
    %p47 = por %p45, %p46
    %p48 = scmp.ne.s32.totalorder %s37, %s38
    %p49 = scmp.eq.s32.totalorder %s15, 0
    %p50 = por %p48, %p49
    %p51 = scmp.ne.s32.totalorder %s37, %s38
    %p52 = scmp.eq.s32.totalorder %s16, 1
    %p53 = por %p51, %p52
    %p55 = scmp.ne.s32.totalorder %s38, %s54
    %p56 = scmp.eq.s32.totalorder %s16, 0
    %p57 = por %p55, %p56
    %s58 = sadd.s32 %s18, 1
    %s59 = smul.u32 %s58, 4
    %s60 = sadd.s32 %s25, 1
    %s61 = smul.u32 %s60, 4
    %s62 = ssub.s32 %s17, %s29
    %s63 = ssub.s32 %s59, %s61
    %s64 = sor.u32 %s62, %s63
    %p65 = scmp.eq.s32.totalorder %s64, 0
    %s67 = sadd.s32 %s66, 1
    %s68 = scalar_select %p65, %s66, %s67
    %p71 = pneg %p65
    %p72 = scmp.eq.s32.totalorder %s10, 1
    %p73 = por %p71, %p72
    %p74 = scmp.ne.s32.totalorder %s66, %s69
    %p75 = scmp.eq.s32.totalorder %s10, 0
    %p76 = por %p74, %p75
    %p77 = scmp.ne.s32.totalorder %s66, %s69
    %p78 = scmp.eq.s32.totalorder %s15, 1
    %p79 = por %p77, %p78
    %p80 = scmp.ne.s32.totalorder %s69, %s70
    %p81 = scmp.eq.s32.totalorder %s15, 0
    %p82 = por %p80, %p81
    %p83 = scmp.ne.s32.totalorder %s69, %s70
    %p84 = scmp.eq.s32.totalorder %s16, 1
    %p85 = por %p83, %p84
    %p87 = scmp.ne.s32.totalorder %s70, %s86
    %p88 = scmp.eq.s32.totalorder %s16, 0
    %p89 = por %p87, %p88
    %s91 = sadd.s32 %s90, 1
    %p94 = scmp.eq.s32.totalorder %s10, 1
    %p95 = scmp.ne.s32.totalorder %s90, %s92
    %p96 = scmp.eq.s32.totalorder %s10, 0
    %p97 = por %p95, %p96
    %p98 = scmp.ne.s32.totalorder %s90, %s92
    %p99 = scmp.eq.s32.totalorder %s15, 1
    %p100 = por %p98, %p99
    %p101 = scmp.ne.s32.totalorder %s92, %s93
    %p102 = scmp.eq.s32.totalorder %s15, 0
    %p103 = por %p101, %p102
    %p104 = scmp.ne.s32.totalorder %s92, %s93
    %p105 = scmp.eq.s32.totalorder %s16, 1
    %p106 = por %p104, %p105
    %p108 = scmp.ne.s32.totalorder %s93, %s107
    %p109 = scmp.eq.s32.totalorder %s16, 0
    %p110 = por %p108, %p109
    %s112 = sadd.s32 %s111, 1
    %p115 = scmp.eq.s32.totalorder %s10, 1
    %p116 = scmp.ne.s32.totalorder %s111, %s113
    %p117 = scmp.eq.s32.totalorder %s10, 0
    %p118 = por %p116, %p117
    %p119 = scmp.ne.s32.totalorder %s111, %s113
    %p120 = scmp.eq.s32.totalorder %s15, 1
    %p121 = por %p119, %p120
    %p122 = scmp.ne.s32.totalorder %s113, %s114
    %p123 = scmp.eq.s32.totalorder %s15, 0
    %p124 = por %p122, %p123
    %p125 = scmp.ne.s32.totalorder %s113, %s114
    %p126 = scmp.eq.s32.totalorder %s16, 1
    %p127 = por %p125, %p126
    %p129 = scmp.ne.s32.totalorder %s114, %s128
    %p130 = scmp.eq.s32.totalorder %s16, 0
    %p131 = por %p129, %p130
    %s132 = ssub.s32 %s17, %s29
    %s133 = ssub.s32 %s18, %s25
    %s134 = sor.u32 %s132, %s133
    %p135 = scmp.eq.s32.totalorder %s134, 0
    %s137 = sadd.s32 %s136, 1
    %s138 = scalar_select %p135, %s136, %s137
    %p141 = pneg %p135
    %p142 = scmp.eq.s32.totalorder %s10, 1
    %p143 = por %p141, %p142
    %p144 = scmp.ne.s32.totalorder %s136, %s139
    %p145 = scmp.eq.s32.totalorder %s10, 0
    %p146 = por %p144, %p145
    %p147 = scmp.ne.s32.totalorder %s136, %s139
    %p148 = scmp.eq.s32.totalorder %s15, 1
    %p149 = por %p147, %p148
    %p150 = scmp.ne.s32.totalorder %s139, %s140
    %p151 = scmp.eq.s32.totalorder %s15, 0
    %p152 = por %p150, %p151
    %p153 = scmp.ne.s32.totalorder %s139, %s140
    %p154 = scmp.eq.s32.totalorder %s16, 1
    %p155 = por %p153, %p154
    %p157 = scmp.ne.s32.totalorder %s140, %s156
    %p158 = scmp.eq.s32.totalorder %s16, 0
    %p159 = por %p157, %p158
    %p160 = scmp.le.s32.totalorder 1, %s10
    %p161 = scmp.lt.s32.totalorder %s10, 3
    %p162 = pnand %p160, %p161
    %p163 = pneg %p162
    // Predicated region
    $region9: #{discriminator_forward.7} parent=5 // pred_check
      _
    $region10: #{discriminator_forward.7} parent=5 // pred_check_branch
      %165 = sbr.rel (%p162) target = $region12
    $region11: #{discriminator_forward.7} parent=5 // pred_region
      %s166 = ssub.s32 %s10, 1
      // Predicated region
      $region13: #{discriminator_forward.7} parent=11 // pred_check
        %p167 = pneg %p103
      $region14: #{discriminator_forward.7} parent=11 // pred_check_branch
        %169 = sbr.rel (%p167) target = $region16
      $region15: #{discriminator_forward.7} parent=11 // pred_region
        _
      $region16: #{discriminator_forward.7} parent=11 // pred_fallthru
        _
      // Predicated region
      $region17: #{discriminator_forward.7} parent=11 // pred_check
        %p170 = pneg %p124
      $region18: #{discriminator_forward.7} parent=11 // pred_check_branch
        %172 = sbr.rel (%p170) target = $region20
      $region19: #{discriminator_forward.7} parent=11 // pred_region
        _
      $region20: #{discriminator_forward.7} parent=11 // pred_fallthru
        _
    $region12: #{discriminator_forward.7} parent=5 // pred_fallthru
      _
    %p173 = scmp.lt.s32.totalorder %s10, 2
    // Predicated region
    $region21: #{discriminator_forward.7} parent=5 // pred_check
      %p174 = pneg %p173
    $region22: #{discriminator_forward.7} parent=5 // pred_check_branch
      %176 = sbr.rel (%p174) target = $region24
    $region23: #{discriminator_forward.7} parent=5 // pred_region
      // Predicated region
      $region25: #{discriminator_forward.7} parent=23 // pred_check
        %p177 = pneg %p44
      $region26: #{discriminator_forward.7} parent=23 // pred_check_branch
        %179 = sbr.rel (%p177) target = $region28
      $region27: #{discriminator_forward.7} parent=23 // pred_region
        %s180 = smul.u32 4, %s18
        %s181 = ssub.s32 5, %s180
        %p182 = scmp.lt.s32.totalorder %s181, 4
        %s183 = scalar_select %p182, %s181, 4
        %s184 = smul.u32 64, %s183
        %s185 = smul.u32 %s184, 2
        %s186 = smul.u32 %s185, 2
        %p187 = scmp.lt.s32.totalorder %s17, 1
        %s188 = scalar_select %p187, %s17, 1
        %p189 = scmp.lt.s32.totalorder %s180, 4
        %s190 = scalar_select %p189, %s180, 4
        %s191 = smul.addr %s190, 4
        %s192 = smul.addr %s188, 20
        %s193 = sadd.s32 %s191, %s192
        %s194 = smul.addr %s193, 4
        %s195 = scalar_lea.vmem %s0, %s194
        %s196 = smul.u32 4, %s18
        %s197 = ssub.s32 5, %s196
        %p198 = scmp.lt.s32.totalorder %s197, 4
        %s199 = scalar_select %p198, %s197, 4
        %s200 = smul.u32 64, %s199
        %s201 = smul.u32 %s200, 2
        %s202 = smul.u32 %s201, 2
      $region28: #{discriminator_forward.7} parent=23 // pred_fallthru
        _
      // Predicated region
      $region29: #{discriminator_forward.7} parent=23 // pred_check
        %p203 = pneg %p76
      $region30: #{discriminator_forward.7} parent=23 // pred_check_branch
        %205 = sbr.rel (%p203) target = $region32
      $region31: #{discriminator_forward.7} parent=23 // pred_region
        %s206 = sadd.s32 %s18, 1
        %s207 = smul.u32 %s206, 4
        %p208 = scmp.lt.s32.totalorder %s17, 1
        %s209 = scalar_select %p208, %s17, 1
        %p210 = scmp.lt.s32.totalorder %s207, 4
        %s211 = scalar_select %p210, %s207, 4
        %s212 = smul.addr %s211, 4
        %s213 = smul.addr %s209, 20
        %s214 = sadd.s32 %s212, %s213
        %s215 = smul.addr %s214, 4
        %s216 = scalar_lea.vmem %s1, %s215
        %s217 = sadd.s32 %s18, 1
        %s218 = smul.u32 %s217, 4
      $region32: #{discriminator_forward.7} parent=23 // pred_fallthru
        _
    $region24: #{discriminator_forward.7} parent=5 // pred_fallthru
      _
    %p219 = scmp.le.s32.totalorder 1, %s10
    %p220 = scmp.lt.s32.totalorder %s10, 3
    %p221 = pnand %p219, %p220
    %p222 = pneg %p221
    // Predicated region
    $region33: #{discriminator_forward.7} parent=5 // pred_check
      _
    $region34: #{discriminator_forward.7} parent=5 // pred_check_branch
      %224 = sbr.rel (%p221) target = $region36
    $region35: #{discriminator_forward.7} parent=5 // pred_region
      %s225 = ssub.s32 %s10, 1
      %s226 = smul.u32 4, %s20
      %s227 = ssub.s32 5, %s226
      %p228 = scmp.lt.s32.totalorder %s227, 4
      %s229 = scalar_select %p228, %s227, 4
      %s230 = smul.u32 64, %s229
      %s231 = smul.u32 %s230, 2
      %s232 = smul.u32 %s231, 2
      %p233 = scmp.lt.s32.totalorder %s19, 1
      %s234 = scalar_select %p233, %s19, 1
      %p235 = scmp.lt.s32.totalorder %s226, 4
      %s236 = scalar_select %p235, %s226, 4
      %s237 = smul.addr %s236, 4
      %s238 = smul.addr %s234, 20
      %s239 = sadd.s32 %s237, %s238
      %s240 = smul.addr %s239, 4
      %s241 = scalar_lea.vmem %s0, %s240
      %p242 = pneg %p50
      %p243 = pneg %p47
      %s244 = sadd.s32 %s20, 1
      %s245 = smul.u32 %s244, 4
      %p246 = scmp.lt.s32.totalorder %s19, 1
      %s247 = scalar_select %p246, %s19, 1
      %p248 = scmp.lt.s32.totalorder %s245, 4
      %s249 = scalar_select %p248, %s245, 4
      %s250 = smul.addr %s249, 4
      %s251 = smul.addr %s247, 20
      %s252 = sadd.s32 %s250, %s251
      %s253 = smul.addr %s252, 4
      %s254 = scalar_lea.vmem %s1, %s253
      %p255 = pneg %p82
      %p256 = pneg %p79
      %p257 = pneg %p103
      %p258 = pneg %p100
      %p259 = pneg %p124
      %p260 = pneg %p121
      %p261 = pneg %p152
      %p262 = pneg %p149
      %s263 = smul.u32 2, %s20
      %p264 = scmp.lt.s32.totalorder %s19, 1
      %s265 = scalar_select %p264, %s19, 1
      %p266 = scmp.lt.s32.totalorder %s263, 1
      %s267 = scalar_select %p266, %s263, 1
      %s268 = smul.addr %s265, 2
      %s269 = sadd.s32 %s267, %s268
      %s270 = smul.addr %s269, 4
      %s271 = scalar_lea.vmem %s4, %s270
      %s272 = smul.u32 4, %s20
      %s273 = ssub.s32 5, %s272
      %p274 = scmp.lt.s32.totalorder %s273, 4
      %s275 = scalar_select %p274, %s273, 4
      %s276 = smul.u32 64, %s275
      %s277 = smul.u32 %s276, 2
      %s278 = smul.u32 %s277, 2
      %p279 = scmp.lt.s32.totalorder %s19, 1
      %s280 = scalar_select %p279, %s19, 1
      %p281 = scmp.lt.s32.totalorder %s272, 4
      %s282 = scalar_select %p281, %s272, 4
      %s283 = smul.addr %s282, 4
      %s284 = smul.addr %s280, 20
      %s285 = sadd.s32 %s283, %s284
      %s286 = smul.addr %s285, 4
      %s287 = scalar_lea.vmem %s0, %s286
      %s288 = smul.u32 4, %s20
      %s289 = ssub.s32 5, %s288
      %p290 = scmp.lt.s32.totalorder %s289, 4
      %s291 = scalar_select %p290, %s289, 4
      %s292 = smul.u32 64, %s291
      %s293 = smul.u32 %s292, 2
      %s294 = smul.u32 %s293, 2
      %s295 = sadd.s32 %s20, 1
      %s296 = smul.u32 %s295, 4
      %p297 = scmp.lt.s32.totalorder %s19, 1
      %s298 = scalar_select %p297, %s19, 1
      %p299 = scmp.lt.s32.totalorder %s296, 4
      %s300 = scalar_select %p299, %s296, 4
      %s301 = smul.addr %s300, 4
      %s302 = smul.addr %s298, 20
      %s303 = sadd.s32 %s301, %s302
      %s304 = smul.addr %s303, 4
      %s305 = scalar_lea.vmem %s1, %s304
      %s306 = sadd.s32 %s20, 1
      %s307 = smul.u32 %s306, 4
      %s308 = smul.u32 2, %s20
      %p309 = scmp.lt.s32.totalorder %s19, 1
      %s310 = scalar_select %p309, %s19, 1
      %p311 = scmp.lt.s32.totalorder %s308, 1
      %s312 = scalar_select %p311, %s308, 1
      %s313 = smul.addr %s310, 2
      %s314 = sadd.s32 %s312, %s313
      %s315 = smul.addr %s314, 4
      %s316 = scalar_lea.vmem %s4, %s315
      %s317 = smul.u32 2, %s20
      %v319 = vld [vmem:[%s287] sm:$0xff]
      %v320 = vld [vmem:[%s287 + $0x8] sm:$0x11]
      %v321 = vld [vmem:[%s287 + $0x10] sm:$0xff]
      %v322 = vld [vmem:[%s287 + $0x18] sm:$0x11]
      %v323 = vld [vmem:[%s287 + $0x20] sm:$0xff]
      %v324 = vld [vmem:[%s287 + $0x28] sm:$0x11]
      %v325 = vld [vmem:[%s287 + $0x30] sm:$0xff]
      %v326 = vld [vmem:[%s287 + $0x38] sm:$0x11]
      %v327 = vld [vmem:[%s305] sm:$0xff]
      %v328 = vld [vmem:[%s305 + $0x8] sm:$0x11]
      %v333 = vunpack.c.h.b16 %v319
      %v334 = vunpack.c.h.b16 %v321
      %v335 = vunpack.c.h.b16 %v323
      %v336 = vunpack.c.h.b16 %v325
      %v337 = vpack.c.b16 %v333, %v333
      %v338 = vpack.c.b16 %v334, %v334
      %v339 = vpack.c.b16 %v335, %v335
      %v340 = vpack.c.b16 %v336, %v336
      %v341 = vunpack.c.l.b16 %v319
      %v342 = vunpack.c.l.b16 %v321
      %v343 = vunpack.c.l.b16 %v323
      %v344 = vunpack.c.l.b16 %v325
      %v345 = vpack.c.b16 %v341, %v341
      %v346 = vpack.c.b16 %v342, %v342
      %v347 = vpack.c.b16 %v343, %v343
      %v348 = vpack.c.b16 %v344, %v344
      %v350 = vshrl.u32 %v345, 16
      %v352 = vshll.u32 %v345, 16
      %v354 = vrot.slane %v352, 1
      %v355 = vor.u32 %v350, %v354
      %v357 = vshrl.u32 %v346, 16
      %v359 = vshll.u32 %v346, 16
      %v361 = vrot.slane %v359, 1
      %v362 = vor.u32 %v357, %v361
      %v364 = vshrl.u32 %v347, 16
      %v366 = vshll.u32 %v347, 16
      %v368 = vrot.slane %v366, 1
      %v369 = vor.u32 %v364, %v368
      %v371 = vshrl.u32 %v348, 16
      %v373 = vshll.u32 %v348, 16
      %v375 = vrot.slane %v373, 1
      %v376 = vor.u32 %v371, %v375
      %v378 = vshrl.u32 %v337, 16
      %v380 = vshll.u32 %v337, 16
      %v382 = vrot.slane %v380, 1
      %v383 = vor.u32 %v378, %v382
      %v385 = vshrl.u32 %v338, 16
      %v387 = vshll.u32 %v338, 16
      %v389 = vrot.slane %v387, 1
      %v390 = vor.u32 %v385, %v389
      %v392 = vshrl.u32 %v339, 16
      %v394 = vshll.u32 %v339, 16
      %v396 = vrot.slane %v394, 1
      %v397 = vor.u32 %v392, %v396
      %v399 = vshrl.u32 %v340, 16
      %v401 = vshll.u32 %v340, 16
      %v403 = vrot.slane %v401, 1
      %v404 = vor.u32 %v399, %v403
      %v409 = vunpack.c.l.b16 %v320
      %v410 = vunpack.c.l.b16 %v322
      %v411 = vunpack.c.l.b16 %v324
      %v412 = vunpack.c.l.b16 %v326
      %v413 = vpack.c.b16 %v409, %v341
      %v414 = vpack.c.b16 %v410, %v342
      %v415 = vpack.c.b16 %v411, %v343
      %v416 = vpack.c.b16 %v412, %v344
      %v418 = vshrl.u32 %v413, 16
      %v420 = vrot.slane %v418, 2
      %v421 = vshll.u32 %v413, 16
      %v423 = vrot.slane %v421, 3
      %v424 = vor.u32 %v420, %v423
      %v426 = vshrl.u32 %v414, 16
      %v428 = vrot.slane %v426, 2
      %v429 = vshll.u32 %v414, 16
      %v431 = vrot.slane %v429, 3
      %v432 = vor.u32 %v428, %v431
      %v434 = vshrl.u32 %v415, 16
      %v436 = vrot.slane %v434, 2
      %v437 = vshll.u32 %v415, 16
      %v439 = vrot.slane %v437, 3
      %v440 = vor.u32 %v436, %v439
      %v442 = vshrl.u32 %v416, 16
      %v444 = vrot.slane %v442, 2
      %v445 = vshll.u32 %v416, 16
      %v447 = vrot.slane %v445, 3
      %v448 = vor.u32 %v444, %v447
      %v449 = vunpack.c.h.b16 %v320
      %v450 = vunpack.c.h.b16 %v322
      %v451 = vunpack.c.h.b16 %v324
      %v452 = vunpack.c.h.b16 %v326
      %v453 = vpack.c.b16 %v449, %v333
      %v454 = vpack.c.b16 %v450, %v334
      %v455 = vpack.c.b16 %v451, %v335
      %v456 = vpack.c.b16 %v452, %v336
      %v458 = vshrl.u32 %v453, 16
      %v460 = vrot.slane %v458, 2
      %v461 = vshll.u32 %v453, 16
      %v463 = vrot.slane %v461, 3
      %v464 = vor.u32 %v460, %v463
      %v466 = vshrl.u32 %v454, 16
      %v468 = vrot.slane %v466, 2
      %v469 = vshll.u32 %v454, 16
      %v471 = vrot.slane %v469, 3
      %v472 = vor.u32 %v468, %v471
      %v474 = vshrl.u32 %v455, 16
      %v476 = vrot.slane %v474, 2
      %v477 = vshll.u32 %v455, 16
      %v479 = vrot.slane %v477, 3
      %v480 = vor.u32 %v476, %v479
      %v482 = vshrl.u32 %v456, 16
      %v484 = vrot.slane %v482, 2
      %v485 = vshll.u32 %v456, 16
      %v487 = vrot.slane %v485, 3
      %v488 = vor.u32 %v484, %v487
      %v489 = vrot.slane %v413, 3
      %v490 = vrot.slane %v414, 3
      %v491 = vrot.slane %v415, 3
      %v492 = vrot.slane %v416, 3
      %v493 = vrot.slane %v453, 3
      %v494 = vrot.slane %v454, 3
      %v495 = vrot.slane %v455, 3
      %v496 = vrot.slane %v456, 3
      %v498 = vunpack.c.h.b16 %v327
      %v499 = vpack.c.b16 %v498, %v498
      %v500 = vunpack.c.l.b16 %v327
      %v501 = vpack.c.b16 %v500, %v500
      %v503 = vshrl.u32 %v501, 16
      %v505 = vshll.u32 %v501, 16
      %v507 = vrot.slane %v505, 1
      %v508 = vor.u32 %v503, %v507
      %v510 = vshrl.u32 %v499, 16
      %v512 = vshll.u32 %v499, 16
      %v514 = vrot.slane %v512, 1
      %v515 = vor.u32 %v510, %v514
      %v517 = vunpack.c.l.b16 %v328
      %v518 = vpack.c.b16 %v517, %v500
      %v520 = vshrl.u32 %v518, 16
      %v522 = vrot.slane %v520, 2
      %v523 = vshll.u32 %v518, 16
      %v525 = vrot.slane %v523, 3
      %v526 = vor.u32 %v522, %v525
      %v527 = vunpack.c.h.b16 %v328
      %v528 = vpack.c.b16 %v527, %v498
      %v530 = vshrl.u32 %v528, 16
      %v532 = vrot.slane %v530, 2
      %v533 = vshll.u32 %v528, 16
      %v535 = vrot.slane %v533, 3
      %v536 = vor.u32 %v532, %v535
      %v537 = vrot.slane %v518, 3
      %v538 = vrot.slane %v528, 3
      %v539 = vcombine.low %v319, %v337
      %v540 = vcombine.low %v355, %v383
      %v542 = vunpack.c.l.s4 1983009808
      %v543 = vunpack.c.0.s8 %v542
      %v544 = vlaneseq
      %v545 = vshrl.u32 %v544, 7
      %v546 = vsub.s32 %v543, %v545
      %v547 = vrot.slane %v539, %v546
      %v549 = vunpack.c.l.s4 1983009808
      %v550 = vunpack.c.0.s8 %v549
      %v551 = vlaneseq
      %v552 = vshrl.u32 %v551, 7
      %v553 = vsub.s32 %v550, %v552
      %v554 = vrot.slane %v540, %v553
      %v555 = vcombine.low %v547, %v554
      %v556 = vcombine.low %v424, %v464
      %v557 = vcombine.low %v489, %v493
      %v559 = vunpack.c.l.s4 1983009808
      %v560 = vunpack.c.0.s8 %v559
      %v561 = vlaneseq
      %v562 = vshrl.u32 %v561, 7
      %v563 = vsub.s32 %v560, %v562
      %v564 = vrot.slane %v556, %v563
      %v566 = vunpack.c.l.s4 1983009808
      %v567 = vunpack.c.0.s8 %v566
      %v568 = vlaneseq
      %v569 = vshrl.u32 %v568, 7
      %v570 = vsub.s32 %v567, %v569
      %v571 = vrot.slane %v557, %v570
      %v572 = vcombine.low %v564, %v571
      %v573 = vcombine.low %v321, %v338
      %v574 = vcombine.low %v362, %v390
      %v576 = vunpack.c.l.s4 1983009808
      %v577 = vunpack.c.0.s8 %v576
      %v578 = vlaneseq
      %v579 = vshrl.u32 %v578, 7
      %v580 = vsub.s32 %v577, %v579
      %v581 = vrot.slane %v573, %v580
      %v583 = vunpack.c.l.s4 1983009808
      %v584 = vunpack.c.0.s8 %v583
      %v585 = vlaneseq
      %v586 = vshrl.u32 %v585, 7
      %v587 = vsub.s32 %v584, %v586
      %v588 = vrot.slane %v574, %v587
      %v589 = vcombine.low %v581, %v588
      %v590 = vcombine.low %v432, %v472
      %v591 = vcombine.low %v490, %v494
      %v593 = vunpack.c.l.s4 1983009808
      %v594 = vunpack.c.0.s8 %v593
      %v595 = vlaneseq
      %v596 = vshrl.u32 %v595, 7
      %v597 = vsub.s32 %v594, %v596
      %v598 = vrot.slane %v590, %v597
      %v600 = vunpack.c.l.s4 1983009808
      %v601 = vunpack.c.0.s8 %v600
      %v602 = vlaneseq
      %v603 = vshrl.u32 %v602, 7
      %v604 = vsub.s32 %v601, %v603
      %v605 = vrot.slane %v591, %v604
      %v606 = vcombine.low %v598, %v605
      %v607 = vcombine.low %v323, %v339
      %v608 = vcombine.low %v369, %v397
      %v610 = vunpack.c.l.s4 1983009808
      %v611 = vunpack.c.0.s8 %v610
      %v612 = vlaneseq
      %v613 = vshrl.u32 %v612, 7
      %v614 = vsub.s32 %v611, %v613
      %v615 = vrot.slane %v607, %v614
      %v617 = vunpack.c.l.s4 1983009808
      %v618 = vunpack.c.0.s8 %v617
      %v619 = vlaneseq
      %v620 = vshrl.u32 %v619, 7
      %v621 = vsub.s32 %v618, %v620
      %v622 = vrot.slane %v608, %v621
      %v623 = vcombine.low %v615, %v622
      %v624 = vcombine.low %v440, %v480
      %v625 = vcombine.low %v491, %v495
      %v627 = vunpack.c.l.s4 1983009808
      %v628 = vunpack.c.0.s8 %v627
      %v629 = vlaneseq
      %v630 = vshrl.u32 %v629, 7
      %v631 = vsub.s32 %v628, %v630
      %v632 = vrot.slane %v624, %v631
      %v634 = vunpack.c.l.s4 1983009808
      %v635 = vunpack.c.0.s8 %v634
      %v636 = vlaneseq
      %v637 = vshrl.u32 %v636, 7
      %v638 = vsub.s32 %v635, %v637
      %v639 = vrot.slane %v625, %v638
      %v640 = vcombine.low %v632, %v639
      %v641 = vcombine.low %v325, %v340
      %v642 = vcombine.low %v376, %v404
      %v644 = vunpack.c.l.s4 1983009808
      %v645 = vunpack.c.0.s8 %v644
      %v646 = vlaneseq
      %v647 = vshrl.u32 %v646, 7
      %v648 = vsub.s32 %v645, %v647
      %v649 = vrot.slane %v641, %v648
      %v651 = vunpack.c.l.s4 1983009808
      %v652 = vunpack.c.0.s8 %v651
      %v653 = vlaneseq
      %v654 = vshrl.u32 %v653, 7
      %v655 = vsub.s32 %v652, %v654
      %v656 = vrot.slane %v642, %v655
      %v657 = vcombine.low %v649, %v656
      %v658 = vcombine.low %v448, %v488
      %v659 = vcombine.low %v492, %v496
      %v661 = vunpack.c.l.s4 1983009808
      %v662 = vunpack.c.0.s8 %v661
      %v663 = vlaneseq
      %v664 = vshrl.u32 %v663, 7
      %v665 = vsub.s32 %v662, %v664
      %v666 = vrot.slane %v658, %v665
      %v668 = vunpack.c.l.s4 1983009808
      %v669 = vunpack.c.0.s8 %v668
      %v670 = vlaneseq
      %v671 = vshrl.u32 %v670, 7
      %v672 = vsub.s32 %v669, %v671
      %v673 = vrot.slane %v659, %v672
      %v674 = vcombine.low %v666, %v673
      %v675 = vcombine.low %v327, %v499
      %v676 = vcombine.low %v508, %v515
      %v678 = vunpack.c.l.s4 1983009808
      %v679 = vunpack.c.0.s8 %v678
      %v680 = vlaneseq
      %v681 = vshrl.u32 %v680, 7
      %v682 = vsub.s32 %v679, %v681
      %v683 = vrot.slane %v675, %v682
      %v685 = vunpack.c.l.s4 1983009808
      %v686 = vunpack.c.0.s8 %v685
      %v687 = vlaneseq
      %v688 = vshrl.u32 %v687, 7
      %v689 = vsub.s32 %v686, %v688
      %v690 = vrot.slane %v676, %v689
      %v691 = vcombine.low %v683, %v690
      %v692 = vcombine.low %v526, %v536
      %v693 = vcombine.low %v537, %v538
      %v695 = vunpack.c.l.s4 1983009808
      %v696 = vunpack.c.0.s8 %v695
      %v697 = vlaneseq
      %v698 = vshrl.u32 %v697, 7
      %v699 = vsub.s32 %v696, %v698
      %v700 = vrot.slane %v692, %v699
      %v702 = vunpack.c.l.s4 1983009808
      %v703 = vunpack.c.0.s8 %v702
      %v704 = vlaneseq
      %v705 = vshrl.u32 %v704, 7
      %v706 = vsub.s32 %v703, %v705
      %v707 = vrot.slane %v693, %v706
      %v708 = vcombine.low %v700, %v707
      %v709 = vld [vmem:[%s2] sm:$0xf]
      %v710 = vld [vmem:[%s2 + $0x4] sm:$0xf]
      %v711 = vld [vmem:[%s2 + $0x8] sm:$0xf]
      %v712 = vld [vmem:[%s2 + $0xc] sm:$0xf]
      %v713 = vld [vmem:[%s2 + $0x10] sm:$0xf]
      %v714 = vld [vmem:[%s2 + $0x14] sm:$0xf]
      %v715 = vld [vmem:[%s2 + $0x18] sm:$0xf]
      %v716 = vld [vmem:[%s2 + $0x1c] sm:$0xf]
      %v717 = vld [vmem:[%s2 + $0x20] sm:$0xf]
      %v718 = vld [vmem:[%s2 + $0x24] sm:$0xf]
      %v719 = vld [vmem:[%s2 + $0x28] sm:$0xf]
      %v720 = vld [vmem:[%s2 + $0x2c] sm:$0xf]
      %v721 = vld [vmem:[%s2 + $0x30] sm:$0xf]
      %v722 = vld [vmem:[%s2 + $0x34] sm:$0xf]
      %v723 = vld [vmem:[%s2 + $0x38] sm:$0xf]
      %v724 = vld [vmem:[%s2 + $0x3c] sm:$0xf]
      %v725 = vld [vmem:[%s2 + $0x40] sm:$0xf]
      %v726 = vld [vmem:[%s2 + $0x44] sm:$0xf]
      %v727 = vld [vmem:[%s2 + $0x48] sm:$0xf]
      %v728 = vld [vmem:[%s2 + $0x4c] sm:$0xf]
      %v729 = vld [vmem:[%s2 + $0x50] sm:$0xf]
      %v730 = vld [vmem:[%s2 + $0x54] sm:$0xf]
      %v731 = vld [vmem:[%s2 + $0x58] sm:$0xf]
      %v732 = vld [vmem:[%s2 + $0x5c] sm:$0xf]
      %v733 = vld [vmem:[%s2 + $0x60] sm:$0xf]
      %v734 = vld [vmem:[%s2 + $0x64] sm:$0xf]
      %v735 = vld [vmem:[%s2 + $0x68] sm:$0xf]
      %v736 = vld [vmem:[%s2 + $0x6c] sm:$0xf]
      %v737 = vld [vmem:[%s2 + $0x70] sm:$0xf]
      %v738 = vld [vmem:[%s2 + $0x74] sm:$0xf]
      %v739 = vld [vmem:[%s2 + $0x78] sm:$0xf]
      %v740 = vld [vmem:[%s2 + $0x7c] sm:$0xf]
      %v741 = vld [vmem:[%s2 + $0x80] sm:$0xf]
      %v742 = vld [vmem:[%s2 + $0x84] sm:$0xf]
      %v743 = vld [vmem:[%s2 + $0x88] sm:$0xf]
      %v744 = vld [vmem:[%s2 + $0x8c] sm:$0xf]
      %v745 = vld [vmem:[%s2 + $0x90] sm:$0xf]
      %v746 = vld [vmem:[%s2 + $0x94] sm:$0xf]
      %v747 = vld [vmem:[%s2 + $0x98] sm:$0xf]
      %v748 = vld [vmem:[%s2 + $0x9c] sm:$0xf]
      %v749 = vld [vmem:[%s2 + $0xa0] sm:$0xf]
      %v750 = vld [vmem:[%s2 + $0xa4] sm:$0xf]
      %v751 = vld [vmem:[%s2 + $0xa8] sm:$0xf]
      %v752 = vld [vmem:[%s2 + $0xac] sm:$0xf]
      %v753 = vld [vmem:[%s2 + $0xb0] sm:$0xf]
      %v754 = vld [vmem:[%s2 + $0xb4] sm:$0xf]
      %v755 = vld [vmem:[%s2 + $0xb8] sm:$0xf]
      %v756 = vld [vmem:[%s2 + $0xbc] sm:$0xf]
      %v757 = vld [vmem:[%s2 + $0xc0] sm:$0xf]
      %v758 = vld [vmem:[%s2 + $0xc4] sm:$0xf]
      %v759 = vld [vmem:[%s2 + $0xc8] sm:$0xf]
      %v760 = vld [vmem:[%s2 + $0xcc] sm:$0xf]
      %v761 = vld [vmem:[%s2 + $0xd0] sm:$0xf]
      %v762 = vld [vmem:[%s2 + $0xd4] sm:$0xf]
      %v763 = vld [vmem:[%s2 + $0xd8] sm:$0xf]
      %v764 = vld [vmem:[%s2 + $0xdc] sm:$0xf]
      %v765 = vld [vmem:[%s2 + $0xe0] sm:$0xf]
      %v766 = vld [vmem:[%s2 + $0xe4] sm:$0xf]
      %v767 = vld [vmem:[%s2 + $0xe8] sm:$0xf]
      %v768 = vld [vmem:[%s2 + $0xec] sm:$0xf]
      %v769 = vld [vmem:[%s2 + $0xf0] sm:$0xf]
      %v770 = vld [vmem:[%s2 + $0xf4] sm:$0xf]
      %v771 = vld [vmem:[%s2 + $0xf8] sm:$0xf]
      %v772 = vld [vmem:[%s2 + $0xfc] sm:$0xf]
      %v773 = vld [vmem:[%s2 + $0x100] sm:$0xf]
      %v774 = vld [vmem:[%s2 + $0x104] sm:$0xf]
      %v775 = vld [vmem:[%s2 + $0x108] sm:$0xf]
      %v776 = vld [vmem:[%s2 + $0x10c] sm:$0xf]
      %v777 = vld [vmem:[%s2 + $0x110] sm:$0xf]
      %v778 = vld [vmem:[%s2 + $0x114] sm:$0xf]
      %v779 = vld [vmem:[%s2 + $0x118] sm:$0xf]
      %v780 = vld [vmem:[%s2 + $0x11c] sm:$0xf]
      %v781 = vld [vmem:[%s2 + $0x120] sm:$0xf]
      %v782 = vld [vmem:[%s2 + $0x124] sm:$0xf]
      %v783 = vld [vmem:[%s2 + $0x128] sm:$0xf]
      %v784 = vld [vmem:[%s2 + $0x12c] sm:$0xf]
      %v785 = vld [vmem:[%s2 + $0x130] sm:$0xf]
      %v786 = vld [vmem:[%s2 + $0x134] sm:$0xf]
      %v787 = vld [vmem:[%s2 + $0x138] sm:$0xf]
      %v788 = vld [vmem:[%s2 + $0x13c] sm:$0xf]
      %v789 = vld [vmem:[%s2 + $0x140] sm:$0xf]
      %v790 = vld [vmem:[%s2 + $0x144] sm:$0xf]
      %v791 = vld [vmem:[%s2 + $0x148] sm:$0xf]
      %v792 = vld [vmem:[%s2 + $0x14c] sm:$0xf]
      %v793 = vld [vmem:[%s2 + $0x150] sm:$0xf]
      %v794 = vld [vmem:[%s2 + $0x154] sm:$0xf]
      %v795 = vld [vmem:[%s2 + $0x158] sm:$0xf]
      %v796 = vld [vmem:[%s2 + $0x15c] sm:$0xf]
      %v797 = vld [vmem:[%s2 + $0x160] sm:$0xf]
      %v798 = vld [vmem:[%s2 + $0x164] sm:$0xf]
      %v799 = vld [vmem:[%s2 + $0x168] sm:$0xf]
      %v800 = vld [vmem:[%s2 + $0x16c] sm:$0xf]
      %v801 = vld [vmem:[%s2 + $0x170] sm:$0xf]
      %v802 = vld [vmem:[%s2 + $0x174] sm:$0xf]
      %v803 = vld [vmem:[%s2 + $0x178] sm:$0xf]
      %v804 = vld [vmem:[%s2 + $0x17c] sm:$0xf]
      %v805 = vld [vmem:[%s2 + $0x180] sm:$0xf]
      %v806 = vld [vmem:[%s2 + $0x184] sm:$0xf]
      %v807 = vld [vmem:[%s2 + $0x188] sm:$0xf]
      %v808 = vld [vmem:[%s2 + $0x18c] sm:$0xf]
      %v809 = vld [vmem:[%s2 + $0x190] sm:$0xf]
      %v810 = vld [vmem:[%s2 + $0x194] sm:$0xf]
      %v811 = vld [vmem:[%s2 + $0x198] sm:$0xf]
      %v812 = vld [vmem:[%s2 + $0x19c] sm:$0xf]
      %v813 = vld [vmem:[%s2 + $0x1a0] sm:$0xf]
      %v814 = vld [vmem:[%s2 + $0x1a4] sm:$0xf]
      %v815 = vld [vmem:[%s2 + $0x1a8] sm:$0xf]
      %v816 = vld [vmem:[%s2 + $0x1ac] sm:$0xf]
      %v817 = vld [vmem:[%s2 + $0x1b0] sm:$0xf]
      %v818 = vld [vmem:[%s2 + $0x1b4] sm:$0xf]
      %v819 = vld [vmem:[%s2 + $0x1b8] sm:$0xf]
      %v820 = vld [vmem:[%s2 + $0x1bc] sm:$0xf]
      %v821 = vld [vmem:[%s2 + $0x1c0] sm:$0xf]
      %v822 = vld [vmem:[%s2 + $0x1c4] sm:$0xf]
      %v823 = vld [vmem:[%s2 + $0x1c8] sm:$0xf]
      %v824 = vld [vmem:[%s2 + $0x1cc] sm:$0xf]
      %v825 = vld [vmem:[%s2 + $0x1d0] sm:$0xf]
      %v826 = vld [vmem:[%s2 + $0x1d4] sm:$0xf]
      %v827 = vld [vmem:[%s2 + $0x1d8] sm:$0xf]
      %v828 = vld [vmem:[%s2 + $0x1dc] sm:$0xf]
      %v829 = vld [vmem:[%s2 + $0x1e0] sm:$0xf]
      %v830 = vld [vmem:[%s2 + $0x1e4] sm:$0xf]
      %v831 = vld [vmem:[%s2 + $0x1e8] sm:$0xf]
      %v832 = vld [vmem:[%s2 + $0x1ec] sm:$0xf]
      %v833 = vld [vmem:[%s2 + $0x1f0] sm:$0xf]
      %v834 = vld [vmem:[%s2 + $0x1f4] sm:$0xf]
      %v835 = vld [vmem:[%s2 + $0x1f8] sm:$0xf]
      %v836 = vld [vmem:[%s2 + $0x1fc] sm:$0xf]
      %v837 = vld [vmem:[%s2 + $0x200] sm:$0xf]
      %v838 = vld [vmem:[%s2 + $0x204] sm:$0xf]
      %v839 = vld [vmem:[%s2 + $0x208] sm:$0xf]
      %v840 = vld [vmem:[%s2 + $0x20c] sm:$0xf]
      %v841 = vld [vmem:[%s2 + $0x210] sm:$0xf]
      %v842 = vld [vmem:[%s2 + $0x214] sm:$0xf]
      %v843 = vld [vmem:[%s2 + $0x218] sm:$0xf]
      %v844 = vld [vmem:[%s2 + $0x21c] sm:$0xf]
      %v845 = vld [vmem:[%s2 + $0x220] sm:$0xf]
      %v846 = vld [vmem:[%s2 + $0x224] sm:$0xf]
      %v847 = vld [vmem:[%s2 + $0x228] sm:$0xf]
      %v848 = vld [vmem:[%s2 + $0x22c] sm:$0xf]
      %v849 = vld [vmem:[%s2 + $0x230] sm:$0xf]
      %v850 = vld [vmem:[%s2 + $0x234] sm:$0xf]
      %v851 = vld [vmem:[%s2 + $0x238] sm:$0xf]
      %v852 = vld [vmem:[%s2 + $0x23c] sm:$0xf]
      %v853 = vld [vmem:[%s2 + $0x240] sm:$0xf]
      %v854 = vld [vmem:[%s2 + $0x244] sm:$0xf]
      %v855 = vld [vmem:[%s2 + $0x248] sm:$0xf]
      %v856 = vld [vmem:[%s2 + $0x24c] sm:$0xf]
      %v857 = vld [vmem:[%s2 + $0x250] sm:$0xf]
      %v858 = vld [vmem:[%s2 + $0x254] sm:$0xf]
      %v859 = vld [vmem:[%s2 + $0x258] sm:$0xf]
      %v860 = vld [vmem:[%s2 + $0x25c] sm:$0xf]
      %v861 = vld [vmem:[%s2 + $0x260] sm:$0xf]
      %v862 = vld [vmem:[%s2 + $0x264] sm:$0xf]
      %v863 = vld [vmem:[%s2 + $0x268] sm:$0xf]
      %v864 = vld [vmem:[%s2 + $0x26c] sm:$0xf]
      %v865 = vld [vmem:[%s2 + $0x270] sm:$0xf]
      %v866 = vld [vmem:[%s2 + $0x274] sm:$0xf]
      %v867 = vld [vmem:[%s2 + $0x278] sm:$0xf]
      %v868 = vld [vmem:[%s2 + $0x27c] sm:$0xf]
      %v869 = vld [vmem:[%s2 + $0x280] sm:$0xf]
      %v870 = vld [vmem:[%s2 + $0x284] sm:$0xf]
      %v871 = vld [vmem:[%s2 + $0x288] sm:$0xf]
      %v872 = vld [vmem:[%s2 + $0x28c] sm:$0xf]
      %v873 = vld [vmem:[%s2 + $0x290] sm:$0xf]
      %v874 = vld [vmem:[%s2 + $0x294] sm:$0xf]
      %v875 = vld [vmem:[%s2 + $0x298] sm:$0xf]
      %v876 = vld [vmem:[%s2 + $0x29c] sm:$0xf]
      %v877 = vld [vmem:[%s2 + $0x2a0] sm:$0xf]
      %v878 = vld [vmem:[%s2 + $0x2a4] sm:$0xf]
      %v879 = vld [vmem:[%s2 + $0x2a8] sm:$0xf]
      %v880 = vld [vmem:[%s2 + $0x2ac] sm:$0xf]
      %v881 = vld [vmem:[%s2 + $0x2b0] sm:$0xf]
      %v882 = vld [vmem:[%s2 + $0x2b4] sm:$0xf]
      %v883 = vld [vmem:[%s2 + $0x2b8] sm:$0xf]
      %v884 = vld [vmem:[%s2 + $0x2bc] sm:$0xf]
      %v885 = vld [vmem:[%s2 + $0x2c0] sm:$0xf]
      %v886 = vld [vmem:[%s2 + $0x2c4] sm:$0xf]
      %v887 = vld [vmem:[%s2 + $0x2c8] sm:$0xf]
      %v888 = vld [vmem:[%s2 + $0x2cc] sm:$0xf]
      %v889 = vld [vmem:[%s2 + $0x2d0] sm:$0xf]
      %v890 = vld [vmem:[%s2 + $0x2d4] sm:$0xf]
      %v891 = vld [vmem:[%s2 + $0x2d8] sm:$0xf]
      %v892 = vld [vmem:[%s2 + $0x2dc] sm:$0xf]
      %v893 = vld [vmem:[%s2 + $0x2e0] sm:$0xf]
      %v894 = vld [vmem:[%s2 + $0x2e4] sm:$0xf]
      %v895 = vld [vmem:[%s2 + $0x2e8] sm:$0xf]
      %v896 = vld [vmem:[%s2 + $0x2ec] sm:$0xf]
      %v897 = vld [vmem:[%s2 + $0x2f0] sm:$0xf]
      %v898 = vld [vmem:[%s2 + $0x2f4] sm:$0xf]
      %v899 = vld [vmem:[%s2 + $0x2f8] sm:$0xf]
      %v900 = vld [vmem:[%s2 + $0x2fc] sm:$0xf]
      %v901 = vld [vmem:[%s2 + $0x300] sm:$0xf]
      %v902 = vld [vmem:[%s2 + $0x304] sm:$0xf]
      %v903 = vld [vmem:[%s2 + $0x308] sm:$0xf]
      %v904 = vld [vmem:[%s2 + $0x30c] sm:$0xf]
      %v905 = vld [vmem:[%s2 + $0x310] sm:$0xf]
      %v906 = vld [vmem:[%s2 + $0x314] sm:$0xf]
      %v907 = vld [vmem:[%s2 + $0x318] sm:$0xf]
      %v908 = vld [vmem:[%s2 + $0x31c] sm:$0xf]
      %v909 = vld [vmem:[%s2 + $0x320] sm:$0xf]
      %v910 = vld [vmem:[%s2 + $0x324] sm:$0xf]
      %v911 = vld [vmem:[%s2 + $0x328] sm:$0xf]
      %v912 = vld [vmem:[%s2 + $0x32c] sm:$0xf]
      %v913 = vld [vmem:[%s2 + $0x330] sm:$0xf]
      %v914 = vld [vmem:[%s2 + $0x334] sm:$0xf]
      %v915 = vld [vmem:[%s2 + $0x338] sm:$0xf]
      %v916 = vld [vmem:[%s2 + $0x33c] sm:$0xf]
      %v917 = vld [vmem:[%s2 + $0x340] sm:$0xf]
      %v918 = vld [vmem:[%s2 + $0x344] sm:$0xf]
      %v919 = vld [vmem:[%s2 + $0x348] sm:$0xf]
      %v920 = vld [vmem:[%s2 + $0x34c] sm:$0xf]
      %v921 = vld [vmem:[%s2 + $0x350] sm:$0xf]
      %v922 = vld [vmem:[%s2 + $0x354] sm:$0xf]
      %v923 = vld [vmem:[%s2 + $0x358] sm:$0xf]
      %v924 = vld [vmem:[%s2 + $0x35c] sm:$0xf]
      %v925 = vld [vmem:[%s2 + $0x360] sm:$0xf]
      %v926 = vld [vmem:[%s2 + $0x364] sm:$0xf]
      %v927 = vld [vmem:[%s2 + $0x368] sm:$0xf]
      %v928 = vld [vmem:[%s2 + $0x36c] sm:$0xf]
      %v929 = vld [vmem:[%s2 + $0x370] sm:$0xf]
      %v930 = vld [vmem:[%s2 + $0x374] sm:$0xf]
      %v931 = vld [vmem:[%s2 + $0x378] sm:$0xf]
      %v932 = vld [vmem:[%s2 + $0x37c] sm:$0xf]
      %v933 = vld [vmem:[%s2 + $0x380] sm:$0xf]
      %v934 = vld [vmem:[%s2 + $0x384] sm:$0xf]
      %v935 = vld [vmem:[%s2 + $0x388] sm:$0xf]
      %v936 = vld [vmem:[%s2 + $0x38c] sm:$0xf]
      %v937 = vld [vmem:[%s2 + $0x390] sm:$0xf]
      %v938 = vld [vmem:[%s2 + $0x394] sm:$0xf]
      %v939 = vld [vmem:[%s2 + $0x398] sm:$0xf]
      %v940 = vld [vmem:[%s2 + $0x39c] sm:$0xf]
      %v941 = vld [vmem:[%s2 + $0x3a0] sm:$0xf]
      %v942 = vld [vmem:[%s2 + $0x3a4] sm:$0xf]
      %v943 = vld [vmem:[%s2 + $0x3a8] sm:$0xf]
      %v944 = vld [vmem:[%s2 + $0x3ac] sm:$0xf]
      %v945 = vld [vmem:[%s2 + $0x3b0] sm:$0xf]
      %v946 = vld [vmem:[%s2 + $0x3b4] sm:$0xf]
      %v947 = vld [vmem:[%s2 + $0x3b8] sm:$0xf]
      %v948 = vld [vmem:[%s2 + $0x3bc] sm:$0xf]
      %v949 = vld [vmem:[%s2 + $0x3c0] sm:$0xf]
      %v950 = vld [vmem:[%s2 + $0x3c4] sm:$0xf]
      %v951 = vld [vmem:[%s2 + $0x3c8] sm:$0xf]
      %v952 = vld [vmem:[%s2 + $0x3cc] sm:$0xf]
      %v953 = vld [vmem:[%s2 + $0x3d0] sm:$0xf]
      %v954 = vld [vmem:[%s2 + $0x3d4] sm:$0xf]
      %v955 = vld [vmem:[%s2 + $0x3d8] sm:$0xf]
      %v956 = vld [vmem:[%s2 + $0x3dc] sm:$0xf]
      %v957 = vld [vmem:[%s2 + $0x3e0] sm:$0xf]
      %v958 = vld [vmem:[%s2 + $0x3e4] sm:$0xf]
      %v959 = vld [vmem:[%s2 + $0x3e8] sm:$0xf]
      %v960 = vld [vmem:[%s2 + $0x3ec] sm:$0xf]
      %v961 = vld [vmem:[%s2 + $0x3f0] sm:$0xf]
      %v962 = vld [vmem:[%s2 + $0x3f4] sm:$0xf]
      %v963 = vld [vmem:[%s2 + $0x3f8] sm:$0xf]
      %v964 = vld [vmem:[%s2 + $0x3fc] sm:$0xf]
      %v965 = vld [vmem:[%s3] sm:$0x1]
      %v967 = vlaneseq
      %v968 = vshrl.u32 %v967, 7
      %v969 = vsub.s32 0, %v968
      %v970 = vrot.slane %v965, %v969
      %v972 = vcombine.low %v555, %v589
      %v973 = vcombine.high %v555, %v589
      %v974 = vcombine.low %v623, %v657
      %v975 = vcombine.high %v623, %v657
      %v977 = vunpack.c.l.s4 1983009808
      %v978 = vunpack.c.0.s8 %v977
      %v979 = vlaneseq
      %v980 = vshrl.u32 %v979, 7
      %v981 = vsub.s32 %v978, %v980
      %v982 = vrot.slane %v972, %v981
      %v984 = vunpack.c.l.s4 1983009808
      %v985 = vunpack.c.0.s8 %v984
      %v986 = vlaneseq
      %v987 = vshrl.u32 %v986, 7
      %v988 = vsub.s32 %v985, %v987
      %v989 = vrot.slane %v973, %v988
      %v991 = vunpack.c.l.s4 1983009808
      %v992 = vunpack.c.0.s8 %v991
      %v993 = vlaneseq
      %v994 = vshrl.u32 %v993, 7
      %v995 = vsub.s32 %v992, %v994
      %v996 = vrot.slane %v974, %v995
      %v998 = vunpack.c.l.s4 1983009808
      %v999 = vunpack.c.0.s8 %v998
      %v1000 = vlaneseq
      %v1001 = vshrl.u32 %v1000, 7
      %v1002 = vsub.s32 %v999, %v1001
      %v1003 = vrot.slane %v975, %v1002
      %v1004 = vcombine.low %v982, %v996
      %v1005 = vcombine.high %v982, %v996
      %v1006 = vcombine.low %v989, %v1003
      %v1007 = vcombine.high %v989, %v1003
      %v1008 = vcombine.low %v572, %v606
      %v1009 = vcombine.high %v572, %v606
      %v1010 = vcombine.low %v640, %v674
      %v1011 = vcombine.high %v640, %v674
      %v1013 = vunpack.c.l.s4 1983009808
      %v1014 = vunpack.c.0.s8 %v1013
      %v1015 = vlaneseq
      %v1016 = vshrl.u32 %v1015, 7
      %v1017 = vsub.s32 %v1014, %v1016
      %v1018 = vrot.slane %v1008, %v1017
      %v1020 = vunpack.c.l.s4 1983009808
      %v1021 = vunpack.c.0.s8 %v1020
      %v1022 = vlaneseq
      %v1023 = vshrl.u32 %v1022, 7
      %v1024 = vsub.s32 %v1021, %v1023
      %v1025 = vrot.slane %v1009, %v1024
      %v1027 = vunpack.c.l.s4 1983009808
      %v1028 = vunpack.c.0.s8 %v1027
      %v1029 = vlaneseq
      %v1030 = vshrl.u32 %v1029, 7
      %v1031 = vsub.s32 %v1028, %v1030
      %v1032 = vrot.slane %v1010, %v1031
      %v1034 = vunpack.c.l.s4 1983009808
      %v1035 = vunpack.c.0.s8 %v1034
      %v1036 = vlaneseq
      %v1037 = vshrl.u32 %v1036, 7
      %v1038 = vsub.s32 %v1035, %v1037
      %v1039 = vrot.slane %v1011, %v1038
      %v1040 = vcombine.low %v1018, %v1032
      %v1041 = vcombine.high %v1018, %v1032
      %v1042 = vcombine.low %v1025, %v1039
      %v1043 = vcombine.high %v1025, %v1039
      %v1044 = vcombine.low %v589, %v623
      %v1045 = vcombine.high %v589, %v623
      %v1046 = vcombine.low %v657, %v691
      %v1047 = vcombine.high %v657, %v691
      %v1049 = vunpack.c.l.s4 1983009808
      %v1050 = vunpack.c.0.s8 %v1049
      %v1051 = vlaneseq
      %v1052 = vshrl.u32 %v1051, 7
      %v1053 = vsub.s32 %v1050, %v1052
      %v1054 = vrot.slane %v1044, %v1053
      %v1056 = vunpack.c.l.s4 1983009808
      %v1057 = vunpack.c.0.s8 %v1056
      %v1058 = vlaneseq
      %v1059 = vshrl.u32 %v1058, 7
      %v1060 = vsub.s32 %v1057, %v1059
      %v1061 = vrot.slane %v1045, %v1060
      %v1063 = vunpack.c.l.s4 1983009808
      %v1064 = vunpack.c.0.s8 %v1063
      %v1065 = vlaneseq
      %v1066 = vshrl.u32 %v1065, 7
      %v1067 = vsub.s32 %v1064, %v1066
      %v1068 = vrot.slane %v1046, %v1067
      %v1070 = vunpack.c.l.s4 1983009808
      %v1071 = vunpack.c.0.s8 %v1070
      %v1072 = vlaneseq
      %v1073 = vshrl.u32 %v1072, 7
      %v1074 = vsub.s32 %v1071, %v1073
      %v1075 = vrot.slane %v1047, %v1074
      %v1076 = vcombine.low %v1054, %v1068
      %v1077 = vcombine.high %v1054, %v1068
      %v1078 = vcombine.low %v1061, %v1075
      %v1079 = vcombine.high %v1061, %v1075
      %v1080 = vcombine.low %v606, %v640
      %v1081 = vcombine.high %v606, %v640
      %v1082 = vcombine.low %v674, %v708
      %v1083 = vcombine.high %v674, %v708
      %v1085 = vunpack.c.l.s4 1983009808
      %v1086 = vunpack.c.0.s8 %v1085
      %v1087 = vlaneseq
      %v1088 = vshrl.u32 %v1087, 7
      %v1089 = vsub.s32 %v1086, %v1088
      %v1090 = vrot.slane %v1080, %v1089
      %v1092 = vunpack.c.l.s4 1983009808
      %v1093 = vunpack.c.0.s8 %v1092
      %v1094 = vlaneseq
      %v1095 = vshrl.u32 %v1094, 7
      %v1096 = vsub.s32 %v1093, %v1095
      %v1097 = vrot.slane %v1081, %v1096
      %v1099 = vunpack.c.l.s4 1983009808
      %v1100 = vunpack.c.0.s8 %v1099
      %v1101 = vlaneseq
      %v1102 = vshrl.u32 %v1101, 7
      %v1103 = vsub.s32 %v1100, %v1102
      %v1104 = vrot.slane %v1082, %v1103
      %v1106 = vunpack.c.l.s4 1983009808
      %v1107 = vunpack.c.0.s8 %v1106
      %v1108 = vlaneseq
      %v1109 = vshrl.u32 %v1108, 7
      %v1110 = vsub.s32 %v1107, %v1109
      %v1111 = vrot.slane %v1083, %v1110
      %v1112 = vcombine.low %v1090, %v1104
      %v1113 = vcombine.high %v1090, %v1104
      %v1114 = vcombine.low %v1097, %v1111
      %v1115 = vcombine.high %v1097, %v1111
      %v1388 = vunpack.c.l.b16 %v709
      %v1389 = vunpack.c.l.b16 %v710
      %v1390 = vunpack.c.l.b16 %v711
      %v1391 = vunpack.c.l.b16 %v712
      %v1392 = vunpack.c.l.b16 %v713
      %v1393 = vunpack.c.l.b16 %v714
      %v1394 = vunpack.c.l.b16 %v715
      %v1395 = vunpack.c.l.b16 %v716
      %v1396 = vunpack.c.l.b16 %v717
      %v1397 = vunpack.c.l.b16 %v718
      %v1398 = vunpack.c.l.b16 %v719
      %v1399 = vunpack.c.l.b16 %v720
      %v1400 = vunpack.c.l.b16 %v721
      %v1401 = vunpack.c.l.b16 %v722
      %v1402 = vunpack.c.l.b16 %v723
      %v1403 = vunpack.c.l.b16 %v724
      %v1404 = vunpack.c.l.b16 %v725
      %v1405 = vunpack.c.l.b16 %v726
      %v1406 = vunpack.c.l.b16 %v727
      %v1407 = vunpack.c.l.b16 %v728
      %v1408 = vunpack.c.l.b16 %v729
      %v1409 = vunpack.c.l.b16 %v730
      %v1410 = vunpack.c.l.b16 %v731
      %v1411 = vunpack.c.l.b16 %v732
      %v1412 = vunpack.c.l.b16 %v733
      %v1413 = vunpack.c.l.b16 %v734
      %v1414 = vunpack.c.l.b16 %v735
      %v1415 = vunpack.c.l.b16 %v736
      %v1416 = vunpack.c.l.b16 %v737
      %v1417 = vunpack.c.l.b16 %v738
      %v1418 = vunpack.c.l.b16 %v739
      %v1419 = vunpack.c.l.b16 %v740
      %v1420 = vunpack.c.l.b16 %v741
      %v1421 = vunpack.c.l.b16 %v742
      %v1422 = vunpack.c.l.b16 %v743
      %v1423 = vunpack.c.l.b16 %v744
      %v1424 = vunpack.c.l.b16 %v745
      %v1425 = vunpack.c.l.b16 %v746
      %v1426 = vunpack.c.l.b16 %v747
      %v1427 = vunpack.c.l.b16 %v748
      %v1428 = vunpack.c.l.b16 %v749
      %v1429 = vunpack.c.l.b16 %v750
      %v1430 = vunpack.c.l.b16 %v751
      %v1431 = vunpack.c.l.b16 %v752
      %v1432 = vunpack.c.l.b16 %v753
      %v1433 = vunpack.c.l.b16 %v754
      %v1434 = vunpack.c.l.b16 %v755
      %v1435 = vunpack.c.l.b16 %v756
      %v1436 = vunpack.c.l.b16 %v757
      %v1437 = vunpack.c.l.b16 %v758
      %v1438 = vunpack.c.l.b16 %v759
      %v1439 = vunpack.c.l.b16 %v760
      %v1440 = vunpack.c.l.b16 %v761
      %v1441 = vunpack.c.l.b16 %v762
      %v1442 = vunpack.c.l.b16 %v763
      %v1443 = vunpack.c.l.b16 %v764
      %v1444 = vunpack.c.l.b16 %v765
      %v1445 = vunpack.c.l.b16 %v766
      %v1446 = vunpack.c.l.b16 %v767
      %v1447 = vunpack.c.l.b16 %v768
      %v1448 = vunpack.c.l.b16 %v769
      %v1449 = vunpack.c.l.b16 %v770
      %v1450 = vunpack.c.l.b16 %v771
      %v1451 = vunpack.c.l.b16 %v772
      %v1452 = vunpack.c.l.b16 %v773
      %v1453 = vunpack.c.l.b16 %v774
      %v1454 = vunpack.c.l.b16 %v775
      %v1455 = vunpack.c.l.b16 %v776
      %v1456 = vunpack.c.l.b16 %v777
      %v1457 = vunpack.c.l.b16 %v778
      %v1458 = vunpack.c.l.b16 %v779
      %v1459 = vunpack.c.l.b16 %v780
      %v1460 = vunpack.c.l.b16 %v781
      %v1461 = vunpack.c.l.b16 %v782
      %v1462 = vunpack.c.l.b16 %v783
      %v1463 = vunpack.c.l.b16 %v784
      %v1464 = vunpack.c.l.b16 %v785
      %v1465 = vunpack.c.l.b16 %v786
      %v1466 = vunpack.c.l.b16 %v787
      %v1467 = vunpack.c.l.b16 %v788
      %v1468 = vunpack.c.l.b16 %v789
      %v1469 = vunpack.c.l.b16 %v790
      %v1470 = vunpack.c.l.b16 %v791
      %v1471 = vunpack.c.l.b16 %v792
      %v1472 = vunpack.c.l.b16 %v793
      %v1473 = vunpack.c.l.b16 %v794
      %v1474 = vunpack.c.l.b16 %v795
      %v1475 = vunpack.c.l.b16 %v796
      %v1476 = vunpack.c.l.b16 %v797
      %v1477 = vunpack.c.l.b16 %v798
      %v1478 = vunpack.c.l.b16 %v799
      %v1479 = vunpack.c.l.b16 %v800
      %v1480 = vunpack.c.l.b16 %v801
      %v1481 = vunpack.c.l.b16 %v802
      %v1482 = vunpack.c.l.b16 %v803
      %v1483 = vunpack.c.l.b16 %v804
      %v1484 = vunpack.c.l.b16 %v805
      %v1485 = vunpack.c.l.b16 %v806
      %v1486 = vunpack.c.l.b16 %v807
      %v1487 = vunpack.c.l.b16 %v808
      %v1488 = vunpack.c.l.b16 %v809
      %v1489 = vunpack.c.l.b16 %v810
      %v1490 = vunpack.c.l.b16 %v811
      %v1491 = vunpack.c.l.b16 %v812
      %v1492 = vunpack.c.l.b16 %v813
      %v1493 = vunpack.c.l.b16 %v814
      %v1494 = vunpack.c.l.b16 %v815
      %v1495 = vunpack.c.l.b16 %v816
      %v1496 = vunpack.c.l.b16 %v817
      %v1497 = vunpack.c.l.b16 %v818
      %v1498 = vunpack.c.l.b16 %v819
      %v1499 = vunpack.c.l.b16 %v820
      %v1500 = vunpack.c.l.b16 %v821
      %v1501 = vunpack.c.l.b16 %v822
      %v1502 = vunpack.c.l.b16 %v823
      %v1503 = vunpack.c.l.b16 %v824
      %v1504 = vunpack.c.l.b16 %v825
      %v1505 = vunpack.c.l.b16 %v826
      %v1506 = vunpack.c.l.b16 %v827
      %v1507 = vunpack.c.l.b16 %v828
      %v1508 = vunpack.c.l.b16 %v829
      %v1509 = vunpack.c.l.b16 %v830
      %v1510 = vunpack.c.l.b16 %v831
      %v1511 = vunpack.c.l.b16 %v832
      %v1512 = vunpack.c.l.b16 %v833
      %v1513 = vunpack.c.l.b16 %v834
      %v1514 = vunpack.c.l.b16 %v835
      %v1515 = vunpack.c.l.b16 %v836
      %v1516 = vunpack.c.l.b16 %v837
      %v1517 = vunpack.c.l.b16 %v838
      %v1518 = vunpack.c.l.b16 %v839
      %v1519 = vunpack.c.l.b16 %v840
      %v1520 = vunpack.c.l.b16 %v841
      %v1521 = vunpack.c.l.b16 %v842
      %v1522 = vunpack.c.l.b16 %v843
      %v1523 = vunpack.c.l.b16 %v844
      %v1524 = vunpack.c.l.b16 %v845
      %v1525 = vunpack.c.l.b16 %v846
      %v1526 = vunpack.c.l.b16 %v847
      %v1527 = vunpack.c.l.b16 %v848
      %v1528 = vunpack.c.l.b16 %v849
      %v1529 = vunpack.c.l.b16 %v850
      %v1530 = vunpack.c.l.b16 %v851
      %v1531 = vunpack.c.l.b16 %v852
      %v1532 = vunpack.c.l.b16 %v853
      %v1533 = vunpack.c.l.b16 %v854
      %v1534 = vunpack.c.l.b16 %v855
      %v1535 = vunpack.c.l.b16 %v856
      %v1536 = vunpack.c.l.b16 %v857
      %v1537 = vunpack.c.l.b16 %v858
      %v1538 = vunpack.c.l.b16 %v859
      %v1539 = vunpack.c.l.b16 %v860
      %v1540 = vunpack.c.l.b16 %v861
      %v1541 = vunpack.c.l.b16 %v862
      %v1542 = vunpack.c.l.b16 %v863
      %v1543 = vunpack.c.l.b16 %v864
      %v1544 = vunpack.c.l.b16 %v865
      %v1545 = vunpack.c.l.b16 %v866
      %v1546 = vunpack.c.l.b16 %v867
      %v1547 = vunpack.c.l.b16 %v868
      %v1548 = vunpack.c.l.b16 %v869
      %v1549 = vunpack.c.l.b16 %v870
      %v1550 = vunpack.c.l.b16 %v871
      %v1551 = vunpack.c.l.b16 %v872
      %v1552 = vunpack.c.l.b16 %v873
      %v1553 = vunpack.c.l.b16 %v874
      %v1554 = vunpack.c.l.b16 %v875
      %v1555 = vunpack.c.l.b16 %v876
      %v1556 = vunpack.c.l.b16 %v877
      %v1557 = vunpack.c.l.b16 %v878
      %v1558 = vunpack.c.l.b16 %v879
      %v1559 = vunpack.c.l.b16 %v880
      %v1560 = vunpack.c.l.b16 %v881
      %v1561 = vunpack.c.l.b16 %v882
      %v1562 = vunpack.c.l.b16 %v883
      %v1563 = vunpack.c.l.b16 %v884
      %v1564 = vunpack.c.l.b16 %v885
      %v1565 = vunpack.c.l.b16 %v886
      %v1566 = vunpack.c.l.b16 %v887
      %v1567 = vunpack.c.l.b16 %v888
      %v1568 = vunpack.c.l.b16 %v889
      %v1569 = vunpack.c.l.b16 %v890
      %v1570 = vunpack.c.l.b16 %v891
      %v1571 = vunpack.c.l.b16 %v892
      %v1572 = vunpack.c.l.b16 %v893
      %v1573 = vunpack.c.l.b16 %v894
      %v1574 = vunpack.c.l.b16 %v895
      %v1575 = vunpack.c.l.b16 %v896
      %v1576 = vunpack.c.l.b16 %v897
      %v1577 = vunpack.c.l.b16 %v898
      %v1578 = vunpack.c.l.b16 %v899
      %v1579 = vunpack.c.l.b16 %v900
      %v1580 = vunpack.c.l.b16 %v901
      %v1581 = vunpack.c.l.b16 %v902
      %v1582 = vunpack.c.l.b16 %v903
      %v1583 = vunpack.c.l.b16 %v904
      %v1584 = vunpack.c.l.b16 %v905
      %v1585 = vunpack.c.l.b16 %v906
      %v1586 = vunpack.c.l.b16 %v907
      %v1587 = vunpack.c.l.b16 %v908
      %v1588 = vunpack.c.l.b16 %v909
      %v1589 = vunpack.c.l.b16 %v910
      %v1590 = vunpack.c.l.b16 %v911
      %v1591 = vunpack.c.l.b16 %v912
      %v1592 = vunpack.c.l.b16 %v913
      %v1593 = vunpack.c.l.b16 %v914
      %v1594 = vunpack.c.l.b16 %v915
      %v1595 = vunpack.c.l.b16 %v916
      %v1596 = vunpack.c.l.b16 %v917
      %v1597 = vunpack.c.l.b16 %v918
      %v1598 = vunpack.c.l.b16 %v919
      %v1599 = vunpack.c.l.b16 %v920
      %v1600 = vunpack.c.l.b16 %v921
      %v1601 = vunpack.c.l.b16 %v922
      %v1602 = vunpack.c.l.b16 %v923
      %v1603 = vunpack.c.l.b16 %v924
      %v1604 = vunpack.c.l.b16 %v925
      %v1605 = vunpack.c.l.b16 %v926
      %v1606 = vunpack.c.l.b16 %v927
      %v1607 = vunpack.c.l.b16 %v928
      %v1608 = vunpack.c.l.b16 %v929
      %v1609 = vunpack.c.l.b16 %v930
      %v1610 = vunpack.c.l.b16 %v931
      %v1611 = vunpack.c.l.b16 %v932
      %v1612 = vunpack.c.l.b16 %v933
      %v1613 = vunpack.c.l.b16 %v934
      %v1614 = vunpack.c.l.b16 %v935
      %v1615 = vunpack.c.l.b16 %v936
      %v1616 = vunpack.c.l.b16 %v937
      %v1617 = vunpack.c.l.b16 %v938
      %v1618 = vunpack.c.l.b16 %v939
      %v1619 = vunpack.c.l.b16 %v940
      %v1620 = vunpack.c.l.b16 %v941
      %v1621 = vunpack.c.l.b16 %v942
      %v1622 = vunpack.c.l.b16 %v943
      %v1623 = vunpack.c.l.b16 %v944
      %v1624 = vunpack.c.l.b16 %v945
      %v1625 = vunpack.c.l.b16 %v946
      %v1626 = vunpack.c.l.b16 %v947
      %v1627 = vunpack.c.l.b16 %v948
      %v1628 = vunpack.c.l.b16 %v949
      %v1629 = vunpack.c.l.b16 %v950
      %v1630 = vunpack.c.l.b16 %v951
      %v1631 = vunpack.c.l.b16 %v952
      %v1632 = vunpack.c.l.b16 %v953
      %v1633 = vunpack.c.l.b16 %v954
      %v1634 = vunpack.c.l.b16 %v955
      %v1635 = vunpack.c.l.b16 %v956
      %v1636 = vunpack.c.l.b16 %v957
      %v1637 = vunpack.c.l.b16 %v958
      %v1638 = vunpack.c.l.b16 %v959
      %v1639 = vunpack.c.l.b16 %v960
      %v1640 = vunpack.c.l.b16 %v961
      %v1641 = vunpack.c.l.b16 %v962
      %v1642 = vunpack.c.l.b16 %v963
      %v1643 = vunpack.c.l.b16 %v964
      %v1644 = vpack.c.b16 %v1389, %v1388
      %v1645 = vpack.c.b16 %v1391, %v1390
      %v1646 = vpack.c.b16 %v1393, %v1392
      %v1647 = vpack.c.b16 %v1395, %v1394
      %v1648 = vpack.c.b16 %v1397, %v1396
      %v1649 = vpack.c.b16 %v1399, %v1398
      %v1650 = vpack.c.b16 %v1401, %v1400
      %v1651 = vpack.c.b16 %v1403, %v1402
      %v1652 = vpack.c.b16 %v1405, %v1404
      %v1653 = vpack.c.b16 %v1407, %v1406
      %v1654 = vpack.c.b16 %v1409, %v1408
      %v1655 = vpack.c.b16 %v1411, %v1410
      %v1656 = vpack.c.b16 %v1413, %v1412
      %v1657 = vpack.c.b16 %v1415, %v1414
      %v1658 = vpack.c.b16 %v1417, %v1416
      %v1659 = vpack.c.b16 %v1419, %v1418
      %v1660 = vpack.c.b16 %v1421, %v1420
      %v1661 = vpack.c.b16 %v1423, %v1422
      %v1662 = vpack.c.b16 %v1425, %v1424
      %v1663 = vpack.c.b16 %v1427, %v1426
      %v1664 = vpack.c.b16 %v1429, %v1428
      %v1665 = vpack.c.b16 %v1431, %v1430
      %v1666 = vpack.c.b16 %v1433, %v1432
      %v1667 = vpack.c.b16 %v1435, %v1434
      %v1668 = vpack.c.b16 %v1437, %v1436
      %v1669 = vpack.c.b16 %v1439, %v1438
      %v1670 = vpack.c.b16 %v1441, %v1440
      %v1671 = vpack.c.b16 %v1443, %v1442
      %v1672 = vpack.c.b16 %v1445, %v1444
      %v1673 = vpack.c.b16 %v1447, %v1446
      %v1674 = vpack.c.b16 %v1449, %v1448
      %v1675 = vpack.c.b16 %v1451, %v1450
      %v1676 = vpack.c.b16 %v1453, %v1452
      %v1677 = vpack.c.b16 %v1455, %v1454
      %v1678 = vpack.c.b16 %v1457, %v1456
      %v1679 = vpack.c.b16 %v1459, %v1458
      %v1680 = vpack.c.b16 %v1461, %v1460
      %v1681 = vpack.c.b16 %v1463, %v1462
      %v1682 = vpack.c.b16 %v1465, %v1464
      %v1683 = vpack.c.b16 %v1467, %v1466
      %v1684 = vpack.c.b16 %v1469, %v1468
      %v1685 = vpack.c.b16 %v1471, %v1470
      %v1686 = vpack.c.b16 %v1473, %v1472
      %v1687 = vpack.c.b16 %v1475, %v1474
      %v1688 = vpack.c.b16 %v1477, %v1476
      %v1689 = vpack.c.b16 %v1479, %v1478
      %v1690 = vpack.c.b16 %v1481, %v1480
      %v1691 = vpack.c.b16 %v1483, %v1482
      %v1692 = vpack.c.b16 %v1485, %v1484
      %v1693 = vpack.c.b16 %v1487, %v1486
      %v1694 = vpack.c.b16 %v1489, %v1488
      %v1695 = vpack.c.b16 %v1491, %v1490
      %v1696 = vpack.c.b16 %v1493, %v1492
      %v1697 = vpack.c.b16 %v1495, %v1494
      %v1698 = vpack.c.b16 %v1497, %v1496
      %v1699 = vpack.c.b16 %v1499, %v1498
      %v1700 = vpack.c.b16 %v1501, %v1500
      %v1701 = vpack.c.b16 %v1503, %v1502
      %v1702 = vpack.c.b16 %v1505, %v1504
      %v1703 = vpack.c.b16 %v1507, %v1506
      %v1704 = vpack.c.b16 %v1509, %v1508
      %v1705 = vpack.c.b16 %v1511, %v1510
      %v1706 = vpack.c.b16 %v1513, %v1512
      %v1707 = vpack.c.b16 %v1515, %v1514
      %v1708 = vpack.c.b16 %v1517, %v1516
      %v1709 = vpack.c.b16 %v1519, %v1518
      %v1710 = vpack.c.b16 %v1521, %v1520
      %v1711 = vpack.c.b16 %v1523, %v1522
      %v1712 = vpack.c.b16 %v1525, %v1524
      %v1713 = vpack.c.b16 %v1527, %v1526
      %v1714 = vpack.c.b16 %v1529, %v1528
      %v1715 = vpack.c.b16 %v1531, %v1530
      %v1716 = vpack.c.b16 %v1533, %v1532
      %v1717 = vpack.c.b16 %v1535, %v1534
      %v1718 = vpack.c.b16 %v1537, %v1536
      %v1719 = vpack.c.b16 %v1539, %v1538
      %v1720 = vpack.c.b16 %v1541, %v1540
      %v1721 = vpack.c.b16 %v1543, %v1542
      %v1722 = vpack.c.b16 %v1545, %v1544
      %v1723 = vpack.c.b16 %v1547, %v1546
      %v1724 = vpack.c.b16 %v1549, %v1548
      %v1725 = vpack.c.b16 %v1551, %v1550
      %v1726 = vpack.c.b16 %v1553, %v1552
      %v1727 = vpack.c.b16 %v1555, %v1554
      %v1728 = vpack.c.b16 %v1557, %v1556
      %v1729 = vpack.c.b16 %v1559, %v1558
      %v1730 = vpack.c.b16 %v1561, %v1560
      %v1731 = vpack.c.b16 %v1563, %v1562
      %v1732 = vpack.c.b16 %v1565, %v1564
      %v1733 = vpack.c.b16 %v1567, %v1566
      %v1734 = vpack.c.b16 %v1569, %v1568
      %v1735 = vpack.c.b16 %v1571, %v1570
      %v1736 = vpack.c.b16 %v1573, %v1572
      %v1737 = vpack.c.b16 %v1575, %v1574
      %v1738 = vpack.c.b16 %v1577, %v1576
      %v1739 = vpack.c.b16 %v1579, %v1578
      %v1740 = vpack.c.b16 %v1581, %v1580
      %v1741 = vpack.c.b16 %v1583, %v1582
      %v1742 = vpack.c.b16 %v1585, %v1584
      %v1743 = vpack.c.b16 %v1587, %v1586
      %v1744 = vpack.c.b16 %v1589, %v1588
      %v1745 = vpack.c.b16 %v1591, %v1590
      %v1746 = vpack.c.b16 %v1593, %v1592
      %v1747 = vpack.c.b16 %v1595, %v1594
      %v1748 = vpack.c.b16 %v1597, %v1596
      %v1749 = vpack.c.b16 %v1599, %v1598
      %v1750 = vpack.c.b16 %v1601, %v1600
      %v1751 = vpack.c.b16 %v1603, %v1602
      %v1752 = vpack.c.b16 %v1605, %v1604
      %v1753 = vpack.c.b16 %v1607, %v1606
      %v1754 = vpack.c.b16 %v1609, %v1608
      %v1755 = vpack.c.b16 %v1611, %v1610
      %v1756 = vpack.c.b16 %v1613, %v1612
      %v1757 = vpack.c.b16 %v1615, %v1614
      %v1758 = vpack.c.b16 %v1617, %v1616
      %v1759 = vpack.c.b16 %v1619, %v1618
      %v1760 = vpack.c.b16 %v1621, %v1620
      %v1761 = vpack.c.b16 %v1623, %v1622
      %v1762 = vpack.c.b16 %v1625, %v1624
      %v1763 = vpack.c.b16 %v1627, %v1626
      %v1764 = vpack.c.b16 %v1629, %v1628
      %v1765 = vpack.c.b16 %v1631, %v1630
      %v1766 = vpack.c.b16 %v1633, %v1632
      %v1767 = vpack.c.b16 %v1635, %v1634
      %v1768 = vpack.c.b16 %v1637, %v1636
      %v1769 = vpack.c.b16 %v1639, %v1638
      %v1770 = vpack.c.b16 %v1641, %v1640
      %v1771 = vpack.c.b16 %v1643, %v1642
      %1900 = vmatprep.subr.bf16.mxu0 0
      %1901 = vmatpush1.bf16.msra.mxu0 %v1644
      %1902 = vmatprep.subr.bf16.mxu0 0
      %1903 = vmatpush1.bf16.msra.mxu0 %v1645
      %1904 = vmatprep.subr.bf16.mxu0 0
      %1905 = vmatpush1.bf16.msra.mxu0 %v1646
      %1906 = vmatprep.subr.bf16.mxu0 0
      %1907 = vmatpush1.bf16.msra.mxu0 %v1647
      %1908 = vmatprep.subr.bf16.mxu0 0
      %1909 = vmatpush1.bf16.msra.mxu0 %v1648
      %1910 = vmatprep.subr.bf16.mxu0 0
      %1911 = vmatpush1.bf16.msra.mxu0 %v1649
      %1912 = vmatprep.subr.bf16.mxu0 0
      %1913 = vmatpush1.bf16.msra.mxu0 %v1650
      %1914 = vmatprep.subr.bf16.mxu0 0
      %1915 = vmatpush1.bf16.msra.mxu0 %v1651
      %1916 = vmatprep.subr.bf16.mxu0 0
      %1917 = vmatpush1.bf16.msra.mxu0 %v1652
      %1918 = vmatprep.subr.bf16.mxu0 0
      %1919 = vmatpush1.bf16.msra.mxu0 %v1653
      %1920 = vmatprep.subr.bf16.mxu0 0
      %1921 = vmatpush1.bf16.msra.mxu0 %v1654
      %1922 = vmatprep.subr.bf16.mxu0 0
      %1923 = vmatpush1.bf16.msra.mxu0 %v1655
      %1924 = vmatprep.subr.bf16.mxu0 0
      %1925 = vmatpush1.bf16.msra.mxu0 %v1656
      %1926 = vmatprep.subr.bf16.mxu0 0
      %1927 = vmatpush1.bf16.msra.mxu0 %v1657
      %1928 = vmatprep.subr.bf16.mxu0 0
      %1929 = vmatpush1.bf16.msra.mxu0 %v1658
      %1930 = vmatprep.subr.bf16.mxu0 0
      %1931 = vmatpush1.bf16.msra.mxu0 %v1659
      %1932 = vmatprep.mubr.bf16.mxu0 %v1005
      %1933 = vmatmul.mubr.bf16.gmra.mrb[0].mxu0 %v1004
      %v1934 = vpop.f32.mrb[0].mxu0
      %v1935 = vadd.f32 %v970, %v1934
      %v1936 = vpop.f32.mrb[0].mxu0
      %v1937 = vpop.f32.mrb[0].mxu0
      %v1938 = vadd.f32 %v970, %v1937
      %v1939 = vpop.f32.mrb[0].mxu0
      %1940 = vdwg.mxu0
      %1941 = vmatprep.subr.bf16.mxu0 0
      %1942 = vmatpush1.bf16.msra.mxu0 %v1660
      %1943 = vmatprep.subr.bf16.mxu0 0
      %1944 = vmatpush1.bf16.msra.mxu0 %v1661
      %1945 = vmatprep.subr.bf16.mxu0 0
      %1946 = vmatpush1.bf16.msra.mxu0 %v1662
      %1947 = vmatprep.subr.bf16.mxu0 0
      %1948 = vmatpush1.bf16.msra.mxu0 %v1663
      %1949 = vmatprep.subr.bf16.mxu0 0
      %1950 = vmatpush1.bf16.msra.mxu0 %v1664
      %1951 = vmatprep.subr.bf16.mxu0 0
      %1952 = vmatpush1.bf16.msra.mxu0 %v1665
      %1953 = vmatprep.subr.bf16.mxu0 0
      %1954 = vmatpush1.bf16.msra.mxu0 %v1666
      %1955 = vmatprep.subr.bf16.mxu0 0
      %1956 = vmatpush1.bf16.msra.mxu0 %v1667
      %1957 = vmatprep.subr.bf16.mxu0 0
      %1958 = vmatpush1.bf16.msra.mxu0 %v1668
      %1959 = vmatprep.subr.bf16.mxu0 0
      %1960 = vmatpush1.bf16.msra.mxu0 %v1669
      %1961 = vmatprep.subr.bf16.mxu0 0
      %1962 = vmatpush1.bf16.msra.mxu0 %v1670
      %1963 = vmatprep.subr.bf16.mxu0 0
      %1964 = vmatpush1.bf16.msra.mxu0 %v1671
      %1965 = vmatprep.subr.bf16.mxu0 0
      %1966 = vmatpush1.bf16.msra.mxu0 %v1672
      %1967 = vmatprep.subr.bf16.mxu0 0
      %1968 = vmatpush1.bf16.msra.mxu0 %v1673
      %1969 = vmatprep.subr.bf16.mxu0 0
      %1970 = vmatpush1.bf16.msra.mxu0 %v1674
      %1971 = vmatprep.subr.bf16.mxu0 0
      %1972 = vmatpush1.bf16.msra.mxu0 %v1675
      %1973 = vmatprep.mubr.bf16.mxu0 %v1007
      %1974 = vmatmul.mubr.bf16.gmra.mrb[0].mxu0 %v1006
      %v1975 = vpop.f32.mrb[0].mxu0
      %v1976 = vadd.f32 %v1935, %v1975
      %v1977 = vpop.f32.mrb[0].mxu0
      %v1978 = vpop.f32.mrb[0].mxu0
      %v1979 = vadd.f32 %v1938, %v1978
      %v1980 = vpop.f32.mrb[0].mxu0
      %1981 = vdwg.mxu0
      %1982 = vmatprep.subr.bf16.mxu0 0
      %1983 = vmatpush1.bf16.msra.mxu0 %v1676
      %1984 = vmatprep.subr.bf16.mxu0 0
      %1985 = vmatpush1.bf16.msra.mxu0 %v1677
      %1986 = vmatprep.subr.bf16.mxu0 0
      %1987 = vmatpush1.bf16.msra.mxu0 %v1678
      %1988 = vmatprep.subr.bf16.mxu0 0
      %1989 = vmatpush1.bf16.msra.mxu0 %v1679
      %1990 = vmatprep.subr.bf16.mxu0 0
      %1991 = vmatpush1.bf16.msra.mxu0 %v1680
      %1992 = vmatprep.subr.bf16.mxu0 0
      %1993 = vmatpush1.bf16.msra.mxu0 %v1681
      %1994 = vmatprep.subr.bf16.mxu0 0
      %1995 = vmatpush1.bf16.msra.mxu0 %v1682
      %1996 = vmatprep.subr.bf16.mxu0 0
      %1997 = vmatpush1.bf16.msra.mxu0 %v1683
      %1998 = vmatprep.subr.bf16.mxu0 0
      %1999 = vmatpush1.bf16.msra.mxu0 %v1684
      %2000 = vmatprep.subr.bf16.mxu0 0
      %2001 = vmatpush1.bf16.msra.mxu0 %v1685
      %2002 = vmatprep.subr.bf16.mxu0 0
      %2003 = vmatpush1.bf16.msra.mxu0 %v1686
      %2004 = vmatprep.subr.bf16.mxu0 0
      %2005 = vmatpush1.bf16.msra.mxu0 %v1687
      %2006 = vmatprep.subr.bf16.mxu0 0
      %2007 = vmatpush1.bf16.msra.mxu0 %v1688
      %2008 = vmatprep.subr.bf16.mxu0 0
      %2009 = vmatpush1.bf16.msra.mxu0 %v1689
      %2010 = vmatprep.subr.bf16.mxu0 0
      %2011 = vmatpush1.bf16.msra.mxu0 %v1690
      %2012 = vmatprep.subr.bf16.mxu0 0
      %2013 = vmatpush1.bf16.msra.mxu0 %v1691
      %2014 = vmatprep.mubr.bf16.mxu0 %v1041
      %2015 = vmatmul.mubr.bf16.gmra.mrb[0].mxu0 %v1040
      %v2016 = vpop.f32.mrb[0].mxu0
      %v2017 = vadd.f32 %v1976, %v2016
      %v2018 = vpop.f32.mrb[0].mxu0
      %v2019 = vpop.f32.mrb[0].mxu0
      %v2020 = vadd.f32 %v1979, %v2019
      %v2021 = vpop.f32.mrb[0].mxu0
      %2022 = vdwg.mxu0
      %2023 = vmatprep.subr.bf16.mxu0 0
      %2024 = vmatpush1.bf16.msra.mxu0 %v1692
      %2025 = vmatprep.subr.bf16.mxu0 0
      %2026 = vmatpush1.bf16.msra.mxu0 %v1693
      %2027 = vmatprep.subr.bf16.mxu0 0
      %2028 = vmatpush1.bf16.msra.mxu0 %v1694
      %2029 = vmatprep.subr.bf16.mxu0 0
      %2030 = vmatpush1.bf16.msra.mxu0 %v1695
      %2031 = vmatprep.subr.bf16.mxu0 0
      %2032 = vmatpush1.bf16.msra.mxu0 %v1696
      %2033 = vmatprep.subr.bf16.mxu0 0
      %2034 = vmatpush1.bf16.msra.mxu0 %v1697
      %2035 = vmatprep.subr.bf16.mxu0 0
      %2036 = vmatpush1.bf16.msra.mxu0 %v1698
      %2037 = vmatprep.subr.bf16.mxu0 0
      %2038 = vmatpush1.bf16.msra.mxu0 %v1699
      %2039 = vmatprep.subr.bf16.mxu0 0
      %2040 = vmatpush1.bf16.msra.mxu0 %v1700
      %2041 = vmatprep.subr.bf16.mxu0 0
      %2042 = vmatpush1.bf16.msra.mxu0 %v1701
      %2043 = vmatprep.subr.bf16.mxu0 0
      %2044 = vmatpush1.bf16.msra.mxu0 %v1702
      %2045 = vmatprep.subr.bf16.mxu0 0
      %2046 = vmatpush1.bf16.msra.mxu0 %v1703
      %2047 = vmatprep.subr.bf16.mxu0 0
      %2048 = vmatpush1.bf16.msra.mxu0 %v1704
      %2049 = vmatprep.subr.bf16.mxu0 0
      %2050 = vmatpush1.bf16.msra.mxu0 %v1705
      %2051 = vmatprep.subr.bf16.mxu0 0
      %2052 = vmatpush1.bf16.msra.mxu0 %v1706
      %2053 = vmatprep.subr.bf16.mxu0 0
      %2054 = vmatpush1.bf16.msra.mxu0 %v1707
      %2055 = vmatprep.mubr.bf16.mxu0 %v1043
      %2056 = vmatmul.mubr.bf16.gmra.mrb[0].mxu0 %v1042
      %v2057 = vpop.f32.mrb[0].mxu0
      %v2058 = vadd.f32 %v2017, %v2057
      %v2059 = vpop.f32.mrb[0].mxu0
      %v2060 = vpop.f32.mrb[0].mxu0
      %v2061 = vadd.f32 %v2020, %v2060
      %v2062 = vpop.f32.mrb[0].mxu0
      %2063 = vdwg.mxu0
      %2064 = vmatprep.subr.bf16.mxu0 0
      %2065 = vmatpush1.bf16.msra.mxu0 %v1708
      %2066 = vmatprep.subr.bf16.mxu0 0
      %2067 = vmatpush1.bf16.msra.mxu0 %v1709
      %2068 = vmatprep.subr.bf16.mxu0 0
      %2069 = vmatpush1.bf16.msra.mxu0 %v1710
      %2070 = vmatprep.subr.bf16.mxu0 0
      %2071 = vmatpush1.bf16.msra.mxu0 %v1711
      %2072 = vmatprep.subr.bf16.mxu0 0
      %2073 = vmatpush1.bf16.msra.mxu0 %v1712
      %2074 = vmatprep.subr.bf16.mxu0 0
      %2075 = vmatpush1.bf16.msra.mxu0 %v1713
      %2076 = vmatprep.subr.bf16.mxu0 0
      %2077 = vmatpush1.bf16.msra.mxu0 %v1714
      %2078 = vmatprep.subr.bf16.mxu0 0
      %2079 = vmatpush1.bf16.msra.mxu0 %v1715
      %2080 = vmatprep.subr.bf16.mxu0 0
      %2081 = vmatpush1.bf16.msra.mxu0 %v1716
      %2082 = vmatprep.subr.bf16.mxu0 0
      %2083 = vmatpush1.bf16.msra.mxu0 %v1717
      %2084 = vmatprep.subr.bf16.mxu0 0
      %2085 = vmatpush1.bf16.msra.mxu0 %v1718
      %2086 = vmatprep.subr.bf16.mxu0 0
      %2087 = vmatpush1.bf16.msra.mxu0 %v1719
      %2088 = vmatprep.subr.bf16.mxu0 0
      %2089 = vmatpush1.bf16.msra.mxu0 %v1720
      %2090 = vmatprep.subr.bf16.mxu0 0
      %2091 = vmatpush1.bf16.msra.mxu0 %v1721
      %2092 = vmatprep.subr.bf16.mxu0 0
      %2093 = vmatpush1.bf16.msra.mxu0 %v1722
      %2094 = vmatprep.subr.bf16.mxu0 0
      %2095 = vmatpush1.bf16.msra.mxu0 %v1723
      %2096 = vmatprep.mubr.bf16.mxu0 %v1077
      %2097 = vmatmul.mubr.bf16.gmra.mrb[0].mxu0 %v1076
      %v2098 = vpop.f32.mrb[0].mxu0
      %v2099 = vadd.f32 %v2058, %v2098
      %v2100 = vpop.f32.mrb[0].mxu0
      %v2101 = vpop.f32.mrb[0].mxu0
      %v2102 = vadd.f32 %v2061, %v2101
      %v2103 = vpop.f32.mrb[0].mxu0
      %2104 = vdwg.mxu0
      %2105 = vmatprep.subr.bf16.mxu0 0
      %2106 = vmatpush1.bf16.msra.mxu0 %v1724
      %2107 = vmatprep.subr.bf16.mxu0 0
      %2108 = vmatpush1.bf16.msra.mxu0 %v1725
      %2109 = vmatprep.subr.bf16.mxu0 0
      %2110 = vmatpush1.bf16.msra.mxu0 %v1726
      %2111 = vmatprep.subr.bf16.mxu0 0
      %2112 = vmatpush1.bf16.msra.mxu0 %v1727
      %2113 = vmatprep.subr.bf16.mxu0 0
      %2114 = vmatpush1.bf16.msra.mxu0 %v1728
      %2115 = vmatprep.subr.bf16.mxu0 0
      %2116 = vmatpush1.bf16.msra.mxu0 %v1729
      %2117 = vmatprep.subr.bf16.mxu0 0
      %2118 = vmatpush1.bf16.msra.mxu0 %v1730
      %2119 = vmatprep.subr.bf16.mxu0 0
      %2120 = vmatpush1.bf16.msra.mxu0 %v1731
      %2121 = vmatprep.subr.bf16.mxu0 0
      %2122 = vmatpush1.bf16.msra.mxu0 %v1732
      %2123 = vmatprep.subr.bf16.mxu0 0
      %2124 = vmatpush1.bf16.msra.mxu0 %v1733
      %2125 = vmatprep.subr.bf16.mxu0 0
      %2126 = vmatpush1.bf16.msra.mxu0 %v1734
      %2127 = vmatprep.subr.bf16.mxu0 0
      %2128 = vmatpush1.bf16.msra.mxu0 %v1735
      %2129 = vmatprep.subr.bf16.mxu0 0
      %2130 = vmatpush1.bf16.msra.mxu0 %v1736
      %2131 = vmatprep.subr.bf16.mxu0 0
      %2132 = vmatpush1.bf16.msra.mxu0 %v1737
      %2133 = vmatprep.subr.bf16.mxu0 0
      %2134 = vmatpush1.bf16.msra.mxu0 %v1738
      %2135 = vmatprep.subr.bf16.mxu0 0
      %2136 = vmatpush1.bf16.msra.mxu0 %v1739
      %2137 = vmatprep.mubr.bf16.mxu0 %v1079
      %2138 = vmatmul.mubr.bf16.gmra.mrb[0].mxu0 %v1078
      %v2139 = vpop.f32.mrb[0].mxu0
      %v2140 = vadd.f32 %v2099, %v2139
      %v2141 = vpop.f32.mrb[0].mxu0
      %v2142 = vpop.f32.mrb[0].mxu0
      %v2143 = vadd.f32 %v2102, %v2142
      %v2144 = vpop.f32.mrb[0].mxu0
      %2145 = vdwg.mxu0
      %2146 = vmatprep.subr.bf16.mxu0 0
      %2147 = vmatpush1.bf16.msra.mxu0 %v1740
      %2148 = vmatprep.subr.bf16.mxu0 0
      %2149 = vmatpush1.bf16.msra.mxu0 %v1741
      %2150 = vmatprep.subr.bf16.mxu0 0
      %2151 = vmatpush1.bf16.msra.mxu0 %v1742
      %2152 = vmatprep.subr.bf16.mxu0 0
      %2153 = vmatpush1.bf16.msra.mxu0 %v1743
      %2154 = vmatprep.subr.bf16.mxu0 0
      %2155 = vmatpush1.bf16.msra.mxu0 %v1744
      %2156 = vmatprep.subr.bf16.mxu0 0
      %2157 = vmatpush1.bf16.msra.mxu0 %v1745
      %2158 = vmatprep.subr.bf16.mxu0 0
      %2159 = vmatpush1.bf16.msra.mxu0 %v1746
      %2160 = vmatprep.subr.bf16.mxu0 0
      %2161 = vmatpush1.bf16.msra.mxu0 %v1747
      %2162 = vmatprep.subr.bf16.mxu0 0
      %2163 = vmatpush1.bf16.msra.mxu0 %v1748
      %2164 = vmatprep.subr.bf16.mxu0 0
      %2165 = vmatpush1.bf16.msra.mxu0 %v1749
      %2166 = vmatprep.subr.bf16.mxu0 0
      %2167 = vmatpush1.bf16.msra.mxu0 %v1750
      %2168 = vmatprep.subr.bf16.mxu0 0
      %2169 = vmatpush1.bf16.msra.mxu0 %v1751
      %2170 = vmatprep.subr.bf16.mxu0 0
      %2171 = vmatpush1.bf16.msra.mxu0 %v1752
      %2172 = vmatprep.subr.bf16.mxu0 0
      %2173 = vmatpush1.bf16.msra.mxu0 %v1753
      %2174 = vmatprep.subr.bf16.mxu0 0
      %2175 = vmatpush1.bf16.msra.mxu0 %v1754
      %2176 = vmatprep.subr.bf16.mxu0 0
      %2177 = vmatpush1.bf16.msra.mxu0 %v1755
      %2178 = vmatprep.mubr.bf16.mxu0 %v1113
      %2179 = vmatmul.mubr.bf16.gmra.mrb[0].mxu0 %v1112
      %v2180 = vpop.f32.mrb[0].mxu0
      %v2181 = vadd.f32 %v2140, %v2180
      %v2182 = vpop.f32.mrb[0].mxu0
      %v2183 = vpop.f32.mrb[0].mxu0
      %v2184 = vadd.f32 %v2143, %v2183
      %v2185 = vpop.f32.mrb[0].mxu0
      %2186 = vdwg.mxu0
      %2187 = vmatprep.subr.bf16.mxu0 0
      %2188 = vmatpush1.bf16.msra.mxu0 %v1756
      %2189 = vmatprep.subr.bf16.mxu0 0
      %2190 = vmatpush1.bf16.msra.mxu0 %v1757
      %2191 = vmatprep.subr.bf16.mxu0 0
      %2192 = vmatpush1.bf16.msra.mxu0 %v1758
      %2193 = vmatprep.subr.bf16.mxu0 0
      %2194 = vmatpush1.bf16.msra.mxu0 %v1759
      %2195 = vmatprep.subr.bf16.mxu0 0
      %2196 = vmatpush1.bf16.msra.mxu0 %v1760
      %2197 = vmatprep.subr.bf16.mxu0 0
      %2198 = vmatpush1.bf16.msra.mxu0 %v1761
      %2199 = vmatprep.subr.bf16.mxu0 0
      %2200 = vmatpush1.bf16.msra.mxu0 %v1762
      %2201 = vmatprep.subr.bf16.mxu0 0
      %2202 = vmatpush1.bf16.msra.mxu0 %v1763
      %2203 = vmatprep.subr.bf16.mxu0 0
      %2204 = vmatpush1.bf16.msra.mxu0 %v1764
      %2205 = vmatprep.subr.bf16.mxu0 0
      %2206 = vmatpush1.bf16.msra.mxu0 %v1765
      %2207 = vmatprep.subr.bf16.mxu0 0
      %2208 = vmatpush1.bf16.msra.mxu0 %v1766
      %2209 = vmatprep.subr.bf16.mxu0 0
      %2210 = vmatpush1.bf16.msra.mxu0 %v1767
      %2211 = vmatprep.subr.bf16.mxu0 0
      %2212 = vmatpush1.bf16.msra.mxu0 %v1768
      %2213 = vmatprep.subr.bf16.mxu0 0
      %2214 = vmatpush1.bf16.msra.mxu0 %v1769
      %2215 = vmatprep.subr.bf16.mxu0 0
      %2216 = vmatpush1.bf16.msra.mxu0 %v1770
      %2217 = vmatprep.subr.bf16.mxu0 0
      %2218 = vmatpush1.bf16.msra.mxu0 %v1771
      %2219 = vmatprep.mubr.bf16.mxu0 %v1115
      %2220 = vmatmul.mubr.bf16.gmra.mrb[0].mxu0 %v1114
      %v2221 = vpop.f32.mrb[0].mxu0
      %v2222 = vadd.f32 %v2181, %v2221
      %v2223 = vpop.f32.mrb[0].mxu0
      %v2224 = vpop.f32.mrb[0].mxu0
      %v2225 = vadd.f32 %v2184, %v2224
      %v2226 = vpop.f32.mrb[0].mxu0
      %2227 = vdwg.mxu0
      %vm2228 = vcmp.gt.f32.partialorder %v2222, 0.0
      %vm2229 = vcmp.gt.f32.partialorder %v2225, 0.0
      %v2230 = vmul.f32 %v2222, 0.2
      %v2231 = vmul.f32 %v2225, 0.2
      %v2232 = vsel %vm2228, %v2222, %v2230
      %v2233 = vsel %vm2229, %v2225, %v2231
      %v2234 = vpack.c.bf16 %v2233, %v2232
      %v2236 = vunpack.c.l.b16 %v2234
      %v2237 = vunpack.c.h.b16 %v2234
      %v2238 = vpack.c.b16 %v2236, %v2236
      %v2239 = vpack.c.b16 %v2237, %v2237
      %2242 = vst [vmem:[%s316] sm:$0xf] %v2238
      %2243 = vst [vmem:[%s316 + $0x4] sm:$0xf] %v2239
      %s2244 = smul.u32 2, %s20
      %p2245 = scmp.lt.s32.totalorder %s19, 1
      %s2246 = scalar_select %p2245, %s19, 1
      %p2247 = scmp.lt.s32.totalorder %s2244, 1
      %s2248 = scalar_select %p2247, %s2244, 1
      %s2249 = smul.addr %s2246, 2
      %s2250 = sadd.s32 %s2248, %s2249
      %s2251 = smul.addr %s2250, 4
      %s2252 = scalar_lea.vmem %s4, %s2251
      // Predicated region
      $region37: #{discriminator_forward.7} parent=35 // pred_check
        %p2253 = pneg %p149
      $region38: #{discriminator_forward.7} parent=35 // pred_check_branch
        %2255 = sbr.rel (%p2253) target = $region40
      $region39: #{discriminator_forward.7} parent=35 // pred_region
        %s2256 = smul.u32 2, %s20
      $region40: #{discriminator_forward.7} parent=35 // pred_fallthru
        _
    $region36: #{discriminator_forward.7} parent=5 // pred_fallthru
      _
    %p2257 = scmp.le.s32.totalorder 2, %s10
    // Predicated region
    $region41: #{discriminator_forward.7} parent=5 // pred_check
      %p2258 = pneg %p2257
    $region42: #{discriminator_forward.7} parent=5 // pred_check_branch
      %2260 = sbr.rel (%p2258) target = $region44
    $region43: #{discriminator_forward.7} parent=5 // pred_region
      %s2261 = ssub.s32 %s10, 2
      // Predicated region
      $region45: #{discriminator_forward.7} parent=43 // pred_check
        %p2262 = pneg %p155
      $region46: #{discriminator_forward.7} parent=43 // pred_check_branch
        %2264 = sbr.rel (%p2262) target = $region48
      $region47: #{discriminator_forward.7} parent=43 // pred_region
        %s2265 = smul.u32 2, %s22
        %p2266 = scmp.lt.s32.totalorder %s21, 1
        %s2267 = scalar_select %p2266, %s21, 1
        %p2268 = scmp.lt.s32.totalorder %s2265, 1
        %s2269 = scalar_select %p2268, %s2265, 1
        %s2270 = smul.addr %s2267, 2
        %s2271 = sadd.s32 %s2269, %s2270
        %s2272 = smul.addr %s2271, 4
        %s2273 = scalar_lea.vmem %s4, %s2272
      $region48: #{discriminator_forward.7} parent=43 // pred_fallthru
        _
    $region44: #{discriminator_forward.7} parent=5 // pred_fallthru
      _
  $region6: #{discriminator_forward.7} parent=0 // loop_footer
    %s14 = sadd.s32 1, %s10
  $region7: #{discriminator_forward.7} parent=0 // loop_footer_branch
    %9 = sbr.rel target = $region3
  $region8: #{discriminator_forward.7} parent=0 // loop_exit
    _

// kernel: discriminator_forward.8
$region0: #{discriminator_forward.8}
  #allocation0 [shape = 'u32[]', space=smem, size = 0x4, offset = 0x4, fixed_abs, tag = 'smem constant byte address 0x4 - core index']
  #allocation1 [shape = 'u32[144,128]{1,0:T(1,128)}', space=vmem, size = 0x12000, scoped, tag = 'internal scratch']
  %s0 = inlined_call_operand.vmem [shape: bf16[2,3,6,256], index: 0, kind: input, shape index: {}, may-alias: {0,1}]
  %s1 = inlined_call_operand.vmem [shape: bf16[2,3,6,256], index: 1, kind: input, shape index: {}, may-alias: {0,1}]
  %s2 = inlined_call_operand.vmem [shape: bf16[2048,128], index: 2, kind: input, shape index: {}]
  %s3 = inlined_call_operand.vmem [shape: f32[1,128], index: 3, kind: input, shape index: {}]
  %s4 = inlined_call_operand.vmem [shape: bf16[2,4,128], index: 4, kind: output, shape index: {}]
  %s5 = sld [smem:[#allocation0]]
  $region49: #{discriminator_forward.8} parent=0
    _
  %s7 = ssub.s32 1, %s5
  %s8 = scalar_select 0, %s7, %s5
  loop: start=0, step=1, limit=4
  $region2: #{discriminator_forward.8} parent=0 // loop_pre_header
    _
  $region3: #{discriminator_forward.8} parent=0 // loop_header
    %s10 = sphi 0, %s14
    %p11 = scmp.ge.s32.totalorder %s10, 4
    %s17 = sphi 0, %s29
    %s18 = sphi 0, %s25
    %s19 = sphi 0, %s17
    %s20 = sphi 0, %s18
    %s21 = sphi 0, %s19
    %s22 = sphi 0, %s20
    %s34 = sphi 0, %s36
    %s37 = sphi 0, %s34
    %s38 = sphi 0, %s37
    %s54 = sphi 0, %s38
    %s66 = sphi 0, %s68
    %s69 = sphi 0, %s66
    %s70 = sphi 0, %s69
    %s86 = sphi 0, %s70
    %s90 = sphi 0, %s90
    %s92 = sphi 0, %s90
    %s93 = sphi 0, %s92
    %s107 = sphi 0, %s93
    %s111 = sphi 0, %s111
    %s113 = sphi 0, %s111
    %s114 = sphi 0, %s113
    %s128 = sphi 0, %s114
    %s136 = sphi 0, %s138
    %s139 = sphi 0, %s136
    %s140 = sphi 0, %s139
    %s156 = sphi 0, %s140
  $region4: #{discriminator_forward.8} parent=0 // loop_header_branch
    %13 = sbr.rel (%p11) target = $region8
  $region5: #{discriminator_forward.8} parent=0 // loop_body
    %s15 = ssub.s32 %s10, 1
    %s16 = ssub.s32 %s10, 2
    %s23 = sadd.s32 1, %s18
    %p24 = scmp.ge.s32.totalorder %s23, 1
    %s25 = scalar_select %p24, 0, %s23
    %s26 = sadd.s32 1, %s17
    %s27 = scalar_select %p24, %s26, %s17
    %p28 = scmp.ge.s32.totalorder %s27, 2
    %s29 = scalar_select %p28, 0, %s27
    %s30 = ssub.s32 %s17, %s29
    %s31 = ssub.s32 %s18, %s25
    %s32 = sor.u32 %s30, %s31
    %p33 = scmp.eq.s32.totalorder %s32, 0
    %s35 = sadd.s32 %s34, 1
    %s36 = scalar_select %p33, %s34, %s35
    %p39 = pneg %p33
    %p40 = scmp.eq.s32.totalorder %s10, 1
    %p41 = por %p39, %p40
    %p42 = scmp.ne.s32.totalorder %s34, %s37
    %p43 = scmp.eq.s32.totalorder %s10, 0
    %p44 = por %p42, %p43
    %p45 = scmp.ne.s32.totalorder %s34, %s37
    %p46 = scmp.eq.s32.totalorder %s15, 1
    %p47 = por %p45, %p46
    %p48 = scmp.ne.s32.totalorder %s37, %s38
    %p49 = scmp.eq.s32.totalorder %s15, 0
    %p50 = por %p48, %p49
    %p51 = scmp.ne.s32.totalorder %s37, %s38
    %p52 = scmp.eq.s32.totalorder %s16, 1
    %p53 = por %p51, %p52
    %p55 = scmp.ne.s32.totalorder %s38, %s54
    %p56 = scmp.eq.s32.totalorder %s16, 0
    %p57 = por %p55, %p56
    %s58 = sadd.s32 %s18, 1
    %s59 = smul.u32 %s58, 2
    %s60 = sadd.s32 %s25, 1
    %s61 = smul.u32 %s60, 2
    %s62 = ssub.s32 %s17, %s29
    %s63 = ssub.s32 %s59, %s61
    %s64 = sor.u32 %s62, %s63
    %p65 = scmp.eq.s32.totalorder %s64, 0
    %s67 = sadd.s32 %s66, 1
    %s68 = scalar_select %p65, %s66, %s67
    %p71 = pneg %p65
    %p72 = scmp.eq.s32.totalorder %s10, 1
    %p73 = por %p71, %p72
    %p74 = scmp.ne.s32.totalorder %s66, %s69
    %p75 = scmp.eq.s32.totalorder %s10, 0
    %p76 = por %p74, %p75
    %p77 = scmp.ne.s32.totalorder %s66, %s69
    %p78 = scmp.eq.s32.totalorder %s15, 1
    %p79 = por %p77, %p78
    %p80 = scmp.ne.s32.totalorder %s69, %s70
    %p81 = scmp.eq.s32.totalorder %s15, 0
    %p82 = por %p80, %p81
    %p83 = scmp.ne.s32.totalorder %s69, %s70
    %p84 = scmp.eq.s32.totalorder %s16, 1
    %p85 = por %p83, %p84
    %p87 = scmp.ne.s32.totalorder %s70, %s86
    %p88 = scmp.eq.s32.totalorder %s16, 0
    %p89 = por %p87, %p88
    %s91 = sadd.s32 %s90, 1
    %p94 = scmp.eq.s32.totalorder %s10, 1
    %p95 = scmp.ne.s32.totalorder %s90, %s92
    %p96 = scmp.eq.s32.totalorder %s10, 0
    %p97 = por %p95, %p96
    %p98 = scmp.ne.s32.totalorder %s90, %s92
    %p99 = scmp.eq.s32.totalorder %s15, 1
    %p100 = por %p98, %p99
    %p101 = scmp.ne.s32.totalorder %s92, %s93
    %p102 = scmp.eq.s32.totalorder %s15, 0
    %p103 = por %p101, %p102
    %p104 = scmp.ne.s32.totalorder %s92, %s93
    %p105 = scmp.eq.s32.totalorder %s16, 1
    %p106 = por %p104, %p105
    %p108 = scmp.ne.s32.totalorder %s93, %s107
    %p109 = scmp.eq.s32.totalorder %s16, 0
    %p110 = por %p108, %p109
    %s112 = sadd.s32 %s111, 1
    %p115 = scmp.eq.s32.totalorder %s10, 1
    %p116 = scmp.ne.s32.totalorder %s111, %s113
    %p117 = scmp.eq.s32.totalorder %s10, 0
    %p118 = por %p116, %p117
    %p119 = scmp.ne.s32.totalorder %s111, %s113
    %p120 = scmp.eq.s32.totalorder %s15, 1
    %p121 = por %p119, %p120
    %p122 = scmp.ne.s32.totalorder %s113, %s114
    %p123 = scmp.eq.s32.totalorder %s15, 0
    %p124 = por %p122, %p123
    %p125 = scmp.ne.s32.totalorder %s113, %s114
    %p126 = scmp.eq.s32.totalorder %s16, 1
    %p127 = por %p125, %p126
    %p129 = scmp.ne.s32.totalorder %s114, %s128
    %p130 = scmp.eq.s32.totalorder %s16, 0
    %p131 = por %p129, %p130
    %s132 = ssub.s32 %s17, %s29
    %s133 = ssub.s32 %s18, %s25
    %s134 = sor.u32 %s132, %s133
    %p135 = scmp.eq.s32.totalorder %s134, 0
    %s137 = sadd.s32 %s136, 1
    %s138 = scalar_select %p135, %s136, %s137
    %p141 = pneg %p135
    %p142 = scmp.eq.s32.totalorder %s10, 1
    %p143 = por %p141, %p142
    %p144 = scmp.ne.s32.totalorder %s136, %s139
    %p145 = scmp.eq.s32.totalorder %s10, 0
    %p146 = por %p144, %p145
    %p147 = scmp.ne.s32.totalorder %s136, %s139
    %p148 = scmp.eq.s32.totalorder %s15, 1
    %p149 = por %p147, %p148
    %p150 = scmp.ne.s32.totalorder %s139, %s140
    %p151 = scmp.eq.s32.totalorder %s15, 0
    %p152 = por %p150, %p151
    %p153 = scmp.ne.s32.totalorder %s139, %s140
    %p154 = scmp.eq.s32.totalorder %s16, 1
    %p155 = por %p153, %p154
    %p157 = scmp.ne.s32.totalorder %s140, %s156
    %p158 = scmp.eq.s32.totalorder %s16, 0
    %p159 = por %p157, %p158
    %p160 = scmp.le.s32.totalorder 1, %s10
    %p161 = scmp.lt.s32.totalorder %s10, 3
    %p162 = pnand %p160, %p161
    %p163 = pneg %p162
    // Predicated region
    $region9: #{discriminator_forward.8} parent=5 // pred_check
      _
    $region10: #{discriminator_forward.8} parent=5 // pred_check_branch
      %165 = sbr.rel (%p162) target = $region12
    $region11: #{discriminator_forward.8} parent=5 // pred_region
      %s166 = ssub.s32 %s10, 1
      // Predicated region
      $region13: #{discriminator_forward.8} parent=11 // pred_check
        %p167 = pneg %p103
      $region14: #{discriminator_forward.8} parent=11 // pred_check_branch
        %169 = sbr.rel (%p167) target = $region16
      $region15: #{discriminator_forward.8} parent=11 // pred_region
        _
      $region16: #{discriminator_forward.8} parent=11 // pred_fallthru
        _
      // Predicated region
      $region17: #{discriminator_forward.8} parent=11 // pred_check
        %p170 = pneg %p124
      $region18: #{discriminator_forward.8} parent=11 // pred_check_branch
        %172 = sbr.rel (%p170) target = $region20
      $region19: #{discriminator_forward.8} parent=11 // pred_region
        _
      $region20: #{discriminator_forward.8} parent=11 // pred_fallthru
        _
    $region12: #{discriminator_forward.8} parent=5 // pred_fallthru
      _
    %p173 = scmp.lt.s32.totalorder %s10, 2
    // Predicated region
    $region21: #{discriminator_forward.8} parent=5 // pred_check
      %p174 = pneg %p173
    $region22: #{discriminator_forward.8} parent=5 // pred_check_branch
      %176 = sbr.rel (%p174) target = $region24
    $region23: #{discriminator_forward.8} parent=5 // pred_region
      // Predicated region
      $region25: #{discriminator_forward.8} parent=23 // pred_check
        %p177 = pneg %p44
      $region26: #{discriminator_forward.8} parent=23 // pred_check_branch
        %179 = sbr.rel (%p177) target = $region28
      $region27: #{discriminator_forward.8} parent=23 // pred_region
        %s180 = smul.u32 2, %s18
        %s181 = ssub.s32 3, %s180
        %p182 = scmp.lt.s32.totalorder %s181, 2
        %s183 = scalar_select %p182, %s181, 2
        %s184 = smul.u32 64, %s183
        %s185 = smul.u32 %s184, 2
        %p186 = scmp.lt.s32.totalorder %s17, 1
        %s187 = scalar_select %p186, %s17, 1
        %p188 = scmp.lt.s32.totalorder %s180, 2
        %s189 = scalar_select %p188, %s180, 2
        %s190 = smul.addr %s189, 2
        %s191 = smul.addr %s187, 6
        %s192 = sadd.s32 %s190, %s191
        %s193 = smul.addr %s192, 4
        %s194 = scalar_lea.vmem %s0, %s193
        %s195 = smul.u32 2, %s18
        %s196 = ssub.s32 3, %s195
        %p197 = scmp.lt.s32.totalorder %s196, 2
        %s198 = scalar_select %p197, %s196, 2
        %s199 = smul.u32 64, %s198
        %s200 = smul.u32 %s199, 2
      $region28: #{discriminator_forward.8} parent=23 // pred_fallthru
        _
      // Predicated region
      $region29: #{discriminator_forward.8} parent=23 // pred_check
        %p201 = pneg %p76
      $region30: #{discriminator_forward.8} parent=23 // pred_check_branch
        %203 = sbr.rel (%p201) target = $region32
      $region31: #{discriminator_forward.8} parent=23 // pred_region
        %s204 = sadd.s32 %s18, 1
        %s205 = smul.u32 %s204, 2
        %p206 = scmp.lt.s32.totalorder %s17, 1
        %s207 = scalar_select %p206, %s17, 1
        %p208 = scmp.lt.s32.totalorder %s205, 2
        %s209 = scalar_select %p208, %s205, 2
        %s210 = smul.addr %s209, 2
        %s211 = smul.addr %s207, 6
        %s212 = sadd.s32 %s210, %s211
        %s213 = smul.addr %s212, 4
        %s214 = scalar_lea.vmem %s1, %s213
        %s215 = sadd.s32 %s18, 1
        %s216 = smul.u32 %s215, 2
      $region32: #{discriminator_forward.8} parent=23 // pred_fallthru
        _
    $region24: #{discriminator_forward.8} parent=5 // pred_fallthru
      _
    %p217 = scmp.le.s32.totalorder 1, %s10
    %p218 = scmp.lt.s32.totalorder %s10, 3
    %p219 = pnand %p217, %p218
    %p220 = pneg %p219
    // Predicated region
    $region33: #{discriminator_forward.8} parent=5 // pred_check
      _
    $region34: #{discriminator_forward.8} parent=5 // pred_check_branch
      %222 = sbr.rel (%p219) target = $region36
    $region35: #{discriminator_forward.8} parent=5 // pred_region
      %s223 = ssub.s32 %s10, 1
      %s224 = smul.u32 2, %s20
      %s225 = ssub.s32 3, %s224
      %p226 = scmp.lt.s32.totalorder %s225, 2
      %s227 = scalar_select %p226, %s225, 2
      %s228 = smul.u32 64, %s227
      %s229 = smul.u32 %s228, 2
      %p230 = scmp.lt.s32.totalorder %s19, 1
      %s231 = scalar_select %p230, %s19, 1
      %p232 = scmp.lt.s32.totalorder %s224, 2
      %s233 = scalar_select %p232, %s224, 2
      %s234 = smul.addr %s233, 2
      %s235 = smul.addr %s231, 6
      %s236 = sadd.s32 %s234, %s235
      %s237 = smul.addr %s236, 4
      %s238 = scalar_lea.vmem %s0, %s237
      %p239 = pneg %p50
      %p240 = pneg %p47
      %s241 = sadd.s32 %s20, 1
      %s242 = smul.u32 %s241, 2
      %p243 = scmp.lt.s32.totalorder %s19, 1
      %s244 = scalar_select %p243, %s19, 1
      %p245 = scmp.lt.s32.totalorder %s242, 2
      %s246 = scalar_select %p245, %s242, 2
      %s247 = smul.addr %s246, 2
      %s248 = smul.addr %s244, 6
      %s249 = sadd.s32 %s247, %s248
      %s250 = smul.addr %s249, 4
      %s251 = scalar_lea.vmem %s1, %s250
      %p252 = pneg %p82
      %p253 = pneg %p79
      %p254 = pneg %p103
      %p255 = pneg %p100
      %p256 = pneg %p124
      %p257 = pneg %p121
      %p258 = pneg %p152
      %p259 = pneg %p149
      %p260 = scmp.lt.s32.totalorder %s19, 1
      %s261 = scalar_select %p260, %s19, 1
      %p262 = scmp.lt.s32.totalorder %s20, 0
      %s263 = scalar_select %p262, %s20, 0
      %s264 = sadd.s32 %s263, %s261
      %s265 = smul.addr %s264, 2
      %s266 = scalar_lea.vmem %s4, %s265
      %s267 = smul.u32 2, %s20
      %s268 = ssub.s32 3, %s267
      %p269 = scmp.lt.s32.totalorder %s268, 2
      %s270 = scalar_select %p269, %s268, 2
      %s271 = smul.u32 64, %s270
      %s272 = smul.u32 %s271, 2
      %p273 = scmp.lt.s32.totalorder %s19, 1
      %s274 = scalar_select %p273, %s19, 1
      %p275 = scmp.lt.s32.totalorder %s267, 2
      %s276 = scalar_select %p275, %s267, 2
      %s277 = smul.addr %s276, 2
      %s278 = smul.addr %s274, 6
      %s279 = sadd.s32 %s277, %s278
      %s280 = smul.addr %s279, 4
      %s281 = scalar_lea.vmem %s0, %s280
      %s282 = smul.u32 2, %s20
      %s283 = ssub.s32 3, %s282
      %p284 = scmp.lt.s32.totalorder %s283, 2
      %s285 = scalar_select %p284, %s283, 2
      %s286 = smul.u32 64, %s285
      %s287 = smul.u32 %s286, 2
      %s288 = sadd.s32 %s20, 1
      %s289 = smul.u32 %s288, 2
      %p290 = scmp.lt.s32.totalorder %s19, 1
      %s291 = scalar_select %p290, %s19, 1
      %p292 = scmp.lt.s32.totalorder %s289, 2
      %s293 = scalar_select %p292, %s289, 2
      %s294 = smul.addr %s293, 2
      %s295 = smul.addr %s291, 6
      %s296 = sadd.s32 %s294, %s295
      %s297 = smul.addr %s296, 4
      %s298 = scalar_lea.vmem %s1, %s297
      %s299 = sadd.s32 %s20, 1
      %s300 = smul.u32 %s299, 2
      %p301 = scmp.lt.s32.totalorder %s19, 1
      %s302 = scalar_select %p301, %s19, 1
      %p303 = scmp.lt.s32.totalorder %s20, 0
      %s304 = scalar_select %p303, %s20, 0
      %s305 = sadd.s32 %s304, %s302
      %s306 = smul.addr %s305, 2
      %s307 = scalar_lea.vmem %s4, %s306
      %v309 = vld [vmem:[%s281] sm:$0x77]
      %v310 = vld [vmem:[%s281 + $0x8] sm:$0x77]
      %v311 = vld [vmem:[%s298] sm:$0x77]
      %v314 = vunpack.c.h.b16 %v309
      %v315 = vunpack.c.h.b16 %v310
      %v316 = vpack.c.b16 %v314, %v314
      %v317 = vpack.c.b16 %v315, %v315
      %v318 = vunpack.c.l.b16 %v309
      %v319 = vunpack.c.l.b16 %v310
      %v320 = vpack.c.b16 %v318, %v318
      %v321 = vpack.c.b16 %v319, %v319
      %v323 = vshrl.u32 %v320, 16
      %v325 = vshll.u32 %v320, 16
      %v327 = vrot.slane %v325, 1
      %v328 = vor.u32 %v323, %v327
      %v330 = vshrl.u32 %v321, 16
      %v332 = vshll.u32 %v321, 16
      %v334 = vrot.slane %v332, 1
      %v335 = vor.u32 %v330, %v334
      %v337 = vshrl.u32 %v316, 16
      %v339 = vshll.u32 %v316, 16
      %v341 = vrot.slane %v339, 1
      %v342 = vor.u32 %v337, %v341
      %v344 = vshrl.u32 %v317, 16
      %v346 = vshll.u32 %v317, 16
      %v348 = vrot.slane %v346, 1
      %v349 = vor.u32 %v344, %v348
      %v350 = vrot.slane %v323, 1
      %v351 = vrot.slane %v325, 2
      %v352 = vor.u32 %v350, %v351
      %v353 = vrot.slane %v330, 1
      %v354 = vrot.slane %v332, 2
      %v355 = vor.u32 %v353, %v354
      %v356 = vrot.slane %v337, 1
      %v357 = vrot.slane %v339, 2
      %v358 = vor.u32 %v356, %v357
      %v359 = vrot.slane %v344, 1
      %v360 = vrot.slane %v346, 2
      %v361 = vor.u32 %v359, %v360
      %v362 = vrot.slane %v320, 2
      %v363 = vrot.slane %v321, 2
      %v364 = vrot.slane %v316, 2
      %v365 = vrot.slane %v317, 2
      %v367 = vunpack.c.h.b16 %v311
      %v368 = vpack.c.b16 %v367, %v367
      %v369 = vunpack.c.l.b16 %v311
      %v370 = vpack.c.b16 %v369, %v369
      %v372 = vshrl.u32 %v370, 16
      %v374 = vshll.u32 %v370, 16
      %v376 = vrot.slane %v374, 1
      %v377 = vor.u32 %v372, %v376
      %v379 = vshrl.u32 %v368, 16
      %v381 = vshll.u32 %v368, 16
      %v383 = vrot.slane %v381, 1
      %v384 = vor.u32 %v379, %v383
      %v385 = vrot.slane %v372, 1
      %v386 = vrot.slane %v374, 2
      %v387 = vor.u32 %v385, %v386
      %v388 = vrot.slane %v379, 1
      %v389 = vrot.slane %v381, 2
      %v390 = vor.u32 %v388, %v389
      %v391 = vrot.slane %v370, 2
      %v392 = vrot.slane %v368, 2
      %v393 = vcombine.low %v309, %v316
      %v394 = vcombine.low %v328, %v342
      %v395 = vcombine.low %v352, %v358
      %v396 = vcombine.low %v362, %v364
      %v398 = vunpack.c.l.s4 1966171168
      %v399 = vunpack.c.0.s8 %v398
      %v400 = vlaneseq
      %v401 = vshrl.u32 %v400, 7
      %v402 = vsub.s32 %v399, %v401
      %v403 = vrot.slane %v393, %v402
      %v405 = vunpack.c.l.s4 1966171168
      %v406 = vunpack.c.0.s8 %v405
      %v407 = vlaneseq
      %v408 = vshrl.u32 %v407, 7
      %v409 = vsub.s32 %v406, %v408
      %v410 = vrot.slane %v394, %v409
      %v412 = vunpack.c.l.s4 1966171168
      %v413 = vunpack.c.0.s8 %v412
      %v414 = vlaneseq
      %v415 = vshrl.u32 %v414, 7
      %v416 = vsub.s32 %v413, %v415
      %v417 = vrot.slane %v395, %v416
      %v419 = vunpack.c.l.s4 1966171168
      %v420 = vunpack.c.0.s8 %v419
      %v421 = vlaneseq
      %v422 = vshrl.u32 %v421, 7
      %v423 = vsub.s32 %v420, %v422
      %v424 = vrot.slane %v396, %v423
      %v425 = vcombine.low %v403, %v410
      %v426 = vcombine.low %v417, %v424
      %v428 = vunpack.c.l.s4 1966171168
      %v429 = vunpack.c.0.s8 %v428
      %v430 = vlaneseq
      %v431 = vshrl.u32 %v430, 7
      %v432 = vsub.s32 %v429, %v431
      %v433 = vrot.slane %v425, %v432
      %v435 = vunpack.c.l.s4 1966171168
      %v436 = vunpack.c.0.s8 %v435
      %v437 = vlaneseq
      %v438 = vshrl.u32 %v437, 7
      %v439 = vsub.s32 %v436, %v438
      %v440 = vrot.slane %v426, %v439
      %v441 = vcombine.low %v433, %v440
      %v442 = vcombine.low %v310, %v317
      %v443 = vcombine.low %v335, %v349
      %v444 = vcombine.low %v355, %v361
      %v445 = vcombine.low %v363, %v365
      %v447 = vunpack.c.l.s4 1966171168
      %v448 = vunpack.c.0.s8 %v447
      %v449 = vlaneseq
      %v450 = vshrl.u32 %v449, 7
      %v451 = vsub.s32 %v448, %v450
      %v452 = vrot.slane %v442, %v451
      %v454 = vunpack.c.l.s4 1966171168
      %v455 = vunpack.c.0.s8 %v454
      %v456 = vlaneseq
      %v457 = vshrl.u32 %v456, 7
      %v458 = vsub.s32 %v455, %v457
      %v459 = vrot.slane %v443, %v458
      %v461 = vunpack.c.l.s4 1966171168
      %v462 = vunpack.c.0.s8 %v461
      %v463 = vlaneseq
      %v464 = vshrl.u32 %v463, 7
      %v465 = vsub.s32 %v462, %v464
      %v466 = vrot.slane %v444, %v465
      %v468 = vunpack.c.l.s4 1966171168
      %v469 = vunpack.c.0.s8 %v468
      %v470 = vlaneseq
      %v471 = vshrl.u32 %v470, 7
      %v472 = vsub.s32 %v469, %v471
      %v473 = vrot.slane %v445, %v472
      %v474 = vcombine.low %v452, %v459
      %v475 = vcombine.low %v466, %v473
      %v477 = vunpack.c.l.s4 1966171168
      %v478 = vunpack.c.0.s8 %v477
      %v479 = vlaneseq
      %v480 = vshrl.u32 %v479, 7
      %v481 = vsub.s32 %v478, %v480
      %v482 = vrot.slane %v474, %v481
      %v484 = vunpack.c.l.s4 1966171168
      %v485 = vunpack.c.0.s8 %v484
      %v486 = vlaneseq
      %v487 = vshrl.u32 %v486, 7
      %v488 = vsub.s32 %v485, %v487
      %v489 = vrot.slane %v475, %v488
      %v490 = vcombine.low %v482, %v489
      %v491 = vcombine.low %v311, %v368
      %v492 = vcombine.low %v377, %v384
      %v493 = vcombine.low %v387, %v390
      %v494 = vcombine.low %v391, %v392
      %v496 = vunpack.c.l.s4 1966171168
      %v497 = vunpack.c.0.s8 %v496
      %v498 = vlaneseq
      %v499 = vshrl.u32 %v498, 7
      %v500 = vsub.s32 %v497, %v499
      %v501 = vrot.slane %v491, %v500
      %v503 = vunpack.c.l.s4 1966171168
      %v504 = vunpack.c.0.s8 %v503
      %v505 = vlaneseq
      %v506 = vshrl.u32 %v505, 7
      %v507 = vsub.s32 %v504, %v506
      %v508 = vrot.slane %v492, %v507
      %v510 = vunpack.c.l.s4 1966171168
      %v511 = vunpack.c.0.s8 %v510
      %v512 = vlaneseq
      %v513 = vshrl.u32 %v512, 7
      %v514 = vsub.s32 %v511, %v513
      %v515 = vrot.slane %v493, %v514
      %v517 = vunpack.c.l.s4 1966171168
      %v518 = vunpack.c.0.s8 %v517
      %v519 = vlaneseq
      %v520 = vshrl.u32 %v519, 7
      %v521 = vsub.s32 %v518, %v520
      %v522 = vrot.slane %v494, %v521
      %v523 = vcombine.low %v501, %v508
      %v524 = vcombine.low %v515, %v522
      %v526 = vunpack.c.l.s4 1966171168
      %v527 = vunpack.c.0.s8 %v526
      %v528 = vlaneseq
      %v529 = vshrl.u32 %v528, 7
      %v530 = vsub.s32 %v527, %v529
      %v531 = vrot.slane %v523, %v530
      %v533 = vunpack.c.l.s4 1966171168
      %v534 = vunpack.c.0.s8 %v533
      %v535 = vlaneseq
      %v536 = vshrl.u32 %v535, 7
      %v537 = vsub.s32 %v534, %v536
      %v538 = vrot.slane %v524, %v537
      %v539 = vcombine.low %v531, %v538
      %v540 = vld [vmem:[%s2] sm:$0xf]
      %v541 = vld [vmem:[%s2 + $0x4] sm:$0xf]
      %v542 = vld [vmem:[%s2 + $0x8] sm:$0xf]
      %v543 = vld [vmem:[%s2 + $0xc] sm:$0xf]
      %v544 = vld [vmem:[%s2 + $0x10] sm:$0xf]
      %v545 = vld [vmem:[%s2 + $0x14] sm:$0xf]
      %v546 = vld [vmem:[%s2 + $0x18] sm:$0xf]
      %v547 = vld [vmem:[%s2 + $0x1c] sm:$0xf]
      %v548 = vld [vmem:[%s2 + $0x20] sm:$0xf]
      %v549 = vld [vmem:[%s2 + $0x24] sm:$0xf]
      %v550 = vld [vmem:[%s2 + $0x28] sm:$0xf]
      %v551 = vld [vmem:[%s2 + $0x2c] sm:$0xf]
      %v552 = vld [vmem:[%s2 + $0x30] sm:$0xf]
      %v553 = vld [vmem:[%s2 + $0x34] sm:$0xf]
      %v554 = vld [vmem:[%s2 + $0x38] sm:$0xf]
      %v555 = vld [vmem:[%s2 + $0x3c] sm:$0xf]
      %v556 = vld [vmem:[%s2 + $0x40] sm:$0xf]
      %v557 = vld [vmem:[%s2 + $0x44] sm:$0xf]
      %v558 = vld [vmem:[%s2 + $0x48] sm:$0xf]
      %v559 = vld [vmem:[%s2 + $0x4c] sm:$0xf]
      %v560 = vld [vmem:[%s2 + $0x50] sm:$0xf]
      %v561 = vld [vmem:[%s2 + $0x54] sm:$0xf]
      %v562 = vld [vmem:[%s2 + $0x58] sm:$0xf]
      %v563 = vld [vmem:[%s2 + $0x5c] sm:$0xf]
      %v564 = vld [vmem:[%s2 + $0x60] sm:$0xf]
      %v565 = vld [vmem:[%s2 + $0x64] sm:$0xf]
      %v566 = vld [vmem:[%s2 + $0x68] sm:$0xf]
      %v567 = vld [vmem:[%s2 + $0x6c] sm:$0xf]
      %v568 = vld [vmem:[%s2 + $0x70] sm:$0xf]
      %v569 = vld [vmem:[%s2 + $0x74] sm:$0xf]
      %v570 = vld [vmem:[%s2 + $0x78] sm:$0xf]
      %v571 = vld [vmem:[%s2 + $0x7c] sm:$0xf]
      %v572 = vld [vmem:[%s2 + $0x80] sm:$0xf]
      %v573 = vld [vmem:[%s2 + $0x84] sm:$0xf]
      %v574 = vld [vmem:[%s2 + $0x88] sm:$0xf]
      %v575 = vld [vmem:[%s2 + $0x8c] sm:$0xf]
      %v576 = vld [vmem:[%s2 + $0x90] sm:$0xf]
      %v577 = vld [vmem:[%s2 + $0x94] sm:$0xf]
      %v578 = vld [vmem:[%s2 + $0x98] sm:$0xf]
      %v579 = vld [vmem:[%s2 + $0x9c] sm:$0xf]
      %v580 = vld [vmem:[%s2 + $0xa0] sm:$0xf]
      %v581 = vld [vmem:[%s2 + $0xa4] sm:$0xf]
      %v582 = vld [vmem:[%s2 + $0xa8] sm:$0xf]
      %v583 = vld [vmem:[%s2 + $0xac] sm:$0xf]
      %v584 = vld [vmem:[%s2 + $0xb0] sm:$0xf]
      %v585 = vld [vmem:[%s2 + $0xb4] sm:$0xf]
      %v586 = vld [vmem:[%s2 + $0xb8] sm:$0xf]
      %v587 = vld [vmem:[%s2 + $0xbc] sm:$0xf]
      %v588 = vld [vmem:[%s2 + $0xc0] sm:$0xf]
      %v589 = vld [vmem:[%s2 + $0xc4] sm:$0xf]
      %v590 = vld [vmem:[%s2 + $0xc8] sm:$0xf]
      %v591 = vld [vmem:[%s2 + $0xcc] sm:$0xf]
      %v592 = vld [vmem:[%s2 + $0xd0] sm:$0xf]
      %v593 = vld [vmem:[%s2 + $0xd4] sm:$0xf]
      %v594 = vld [vmem:[%s2 + $0xd8] sm:$0xf]
      %v595 = vld [vmem:[%s2 + $0xdc] sm:$0xf]
      %v596 = vld [vmem:[%s2 + $0xe0] sm:$0xf]
      %v597 = vld [vmem:[%s2 + $0xe4] sm:$0xf]
      %v598 = vld [vmem:[%s2 + $0xe8] sm:$0xf]
      %v599 = vld [vmem:[%s2 + $0xec] sm:$0xf]
      %v600 = vld [vmem:[%s2 + $0xf0] sm:$0xf]
      %v601 = vld [vmem:[%s2 + $0xf4] sm:$0xf]
      %v602 = vld [vmem:[%s2 + $0xf8] sm:$0xf]
      %v603 = vld [vmem:[%s2 + $0xfc] sm:$0xf]
      %v604 = vld [vmem:[%s2 + $0x100] sm:$0xf]
      %v605 = vld [vmem:[%s2 + $0x104] sm:$0xf]
      %v606 = vld [vmem:[%s2 + $0x108] sm:$0xf]
      %v607 = vld [vmem:[%s2 + $0x10c] sm:$0xf]
      %v608 = vld [vmem:[%s2 + $0x110] sm:$0xf]
      %v609 = vld [vmem:[%s2 + $0x114] sm:$0xf]
      %v610 = vld [vmem:[%s2 + $0x118] sm:$0xf]
      %v611 = vld [vmem:[%s2 + $0x11c] sm:$0xf]
      %v612 = vld [vmem:[%s2 + $0x120] sm:$0xf]
      %v613 = vld [vmem:[%s2 + $0x124] sm:$0xf]
      %v614 = vld [vmem:[%s2 + $0x128] sm:$0xf]
      %v615 = vld [vmem:[%s2 + $0x12c] sm:$0xf]
      %v616 = vld [vmem:[%s2 + $0x130] sm:$0xf]
      %v617 = vld [vmem:[%s2 + $0x134] sm:$0xf]
      %v618 = vld [vmem:[%s2 + $0x138] sm:$0xf]
      %v619 = vld [vmem:[%s2 + $0x13c] sm:$0xf]
      %v620 = vld [vmem:[%s2 + $0x140] sm:$0xf]
      %v621 = vld [vmem:[%s2 + $0x144] sm:$0xf]
      %v622 = vld [vmem:[%s2 + $0x148] sm:$0xf]
      %v623 = vld [vmem:[%s2 + $0x14c] sm:$0xf]
      %v624 = vld [vmem:[%s2 + $0x150] sm:$0xf]
      %v625 = vld [vmem:[%s2 + $0x154] sm:$0xf]
      %v626 = vld [vmem:[%s2 + $0x158] sm:$0xf]
      %v627 = vld [vmem:[%s2 + $0x15c] sm:$0xf]
      %v628 = vld [vmem:[%s2 + $0x160] sm:$0xf]
      %v629 = vld [vmem:[%s2 + $0x164] sm:$0xf]
      %v630 = vld [vmem:[%s2 + $0x168] sm:$0xf]
      %v631 = vld [vmem:[%s2 + $0x16c] sm:$0xf]
      %v632 = vld [vmem:[%s2 + $0x170] sm:$0xf]
      %v633 = vld [vmem:[%s2 + $0x174] sm:$0xf]
      %v634 = vld [vmem:[%s2 + $0x178] sm:$0xf]
      %v635 = vld [vmem:[%s2 + $0x17c] sm:$0xf]
      %v636 = vld [vmem:[%s2 + $0x180] sm:$0xf]
      %v637 = vld [vmem:[%s2 + $0x184] sm:$0xf]
      %v638 = vld [vmem:[%s2 + $0x188] sm:$0xf]
      %v639 = vld [vmem:[%s2 + $0x18c] sm:$0xf]
      %v640 = vld [vmem:[%s2 + $0x190] sm:$0xf]
      %v641 = vld [vmem:[%s2 + $0x194] sm:$0xf]
      %v642 = vld [vmem:[%s2 + $0x198] sm:$0xf]
      %v643 = vld [vmem:[%s2 + $0x19c] sm:$0xf]
      %v644 = vld [vmem:[%s2 + $0x1a0] sm:$0xf]
      %v645 = vld [vmem:[%s2 + $0x1a4] sm:$0xf]
      %v646 = vld [vmem:[%s2 + $0x1a8] sm:$0xf]
      %v647 = vld [vmem:[%s2 + $0x1ac] sm:$0xf]
      %v648 = vld [vmem:[%s2 + $0x1b0] sm:$0xf]
      %v649 = vld [vmem:[%s2 + $0x1b4] sm:$0xf]
      %v650 = vld [vmem:[%s2 + $0x1b8] sm:$0xf]
      %v651 = vld [vmem:[%s2 + $0x1bc] sm:$0xf]
      %v652 = vld [vmem:[%s2 + $0x1c0] sm:$0xf]
      %v653 = vld [vmem:[%s2 + $0x1c4] sm:$0xf]
      %v654 = vld [vmem:[%s2 + $0x1c8] sm:$0xf]
      %v655 = vld [vmem:[%s2 + $0x1cc] sm:$0xf]
      %v656 = vld [vmem:[%s2 + $0x1d0] sm:$0xf]
      %v657 = vld [vmem:[%s2 + $0x1d4] sm:$0xf]
      %v658 = vld [vmem:[%s2 + $0x1d8] sm:$0xf]
      %v659 = vld [vmem:[%s2 + $0x1dc] sm:$0xf]
      %v660 = vld [vmem:[%s2 + $0x1e0] sm:$0xf]
      %v661 = vld [vmem:[%s2 + $0x1e4] sm:$0xf]
      %v662 = vld [vmem:[%s2 + $0x1e8] sm:$0xf]
      %v663 = vld [vmem:[%s2 + $0x1ec] sm:$0xf]
      %v664 = vld [vmem:[%s2 + $0x1f0] sm:$0xf]
      %v665 = vld [vmem:[%s2 + $0x1f4] sm:$0xf]
      %v666 = vld [vmem:[%s2 + $0x1f8] sm:$0xf]
      %v667 = vld [vmem:[%s2 + $0x1fc] sm:$0xf]
      %v668 = vld [vmem:[%s2 + $0x200] sm:$0xf]
      %v669 = vld [vmem:[%s2 + $0x204] sm:$0xf]
      %v670 = vld [vmem:[%s2 + $0x208] sm:$0xf]
      %v671 = vld [vmem:[%s2 + $0x20c] sm:$0xf]
      %v672 = vld [vmem:[%s2 + $0x210] sm:$0xf]
      %v673 = vld [vmem:[%s2 + $0x214] sm:$0xf]
      %v674 = vld [vmem:[%s2 + $0x218] sm:$0xf]
      %v675 = vld [vmem:[%s2 + $0x21c] sm:$0xf]
      %v676 = vld [vmem:[%s2 + $0x220] sm:$0xf]
      %v677 = vld [vmem:[%s2 + $0x224] sm:$0xf]
      %v678 = vld [vmem:[%s2 + $0x228] sm:$0xf]
      %v679 = vld [vmem:[%s2 + $0x22c] sm:$0xf]
      %v680 = vld [vmem:[%s2 + $0x230] sm:$0xf]
      %v681 = vld [vmem:[%s2 + $0x234] sm:$0xf]
      %v682 = vld [vmem:[%s2 + $0x238] sm:$0xf]
      %v683 = vld [vmem:[%s2 + $0x23c] sm:$0xf]
      %v684 = vld [vmem:[%s2 + $0x240] sm:$0xf]
      %v685 = vld [vmem:[%s2 + $0x244] sm:$0xf]
      %v686 = vld [vmem:[%s2 + $0x248] sm:$0xf]
      %v687 = vld [vmem:[%s2 + $0x24c] sm:$0xf]
      %v688 = vld [vmem:[%s2 + $0x250] sm:$0xf]
      %v689 = vld [vmem:[%s2 + $0x254] sm:$0xf]
      %v690 = vld [vmem:[%s2 + $0x258] sm:$0xf]
      %v691 = vld [vmem:[%s2 + $0x25c] sm:$0xf]
      %v692 = vld [vmem:[%s2 + $0x260] sm:$0xf]
      %v693 = vld [vmem:[%s2 + $0x264] sm:$0xf]
      %v694 = vld [vmem:[%s2 + $0x268] sm:$0xf]
      %v695 = vld [vmem:[%s2 + $0x26c] sm:$0xf]
      %v696 = vld [vmem:[%s2 + $0x270] sm:$0xf]
      %v697 = vld [vmem:[%s2 + $0x274] sm:$0xf]
      %v698 = vld [vmem:[%s2 + $0x278] sm:$0xf]
      %v699 = vld [vmem:[%s2 + $0x27c] sm:$0xf]
      %v700 = vld [vmem:[%s2 + $0x280] sm:$0xf]
      %v701 = vld [vmem:[%s2 + $0x284] sm:$0xf]
      %v702 = vld [vmem:[%s2 + $0x288] sm:$0xf]
      %v703 = vld [vmem:[%s2 + $0x28c] sm:$0xf]
      %v704 = vld [vmem:[%s2 + $0x290] sm:$0xf]
      %v705 = vld [vmem:[%s2 + $0x294] sm:$0xf]
      %v706 = vld [vmem:[%s2 + $0x298] sm:$0xf]
      %v707 = vld [vmem:[%s2 + $0x29c] sm:$0xf]
      %v708 = vld [vmem:[%s2 + $0x2a0] sm:$0xf]
      %v709 = vld [vmem:[%s2 + $0x2a4] sm:$0xf]
      %v710 = vld [vmem:[%s2 + $0x2a8] sm:$0xf]
      %v711 = vld [vmem:[%s2 + $0x2ac] sm:$0xf]
      %v712 = vld [vmem:[%s2 + $0x2b0] sm:$0xf]
      %v713 = vld [vmem:[%s2 + $0x2b4] sm:$0xf]
      %v714 = vld [vmem:[%s2 + $0x2b8] sm:$0xf]
      %v715 = vld [vmem:[%s2 + $0x2bc] sm:$0xf]
      %v716 = vld [vmem:[%s2 + $0x2c0] sm:$0xf]
      %v717 = vld [vmem:[%s2 + $0x2c4] sm:$0xf]
      %v718 = vld [vmem:[%s2 + $0x2c8] sm:$0xf]
      %v719 = vld [vmem:[%s2 + $0x2cc] sm:$0xf]
      %v720 = vld [vmem:[%s2 + $0x2d0] sm:$0xf]
      %v721 = vld [vmem:[%s2 + $0x2d4] sm:$0xf]
      %v722 = vld [vmem:[%s2 + $0x2d8] sm:$0xf]
      %v723 = vld [vmem:[%s2 + $0x2dc] sm:$0xf]
      %v724 = vld [vmem:[%s2 + $0x2e0] sm:$0xf]
      %v725 = vld [vmem:[%s2 + $0x2e4] sm:$0xf]
      %v726 = vld [vmem:[%s2 + $0x2e8] sm:$0xf]
      %v727 = vld [vmem:[%s2 + $0x2ec] sm:$0xf]
      %v728 = vld [vmem:[%s2 + $0x2f0] sm:$0xf]
      %v729 = vld [vmem:[%s2 + $0x2f4] sm:$0xf]
      %v730 = vld [vmem:[%s2 + $0x2f8] sm:$0xf]
      %v731 = vld [vmem:[%s2 + $0x2fc] sm:$0xf]
      %v732 = vld [vmem:[%s2 + $0x300] sm:$0xf]
      %v733 = vld [vmem:[%s2 + $0x304] sm:$0xf]
      %v734 = vld [vmem:[%s2 + $0x308] sm:$0xf]
      %v735 = vld [vmem:[%s2 + $0x30c] sm:$0xf]
      %v736 = vld [vmem:[%s2 + $0x310] sm:$0xf]
      %v737 = vld [vmem:[%s2 + $0x314] sm:$0xf]
      %v738 = vld [vmem:[%s2 + $0x318] sm:$0xf]
      %v739 = vld [vmem:[%s2 + $0x31c] sm:$0xf]
      %v740 = vld [vmem:[%s2 + $0x320] sm:$0xf]
      %v741 = vld [vmem:[%s2 + $0x324] sm:$0xf]
      %v742 = vld [vmem:[%s2 + $0x328] sm:$0xf]
      %v743 = vld [vmem:[%s2 + $0x32c] sm:$0xf]
      %v744 = vld [vmem:[%s2 + $0x330] sm:$0xf]
      %v745 = vld [vmem:[%s2 + $0x334] sm:$0xf]
      %v746 = vld [vmem:[%s2 + $0x338] sm:$0xf]
      %v747 = vld [vmem:[%s2 + $0x33c] sm:$0xf]
      %v748 = vld [vmem:[%s2 + $0x340] sm:$0xf]
      %v749 = vld [vmem:[%s2 + $0x344] sm:$0xf]
      %v750 = vld [vmem:[%s2 + $0x348] sm:$0xf]
      %v751 = vld [vmem:[%s2 + $0x34c] sm:$0xf]
      %v752 = vld [vmem:[%s2 + $0x350] sm:$0xf]
      %v753 = vld [vmem:[%s2 + $0x354] sm:$0xf]
      %v754 = vld [vmem:[%s2 + $0x358] sm:$0xf]
      %v755 = vld [vmem:[%s2 + $0x35c] sm:$0xf]
      %v756 = vld [vmem:[%s2 + $0x360] sm:$0xf]
      %v757 = vld [vmem:[%s2 + $0x364] sm:$0xf]
      %v758 = vld [vmem:[%s2 + $0x368] sm:$0xf]
      %v759 = vld [vmem:[%s2 + $0x36c] sm:$0xf]
      %v760 = vld [vmem:[%s2 + $0x370] sm:$0xf]
      %v761 = vld [vmem:[%s2 + $0x374] sm:$0xf]
      %v762 = vld [vmem:[%s2 + $0x378] sm:$0xf]
      %v763 = vld [vmem:[%s2 + $0x37c] sm:$0xf]
      %v764 = vld [vmem:[%s2 + $0x380] sm:$0xf]
      %v765 = vld [vmem:[%s2 + $0x384] sm:$0xf]
      %v766 = vld [vmem:[%s2 + $0x388] sm:$0xf]
      %v767 = vld [vmem:[%s2 + $0x38c] sm:$0xf]
      %v768 = vld [vmem:[%s2 + $0x390] sm:$0xf]
      %v769 = vld [vmem:[%s2 + $0x394] sm:$0xf]
      %v770 = vld [vmem:[%s2 + $0x398] sm:$0xf]
      %v771 = vld [vmem:[%s2 + $0x39c] sm:$0xf]
      %v772 = vld [vmem:[%s2 + $0x3a0] sm:$0xf]
      %v773 = vld [vmem:[%s2 + $0x3a4] sm:$0xf]
      %v774 = vld [vmem:[%s2 + $0x3a8] sm:$0xf]
      %v775 = vld [vmem:[%s2 + $0x3ac] sm:$0xf]
      %v776 = vld [vmem:[%s2 + $0x3b0] sm:$0xf]
      %v777 = vld [vmem:[%s2 + $0x3b4] sm:$0xf]
      %v778 = vld [vmem:[%s2 + $0x3b8] sm:$0xf]
      %v779 = vld [vmem:[%s2 + $0x3bc] sm:$0xf]
      %v780 = vld [vmem:[%s2 + $0x3c0] sm:$0xf]
      %v781 = vld [vmem:[%s2 + $0x3c4] sm:$0xf]
      %v782 = vld [vmem:[%s2 + $0x3c8] sm:$0xf]
      %v783 = vld [vmem:[%s2 + $0x3cc] sm:$0xf]
      %v784 = vld [vmem:[%s2 + $0x3d0] sm:$0xf]
      %v785 = vld [vmem:[%s2 + $0x3d4] sm:$0xf]
      %v786 = vld [vmem:[%s2 + $0x3d8] sm:$0xf]
      %v787 = vld [vmem:[%s2 + $0x3dc] sm:$0xf]
      %v788 = vld [vmem:[%s2 + $0x3e0] sm:$0xf]
      %v789 = vld [vmem:[%s2 + $0x3e4] sm:$0xf]
      %v790 = vld [vmem:[%s2 + $0x3e8] sm:$0xf]
      %v791 = vld [vmem:[%s2 + $0x3ec] sm:$0xf]
      %v792 = vld [vmem:[%s2 + $0x3f0] sm:$0xf]
      %v793 = vld [vmem:[%s2 + $0x3f4] sm:$0xf]
      %v794 = vld [vmem:[%s2 + $0x3f8] sm:$0xf]
      %v795 = vld [vmem:[%s2 + $0x3fc] sm:$0xf]
      %v796 = vld [vmem:[%s3] sm:$0x1]
      %v798 = vlaneseq
      %v799 = vshrl.u32 %v798, 7
      %v800 = vsub.s32 0, %v799
      %v801 = vrot.slane %v796, %v800
      %v803 = vcombine.low %v441, %v490
      %v804 = vcombine.high %v441, %v490
      %v806 = vunpack.c.l.s4 1966171168
      %v807 = vunpack.c.0.s8 %v806
      %v808 = vlaneseq
      %v809 = vshrl.u32 %v808, 7
      %v810 = vsub.s32 %v807, %v809
      %v811 = vrot.slane %v803, %v810
      %v813 = vunpack.c.l.s4 1966171168
      %v814 = vunpack.c.0.s8 %v813
      %v815 = vlaneseq
      %v816 = vshrl.u32 %v815, 7
      %v817 = vsub.s32 %v814, %v816
      %v818 = vrot.slane %v804, %v817
      %v819 = vcombine.high %v811, %v811
      %v820 = vcombine.high %v818, %v818
      %v822 = vunpack.c.l.s4 1966171168
      %v823 = vunpack.c.0.s8 %v822
      %v824 = vlaneseq
      %v825 = vshrl.u32 %v824, 7
      %v826 = vsub.s32 %v823, %v825
      %v827 = vrot.slane %v811, %v826
      %v829 = vunpack.c.l.s4 1966171168
      %v830 = vunpack.c.0.s8 %v829
      %v831 = vlaneseq
      %v832 = vshrl.u32 %v831, 7
      %v833 = vsub.s32 %v830, %v832
      %v834 = vrot.slane %v818, %v833
      %v836 = vunpack.c.l.s4 1966171168
      %v837 = vunpack.c.0.s8 %v836
      %v838 = vlaneseq
      %v839 = vshrl.u32 %v838, 7
      %v840 = vsub.s32 %v837, %v839
      %v841 = vrot.slane %v819, %v840
      %v843 = vunpack.c.l.s4 1966171168
      %v844 = vunpack.c.0.s8 %v843
      %v845 = vlaneseq
      %v846 = vshrl.u32 %v845, 7
      %v847 = vsub.s32 %v844, %v846
      %v848 = vrot.slane %v820, %v847
      %v849 = vcombine.high %v827, %v827
      %v850 = vcombine.high %v834, %v834
      %v851 = vcombine.high %v841, %v841
      %v852 = vcombine.high %v848, %v848
      %v853 = vcombine.low %v490, %v539
      %v854 = vcombine.high %v490, %v539
      %v856 = vunpack.c.l.s4 1966171168
      %v857 = vunpack.c.0.s8 %v856
      %v858 = vlaneseq
      %v859 = vshrl.u32 %v858, 7
      %v860 = vsub.s32 %v857, %v859
      %v861 = vrot.slane %v853, %v860
      %v863 = vunpack.c.l.s4 1966171168
      %v864 = vunpack.c.0.s8 %v863
      %v865 = vlaneseq
      %v866 = vshrl.u32 %v865, 7
      %v867 = vsub.s32 %v864, %v866
      %v868 = vrot.slane %v854, %v867
      %v869 = vcombine.high %v861, %v861
      %v870 = vcombine.high %v868, %v868
      %v872 = vunpack.c.l.s4 1966171168
      %v873 = vunpack.c.0.s8 %v872
      %v874 = vlaneseq
      %v875 = vshrl.u32 %v874, 7
      %v876 = vsub.s32 %v873, %v875
      %v877 = vrot.slane %v861, %v876
      %v879 = vunpack.c.l.s4 1966171168
      %v880 = vunpack.c.0.s8 %v879
      %v881 = vlaneseq
      %v882 = vshrl.u32 %v881, 7
      %v883 = vsub.s32 %v880, %v882
      %v884 = vrot.slane %v868, %v883
      %v886 = vunpack.c.l.s4 1966171168
      %v887 = vunpack.c.0.s8 %v886
      %v888 = vlaneseq
      %v889 = vshrl.u32 %v888, 7
      %v890 = vsub.s32 %v887, %v889
      %v891 = vrot.slane %v869, %v890
      %v893 = vunpack.c.l.s4 1966171168
      %v894 = vunpack.c.0.s8 %v893
      %v895 = vlaneseq
      %v896 = vshrl.u32 %v895, 7
      %v897 = vsub.s32 %v894, %v896
      %v898 = vrot.slane %v870, %v897
      %v899 = vcombine.high %v877, %v877
      %v900 = vcombine.high %v884, %v884
      %v901 = vcombine.high %v891, %v891
      %v902 = vcombine.high %v898, %v898
      %v1175 = vunpack.c.l.b16 %v540
      %v1176 = vunpack.c.l.b16 %v541
      %v1177 = vunpack.c.l.b16 %v542
      %v1178 = vunpack.c.l.b16 %v543
      %v1179 = vunpack.c.l.b16 %v544
      %v1180 = vunpack.c.l.b16 %v545
      %v1181 = vunpack.c.l.b16 %v546
      %v1182 = vunpack.c.l.b16 %v547
      %v1183 = vunpack.c.l.b16 %v548
      %v1184 = vunpack.c.l.b16 %v549
      %v1185 = vunpack.c.l.b16 %v550
      %v1186 = vunpack.c.l.b16 %v551
      %v1187 = vunpack.c.l.b16 %v552
      %v1188 = vunpack.c.l.b16 %v553
      %v1189 = vunpack.c.l.b16 %v554
      %v1190 = vunpack.c.l.b16 %v555
      %v1191 = vunpack.c.l.b16 %v556
      %v1192 = vunpack.c.l.b16 %v557
      %v1193 = vunpack.c.l.b16 %v558
      %v1194 = vunpack.c.l.b16 %v559
      %v1195 = vunpack.c.l.b16 %v560
      %v1196 = vunpack.c.l.b16 %v561
      %v1197 = vunpack.c.l.b16 %v562
      %v1198 = vunpack.c.l.b16 %v563
      %v1199 = vunpack.c.l.b16 %v564
      %v1200 = vunpack.c.l.b16 %v565
      %v1201 = vunpack.c.l.b16 %v566
      %v1202 = vunpack.c.l.b16 %v567
      %v1203 = vunpack.c.l.b16 %v568
      %v1204 = vunpack.c.l.b16 %v569
      %v1205 = vunpack.c.l.b16 %v570
      %v1206 = vunpack.c.l.b16 %v571
      %v1207 = vunpack.c.l.b16 %v572
      %v1208 = vunpack.c.l.b16 %v573
      %v1209 = vunpack.c.l.b16 %v574
      %v1210 = vunpack.c.l.b16 %v575
      %v1211 = vunpack.c.l.b16 %v576
      %v1212 = vunpack.c.l.b16 %v577
      %v1213 = vunpack.c.l.b16 %v578
      %v1214 = vunpack.c.l.b16 %v579
      %v1215 = vunpack.c.l.b16 %v580
      %v1216 = vunpack.c.l.b16 %v581
      %v1217 = vunpack.c.l.b16 %v582
      %v1218 = vunpack.c.l.b16 %v583
      %v1219 = vunpack.c.l.b16 %v584
      %v1220 = vunpack.c.l.b16 %v585
      %v1221 = vunpack.c.l.b16 %v586
      %v1222 = vunpack.c.l.b16 %v587
      %v1223 = vunpack.c.l.b16 %v588
      %v1224 = vunpack.c.l.b16 %v589
      %v1225 = vunpack.c.l.b16 %v590
      %v1226 = vunpack.c.l.b16 %v591
      %v1227 = vunpack.c.l.b16 %v592
      %v1228 = vunpack.c.l.b16 %v593
      %v1229 = vunpack.c.l.b16 %v594
      %v1230 = vunpack.c.l.b16 %v595
      %v1231 = vunpack.c.l.b16 %v596
      %v1232 = vunpack.c.l.b16 %v597
      %v1233 = vunpack.c.l.b16 %v598
      %v1234 = vunpack.c.l.b16 %v599
      %v1235 = vunpack.c.l.b16 %v600
      %v1236 = vunpack.c.l.b16 %v601
      %v1237 = vunpack.c.l.b16 %v602
      %v1238 = vunpack.c.l.b16 %v603
      %v1239 = vunpack.c.l.b16 %v604
      %v1240 = vunpack.c.l.b16 %v605
      %v1241 = vunpack.c.l.b16 %v606
      %v1242 = vunpack.c.l.b16 %v607
      %v1243 = vunpack.c.l.b16 %v608
      %v1244 = vunpack.c.l.b16 %v609
      %v1245 = vunpack.c.l.b16 %v610
      %v1246 = vunpack.c.l.b16 %v611
      %v1247 = vunpack.c.l.b16 %v612
      %v1248 = vunpack.c.l.b16 %v613
      %v1249 = vunpack.c.l.b16 %v614
      %v1250 = vunpack.c.l.b16 %v615
      %v1251 = vunpack.c.l.b16 %v616
      %v1252 = vunpack.c.l.b16 %v617
      %v1253 = vunpack.c.l.b16 %v618
      %v1254 = vunpack.c.l.b16 %v619
      %v1255 = vunpack.c.l.b16 %v620
      %v1256 = vunpack.c.l.b16 %v621
      %v1257 = vunpack.c.l.b16 %v622
      %v1258 = vunpack.c.l.b16 %v623
      %v1259 = vunpack.c.l.b16 %v624
      %v1260 = vunpack.c.l.b16 %v625
      %v1261 = vunpack.c.l.b16 %v626
      %v1262 = vunpack.c.l.b16 %v627
      %v1263 = vunpack.c.l.b16 %v628
      %v1264 = vunpack.c.l.b16 %v629
      %v1265 = vunpack.c.l.b16 %v630
      %v1266 = vunpack.c.l.b16 %v631
      %v1267 = vunpack.c.l.b16 %v632
      %v1268 = vunpack.c.l.b16 %v633
      %v1269 = vunpack.c.l.b16 %v634
      %v1270 = vunpack.c.l.b16 %v635
      %v1271 = vunpack.c.l.b16 %v636
      %v1272 = vunpack.c.l.b16 %v637
      %v1273 = vunpack.c.l.b16 %v638
      %v1274 = vunpack.c.l.b16 %v639
      %v1275 = vunpack.c.l.b16 %v640
      %v1276 = vunpack.c.l.b16 %v641
      %v1277 = vunpack.c.l.b16 %v642
      %v1278 = vunpack.c.l.b16 %v643
      %v1279 = vunpack.c.l.b16 %v644
      %v1280 = vunpack.c.l.b16 %v645
      %v1281 = vunpack.c.l.b16 %v646
      %v1282 = vunpack.c.l.b16 %v647
      %v1283 = vunpack.c.l.b16 %v648
      %v1284 = vunpack.c.l.b16 %v649
      %v1285 = vunpack.c.l.b16 %v650
      %v1286 = vunpack.c.l.b16 %v651
      %v1287 = vunpack.c.l.b16 %v652
      %v1288 = vunpack.c.l.b16 %v653
      %v1289 = vunpack.c.l.b16 %v654
      %v1290 = vunpack.c.l.b16 %v655
      %v1291 = vunpack.c.l.b16 %v656
      %v1292 = vunpack.c.l.b16 %v657
      %v1293 = vunpack.c.l.b16 %v658
      %v1294 = vunpack.c.l.b16 %v659
      %v1295 = vunpack.c.l.b16 %v660
      %v1296 = vunpack.c.l.b16 %v661
      %v1297 = vunpack.c.l.b16 %v662
      %v1298 = vunpack.c.l.b16 %v663
      %v1299 = vunpack.c.l.b16 %v664
      %v1300 = vunpack.c.l.b16 %v665
      %v1301 = vunpack.c.l.b16 %v666
      %v1302 = vunpack.c.l.b16 %v667
      %v1303 = vunpack.c.l.b16 %v668
      %v1304 = vunpack.c.l.b16 %v669
      %v1305 = vunpack.c.l.b16 %v670
      %v1306 = vunpack.c.l.b16 %v671
      %v1307 = vunpack.c.l.b16 %v672
      %v1308 = vunpack.c.l.b16 %v673
      %v1309 = vunpack.c.l.b16 %v674
      %v1310 = vunpack.c.l.b16 %v675
      %v1311 = vunpack.c.l.b16 %v676
      %v1312 = vunpack.c.l.b16 %v677
      %v1313 = vunpack.c.l.b16 %v678
      %v1314 = vunpack.c.l.b16 %v679
      %v1315 = vunpack.c.l.b16 %v680
      %v1316 = vunpack.c.l.b16 %v681
      %v1317 = vunpack.c.l.b16 %v682
      %v1318 = vunpack.c.l.b16 %v683
      %v1319 = vunpack.c.l.b16 %v684
      %v1320 = vunpack.c.l.b16 %v685
      %v1321 = vunpack.c.l.b16 %v686
      %v1322 = vunpack.c.l.b16 %v687
      %v1323 = vunpack.c.l.b16 %v688
      %v1324 = vunpack.c.l.b16 %v689
      %v1325 = vunpack.c.l.b16 %v690
      %v1326 = vunpack.c.l.b16 %v691
      %v1327 = vunpack.c.l.b16 %v692
      %v1328 = vunpack.c.l.b16 %v693
      %v1329 = vunpack.c.l.b16 %v694
      %v1330 = vunpack.c.l.b16 %v695
      %v1331 = vunpack.c.l.b16 %v696
      %v1332 = vunpack.c.l.b16 %v697
      %v1333 = vunpack.c.l.b16 %v698
      %v1334 = vunpack.c.l.b16 %v699
      %v1335 = vunpack.c.l.b16 %v700
      %v1336 = vunpack.c.l.b16 %v701
      %v1337 = vunpack.c.l.b16 %v702
      %v1338 = vunpack.c.l.b16 %v703
      %v1339 = vunpack.c.l.b16 %v704
      %v1340 = vunpack.c.l.b16 %v705
      %v1341 = vunpack.c.l.b16 %v706
      %v1342 = vunpack.c.l.b16 %v707
      %v1343 = vunpack.c.l.b16 %v708
      %v1344 = vunpack.c.l.b16 %v709
      %v1345 = vunpack.c.l.b16 %v710
      %v1346 = vunpack.c.l.b16 %v711
      %v1347 = vunpack.c.l.b16 %v712
      %v1348 = vunpack.c.l.b16 %v713
      %v1349 = vunpack.c.l.b16 %v714
      %v1350 = vunpack.c.l.b16 %v715
      %v1351 = vunpack.c.l.b16 %v716
      %v1352 = vunpack.c.l.b16 %v717
      %v1353 = vunpack.c.l.b16 %v718
      %v1354 = vunpack.c.l.b16 %v719
      %v1355 = vunpack.c.l.b16 %v720
      %v1356 = vunpack.c.l.b16 %v721
      %v1357 = vunpack.c.l.b16 %v722
      %v1358 = vunpack.c.l.b16 %v723
      %v1359 = vunpack.c.l.b16 %v724
      %v1360 = vunpack.c.l.b16 %v725
      %v1361 = vunpack.c.l.b16 %v726
      %v1362 = vunpack.c.l.b16 %v727
      %v1363 = vunpack.c.l.b16 %v728
      %v1364 = vunpack.c.l.b16 %v729
      %v1365 = vunpack.c.l.b16 %v730
      %v1366 = vunpack.c.l.b16 %v731
      %v1367 = vunpack.c.l.b16 %v732
      %v1368 = vunpack.c.l.b16 %v733
      %v1369 = vunpack.c.l.b16 %v734
      %v1370 = vunpack.c.l.b16 %v735
      %v1371 = vunpack.c.l.b16 %v736
      %v1372 = vunpack.c.l.b16 %v737
      %v1373 = vunpack.c.l.b16 %v738
      %v1374 = vunpack.c.l.b16 %v739
      %v1375 = vunpack.c.l.b16 %v740
      %v1376 = vunpack.c.l.b16 %v741
      %v1377 = vunpack.c.l.b16 %v742
      %v1378 = vunpack.c.l.b16 %v743
      %v1379 = vunpack.c.l.b16 %v744
      %v1380 = vunpack.c.l.b16 %v745
      %v1381 = vunpack.c.l.b16 %v746
      %v1382 = vunpack.c.l.b16 %v747
      %v1383 = vunpack.c.l.b16 %v748
      %v1384 = vunpack.c.l.b16 %v749
      %v1385 = vunpack.c.l.b16 %v750
      %v1386 = vunpack.c.l.b16 %v751
      %v1387 = vunpack.c.l.b16 %v752
      %v1388 = vunpack.c.l.b16 %v753
      %v1389 = vunpack.c.l.b16 %v754
      %v1390 = vunpack.c.l.b16 %v755
      %v1391 = vunpack.c.l.b16 %v756
      %v1392 = vunpack.c.l.b16 %v757
      %v1393 = vunpack.c.l.b16 %v758
      %v1394 = vunpack.c.l.b16 %v759
      %v1395 = vunpack.c.l.b16 %v760
      %v1396 = vunpack.c.l.b16 %v761
      %v1397 = vunpack.c.l.b16 %v762
      %v1398 = vunpack.c.l.b16 %v763
      %v1399 = vunpack.c.l.b16 %v764
      %v1400 = vunpack.c.l.b16 %v765
      %v1401 = vunpack.c.l.b16 %v766
      %v1402 = vunpack.c.l.b16 %v767
      %v1403 = vunpack.c.l.b16 %v768
      %v1404 = vunpack.c.l.b16 %v769
      %v1405 = vunpack.c.l.b16 %v770
      %v1406 = vunpack.c.l.b16 %v771
      %v1407 = vunpack.c.l.b16 %v772
      %v1408 = vunpack.c.l.b16 %v773
      %v1409 = vunpack.c.l.b16 %v774
      %v1410 = vunpack.c.l.b16 %v775
      %v1411 = vunpack.c.l.b16 %v776
      %v1412 = vunpack.c.l.b16 %v777
      %v1413 = vunpack.c.l.b16 %v778
      %v1414 = vunpack.c.l.b16 %v779
      %v1415 = vunpack.c.l.b16 %v780
      %v1416 = vunpack.c.l.b16 %v781
      %v1417 = vunpack.c.l.b16 %v782
      %v1418 = vunpack.c.l.b16 %v783
      %v1419 = vunpack.c.l.b16 %v784
      %v1420 = vunpack.c.l.b16 %v785
      %v1421 = vunpack.c.l.b16 %v786
      %v1422 = vunpack.c.l.b16 %v787
      %v1423 = vunpack.c.l.b16 %v788
      %v1424 = vunpack.c.l.b16 %v789
      %v1425 = vunpack.c.l.b16 %v790
      %v1426 = vunpack.c.l.b16 %v791
      %v1427 = vunpack.c.l.b16 %v792
      %v1428 = vunpack.c.l.b16 %v793
      %v1429 = vunpack.c.l.b16 %v794
      %v1430 = vunpack.c.l.b16 %v795
      %v1431 = vpack.c.b16 %v1176, %v1175
      %v1432 = vpack.c.b16 %v1178, %v1177
      %v1433 = vpack.c.b16 %v1180, %v1179
      %v1434 = vpack.c.b16 %v1182, %v1181
      %v1435 = vpack.c.b16 %v1184, %v1183
      %v1436 = vpack.c.b16 %v1186, %v1185
      %v1437 = vpack.c.b16 %v1188, %v1187
      %v1438 = vpack.c.b16 %v1190, %v1189
      %v1439 = vpack.c.b16 %v1192, %v1191
      %v1440 = vpack.c.b16 %v1194, %v1193
      %v1441 = vpack.c.b16 %v1196, %v1195
      %v1442 = vpack.c.b16 %v1198, %v1197
      %v1443 = vpack.c.b16 %v1200, %v1199
      %v1444 = vpack.c.b16 %v1202, %v1201
      %v1445 = vpack.c.b16 %v1204, %v1203
      %v1446 = vpack.c.b16 %v1206, %v1205
      %v1447 = vpack.c.b16 %v1208, %v1207
      %v1448 = vpack.c.b16 %v1210, %v1209
      %v1449 = vpack.c.b16 %v1212, %v1211
      %v1450 = vpack.c.b16 %v1214, %v1213
      %v1451 = vpack.c.b16 %v1216, %v1215
      %v1452 = vpack.c.b16 %v1218, %v1217
      %v1453 = vpack.c.b16 %v1220, %v1219
      %v1454 = vpack.c.b16 %v1222, %v1221
      %v1455 = vpack.c.b16 %v1224, %v1223
      %v1456 = vpack.c.b16 %v1226, %v1225
      %v1457 = vpack.c.b16 %v1228, %v1227
      %v1458 = vpack.c.b16 %v1230, %v1229
      %v1459 = vpack.c.b16 %v1232, %v1231
      %v1460 = vpack.c.b16 %v1234, %v1233
      %v1461 = vpack.c.b16 %v1236, %v1235
      %v1462 = vpack.c.b16 %v1238, %v1237
      %v1463 = vpack.c.b16 %v1240, %v1239
      %v1464 = vpack.c.b16 %v1242, %v1241
      %v1465 = vpack.c.b16 %v1244, %v1243
      %v1466 = vpack.c.b16 %v1246, %v1245
      %v1467 = vpack.c.b16 %v1248, %v1247
      %v1468 = vpack.c.b16 %v1250, %v1249
      %v1469 = vpack.c.b16 %v1252, %v1251
      %v1470 = vpack.c.b16 %v1254, %v1253
      %v1471 = vpack.c.b16 %v1256, %v1255
      %v1472 = vpack.c.b16 %v1258, %v1257
      %v1473 = vpack.c.b16 %v1260, %v1259
      %v1474 = vpack.c.b16 %v1262, %v1261
      %v1475 = vpack.c.b16 %v1264, %v1263
      %v1476 = vpack.c.b16 %v1266, %v1265
      %v1477 = vpack.c.b16 %v1268, %v1267
      %v1478 = vpack.c.b16 %v1270, %v1269
      %v1479 = vpack.c.b16 %v1272, %v1271
      %v1480 = vpack.c.b16 %v1274, %v1273
      %v1481 = vpack.c.b16 %v1276, %v1275
      %v1482 = vpack.c.b16 %v1278, %v1277
      %v1483 = vpack.c.b16 %v1280, %v1279
      %v1484 = vpack.c.b16 %v1282, %v1281
      %v1485 = vpack.c.b16 %v1284, %v1283
      %v1486 = vpack.c.b16 %v1286, %v1285
      %v1487 = vpack.c.b16 %v1288, %v1287
      %v1488 = vpack.c.b16 %v1290, %v1289
      %v1489 = vpack.c.b16 %v1292, %v1291
      %v1490 = vpack.c.b16 %v1294, %v1293
      %v1491 = vpack.c.b16 %v1296, %v1295
      %v1492 = vpack.c.b16 %v1298, %v1297
      %v1493 = vpack.c.b16 %v1300, %v1299
      %v1494 = vpack.c.b16 %v1302, %v1301
      %v1495 = vpack.c.b16 %v1304, %v1303
      %v1496 = vpack.c.b16 %v1306, %v1305
      %v1497 = vpack.c.b16 %v1308, %v1307
      %v1498 = vpack.c.b16 %v1310, %v1309
      %v1499 = vpack.c.b16 %v1312, %v1311
      %v1500 = vpack.c.b16 %v1314, %v1313
      %v1501 = vpack.c.b16 %v1316, %v1315
      %v1502 = vpack.c.b16 %v1318, %v1317
      %v1503 = vpack.c.b16 %v1320, %v1319
      %v1504 = vpack.c.b16 %v1322, %v1321
      %v1505 = vpack.c.b16 %v1324, %v1323
      %v1506 = vpack.c.b16 %v1326, %v1325
      %v1507 = vpack.c.b16 %v1328, %v1327
      %v1508 = vpack.c.b16 %v1330, %v1329
      %v1509 = vpack.c.b16 %v1332, %v1331
      %v1510 = vpack.c.b16 %v1334, %v1333
      %v1511 = vpack.c.b16 %v1336, %v1335
      %v1512 = vpack.c.b16 %v1338, %v1337
      %v1513 = vpack.c.b16 %v1340, %v1339
      %v1514 = vpack.c.b16 %v1342, %v1341
      %v1515 = vpack.c.b16 %v1344, %v1343
      %v1516 = vpack.c.b16 %v1346, %v1345
      %v1517 = vpack.c.b16 %v1348, %v1347
      %v1518 = vpack.c.b16 %v1350, %v1349
      %v1519 = vpack.c.b16 %v1352, %v1351
      %v1520 = vpack.c.b16 %v1354, %v1353
      %v1521 = vpack.c.b16 %v1356, %v1355
      %v1522 = vpack.c.b16 %v1358, %v1357
      %v1523 = vpack.c.b16 %v1360, %v1359
      %v1524 = vpack.c.b16 %v1362, %v1361
      %v1525 = vpack.c.b16 %v1364, %v1363
      %v1526 = vpack.c.b16 %v1366, %v1365
      %v1527 = vpack.c.b16 %v1368, %v1367
      %v1528 = vpack.c.b16 %v1370, %v1369
      %v1529 = vpack.c.b16 %v1372, %v1371
      %v1530 = vpack.c.b16 %v1374, %v1373
      %v1531 = vpack.c.b16 %v1376, %v1375
      %v1532 = vpack.c.b16 %v1378, %v1377
      %v1533 = vpack.c.b16 %v1380, %v1379
      %v1534 = vpack.c.b16 %v1382, %v1381
      %v1535 = vpack.c.b16 %v1384, %v1383
      %v1536 = vpack.c.b16 %v1386, %v1385
      %v1537 = vpack.c.b16 %v1388, %v1387
      %v1538 = vpack.c.b16 %v1390, %v1389
      %v1539 = vpack.c.b16 %v1392, %v1391
      %v1540 = vpack.c.b16 %v1394, %v1393
      %v1541 = vpack.c.b16 %v1396, %v1395
      %v1542 = vpack.c.b16 %v1398, %v1397
      %v1543 = vpack.c.b16 %v1400, %v1399
      %v1544 = vpack.c.b16 %v1402, %v1401
      %v1545 = vpack.c.b16 %v1404, %v1403
      %v1546 = vpack.c.b16 %v1406, %v1405
      %v1547 = vpack.c.b16 %v1408, %v1407
      %v1548 = vpack.c.b16 %v1410, %v1409
      %v1549 = vpack.c.b16 %v1412, %v1411
      %v1550 = vpack.c.b16 %v1414, %v1413
      %v1551 = vpack.c.b16 %v1416, %v1415
      %v1552 = vpack.c.b16 %v1418, %v1417
      %v1553 = vpack.c.b16 %v1420, %v1419
      %v1554 = vpack.c.b16 %v1422, %v1421
      %v1555 = vpack.c.b16 %v1424, %v1423
      %v1556 = vpack.c.b16 %v1426, %v1425
      %v1557 = vpack.c.b16 %v1428, %v1427
      %v1558 = vpack.c.b16 %v1430, %v1429
      %1687 = vmatprep.subr.bf16.mxu0 0
      %1688 = vmatpush1.bf16.msra.mxu0 %v1431
      %1689 = vmatprep.subr.bf16.mxu0 0
      %1690 = vmatpush1.bf16.msra.mxu0 %v1432
      %1691 = vmatprep.subr.bf16.mxu0 0
      %1692 = vmatpush1.bf16.msra.mxu0 %v1433
      %1693 = vmatprep.subr.bf16.mxu0 0
      %1694 = vmatpush1.bf16.msra.mxu0 %v1434
      %1695 = vmatprep.subr.bf16.mxu0 0
      %1696 = vmatpush1.bf16.msra.mxu0 %v1435
      %1697 = vmatprep.subr.bf16.mxu0 0
      %1698 = vmatpush1.bf16.msra.mxu0 %v1436
      %1699 = vmatprep.subr.bf16.mxu0 0
      %1700 = vmatpush1.bf16.msra.mxu0 %v1437
      %1701 = vmatprep.subr.bf16.mxu0 0
      %1702 = vmatpush1.bf16.msra.mxu0 %v1438
      %1703 = vmatprep.subr.bf16.mxu0 0
      %1704 = vmatpush1.bf16.msra.mxu0 %v1439
      %1705 = vmatprep.subr.bf16.mxu0 0
      %1706 = vmatpush1.bf16.msra.mxu0 %v1440
      %1707 = vmatprep.subr.bf16.mxu0 0
      %1708 = vmatpush1.bf16.msra.mxu0 %v1441
      %1709 = vmatprep.subr.bf16.mxu0 0
      %1710 = vmatpush1.bf16.msra.mxu0 %v1442
      %1711 = vmatprep.subr.bf16.mxu0 0
      %1712 = vmatpush1.bf16.msra.mxu0 %v1443
      %1713 = vmatprep.subr.bf16.mxu0 0
      %1714 = vmatpush1.bf16.msra.mxu0 %v1444
      %1715 = vmatprep.subr.bf16.mxu0 0
      %1716 = vmatpush1.bf16.msra.mxu0 %v1445
      %1717 = vmatprep.subr.bf16.mxu0 0
      %1718 = vmatpush1.bf16.msra.mxu0 %v1446
      %1719 = vmatprep.mubr.bf16.mxu0 %v841
      %1720 = vmatmul.mubr.bf16.gmra.mrb[0].mxu0 %v827
      %v1721 = vpop.f32.mrb[0].mxu0
      %v1722 = vadd.f32 %v801, %v1721
      %v1723 = vpop.f32.mrb[0].mxu0
      %v1724 = vpop.f32.mrb[0].mxu0
      %v1725 = vpop.f32.mrb[0].mxu0
      %1726 = vdwg.mxu0
      %1727 = vmatprep.subr.bf16.mxu0 0
      %1728 = vmatpush1.bf16.msra.mxu0 %v1447
      %1729 = vmatprep.subr.bf16.mxu0 0
      %1730 = vmatpush1.bf16.msra.mxu0 %v1448
      %1731 = vmatprep.subr.bf16.mxu0 0
      %1732 = vmatpush1.bf16.msra.mxu0 %v1449
      %1733 = vmatprep.subr.bf16.mxu0 0
      %1734 = vmatpush1.bf16.msra.mxu0 %v1450
      %1735 = vmatprep.subr.bf16.mxu0 0
      %1736 = vmatpush1.bf16.msra.mxu0 %v1451
      %1737 = vmatprep.subr.bf16.mxu0 0
      %1738 = vmatpush1.bf16.msra.mxu0 %v1452
      %1739 = vmatprep.subr.bf16.mxu0 0
      %1740 = vmatpush1.bf16.msra.mxu0 %v1453
      %1741 = vmatprep.subr.bf16.mxu0 0
      %1742 = vmatpush1.bf16.msra.mxu0 %v1454
      %1743 = vmatprep.subr.bf16.mxu0 0
      %1744 = vmatpush1.bf16.msra.mxu0 %v1455
      %1745 = vmatprep.subr.bf16.mxu0 0
      %1746 = vmatpush1.bf16.msra.mxu0 %v1456
      %1747 = vmatprep.subr.bf16.mxu0 0
      %1748 = vmatpush1.bf16.msra.mxu0 %v1457
      %1749 = vmatprep.subr.bf16.mxu0 0
      %1750 = vmatpush1.bf16.msra.mxu0 %v1458
      %1751 = vmatprep.subr.bf16.mxu0 0
      %1752 = vmatpush1.bf16.msra.mxu0 %v1459
      %1753 = vmatprep.subr.bf16.mxu0 0
      %1754 = vmatpush1.bf16.msra.mxu0 %v1460
      %1755 = vmatprep.subr.bf16.mxu0 0
      %1756 = vmatpush1.bf16.msra.mxu0 %v1461
      %1757 = vmatprep.subr.bf16.mxu0 0
      %1758 = vmatpush1.bf16.msra.mxu0 %v1462
      %1759 = vmatprep.mubr.bf16.mxu0 %v851
      %1760 = vmatmul.mubr.bf16.gmra.mrb[0].mxu0 %v849
      %v1761 = vpop.f32.mrb[0].mxu0
      %v1762 = vadd.f32 %v1722, %v1761
      %v1763 = vpop.f32.mrb[0].mxu0
      %v1764 = vpop.f32.mrb[0].mxu0
      %v1765 = vpop.f32.mrb[0].mxu0
      %1766 = vdwg.mxu0
      %1767 = vmatprep.subr.bf16.mxu0 0
      %1768 = vmatpush1.bf16.msra.mxu0 %v1463
      %1769 = vmatprep.subr.bf16.mxu0 0
      %1770 = vmatpush1.bf16.msra.mxu0 %v1464
      %1771 = vmatprep.subr.bf16.mxu0 0
      %1772 = vmatpush1.bf16.msra.mxu0 %v1465
      %1773 = vmatprep.subr.bf16.mxu0 0
      %1774 = vmatpush1.bf16.msra.mxu0 %v1466
      %1775 = vmatprep.subr.bf16.mxu0 0
      %1776 = vmatpush1.bf16.msra.mxu0 %v1467
      %1777 = vmatprep.subr.bf16.mxu0 0
      %1778 = vmatpush1.bf16.msra.mxu0 %v1468
      %1779 = vmatprep.subr.bf16.mxu0 0
      %1780 = vmatpush1.bf16.msra.mxu0 %v1469
      %1781 = vmatprep.subr.bf16.mxu0 0
      %1782 = vmatpush1.bf16.msra.mxu0 %v1470
      %1783 = vmatprep.subr.bf16.mxu0 0
      %1784 = vmatpush1.bf16.msra.mxu0 %v1471
      %1785 = vmatprep.subr.bf16.mxu0 0
      %1786 = vmatpush1.bf16.msra.mxu0 %v1472
      %1787 = vmatprep.subr.bf16.mxu0 0
      %1788 = vmatpush1.bf16.msra.mxu0 %v1473
      %1789 = vmatprep.subr.bf16.mxu0 0
      %1790 = vmatpush1.bf16.msra.mxu0 %v1474
      %1791 = vmatprep.subr.bf16.mxu0 0
      %1792 = vmatpush1.bf16.msra.mxu0 %v1475
      %1793 = vmatprep.subr.bf16.mxu0 0
      %1794 = vmatpush1.bf16.msra.mxu0 %v1476
      %1795 = vmatprep.subr.bf16.mxu0 0
      %1796 = vmatpush1.bf16.msra.mxu0 %v1477
      %1797 = vmatprep.subr.bf16.mxu0 0
      %1798 = vmatpush1.bf16.msra.mxu0 %v1478
      %1799 = vmatprep.mubr.bf16.mxu0 %v848
      %1800 = vmatmul.mubr.bf16.gmra.mrb[0].mxu0 %v834
      %v1801 = vpop.f32.mrb[0].mxu0
      %v1802 = vadd.f32 %v1762, %v1801
      %v1803 = vpop.f32.mrb[0].mxu0
      %v1804 = vpop.f32.mrb[0].mxu0
      %v1805 = vpop.f32.mrb[0].mxu0
      %1806 = vdwg.mxu0
      %1807 = vmatprep.subr.bf16.mxu0 0
      %1808 = vmatpush1.bf16.msra.mxu0 %v1479
      %1809 = vmatprep.subr.bf16.mxu0 0
      %1810 = vmatpush1.bf16.msra.mxu0 %v1480
      %1811 = vmatprep.subr.bf16.mxu0 0
      %1812 = vmatpush1.bf16.msra.mxu0 %v1481
      %1813 = vmatprep.subr.bf16.mxu0 0
      %1814 = vmatpush1.bf16.msra.mxu0 %v1482
      %1815 = vmatprep.subr.bf16.mxu0 0
      %1816 = vmatpush1.bf16.msra.mxu0 %v1483
      %1817 = vmatprep.subr.bf16.mxu0 0
      %1818 = vmatpush1.bf16.msra.mxu0 %v1484
      %1819 = vmatprep.subr.bf16.mxu0 0
      %1820 = vmatpush1.bf16.msra.mxu0 %v1485
      %1821 = vmatprep.subr.bf16.mxu0 0
      %1822 = vmatpush1.bf16.msra.mxu0 %v1486
      %1823 = vmatprep.subr.bf16.mxu0 0
      %1824 = vmatpush1.bf16.msra.mxu0 %v1487
      %1825 = vmatprep.subr.bf16.mxu0 0
      %1826 = vmatpush1.bf16.msra.mxu0 %v1488
      %1827 = vmatprep.subr.bf16.mxu0 0
      %1828 = vmatpush1.bf16.msra.mxu0 %v1489
      %1829 = vmatprep.subr.bf16.mxu0 0
      %1830 = vmatpush1.bf16.msra.mxu0 %v1490
      %1831 = vmatprep.subr.bf16.mxu0 0
      %1832 = vmatpush1.bf16.msra.mxu0 %v1491
      %1833 = vmatprep.subr.bf16.mxu0 0
      %1834 = vmatpush1.bf16.msra.mxu0 %v1492
      %1835 = vmatprep.subr.bf16.mxu0 0
      %1836 = vmatpush1.bf16.msra.mxu0 %v1493
      %1837 = vmatprep.subr.bf16.mxu0 0
      %1838 = vmatpush1.bf16.msra.mxu0 %v1494
      %1839 = vmatprep.mubr.bf16.mxu0 %v852
      %1840 = vmatmul.mubr.bf16.gmra.mrb[0].mxu0 %v850
      %v1841 = vpop.f32.mrb[0].mxu0
      %v1842 = vadd.f32 %v1802, %v1841
      %v1843 = vpop.f32.mrb[0].mxu0
      %v1844 = vpop.f32.mrb[0].mxu0
      %v1845 = vpop.f32.mrb[0].mxu0
      %1846 = vdwg.mxu0
      %1847 = vmatprep.subr.bf16.mxu0 0
      %1848 = vmatpush1.bf16.msra.mxu0 %v1495
      %1849 = vmatprep.subr.bf16.mxu0 0
      %1850 = vmatpush1.bf16.msra.mxu0 %v1496
      %1851 = vmatprep.subr.bf16.mxu0 0
      %1852 = vmatpush1.bf16.msra.mxu0 %v1497
      %1853 = vmatprep.subr.bf16.mxu0 0
      %1854 = vmatpush1.bf16.msra.mxu0 %v1498
      %1855 = vmatprep.subr.bf16.mxu0 0
      %1856 = vmatpush1.bf16.msra.mxu0 %v1499
      %1857 = vmatprep.subr.bf16.mxu0 0
      %1858 = vmatpush1.bf16.msra.mxu0 %v1500
      %1859 = vmatprep.subr.bf16.mxu0 0
      %1860 = vmatpush1.bf16.msra.mxu0 %v1501
      %1861 = vmatprep.subr.bf16.mxu0 0
      %1862 = vmatpush1.bf16.msra.mxu0 %v1502
      %1863 = vmatprep.subr.bf16.mxu0 0
      %1864 = vmatpush1.bf16.msra.mxu0 %v1503
      %1865 = vmatprep.subr.bf16.mxu0 0
      %1866 = vmatpush1.bf16.msra.mxu0 %v1504
      %1867 = vmatprep.subr.bf16.mxu0 0
      %1868 = vmatpush1.bf16.msra.mxu0 %v1505
      %1869 = vmatprep.subr.bf16.mxu0 0
      %1870 = vmatpush1.bf16.msra.mxu0 %v1506
      %1871 = vmatprep.subr.bf16.mxu0 0
      %1872 = vmatpush1.bf16.msra.mxu0 %v1507
      %1873 = vmatprep.subr.bf16.mxu0 0
      %1874 = vmatpush1.bf16.msra.mxu0 %v1508
      %1875 = vmatprep.subr.bf16.mxu0 0
      %1876 = vmatpush1.bf16.msra.mxu0 %v1509
      %1877 = vmatprep.subr.bf16.mxu0 0
      %1878 = vmatpush1.bf16.msra.mxu0 %v1510
      %1879 = vmatprep.mubr.bf16.mxu0 %v891
      %1880 = vmatmul.mubr.bf16.gmra.mrb[0].mxu0 %v877
      %v1881 = vpop.f32.mrb[0].mxu0
      %v1882 = vadd.f32 %v1842, %v1881
      %v1883 = vpop.f32.mrb[0].mxu0
      %v1884 = vpop.f32.mrb[0].mxu0
      %v1885 = vpop.f32.mrb[0].mxu0
      %1886 = vdwg.mxu0
      %1887 = vmatprep.subr.bf16.mxu0 0
      %1888 = vmatpush1.bf16.msra.mxu0 %v1511
      %1889 = vmatprep.subr.bf16.mxu0 0
      %1890 = vmatpush1.bf16.msra.mxu0 %v1512
      %1891 = vmatprep.subr.bf16.mxu0 0
      %1892 = vmatpush1.bf16.msra.mxu0 %v1513
      %1893 = vmatprep.subr.bf16.mxu0 0
      %1894 = vmatpush1.bf16.msra.mxu0 %v1514
      %1895 = vmatprep.subr.bf16.mxu0 0
      %1896 = vmatpush1.bf16.msra.mxu0 %v1515
      %1897 = vmatprep.subr.bf16.mxu0 0
      %1898 = vmatpush1.bf16.msra.mxu0 %v1516
      %1899 = vmatprep.subr.bf16.mxu0 0
      %1900 = vmatpush1.bf16.msra.mxu0 %v1517
      %1901 = vmatprep.subr.bf16.mxu0 0
      %1902 = vmatpush1.bf16.msra.mxu0 %v1518
      %1903 = vmatprep.subr.bf16.mxu0 0
      %1904 = vmatpush1.bf16.msra.mxu0 %v1519
      %1905 = vmatprep.subr.bf16.mxu0 0
      %1906 = vmatpush1.bf16.msra.mxu0 %v1520
      %1907 = vmatprep.subr.bf16.mxu0 0
      %1908 = vmatpush1.bf16.msra.mxu0 %v1521
      %1909 = vmatprep.subr.bf16.mxu0 0
      %1910 = vmatpush1.bf16.msra.mxu0 %v1522
      %1911 = vmatprep.subr.bf16.mxu0 0
      %1912 = vmatpush1.bf16.msra.mxu0 %v1523
      %1913 = vmatprep.subr.bf16.mxu0 0
      %1914 = vmatpush1.bf16.msra.mxu0 %v1524
      %1915 = vmatprep.subr.bf16.mxu0 0
      %1916 = vmatpush1.bf16.msra.mxu0 %v1525
      %1917 = vmatprep.subr.bf16.mxu0 0
      %1918 = vmatpush1.bf16.msra.mxu0 %v1526
      %1919 = vmatprep.mubr.bf16.mxu0 %v901
      %1920 = vmatmul.mubr.bf16.gmra.mrb[0].mxu0 %v899
      %v1921 = vpop.f32.mrb[0].mxu0
      %v1922 = vadd.f32 %v1882, %v1921
      %v1923 = vpop.f32.mrb[0].mxu0
      %v1924 = vpop.f32.mrb[0].mxu0
      %v1925 = vpop.f32.mrb[0].mxu0
      %1926 = vdwg.mxu0
      %1927 = vmatprep.subr.bf16.mxu0 0
      %1928 = vmatpush1.bf16.msra.mxu0 %v1527
      %1929 = vmatprep.subr.bf16.mxu0 0
      %1930 = vmatpush1.bf16.msra.mxu0 %v1528
      %1931 = vmatprep.subr.bf16.mxu0 0
      %1932 = vmatpush1.bf16.msra.mxu0 %v1529
      %1933 = vmatprep.subr.bf16.mxu0 0
      %1934 = vmatpush1.bf16.msra.mxu0 %v1530
      %1935 = vmatprep.subr.bf16.mxu0 0
      %1936 = vmatpush1.bf16.msra.mxu0 %v1531
      %1937 = vmatprep.subr.bf16.mxu0 0
      %1938 = vmatpush1.bf16.msra.mxu0 %v1532
      %1939 = vmatprep.subr.bf16.mxu0 0
      %1940 = vmatpush1.bf16.msra.mxu0 %v1533
      %1941 = vmatprep.subr.bf16.mxu0 0
      %1942 = vmatpush1.bf16.msra.mxu0 %v1534
      %1943 = vmatprep.subr.bf16.mxu0 0
      %1944 = vmatpush1.bf16.msra.mxu0 %v1535
      %1945 = vmatprep.subr.bf16.mxu0 0
      %1946 = vmatpush1.bf16.msra.mxu0 %v1536
      %1947 = vmatprep.subr.bf16.mxu0 0
      %1948 = vmatpush1.bf16.msra.mxu0 %v1537
      %1949 = vmatprep.subr.bf16.mxu0 0
      %1950 = vmatpush1.bf16.msra.mxu0 %v1538
      %1951 = vmatprep.subr.bf16.mxu0 0
      %1952 = vmatpush1.bf16.msra.mxu0 %v1539
      %1953 = vmatprep.subr.bf16.mxu0 0
      %1954 = vmatpush1.bf16.msra.mxu0 %v1540
      %1955 = vmatprep.subr.bf16.mxu0 0
      %1956 = vmatpush1.bf16.msra.mxu0 %v1541
      %1957 = vmatprep.subr.bf16.mxu0 0
      %1958 = vmatpush1.bf16.msra.mxu0 %v1542
      %1959 = vmatprep.mubr.bf16.mxu0 %v898
      %1960 = vmatmul.mubr.bf16.gmra.mrb[0].mxu0 %v884
      %v1961 = vpop.f32.mrb[0].mxu0
      %v1962 = vadd.f32 %v1922, %v1961
      %v1963 = vpop.f32.mrb[0].mxu0
      %v1964 = vpop.f32.mrb[0].mxu0
      %v1965 = vpop.f32.mrb[0].mxu0
      %1966 = vdwg.mxu0
      %1967 = vmatprep.subr.bf16.mxu0 0
      %1968 = vmatpush1.bf16.msra.mxu0 %v1543
      %1969 = vmatprep.subr.bf16.mxu0 0
      %1970 = vmatpush1.bf16.msra.mxu0 %v1544
      %1971 = vmatprep.subr.bf16.mxu0 0
      %1972 = vmatpush1.bf16.msra.mxu0 %v1545
      %1973 = vmatprep.subr.bf16.mxu0 0
      %1974 = vmatpush1.bf16.msra.mxu0 %v1546
      %1975 = vmatprep.subr.bf16.mxu0 0
      %1976 = vmatpush1.bf16.msra.mxu0 %v1547
      %1977 = vmatprep.subr.bf16.mxu0 0
      %1978 = vmatpush1.bf16.msra.mxu0 %v1548
      %1979 = vmatprep.subr.bf16.mxu0 0
      %1980 = vmatpush1.bf16.msra.mxu0 %v1549
      %1981 = vmatprep.subr.bf16.mxu0 0
      %1982 = vmatpush1.bf16.msra.mxu0 %v1550
      %1983 = vmatprep.subr.bf16.mxu0 0
      %1984 = vmatpush1.bf16.msra.mxu0 %v1551
      %1985 = vmatprep.subr.bf16.mxu0 0
      %1986 = vmatpush1.bf16.msra.mxu0 %v1552
      %1987 = vmatprep.subr.bf16.mxu0 0
      %1988 = vmatpush1.bf16.msra.mxu0 %v1553
      %1989 = vmatprep.subr.bf16.mxu0 0
      %1990 = vmatpush1.bf16.msra.mxu0 %v1554
      %1991 = vmatprep.subr.bf16.mxu0 0
      %1992 = vmatpush1.bf16.msra.mxu0 %v1555
      %1993 = vmatprep.subr.bf16.mxu0 0
      %1994 = vmatpush1.bf16.msra.mxu0 %v1556
      %1995 = vmatprep.subr.bf16.mxu0 0
      %1996 = vmatpush1.bf16.msra.mxu0 %v1557
      %1997 = vmatprep.subr.bf16.mxu0 0
      %1998 = vmatpush1.bf16.msra.mxu0 %v1558
      %1999 = vmatprep.mubr.bf16.mxu0 %v902
      %2000 = vmatmul.mubr.bf16.gmra.mrb[0].mxu0 %v900
      %v2001 = vpop.f32.mrb[0].mxu0
      %v2002 = vadd.f32 %v1962, %v2001
      %v2003 = vpop.f32.mrb[0].mxu0
      %v2004 = vpop.f32.mrb[0].mxu0
      %v2005 = vpop.f32.mrb[0].mxu0
      %2006 = vdwg.mxu0
      %vm2007 = vcmp.gt.f32.partialorder %v2002, 0.0
      %v2008 = vmul.f32 %v2002, 0.2
      %v2009 = vsel %vm2007, %v2002, %v2008
      %v2010 = vpack.c.bf16 %v2009, %v2009
      %2011 = vst [vmem:[%s307] sm:$0x3] %v2010
      %p2012 = scmp.lt.s32.totalorder %s19, 1
      %s2013 = scalar_select %p2012, %s19, 1
      %p2014 = scmp.lt.s32.totalorder %s20, 0
      %s2015 = scalar_select %p2014, %s20, 0
      %s2016 = sadd.s32 %s2015, %s2013
      %s2017 = smul.addr %s2016, 2
      %s2018 = scalar_lea.vmem %s4, %s2017
      // Predicated region
      $region37: #{discriminator_forward.8} parent=35 // pred_check
        %p2019 = pneg %p149
      $region38: #{discriminator_forward.8} parent=35 // pred_check_branch
        %2021 = sbr.rel (%p2019) target = $region40
      $region39: #{discriminator_forward.8} parent=35 // pred_region
        _
      $region40: #{discriminator_forward.8} parent=35 // pred_fallthru
        _
    $region36: #{discriminator_forward.8} parent=5 // pred_fallthru
      _
    %p2022 = scmp.le.s32.totalorder 2, %s10
    // Predicated region
    $region41: #{discriminator_forward.8} parent=5 // pred_check
      %p2023 = pneg %p2022
    $region42: #{discriminator_forward.8} parent=5 // pred_check_branch
      %2025 = sbr.rel (%p2023) target = $region44
    $region43: #{discriminator_forward.8} parent=5 // pred_region
      %s2026 = ssub.s32 %s10, 2
      // Predicated region
      $region45: #{discriminator_forward.8} parent=43 // pred_check
        %p2027 = pneg %p155
      $region46: #{discriminator_forward.8} parent=43 // pred_check_branch
        %2029 = sbr.rel (%p2027) target = $region48
      $region47: #{discriminator_forward.8} parent=43 // pred_region
        %p2030 = scmp.lt.s32.totalorder %s21, 1
        %s2031 = scalar_select %p2030, %s21, 1
        %p2032 = scmp.lt.s32.totalorder %s22, 0
        %s2033 = scalar_select %p2032, %s22, 0
        %s2034 = sadd.s32 %s2033, %s2031
        %s2035 = smul.addr %s2034, 2
        %s2036 = scalar_lea.vmem %s4, %s2035
      $region48: #{discriminator_forward.8} parent=43 // pred_fallthru
        _
    $region44: #{discriminator_forward.8} parent=5 // pred_fallthru
      _
  $region6: #{discriminator_forward.8} parent=0 // loop_footer
    %s14 = sadd.s32 1, %s10
  $region7: #{discriminator_forward.8} parent=0 // loop_footer_branch
    %9 = sbr.rel target = $region3
  $region8: #{discriminator_forward.8} parent=0 // loop_exit
    _

// kernel: discriminator_forward.9
$region0: #{discriminator_forward.9}
  #allocation0 [shape = 'u32[]', space=smem, size = 0x4, offset = 0x4, fixed_abs, tag = 'smem constant byte address 0x4 - core index']
  #allocation1 [shape = 'u32[144,128]{1,0:T(1,128)}', space=vmem, size = 0x12000, scoped, tag = 'internal scratch']
  #allocation2 [shape = 'f32[1,1]{1,0:T(1,128)S(1)}', space=vmem, size = 0x200, scoped, tag = 'scoped memory for discriminator_forward.9']
  %s0 = inlined_call_operand.vmem [shape: bf16[2,2,4,256], index: 0, kind: input, shape index: {}]
  %s1 = inlined_call_operand.vmem [shape: bf16[2048,128], index: 1, kind: input, shape index: {}]
  %s2 = inlined_call_operand.<no memory space> [shape: f32[1,1], index: 2, kind: input, shape index: {}]
  %s3 = inlined_call_operand.vmem [shape: f32[32,1], index: 3, kind: input, shape index: {}]
  %s4 = inlined_call_operand.vmem [shape: f32[1,32], index: 4, kind: input, shape index: {}]
  %s5 = inlined_call_operand.hbm [shape: f32[2,32,32], index: 5, kind: output, shape index: {}]
  %s6 = sld [smem:[#allocation0]]
  $region53: #{discriminator_forward.9} parent=0
    _
  %s8 = ssub.s32 1, %s6
  %s9 = scalar_select 0, %s8, %s6
  %v10 = vstv %s2
  %11 = vst [vmem:[#allocation2] sm:$0x1] %v10
  $region1: #{discriminator_forward.9} parent=0
    #allocation3 [shape = 'u8[32768]{0}', space=vmem, size = 0x8000, scoped, tag = 'output window, operand 0']
    #allocation4 [shape = 's32[2]{0}', space=sflag, size = 0x8, scoped, tag = 'scoped memory for discriminator_forward.9']
    %12 = vsyncpa [#allocation4], 0
    %s13 = scalar_lea.sflag [#allocation4], 1
    %14 = vsyncpa %s13, 0
    loop: start=0, step=1, limit=4
    $region2: #{discriminator_forward.9} parent=1 // loop_pre_header
      _
    $region3: #{discriminator_forward.9} parent=1 // loop_header
      %s16 = sphi 0, %s20
      %p17 = scmp.ge.s32.totalorder %s16, 4
      %s26 = sphi 0, %s28
      %s29 = sphi 0, %s26
      %s30 = sphi 0, %s29
      %s46 = sphi 0, %s30
      %s50 = sphi 0, %s50
      %s52 = sphi 0, %s50
      %s53 = sphi 0, %s52
      %s67 = sphi 0, %s53
      %s71 = sphi 0, %s71
      %s73 = sphi 0, %s71
      %s74 = sphi 0, %s73
      %s88 = sphi 0, %s74
      %s92 = sphi 0, %s92
      %s94 = sphi 0, %s92
      %s95 = sphi 0, %s94
      %s109 = sphi 0, %s95
      %s113 = sphi 0, %s113
      %s115 = sphi 0, %s113
      %s116 = sphi 0, %s115
      %s130 = sphi 0, %s116
      %s136 = sphi 0, %s138
      %s139 = sphi 0, %s136
      %s140 = sphi 0, %s139
      %s156 = sphi 0, %s140
    $region4: #{discriminator_forward.9} parent=1 // loop_header_branch
      %19 = sbr.rel (%p17) target = $region8
    $region5: #{discriminator_forward.9} parent=1 // loop_body
      %s21 = ssub.s32 %s16, 1
      %s22 = ssub.s32 %s16, 2
      %s23 = sadd.s32 %s16, 1
      %s24 = ssub.s32 %s16, %s23
      %p25 = scmp.eq.s32.totalorder %s24, 0
      %s27 = sadd.s32 %s26, 1
      %s28 = scalar_select %p25, %s26, %s27
      %p31 = pneg %p25
      %p32 = scmp.eq.s32.totalorder %s16, 1
      %p33 = por %p31, %p32
      %p34 = scmp.ne.s32.totalorder %s26, %s29
      %p35 = scmp.eq.s32.totalorder %s16, 0
      %p36 = por %p34, %p35
      %p37 = scmp.ne.s32.totalorder %s26, %s29
      %p38 = scmp.eq.s32.totalorder %s21, 1
      %p39 = por %p37, %p38
      %p40 = scmp.ne.s32.totalorder %s29, %s30
      %p41 = scmp.eq.s32.totalorder %s21, 0
      %p42 = por %p40, %p41
      %p43 = scmp.ne.s32.totalorder %s29, %s30
      %p44 = scmp.eq.s32.totalorder %s22, 1
      %p45 = por %p43, %p44
      %p47 = scmp.ne.s32.totalorder %s30, %s46
      %p48 = scmp.eq.s32.totalorder %s22, 0
      %p49 = por %p47, %p48
      %s51 = sadd.s32 %s50, 1
      %p54 = scmp.eq.s32.totalorder %s16, 1
      %p55 = scmp.ne.s32.totalorder %s50, %s52
      %p56 = scmp.eq.s32.totalorder %s16, 0
      %p57 = por %p55, %p56
      %p58 = scmp.ne.s32.totalorder %s50, %s52
      %p59 = scmp.eq.s32.totalorder %s21, 1
      %p60 = por %p58, %p59
      %p61 = scmp.ne.s32.totalorder %s52, %s53
      %p62 = scmp.eq.s32.totalorder %s21, 0
      %p63 = por %p61, %p62
      %p64 = scmp.ne.s32.totalorder %s52, %s53
      %p65 = scmp.eq.s32.totalorder %s22, 1
      %p66 = por %p64, %p65
      %p68 = scmp.ne.s32.totalorder %s53, %s67
      %p69 = scmp.eq.s32.totalorder %s22, 0
      %p70 = por %p68, %p69
      %s72 = sadd.s32 %s71, 1
      %p75 = scmp.eq.s32.totalorder %s16, 1
      %p76 = scmp.ne.s32.totalorder %s71, %s73
      %p77 = scmp.eq.s32.totalorder %s16, 0
      %p78 = por %p76, %p77
      %p79 = scmp.ne.s32.totalorder %s71, %s73
      %p80 = scmp.eq.s32.totalorder %s21, 1
      %p81 = por %p79, %p80
      %p82 = scmp.ne.s32.totalorder %s73, %s74
      %p83 = scmp.eq.s32.totalorder %s21, 0
      %p84 = por %p82, %p83
      %p85 = scmp.ne.s32.totalorder %s73, %s74
      %p86 = scmp.eq.s32.totalorder %s22, 1
      %p87 = por %p85, %p86
      %p89 = scmp.ne.s32.totalorder %s74, %s88
      %p90 = scmp.eq.s32.totalorder %s22, 0
      %p91 = por %p89, %p90
      %s93 = sadd.s32 %s92, 1
      %p96 = scmp.eq.s32.totalorder %s16, 1
      %p97 = scmp.ne.s32.totalorder %s92, %s94
      %p98 = scmp.eq.s32.totalorder %s16, 0
      %p99 = por %p97, %p98
      %p100 = scmp.ne.s32.totalorder %s92, %s94
      %p101 = scmp.eq.s32.totalorder %s21, 1
      %p102 = por %p100, %p101
      %p103 = scmp.ne.s32.totalorder %s94, %s95
      %p104 = scmp.eq.s32.totalorder %s21, 0
      %p105 = por %p103, %p104
      %p106 = scmp.ne.s32.totalorder %s94, %s95
      %p107 = scmp.eq.s32.totalorder %s22, 1
      %p108 = por %p106, %p107
      %p110 = scmp.ne.s32.totalorder %s95, %s109
      %p111 = scmp.eq.s32.totalorder %s22, 0
      %p112 = por %p110, %p111
      %s114 = sadd.s32 %s113, 1
      %p117 = scmp.eq.s32.totalorder %s16, 1
      %p118 = scmp.ne.s32.totalorder %s113, %s115
      %p119 = scmp.eq.s32.totalorder %s16, 0
      %p120 = por %p118, %p119
      %p121 = scmp.ne.s32.totalorder %s113, %s115
      %p122 = scmp.eq.s32.totalorder %s21, 1
      %p123 = por %p121, %p122
      %p124 = scmp.ne.s32.totalorder %s115, %s116
      %p125 = scmp.eq.s32.totalorder %s21, 0
      %p126 = por %p124, %p125
      %p127 = scmp.ne.s32.totalorder %s115, %s116
      %p128 = scmp.eq.s32.totalorder %s22, 1
      %p129 = por %p127, %p128
      %p131 = scmp.ne.s32.totalorder %s116, %s130
      %p132 = scmp.eq.s32.totalorder %s22, 0
      %p133 = por %p131, %p132
      %s134 = ssub.s32 %s16, %s23
      %p135 = scmp.eq.s32.totalorder %s134, 0
      %s137 = sadd.s32 %s136, 1
      %s138 = scalar_select %p135, %s136, %s137
      %p141 = pneg %p135
      %p142 = scmp.eq.s32.totalorder %s16, 1
      %p143 = por %p141, %p142
      %p144 = scmp.ne.s32.totalorder %s136, %s139
      %p145 = scmp.eq.s32.totalorder %s16, 0
      %p146 = por %p144, %p145
      %p147 = scmp.ne.s32.totalorder %s136, %s139
      %p148 = scmp.eq.s32.totalorder %s21, 1
      %p149 = por %p147, %p148
      %p150 = scmp.ne.s32.totalorder %s139, %s140
      %p151 = scmp.eq.s32.totalorder %s21, 0
      %p152 = por %p150, %p151
      %p153 = scmp.ne.s32.totalorder %s139, %s140
      %p154 = scmp.eq.s32.totalorder %s22, 1
      %p155 = por %p153, %p154
      %p157 = scmp.ne.s32.totalorder %s140, %s156
      %p158 = scmp.eq.s32.totalorder %s22, 0
      %p159 = por %p157, %p158
      %p160 = scmp.le.s32.totalorder 1, %s16
      %p161 = scmp.lt.s32.totalorder %s16, 3
      %p162 = pnand %p160, %p161
      %p163 = pneg %p162
      // Predicated region
      $region9: #{discriminator_forward.9} parent=5 // pred_check
        _
      $region10: #{discriminator_forward.9} parent=5 // pred_check_branch
        %165 = sbr.rel (%p162) target = $region12
      $region11: #{discriminator_forward.9} parent=5 // pred_region
        %s166 = ssub.s32 %s16, 1
        // Predicated region
        $region13: #{discriminator_forward.9} parent=11 // pred_check
          %p167 = pneg %p63
        $region14: #{discriminator_forward.9} parent=11 // pred_check_branch
          %169 = sbr.rel (%p167) target = $region16
        $region15: #{discriminator_forward.9} parent=11 // pred_region
          _
        $region16: #{discriminator_forward.9} parent=11 // pred_fallthru
          _
        // Predicated region
        $region17: #{discriminator_forward.9} parent=11 // pred_check
          %p170 = pneg %p84
        $region18: #{discriminator_forward.9} parent=11 // pred_check_branch
          %172 = sbr.rel (%p170) target = $region20
        $region19: #{discriminator_forward.9} parent=11 // pred_region
          _
        $region20: #{discriminator_forward.9} parent=11 // pred_fallthru
          _
        // Predicated region
        $region21: #{discriminator_forward.9} parent=11 // pred_check
          %p173 = pneg %p105
        $region22: #{discriminator_forward.9} parent=11 // pred_check_branch
          %175 = sbr.rel (%p173) target = $region24
        $region23: #{discriminator_forward.9} parent=11 // pred_region
          _
        $region24: #{discriminator_forward.9} parent=11 // pred_fallthru
          _
        // Predicated region
        $region25: #{discriminator_forward.9} parent=11 // pred_check
          %p176 = pneg %p126
        $region26: #{discriminator_forward.9} parent=11 // pred_check_branch
          %178 = sbr.rel (%p176) target = $region28
        $region27: #{discriminator_forward.9} parent=11 // pred_region
          _
        $region28: #{discriminator_forward.9} parent=11 // pred_fallthru
          _
      $region12: #{discriminator_forward.9} parent=5 // pred_fallthru
        _
      %p179 = scmp.lt.s32.totalorder %s16, 2
      // Predicated region
      $region29: #{discriminator_forward.9} parent=5 // pred_check
        %p180 = pneg %p179
      $region30: #{discriminator_forward.9} parent=5 // pred_check_branch
        %182 = sbr.rel (%p180) target = $region32
      $region31: #{discriminator_forward.9} parent=5 // pred_region
        // Predicated region
        $region33: #{discriminator_forward.9} parent=31 // pred_check
          %p183 = pneg %p36
        $region34: #{discriminator_forward.9} parent=31 // pred_check_branch
          %185 = sbr.rel (%p183) target = $region36
        $region35: #{discriminator_forward.9} parent=31 // pred_region
          %p186 = scmp.lt.s32.totalorder %s16, 1
          %s187 = scalar_select %p186, %s16, 1
          %s188 = smul.addr %s187, 4
          %s189 = smul.addr %s188, 2
          %s190 = scalar_lea.vmem %s0, %s189
        $region36: #{discriminator_forward.9} parent=31 // pred_fallthru
          _
      $region32: #{discriminator_forward.9} parent=5 // pred_fallthru
        _
      %p191 = scmp.le.s32.totalorder 1, %s16
      %p192 = scmp.lt.s32.totalorder %s16, 3
      %p193 = pnand %p191, %p192
      %p194 = pneg %p193
      // Predicated region
      $region37: #{discriminator_forward.9} parent=5 // pred_check
        _
      $region38: #{discriminator_forward.9} parent=5 // pred_check_branch
        %196 = sbr.rel (%p193) target = $region40
      $region39: #{discriminator_forward.9} parent=5 // pred_region
        %s197 = ssub.s32 %s16, 1
        %p198 = scmp.lt.s32.totalorder %s21, 1
        %s199 = scalar_select %p198, %s21, 1
        %s200 = smul.addr %s199, 4
        %s201 = smul.addr %s200, 2
        %s202 = scalar_lea.vmem %s0, %s201
        %p203 = pneg %p42
        %p204 = pneg %p39
        %p205 = pneg %p63
        %p206 = pneg %p60
        %p207 = pneg %p84
        %p208 = pneg %p81
        %p209 = pneg %p105
        %p210 = pneg %p102
        %p211 = pneg %p126
        %p212 = pneg %p123
        %p213 = pneg %p152
        %p214 = pneg %p149
        %s215 = sand.u32 %s139, 1
        %s216 = scalar_lea.sflag [#allocation4], %s215
        %s217 = sand.u32 %s139, 1
        %s218 = smul.addr %s217, 32
        %s219 = scalar_lea.vmem [#allocation3], %s218
        %p220 = scmp.lt.s32.totalorder %s21, 1
        %s221 = scalar_select %p220, %s21, 1
        %s222 = smul.addr %s221, 4
        %s223 = smul.addr %s222, 2
        %s224 = scalar_lea.vmem %s0, %s223
        %v226 = vld [vmem:[%s224] sm:$0xf]
        %v227 = vld [vmem:[%s224 + $0x4] sm:$0xf]
        %v230 = vunpack.c.l.s4 1983009808
        %v231 = vunpack.c.0.s8 %v230
        %v232 = vlaneseq
        %v233 = vshrl.u32 %v232, 7
        %v234 = vsub.s32 %v231, %v233
        %v235 = vrot.slane %v226, %v234
        %v236 = vcombine.high %v235, %v235
        %v239 = vshrl.u32 %v235, 16
        %v243 = vshrl.u32 %v236, 16
        %v246 = vrot.slane %v235, 1
        %v248 = vrot.slane %v236, 1
        %v250 = vrot.slane %v239, 1
        %v252 = vrot.slane %v243, 1
        %v256 = vunpack.c.l.s4 1983009808
        %v257 = vunpack.c.0.s8 %v256
        %v258 = vlaneseq
        %v259 = vshrl.u32 %v258, 7
        %v260 = vsub.s32 %v257, %v259
        %v261 = vrot.slane %v227, %v260
        %v262 = vcombine.high %v261, %v261
        %v265 = vshrl.u32 %v261, 16
        %v269 = vshrl.u32 %v262, 16
        %v272 = vrot.slane %v261, 1
        %v274 = vrot.slane %v262, 1
        %v276 = vrot.slane %v265, 1
        %v278 = vrot.slane %v269, 1
        %v280 = vld [vmem:[%s1] sm:$0xf]
        %v281 = vld [vmem:[%s1 + $0x4] sm:$0xf]
        %v282 = vld [vmem:[%s1 + $0x8] sm:$0xf]
        %v283 = vld [vmem:[%s1 + $0xc] sm:$0xf]
        %v284 = vld [vmem:[%s1 + $0x10] sm:$0xf]
        %v285 = vld [vmem:[%s1 + $0x14] sm:$0xf]
        %v286 = vld [vmem:[%s1 + $0x18] sm:$0xf]
        %v287 = vld [vmem:[%s1 + $0x1c] sm:$0xf]
        %v288 = vld [vmem:[%s1 + $0x20] sm:$0xf]
        %v289 = vld [vmem:[%s1 + $0x24] sm:$0xf]
        %v290 = vld [vmem:[%s1 + $0x28] sm:$0xf]
        %v291 = vld [vmem:[%s1 + $0x2c] sm:$0xf]
        %v292 = vld [vmem:[%s1 + $0x30] sm:$0xf]
        %v293 = vld [vmem:[%s1 + $0x34] sm:$0xf]
        %v294 = vld [vmem:[%s1 + $0x38] sm:$0xf]
        %v295 = vld [vmem:[%s1 + $0x3c] sm:$0xf]
        %v296 = vld [vmem:[%s1 + $0x40] sm:$0xf]
        %v297 = vld [vmem:[%s1 + $0x44] sm:$0xf]
        %v298 = vld [vmem:[%s1 + $0x48] sm:$0xf]
        %v299 = vld [vmem:[%s1 + $0x4c] sm:$0xf]
        %v300 = vld [vmem:[%s1 + $0x50] sm:$0xf]
        %v301 = vld [vmem:[%s1 + $0x54] sm:$0xf]
        %v302 = vld [vmem:[%s1 + $0x58] sm:$0xf]
        %v303 = vld [vmem:[%s1 + $0x5c] sm:$0xf]
        %v304 = vld [vmem:[%s1 + $0x60] sm:$0xf]
        %v305 = vld [vmem:[%s1 + $0x64] sm:$0xf]
        %v306 = vld [vmem:[%s1 + $0x68] sm:$0xf]
        %v307 = vld [vmem:[%s1 + $0x6c] sm:$0xf]
        %v308 = vld [vmem:[%s1 + $0x70] sm:$0xf]
        %v309 = vld [vmem:[%s1 + $0x74] sm:$0xf]
        %v310 = vld [vmem:[%s1 + $0x78] sm:$0xf]
        %v311 = vld [vmem:[%s1 + $0x7c] sm:$0xf]
        %v312 = vld [vmem:[%s1 + $0x80] sm:$0xf]
        %v313 = vld [vmem:[%s1 + $0x84] sm:$0xf]
        %v314 = vld [vmem:[%s1 + $0x88] sm:$0xf]
        %v315 = vld [vmem:[%s1 + $0x8c] sm:$0xf]
        %v316 = vld [vmem:[%s1 + $0x90] sm:$0xf]
        %v317 = vld [vmem:[%s1 + $0x94] sm:$0xf]
        %v318 = vld [vmem:[%s1 + $0x98] sm:$0xf]
        %v319 = vld [vmem:[%s1 + $0x9c] sm:$0xf]
        %v320 = vld [vmem:[%s1 + $0xa0] sm:$0xf]
        %v321 = vld [vmem:[%s1 + $0xa4] sm:$0xf]
        %v322 = vld [vmem:[%s1 + $0xa8] sm:$0xf]
        %v323 = vld [vmem:[%s1 + $0xac] sm:$0xf]
        %v324 = vld [vmem:[%s1 + $0xb0] sm:$0xf]
        %v325 = vld [vmem:[%s1 + $0xb4] sm:$0xf]
        %v326 = vld [vmem:[%s1 + $0xb8] sm:$0xf]
        %v327 = vld [vmem:[%s1 + $0xbc] sm:$0xf]
        %v328 = vld [vmem:[%s1 + $0xc0] sm:$0xf]
        %v329 = vld [vmem:[%s1 + $0xc4] sm:$0xf]
        %v330 = vld [vmem:[%s1 + $0xc8] sm:$0xf]
        %v331 = vld [vmem:[%s1 + $0xcc] sm:$0xf]
        %v332 = vld [vmem:[%s1 + $0xd0] sm:$0xf]
        %v333 = vld [vmem:[%s1 + $0xd4] sm:$0xf]
        %v334 = vld [vmem:[%s1 + $0xd8] sm:$0xf]
        %v335 = vld [vmem:[%s1 + $0xdc] sm:$0xf]
        %v336 = vld [vmem:[%s1 + $0xe0] sm:$0xf]
        %v337 = vld [vmem:[%s1 + $0xe4] sm:$0xf]
        %v338 = vld [vmem:[%s1 + $0xe8] sm:$0xf]
        %v339 = vld [vmem:[%s1 + $0xec] sm:$0xf]
        %v340 = vld [vmem:[%s1 + $0xf0] sm:$0xf]
        %v341 = vld [vmem:[%s1 + $0xf4] sm:$0xf]
        %v342 = vld [vmem:[%s1 + $0xf8] sm:$0xf]
        %v343 = vld [vmem:[%s1 + $0xfc] sm:$0xf]
        %v344 = vld [vmem:[%s1 + $0x100] sm:$0xf]
        %v345 = vld [vmem:[%s1 + $0x104] sm:$0xf]
        %v346 = vld [vmem:[%s1 + $0x108] sm:$0xf]
        %v347 = vld [vmem:[%s1 + $0x10c] sm:$0xf]
        %v348 = vld [vmem:[%s1 + $0x110] sm:$0xf]
        %v349 = vld [vmem:[%s1 + $0x114] sm:$0xf]
        %v350 = vld [vmem:[%s1 + $0x118] sm:$0xf]
        %v351 = vld [vmem:[%s1 + $0x11c] sm:$0xf]
        %v352 = vld [vmem:[%s1 + $0x120] sm:$0xf]
        %v353 = vld [vmem:[%s1 + $0x124] sm:$0xf]
        %v354 = vld [vmem:[%s1 + $0x128] sm:$0xf]
        %v355 = vld [vmem:[%s1 + $0x12c] sm:$0xf]
        %v356 = vld [vmem:[%s1 + $0x130] sm:$0xf]
        %v357 = vld [vmem:[%s1 + $0x134] sm:$0xf]
        %v358 = vld [vmem:[%s1 + $0x138] sm:$0xf]
        %v359 = vld [vmem:[%s1 + $0x13c] sm:$0xf]
        %v360 = vld [vmem:[%s1 + $0x140] sm:$0xf]
        %v361 = vld [vmem:[%s1 + $0x144] sm:$0xf]
        %v362 = vld [vmem:[%s1 + $0x148] sm:$0xf]
        %v363 = vld [vmem:[%s1 + $0x14c] sm:$0xf]
        %v364 = vld [vmem:[%s1 + $0x150] sm:$0xf]
        %v365 = vld [vmem:[%s1 + $0x154] sm:$0xf]
        %v366 = vld [vmem:[%s1 + $0x158] sm:$0xf]
        %v367 = vld [vmem:[%s1 + $0x15c] sm:$0xf]
        %v368 = vld [vmem:[%s1 + $0x160] sm:$0xf]
        %v369 = vld [vmem:[%s1 + $0x164] sm:$0xf]
        %v370 = vld [vmem:[%s1 + $0x168] sm:$0xf]
        %v371 = vld [vmem:[%s1 + $0x16c] sm:$0xf]
        %v372 = vld [vmem:[%s1 + $0x170] sm:$0xf]
        %v373 = vld [vmem:[%s1 + $0x174] sm:$0xf]
        %v374 = vld [vmem:[%s1 + $0x178] sm:$0xf]
        %v375 = vld [vmem:[%s1 + $0x17c] sm:$0xf]
        %v376 = vld [vmem:[%s1 + $0x180] sm:$0xf]
        %v377 = vld [vmem:[%s1 + $0x184] sm:$0xf]
        %v378 = vld [vmem:[%s1 + $0x188] sm:$0xf]
        %v379 = vld [vmem:[%s1 + $0x18c] sm:$0xf]
        %v380 = vld [vmem:[%s1 + $0x190] sm:$0xf]
        %v381 = vld [vmem:[%s1 + $0x194] sm:$0xf]
        %v382 = vld [vmem:[%s1 + $0x198] sm:$0xf]
        %v383 = vld [vmem:[%s1 + $0x19c] sm:$0xf]
        %v384 = vld [vmem:[%s1 + $0x1a0] sm:$0xf]
        %v385 = vld [vmem:[%s1 + $0x1a4] sm:$0xf]
        %v386 = vld [vmem:[%s1 + $0x1a8] sm:$0xf]
        %v387 = vld [vmem:[%s1 + $0x1ac] sm:$0xf]
        %v388 = vld [vmem:[%s1 + $0x1b0] sm:$0xf]
        %v389 = vld [vmem:[%s1 + $0x1b4] sm:$0xf]
        %v390 = vld [vmem:[%s1 + $0x1b8] sm:$0xf]
        %v391 = vld [vmem:[%s1 + $0x1bc] sm:$0xf]
        %v392 = vld [vmem:[%s1 + $0x1c0] sm:$0xf]
        %v393 = vld [vmem:[%s1 + $0x1c4] sm:$0xf]
        %v394 = vld [vmem:[%s1 + $0x1c8] sm:$0xf]
        %v395 = vld [vmem:[%s1 + $0x1cc] sm:$0xf]
        %v396 = vld [vmem:[%s1 + $0x1d0] sm:$0xf]
        %v397 = vld [vmem:[%s1 + $0x1d4] sm:$0xf]
        %v398 = vld [vmem:[%s1 + $0x1d8] sm:$0xf]
        %v399 = vld [vmem:[%s1 + $0x1dc] sm:$0xf]
        %v400 = vld [vmem:[%s1 + $0x1e0] sm:$0xf]
        %v401 = vld [vmem:[%s1 + $0x1e4] sm:$0xf]
        %v402 = vld [vmem:[%s1 + $0x1e8] sm:$0xf]
        %v403 = vld [vmem:[%s1 + $0x1ec] sm:$0xf]
        %v404 = vld [vmem:[%s1 + $0x1f0] sm:$0xf]
        %v405 = vld [vmem:[%s1 + $0x1f4] sm:$0xf]
        %v406 = vld [vmem:[%s1 + $0x1f8] sm:$0xf]
        %v407 = vld [vmem:[%s1 + $0x1fc] sm:$0xf]
        %v408 = vld [vmem:[%s1 + $0x200] sm:$0xf]
        %v409 = vld [vmem:[%s1 + $0x204] sm:$0xf]
        %v410 = vld [vmem:[%s1 + $0x208] sm:$0xf]
        %v411 = vld [vmem:[%s1 + $0x20c] sm:$0xf]
        %v412 = vld [vmem:[%s1 + $0x210] sm:$0xf]
        %v413 = vld [vmem:[%s1 + $0x214] sm:$0xf]
        %v414 = vld [vmem:[%s1 + $0x218] sm:$0xf]
        %v415 = vld [vmem:[%s1 + $0x21c] sm:$0xf]
        %v416 = vld [vmem:[%s1 + $0x220] sm:$0xf]
        %v417 = vld [vmem:[%s1 + $0x224] sm:$0xf]
        %v418 = vld [vmem:[%s1 + $0x228] sm:$0xf]
        %v419 = vld [vmem:[%s1 + $0x22c] sm:$0xf]
        %v420 = vld [vmem:[%s1 + $0x230] sm:$0xf]
        %v421 = vld [vmem:[%s1 + $0x234] sm:$0xf]
        %v422 = vld [vmem:[%s1 + $0x238] sm:$0xf]
        %v423 = vld [vmem:[%s1 + $0x23c] sm:$0xf]
        %v424 = vld [vmem:[%s1 + $0x240] sm:$0xf]
        %v425 = vld [vmem:[%s1 + $0x244] sm:$0xf]
        %v426 = vld [vmem:[%s1 + $0x248] sm:$0xf]
        %v427 = vld [vmem:[%s1 + $0x24c] sm:$0xf]
        %v428 = vld [vmem:[%s1 + $0x250] sm:$0xf]
        %v429 = vld [vmem:[%s1 + $0x254] sm:$0xf]
        %v430 = vld [vmem:[%s1 + $0x258] sm:$0xf]
        %v431 = vld [vmem:[%s1 + $0x25c] sm:$0xf]
        %v432 = vld [vmem:[%s1 + $0x260] sm:$0xf]
        %v433 = vld [vmem:[%s1 + $0x264] sm:$0xf]
        %v434 = vld [vmem:[%s1 + $0x268] sm:$0xf]
        %v435 = vld [vmem:[%s1 + $0x26c] sm:$0xf]
        %v436 = vld [vmem:[%s1 + $0x270] sm:$0xf]
        %v437 = vld [vmem:[%s1 + $0x274] sm:$0xf]
        %v438 = vld [vmem:[%s1 + $0x278] sm:$0xf]
        %v439 = vld [vmem:[%s1 + $0x27c] sm:$0xf]
        %v440 = vld [vmem:[%s1 + $0x280] sm:$0xf]
        %v441 = vld [vmem:[%s1 + $0x284] sm:$0xf]
        %v442 = vld [vmem:[%s1 + $0x288] sm:$0xf]
        %v443 = vld [vmem:[%s1 + $0x28c] sm:$0xf]
        %v444 = vld [vmem:[%s1 + $0x290] sm:$0xf]
        %v445 = vld [vmem:[%s1 + $0x294] sm:$0xf]
        %v446 = vld [vmem:[%s1 + $0x298] sm:$0xf]
        %v447 = vld [vmem:[%s1 + $0x29c] sm:$0xf]
        %v448 = vld [vmem:[%s1 + $0x2a0] sm:$0xf]
        %v449 = vld [vmem:[%s1 + $0x2a4] sm:$0xf]
        %v450 = vld [vmem:[%s1 + $0x2a8] sm:$0xf]
        %v451 = vld [vmem:[%s1 + $0x2ac] sm:$0xf]
        %v452 = vld [vmem:[%s1 + $0x2b0] sm:$0xf]
        %v453 = vld [vmem:[%s1 + $0x2b4] sm:$0xf]
        %v454 = vld [vmem:[%s1 + $0x2b8] sm:$0xf]
        %v455 = vld [vmem:[%s1 + $0x2bc] sm:$0xf]
        %v456 = vld [vmem:[%s1 + $0x2c0] sm:$0xf]
        %v457 = vld [vmem:[%s1 + $0x2c4] sm:$0xf]
        %v458 = vld [vmem:[%s1 + $0x2c8] sm:$0xf]
        %v459 = vld [vmem:[%s1 + $0x2cc] sm:$0xf]
        %v460 = vld [vmem:[%s1 + $0x2d0] sm:$0xf]
        %v461 = vld [vmem:[%s1 + $0x2d4] sm:$0xf]
        %v462 = vld [vmem:[%s1 + $0x2d8] sm:$0xf]
        %v463 = vld [vmem:[%s1 + $0x2dc] sm:$0xf]
        %v464 = vld [vmem:[%s1 + $0x2e0] sm:$0xf]
        %v465 = vld [vmem:[%s1 + $0x2e4] sm:$0xf]
        %v466 = vld [vmem:[%s1 + $0x2e8] sm:$0xf]
        %v467 = vld [vmem:[%s1 + $0x2ec] sm:$0xf]
        %v468 = vld [vmem:[%s1 + $0x2f0] sm:$0xf]
        %v469 = vld [vmem:[%s1 + $0x2f4] sm:$0xf]
        %v470 = vld [vmem:[%s1 + $0x2f8] sm:$0xf]
        %v471 = vld [vmem:[%s1 + $0x2fc] sm:$0xf]
        %v472 = vld [vmem:[%s1 + $0x300] sm:$0xf]
        %v473 = vld [vmem:[%s1 + $0x304] sm:$0xf]
        %v474 = vld [vmem:[%s1 + $0x308] sm:$0xf]
        %v475 = vld [vmem:[%s1 + $0x30c] sm:$0xf]
        %v476 = vld [vmem:[%s1 + $0x310] sm:$0xf]
        %v477 = vld [vmem:[%s1 + $0x314] sm:$0xf]
        %v478 = vld [vmem:[%s1 + $0x318] sm:$0xf]
        %v479 = vld [vmem:[%s1 + $0x31c] sm:$0xf]
        %v480 = vld [vmem:[%s1 + $0x320] sm:$0xf]
        %v481 = vld [vmem:[%s1 + $0x324] sm:$0xf]
        %v482 = vld [vmem:[%s1 + $0x328] sm:$0xf]
        %v483 = vld [vmem:[%s1 + $0x32c] sm:$0xf]
        %v484 = vld [vmem:[%s1 + $0x330] sm:$0xf]
        %v485 = vld [vmem:[%s1 + $0x334] sm:$0xf]
        %v486 = vld [vmem:[%s1 + $0x338] sm:$0xf]
        %v487 = vld [vmem:[%s1 + $0x33c] sm:$0xf]
        %v488 = vld [vmem:[%s1 + $0x340] sm:$0xf]
        %v489 = vld [vmem:[%s1 + $0x344] sm:$0xf]
        %v490 = vld [vmem:[%s1 + $0x348] sm:$0xf]
        %v491 = vld [vmem:[%s1 + $0x34c] sm:$0xf]
        %v492 = vld [vmem:[%s1 + $0x350] sm:$0xf]
        %v493 = vld [vmem:[%s1 + $0x354] sm:$0xf]
        %v494 = vld [vmem:[%s1 + $0x358] sm:$0xf]
        %v495 = vld [vmem:[%s1 + $0x35c] sm:$0xf]
        %v496 = vld [vmem:[%s1 + $0x360] sm:$0xf]
        %v497 = vld [vmem:[%s1 + $0x364] sm:$0xf]
        %v498 = vld [vmem:[%s1 + $0x368] sm:$0xf]
        %v499 = vld [vmem:[%s1 + $0x36c] sm:$0xf]
        %v500 = vld [vmem:[%s1 + $0x370] sm:$0xf]
        %v501 = vld [vmem:[%s1 + $0x374] sm:$0xf]
        %v502 = vld [vmem:[%s1 + $0x378] sm:$0xf]
        %v503 = vld [vmem:[%s1 + $0x37c] sm:$0xf]
        %v504 = vld [vmem:[%s1 + $0x380] sm:$0xf]
        %v505 = vld [vmem:[%s1 + $0x384] sm:$0xf]
        %v506 = vld [vmem:[%s1 + $0x388] sm:$0xf]
        %v507 = vld [vmem:[%s1 + $0x38c] sm:$0xf]
        %v508 = vld [vmem:[%s1 + $0x390] sm:$0xf]
        %v509 = vld [vmem:[%s1 + $0x394] sm:$0xf]
        %v510 = vld [vmem:[%s1 + $0x398] sm:$0xf]
        %v511 = vld [vmem:[%s1 + $0x39c] sm:$0xf]
        %v512 = vld [vmem:[%s1 + $0x3a0] sm:$0xf]
        %v513 = vld [vmem:[%s1 + $0x3a4] sm:$0xf]
        %v514 = vld [vmem:[%s1 + $0x3a8] sm:$0xf]
        %v515 = vld [vmem:[%s1 + $0x3ac] sm:$0xf]
        %v516 = vld [vmem:[%s1 + $0x3b0] sm:$0xf]
        %v517 = vld [vmem:[%s1 + $0x3b4] sm:$0xf]
        %v518 = vld [vmem:[%s1 + $0x3b8] sm:$0xf]
        %v519 = vld [vmem:[%s1 + $0x3bc] sm:$0xf]
        %v520 = vld [vmem:[%s1 + $0x3c0] sm:$0xf]
        %v521 = vld [vmem:[%s1 + $0x3c4] sm:$0xf]
        %v522 = vld [vmem:[%s1 + $0x3c8] sm:$0xf]
        %v523 = vld [vmem:[%s1 + $0x3cc] sm:$0xf]
        %v524 = vld [vmem:[%s1 + $0x3d0] sm:$0xf]
        %v525 = vld [vmem:[%s1 + $0x3d4] sm:$0xf]
        %v526 = vld [vmem:[%s1 + $0x3d8] sm:$0xf]
        %v527 = vld [vmem:[%s1 + $0x3dc] sm:$0xf]
        %v528 = vld [vmem:[%s1 + $0x3e0] sm:$0xf]
        %v529 = vld [vmem:[%s1 + $0x3e4] sm:$0xf]
        %v530 = vld [vmem:[%s1 + $0x3e8] sm:$0xf]
        %v531 = vld [vmem:[%s1 + $0x3ec] sm:$0xf]
        %v532 = vld [vmem:[%s1 + $0x3f0] sm:$0xf]
        %v533 = vld [vmem:[%s1 + $0x3f4] sm:$0xf]
        %v534 = vld [vmem:[%s1 + $0x3f8] sm:$0xf]
        %v535 = vld [vmem:[%s1 + $0x3fc] sm:$0xf]
        %v792 = vunpack.c.l.b16 %v280
        %v793 = vunpack.c.l.b16 %v281
        %v794 = vunpack.c.l.b16 %v282
        %v795 = vunpack.c.l.b16 %v283
        %v796 = vunpack.c.l.b16 %v284
        %v797 = vunpack.c.l.b16 %v285
        %v798 = vunpack.c.l.b16 %v286
        %v799 = vunpack.c.l.b16 %v287
        %v800 = vunpack.c.l.b16 %v288
        %v801 = vunpack.c.l.b16 %v289
        %v802 = vunpack.c.l.b16 %v290
        %v803 = vunpack.c.l.b16 %v291
        %v804 = vunpack.c.l.b16 %v292
        %v805 = vunpack.c.l.b16 %v293
        %v806 = vunpack.c.l.b16 %v294
        %v807 = vunpack.c.l.b16 %v295
        %v808 = vunpack.c.l.b16 %v296
        %v809 = vunpack.c.l.b16 %v297
        %v810 = vunpack.c.l.b16 %v298
        %v811 = vunpack.c.l.b16 %v299
        %v812 = vunpack.c.l.b16 %v300
        %v813 = vunpack.c.l.b16 %v301
        %v814 = vunpack.c.l.b16 %v302
        %v815 = vunpack.c.l.b16 %v303
        %v816 = vunpack.c.l.b16 %v304
        %v817 = vunpack.c.l.b16 %v305
        %v818 = vunpack.c.l.b16 %v306
        %v819 = vunpack.c.l.b16 %v307
        %v820 = vunpack.c.l.b16 %v308
        %v821 = vunpack.c.l.b16 %v309
        %v822 = vunpack.c.l.b16 %v310
        %v823 = vunpack.c.l.b16 %v311
        %v824 = vunpack.c.l.b16 %v312
        %v825 = vunpack.c.l.b16 %v313
        %v826 = vunpack.c.l.b16 %v314
        %v827 = vunpack.c.l.b16 %v315
        %v828 = vunpack.c.l.b16 %v316
        %v829 = vunpack.c.l.b16 %v317
        %v830 = vunpack.c.l.b16 %v318
        %v831 = vunpack.c.l.b16 %v319
        %v832 = vunpack.c.l.b16 %v320
        %v833 = vunpack.c.l.b16 %v321
        %v834 = vunpack.c.l.b16 %v322
        %v835 = vunpack.c.l.b16 %v323
        %v836 = vunpack.c.l.b16 %v324
        %v837 = vunpack.c.l.b16 %v325
        %v838 = vunpack.c.l.b16 %v326
        %v839 = vunpack.c.l.b16 %v327
        %v840 = vunpack.c.l.b16 %v328
        %v841 = vunpack.c.l.b16 %v329
        %v842 = vunpack.c.l.b16 %v330
        %v843 = vunpack.c.l.b16 %v331
        %v844 = vunpack.c.l.b16 %v332
        %v845 = vunpack.c.l.b16 %v333
        %v846 = vunpack.c.l.b16 %v334
        %v847 = vunpack.c.l.b16 %v335
        %v848 = vunpack.c.l.b16 %v336
        %v849 = vunpack.c.l.b16 %v337
        %v850 = vunpack.c.l.b16 %v338
        %v851 = vunpack.c.l.b16 %v339
        %v852 = vunpack.c.l.b16 %v340
        %v853 = vunpack.c.l.b16 %v341
        %v854 = vunpack.c.l.b16 %v342
        %v855 = vunpack.c.l.b16 %v343
        %v856 = vunpack.c.l.b16 %v344
        %v857 = vunpack.c.l.b16 %v345
        %v858 = vunpack.c.l.b16 %v346
        %v859 = vunpack.c.l.b16 %v347
        %v860 = vunpack.c.l.b16 %v348
        %v861 = vunpack.c.l.b16 %v349
        %v862 = vunpack.c.l.b16 %v350
        %v863 = vunpack.c.l.b16 %v351
        %v864 = vunpack.c.l.b16 %v352
        %v865 = vunpack.c.l.b16 %v353
        %v866 = vunpack.c.l.b16 %v354
        %v867 = vunpack.c.l.b16 %v355
        %v868 = vunpack.c.l.b16 %v356
        %v869 = vunpack.c.l.b16 %v357
        %v870 = vunpack.c.l.b16 %v358
        %v871 = vunpack.c.l.b16 %v359
        %v872 = vunpack.c.l.b16 %v360
        %v873 = vunpack.c.l.b16 %v361
        %v874 = vunpack.c.l.b16 %v362
        %v875 = vunpack.c.l.b16 %v363
        %v876 = vunpack.c.l.b16 %v364
        %v877 = vunpack.c.l.b16 %v365
        %v878 = vunpack.c.l.b16 %v366
        %v879 = vunpack.c.l.b16 %v367
        %v880 = vunpack.c.l.b16 %v368
        %v881 = vunpack.c.l.b16 %v369
        %v882 = vunpack.c.l.b16 %v370
        %v883 = vunpack.c.l.b16 %v371
        %v884 = vunpack.c.l.b16 %v372
        %v885 = vunpack.c.l.b16 %v373
        %v886 = vunpack.c.l.b16 %v374
        %v887 = vunpack.c.l.b16 %v375
        %v888 = vunpack.c.l.b16 %v376
        %v889 = vunpack.c.l.b16 %v377
        %v890 = vunpack.c.l.b16 %v378
        %v891 = vunpack.c.l.b16 %v379
        %v892 = vunpack.c.l.b16 %v380
        %v893 = vunpack.c.l.b16 %v381
        %v894 = vunpack.c.l.b16 %v382
        %v895 = vunpack.c.l.b16 %v383
        %v896 = vunpack.c.l.b16 %v384
        %v897 = vunpack.c.l.b16 %v385
        %v898 = vunpack.c.l.b16 %v386
        %v899 = vunpack.c.l.b16 %v387
        %v900 = vunpack.c.l.b16 %v388
        %v901 = vunpack.c.l.b16 %v389
        %v902 = vunpack.c.l.b16 %v390
        %v903 = vunpack.c.l.b16 %v391
        %v904 = vunpack.c.l.b16 %v392
        %v905 = vunpack.c.l.b16 %v393
        %v906 = vunpack.c.l.b16 %v394
        %v907 = vunpack.c.l.b16 %v395
        %v908 = vunpack.c.l.b16 %v396
        %v909 = vunpack.c.l.b16 %v397
        %v910 = vunpack.c.l.b16 %v398
        %v911 = vunpack.c.l.b16 %v399
        %v912 = vunpack.c.l.b16 %v400
        %v913 = vunpack.c.l.b16 %v401
        %v914 = vunpack.c.l.b16 %v402
        %v915 = vunpack.c.l.b16 %v403
        %v916 = vunpack.c.l.b16 %v404
        %v917 = vunpack.c.l.b16 %v405
        %v918 = vunpack.c.l.b16 %v406
        %v919 = vunpack.c.l.b16 %v407
        %v920 = vunpack.c.l.b16 %v408
        %v921 = vunpack.c.l.b16 %v409
        %v922 = vunpack.c.l.b16 %v410
        %v923 = vunpack.c.l.b16 %v411
        %v924 = vunpack.c.l.b16 %v412
        %v925 = vunpack.c.l.b16 %v413
        %v926 = vunpack.c.l.b16 %v414
        %v927 = vunpack.c.l.b16 %v415
        %v928 = vunpack.c.l.b16 %v416
        %v929 = vunpack.c.l.b16 %v417
        %v930 = vunpack.c.l.b16 %v418
        %v931 = vunpack.c.l.b16 %v419
        %v932 = vunpack.c.l.b16 %v420
        %v933 = vunpack.c.l.b16 %v421
        %v934 = vunpack.c.l.b16 %v422
        %v935 = vunpack.c.l.b16 %v423
        %v936 = vunpack.c.l.b16 %v424
        %v937 = vunpack.c.l.b16 %v425
        %v938 = vunpack.c.l.b16 %v426
        %v939 = vunpack.c.l.b16 %v427
        %v940 = vunpack.c.l.b16 %v428
        %v941 = vunpack.c.l.b16 %v429
        %v942 = vunpack.c.l.b16 %v430
        %v943 = vunpack.c.l.b16 %v431
        %v944 = vunpack.c.l.b16 %v432
        %v945 = vunpack.c.l.b16 %v433
        %v946 = vunpack.c.l.b16 %v434
        %v947 = vunpack.c.l.b16 %v435
        %v948 = vunpack.c.l.b16 %v436
        %v949 = vunpack.c.l.b16 %v437
        %v950 = vunpack.c.l.b16 %v438
        %v951 = vunpack.c.l.b16 %v439
        %v952 = vunpack.c.l.b16 %v440
        %v953 = vunpack.c.l.b16 %v441
        %v954 = vunpack.c.l.b16 %v442
        %v955 = vunpack.c.l.b16 %v443
        %v956 = vunpack.c.l.b16 %v444
        %v957 = vunpack.c.l.b16 %v445
        %v958 = vunpack.c.l.b16 %v446
        %v959 = vunpack.c.l.b16 %v447
        %v960 = vunpack.c.l.b16 %v448
        %v961 = vunpack.c.l.b16 %v449
        %v962 = vunpack.c.l.b16 %v450
        %v963 = vunpack.c.l.b16 %v451
        %v964 = vunpack.c.l.b16 %v452
        %v965 = vunpack.c.l.b16 %v453
        %v966 = vunpack.c.l.b16 %v454
        %v967 = vunpack.c.l.b16 %v455
        %v968 = vunpack.c.l.b16 %v456
        %v969 = vunpack.c.l.b16 %v457
        %v970 = vunpack.c.l.b16 %v458
        %v971 = vunpack.c.l.b16 %v459
        %v972 = vunpack.c.l.b16 %v460
        %v973 = vunpack.c.l.b16 %v461
        %v974 = vunpack.c.l.b16 %v462
        %v975 = vunpack.c.l.b16 %v463
        %v976 = vunpack.c.l.b16 %v464
        %v977 = vunpack.c.l.b16 %v465
        %v978 = vunpack.c.l.b16 %v466
        %v979 = vunpack.c.l.b16 %v467
        %v980 = vunpack.c.l.b16 %v468
        %v981 = vunpack.c.l.b16 %v469
        %v982 = vunpack.c.l.b16 %v470
        %v983 = vunpack.c.l.b16 %v471
        %v984 = vunpack.c.l.b16 %v472
        %v985 = vunpack.c.l.b16 %v473
        %v986 = vunpack.c.l.b16 %v474
        %v987 = vunpack.c.l.b16 %v475
        %v988 = vunpack.c.l.b16 %v476
        %v989 = vunpack.c.l.b16 %v477
        %v990 = vunpack.c.l.b16 %v478
        %v991 = vunpack.c.l.b16 %v479
        %v992 = vunpack.c.l.b16 %v480
        %v993 = vunpack.c.l.b16 %v481
        %v994 = vunpack.c.l.b16 %v482
        %v995 = vunpack.c.l.b16 %v483
        %v996 = vunpack.c.l.b16 %v484
        %v997 = vunpack.c.l.b16 %v485
        %v998 = vunpack.c.l.b16 %v486
        %v999 = vunpack.c.l.b16 %v487
        %v1000 = vunpack.c.l.b16 %v488
        %v1001 = vunpack.c.l.b16 %v489
        %v1002 = vunpack.c.l.b16 %v490
        %v1003 = vunpack.c.l.b16 %v491
        %v1004 = vunpack.c.l.b16 %v492
        %v1005 = vunpack.c.l.b16 %v493
        %v1006 = vunpack.c.l.b16 %v494
        %v1007 = vunpack.c.l.b16 %v495
        %v1008 = vunpack.c.l.b16 %v496
        %v1009 = vunpack.c.l.b16 %v497
        %v1010 = vunpack.c.l.b16 %v498
        %v1011 = vunpack.c.l.b16 %v499
        %v1012 = vunpack.c.l.b16 %v500
        %v1013 = vunpack.c.l.b16 %v501
        %v1014 = vunpack.c.l.b16 %v502
        %v1015 = vunpack.c.l.b16 %v503
        %v1016 = vunpack.c.l.b16 %v504
        %v1017 = vunpack.c.l.b16 %v505
        %v1018 = vunpack.c.l.b16 %v506
        %v1019 = vunpack.c.l.b16 %v507
        %v1020 = vunpack.c.l.b16 %v508
        %v1021 = vunpack.c.l.b16 %v509
        %v1022 = vunpack.c.l.b16 %v510
        %v1023 = vunpack.c.l.b16 %v511
        %v1024 = vunpack.c.l.b16 %v512
        %v1025 = vunpack.c.l.b16 %v513
        %v1026 = vunpack.c.l.b16 %v514
        %v1027 = vunpack.c.l.b16 %v515
        %v1028 = vunpack.c.l.b16 %v516
        %v1029 = vunpack.c.l.b16 %v517
        %v1030 = vunpack.c.l.b16 %v518
        %v1031 = vunpack.c.l.b16 %v519
        %v1032 = vunpack.c.l.b16 %v520
        %v1033 = vunpack.c.l.b16 %v521
        %v1034 = vunpack.c.l.b16 %v522
        %v1035 = vunpack.c.l.b16 %v523
        %v1036 = vunpack.c.l.b16 %v524
        %v1037 = vunpack.c.l.b16 %v525
        %v1038 = vunpack.c.l.b16 %v526
        %v1039 = vunpack.c.l.b16 %v527
        %v1040 = vunpack.c.l.b16 %v528
        %v1041 = vunpack.c.l.b16 %v529
        %v1042 = vunpack.c.l.b16 %v530
        %v1043 = vunpack.c.l.b16 %v531
        %v1044 = vunpack.c.l.b16 %v532
        %v1045 = vunpack.c.l.b16 %v533
        %v1046 = vunpack.c.l.b16 %v534
        %v1047 = vunpack.c.l.b16 %v535
        %v1048 = vpack.c.b16 %v793, %v792
        %v1049 = vpack.c.b16 %v795, %v794
        %v1050 = vpack.c.b16 %v797, %v796
        %v1051 = vpack.c.b16 %v799, %v798
        %v1052 = vpack.c.b16 %v801, %v800
        %v1053 = vpack.c.b16 %v803, %v802
        %v1054 = vpack.c.b16 %v805, %v804
        %v1055 = vpack.c.b16 %v807, %v806
        %v1056 = vpack.c.b16 %v809, %v808
        %v1057 = vpack.c.b16 %v811, %v810
        %v1058 = vpack.c.b16 %v813, %v812
        %v1059 = vpack.c.b16 %v815, %v814
        %v1060 = vpack.c.b16 %v817, %v816
        %v1061 = vpack.c.b16 %v819, %v818
        %v1062 = vpack.c.b16 %v821, %v820
        %v1063 = vpack.c.b16 %v823, %v822
        %v1064 = vpack.c.b16 %v825, %v824
        %v1065 = vpack.c.b16 %v827, %v826
        %v1066 = vpack.c.b16 %v829, %v828
        %v1067 = vpack.c.b16 %v831, %v830
        %v1068 = vpack.c.b16 %v833, %v832
        %v1069 = vpack.c.b16 %v835, %v834
        %v1070 = vpack.c.b16 %v837, %v836
        %v1071 = vpack.c.b16 %v839, %v838
        %v1072 = vpack.c.b16 %v841, %v840
        %v1073 = vpack.c.b16 %v843, %v842
        %v1074 = vpack.c.b16 %v845, %v844
        %v1075 = vpack.c.b16 %v847, %v846
        %v1076 = vpack.c.b16 %v849, %v848
        %v1077 = vpack.c.b16 %v851, %v850
        %v1078 = vpack.c.b16 %v853, %v852
        %v1079 = vpack.c.b16 %v855, %v854
        %v1080 = vpack.c.b16 %v857, %v856
        %v1081 = vpack.c.b16 %v859, %v858
        %v1082 = vpack.c.b16 %v861, %v860
        %v1083 = vpack.c.b16 %v863, %v862
        %v1084 = vpack.c.b16 %v865, %v864
        %v1085 = vpack.c.b16 %v867, %v866
        %v1086 = vpack.c.b16 %v869, %v868
        %v1087 = vpack.c.b16 %v871, %v870
        %v1088 = vpack.c.b16 %v873, %v872
        %v1089 = vpack.c.b16 %v875, %v874
        %v1090 = vpack.c.b16 %v877, %v876
        %v1091 = vpack.c.b16 %v879, %v878
        %v1092 = vpack.c.b16 %v881, %v880
        %v1093 = vpack.c.b16 %v883, %v882
        %v1094 = vpack.c.b16 %v885, %v884
        %v1095 = vpack.c.b16 %v887, %v886
        %v1096 = vpack.c.b16 %v889, %v888
        %v1097 = vpack.c.b16 %v891, %v890
        %v1098 = vpack.c.b16 %v893, %v892
        %v1099 = vpack.c.b16 %v895, %v894
        %v1100 = vpack.c.b16 %v897, %v896
        %v1101 = vpack.c.b16 %v899, %v898
        %v1102 = vpack.c.b16 %v901, %v900
        %v1103 = vpack.c.b16 %v903, %v902
        %v1104 = vpack.c.b16 %v905, %v904
        %v1105 = vpack.c.b16 %v907, %v906
        %v1106 = vpack.c.b16 %v909, %v908
        %v1107 = vpack.c.b16 %v911, %v910
        %v1108 = vpack.c.b16 %v913, %v912
        %v1109 = vpack.c.b16 %v915, %v914
        %v1110 = vpack.c.b16 %v917, %v916
        %v1111 = vpack.c.b16 %v919, %v918
        %v1112 = vpack.c.b16 %v921, %v920
        %v1113 = vpack.c.b16 %v923, %v922
        %v1114 = vpack.c.b16 %v925, %v924
        %v1115 = vpack.c.b16 %v927, %v926
        %v1116 = vpack.c.b16 %v929, %v928
        %v1117 = vpack.c.b16 %v931, %v930
        %v1118 = vpack.c.b16 %v933, %v932
        %v1119 = vpack.c.b16 %v935, %v934
        %v1120 = vpack.c.b16 %v937, %v936
        %v1121 = vpack.c.b16 %v939, %v938
        %v1122 = vpack.c.b16 %v941, %v940
        %v1123 = vpack.c.b16 %v943, %v942
        %v1124 = vpack.c.b16 %v945, %v944
        %v1125 = vpack.c.b16 %v947, %v946
        %v1126 = vpack.c.b16 %v949, %v948
        %v1127 = vpack.c.b16 %v951, %v950
        %v1128 = vpack.c.b16 %v953, %v952
        %v1129 = vpack.c.b16 %v955, %v954
        %v1130 = vpack.c.b16 %v957, %v956
        %v1131 = vpack.c.b16 %v959, %v958
        %v1132 = vpack.c.b16 %v961, %v960
        %v1133 = vpack.c.b16 %v963, %v962
        %v1134 = vpack.c.b16 %v965, %v964
        %v1135 = vpack.c.b16 %v967, %v966
        %v1136 = vpack.c.b16 %v969, %v968
        %v1137 = vpack.c.b16 %v971, %v970
        %v1138 = vpack.c.b16 %v973, %v972
        %v1139 = vpack.c.b16 %v975, %v974
        %v1140 = vpack.c.b16 %v977, %v976
        %v1141 = vpack.c.b16 %v979, %v978
        %v1142 = vpack.c.b16 %v981, %v980
        %v1143 = vpack.c.b16 %v983, %v982
        %v1144 = vpack.c.b16 %v985, %v984
        %v1145 = vpack.c.b16 %v987, %v986
        %v1146 = vpack.c.b16 %v989, %v988
        %v1147 = vpack.c.b16 %v991, %v990
        %v1148 = vpack.c.b16 %v993, %v992
        %v1149 = vpack.c.b16 %v995, %v994
        %v1150 = vpack.c.b16 %v997, %v996
        %v1151 = vpack.c.b16 %v999, %v998
        %v1152 = vpack.c.b16 %v1001, %v1000
        %v1153 = vpack.c.b16 %v1003, %v1002
        %v1154 = vpack.c.b16 %v1005, %v1004
        %v1155 = vpack.c.b16 %v1007, %v1006
        %v1156 = vpack.c.b16 %v1009, %v1008
        %v1157 = vpack.c.b16 %v1011, %v1010
        %v1158 = vpack.c.b16 %v1013, %v1012
        %v1159 = vpack.c.b16 %v1015, %v1014
        %v1160 = vpack.c.b16 %v1017, %v1016
        %v1161 = vpack.c.b16 %v1019, %v1018
        %v1162 = vpack.c.b16 %v1021, %v1020
        %v1163 = vpack.c.b16 %v1023, %v1022
        %v1164 = vpack.c.b16 %v1025, %v1024
        %v1165 = vpack.c.b16 %v1027, %v1026
        %v1166 = vpack.c.b16 %v1029, %v1028
        %v1167 = vpack.c.b16 %v1031, %v1030
        %v1168 = vpack.c.b16 %v1033, %v1032
        %v1169 = vpack.c.b16 %v1035, %v1034
        %v1170 = vpack.c.b16 %v1037, %v1036
        %v1171 = vpack.c.b16 %v1039, %v1038
        %v1172 = vpack.c.b16 %v1041, %v1040
        %v1173 = vpack.c.b16 %v1043, %v1042
        %v1174 = vpack.c.b16 %v1045, %v1044
        %v1175 = vpack.c.b16 %v1047, %v1046
        %1304 = vmatprep.subr.bf16.mxu0 0
        %1305 = vmatpush1.bf16.msra.mxu0 %v1048
        %1306 = vmatprep.subr.bf16.mxu0 0
        %1307 = vmatpush1.bf16.msra.mxu0 %v1049
        %1308 = vmatprep.subr.bf16.mxu0 0
        %1309 = vmatpush1.bf16.msra.mxu0 %v1050
        %1310 = vmatprep.subr.bf16.mxu0 0
        %1311 = vmatpush1.bf16.msra.mxu0 %v1051
        %1312 = vmatprep.subr.bf16.mxu0 0
        %1313 = vmatpush1.bf16.msra.mxu0 %v1052
        %1314 = vmatprep.subr.bf16.mxu0 0
        %1315 = vmatpush1.bf16.msra.mxu0 %v1053
        %1316 = vmatprep.subr.bf16.mxu0 0
        %1317 = vmatpush1.bf16.msra.mxu0 %v1054
        %1318 = vmatprep.subr.bf16.mxu0 0
        %1319 = vmatpush1.bf16.msra.mxu0 %v1055
        %1320 = vmatprep.subr.bf16.mxu0 0
        %1321 = vmatpush1.bf16.msra.mxu0 %v1056
        %1322 = vmatprep.subr.bf16.mxu0 0
        %1323 = vmatpush1.bf16.msra.mxu0 %v1057
        %1324 = vmatprep.subr.bf16.mxu0 0
        %1325 = vmatpush1.bf16.msra.mxu0 %v1058
        %1326 = vmatprep.subr.bf16.mxu0 0
        %1327 = vmatpush1.bf16.msra.mxu0 %v1059
        %1328 = vmatprep.subr.bf16.mxu0 0
        %1329 = vmatpush1.bf16.msra.mxu0 %v1060
        %1330 = vmatprep.subr.bf16.mxu0 0
        %1331 = vmatpush1.bf16.msra.mxu0 %v1061
        %1332 = vmatprep.subr.bf16.mxu0 0
        %1333 = vmatpush1.bf16.msra.mxu0 %v1062
        %1334 = vmatprep.subr.bf16.mxu0 0
        %1335 = vmatpush1.bf16.msra.mxu0 %v1063
        %1336 = vmatprep.mubr.bf16.mxu0 %v236
        %1337 = vmatmul.mubr.bf16.gmra.mrb[0].mxu0 %v226
        %v1338 = vpop.f32.mrb[0].mxu0
        %v1339 = vadd.f32 0.0, %v1338
        %v1340 = vpop.f32.mrb[0].mxu0
        %v1341 = vpop.f32.mrb[0].mxu0
        %v1342 = vpop.f32.mrb[0].mxu0
        %1343 = vdwg.mxu0
        %1344 = vmatprep.subr.bf16.mxu0 0
        %1345 = vmatpush1.bf16.msra.mxu0 %v1064
        %1346 = vmatprep.subr.bf16.mxu0 0
        %1347 = vmatpush1.bf16.msra.mxu0 %v1065
        %1348 = vmatprep.subr.bf16.mxu0 0
        %1349 = vmatpush1.bf16.msra.mxu0 %v1066
        %1350 = vmatprep.subr.bf16.mxu0 0
        %1351 = vmatpush1.bf16.msra.mxu0 %v1067
        %1352 = vmatprep.subr.bf16.mxu0 0
        %1353 = vmatpush1.bf16.msra.mxu0 %v1068
        %1354 = vmatprep.subr.bf16.mxu0 0
        %1355 = vmatpush1.bf16.msra.mxu0 %v1069
        %1356 = vmatprep.subr.bf16.mxu0 0
        %1357 = vmatpush1.bf16.msra.mxu0 %v1070
        %1358 = vmatprep.subr.bf16.mxu0 0
        %1359 = vmatpush1.bf16.msra.mxu0 %v1071
        %1360 = vmatprep.subr.bf16.mxu0 0
        %1361 = vmatpush1.bf16.msra.mxu0 %v1072
        %1362 = vmatprep.subr.bf16.mxu0 0
        %1363 = vmatpush1.bf16.msra.mxu0 %v1073
        %1364 = vmatprep.subr.bf16.mxu0 0
        %1365 = vmatpush1.bf16.msra.mxu0 %v1074
        %1366 = vmatprep.subr.bf16.mxu0 0
        %1367 = vmatpush1.bf16.msra.mxu0 %v1075
        %1368 = vmatprep.subr.bf16.mxu0 0
        %1369 = vmatpush1.bf16.msra.mxu0 %v1076
        %1370 = vmatprep.subr.bf16.mxu0 0
        %1371 = vmatpush1.bf16.msra.mxu0 %v1077
        %1372 = vmatprep.subr.bf16.mxu0 0
        %1373 = vmatpush1.bf16.msra.mxu0 %v1078
        %1374 = vmatprep.subr.bf16.mxu0 0
        %1375 = vmatpush1.bf16.msra.mxu0 %v1079
        %1376 = vmatprep.mubr.bf16.mxu0 %v243
        %1377 = vmatmul.mubr.bf16.gmra.mrb[0].mxu0 %v239
        %v1378 = vpop.f32.mrb[0].mxu0
        %v1379 = vadd.f32 %v1339, %v1378
        %v1380 = vpop.f32.mrb[0].mxu0
        %v1381 = vpop.f32.mrb[0].mxu0
        %v1382 = vpop.f32.mrb[0].mxu0
        %1383 = vdwg.mxu0
        %1384 = vmatprep.subr.bf16.mxu0 0
        %1385 = vmatpush1.bf16.msra.mxu0 %v1080
        %1386 = vmatprep.subr.bf16.mxu0 0
        %1387 = vmatpush1.bf16.msra.mxu0 %v1081
        %1388 = vmatprep.subr.bf16.mxu0 0
        %1389 = vmatpush1.bf16.msra.mxu0 %v1082
        %1390 = vmatprep.subr.bf16.mxu0 0
        %1391 = vmatpush1.bf16.msra.mxu0 %v1083
        %1392 = vmatprep.subr.bf16.mxu0 0
        %1393 = vmatpush1.bf16.msra.mxu0 %v1084
        %1394 = vmatprep.subr.bf16.mxu0 0
        %1395 = vmatpush1.bf16.msra.mxu0 %v1085
        %1396 = vmatprep.subr.bf16.mxu0 0
        %1397 = vmatpush1.bf16.msra.mxu0 %v1086
        %1398 = vmatprep.subr.bf16.mxu0 0
        %1399 = vmatpush1.bf16.msra.mxu0 %v1087
        %1400 = vmatprep.subr.bf16.mxu0 0
        %1401 = vmatpush1.bf16.msra.mxu0 %v1088
        %1402 = vmatprep.subr.bf16.mxu0 0
        %1403 = vmatpush1.bf16.msra.mxu0 %v1089
        %1404 = vmatprep.subr.bf16.mxu0 0
        %1405 = vmatpush1.bf16.msra.mxu0 %v1090
        %1406 = vmatprep.subr.bf16.mxu0 0
        %1407 = vmatpush1.bf16.msra.mxu0 %v1091
        %1408 = vmatprep.subr.bf16.mxu0 0
        %1409 = vmatpush1.bf16.msra.mxu0 %v1092
        %1410 = vmatprep.subr.bf16.mxu0 0
        %1411 = vmatpush1.bf16.msra.mxu0 %v1093
        %1412 = vmatprep.subr.bf16.mxu0 0
        %1413 = vmatpush1.bf16.msra.mxu0 %v1094
        %1414 = vmatprep.subr.bf16.mxu0 0
        %1415 = vmatpush1.bf16.msra.mxu0 %v1095
        %1416 = vmatprep.mubr.bf16.mxu0 %v248
        %1417 = vmatmul.mubr.bf16.gmra.mrb[0].mxu0 %v246
        %v1418 = vpop.f32.mrb[0].mxu0
        %v1419 = vadd.f32 %v1379, %v1418
        %v1420 = vpop.f32.mrb[0].mxu0
        %v1421 = vpop.f32.mrb[0].mxu0
        %v1422 = vpop.f32.mrb[0].mxu0
        %1423 = vdwg.mxu0
        %1424 = vmatprep.subr.bf16.mxu0 0
        %1425 = vmatpush1.bf16.msra.mxu0 %v1096
        %1426 = vmatprep.subr.bf16.mxu0 0
        %1427 = vmatpush1.bf16.msra.mxu0 %v1097
        %1428 = vmatprep.subr.bf16.mxu0 0
        %1429 = vmatpush1.bf16.msra.mxu0 %v1098
        %1430 = vmatprep.subr.bf16.mxu0 0
        %1431 = vmatpush1.bf16.msra.mxu0 %v1099
        %1432 = vmatprep.subr.bf16.mxu0 0
        %1433 = vmatpush1.bf16.msra.mxu0 %v1100
        %1434 = vmatprep.subr.bf16.mxu0 0
        %1435 = vmatpush1.bf16.msra.mxu0 %v1101
        %1436 = vmatprep.subr.bf16.mxu0 0
        %1437 = vmatpush1.bf16.msra.mxu0 %v1102
        %1438 = vmatprep.subr.bf16.mxu0 0
        %1439 = vmatpush1.bf16.msra.mxu0 %v1103
        %1440 = vmatprep.subr.bf16.mxu0 0
        %1441 = vmatpush1.bf16.msra.mxu0 %v1104
        %1442 = vmatprep.subr.bf16.mxu0 0
        %1443 = vmatpush1.bf16.msra.mxu0 %v1105
        %1444 = vmatprep.subr.bf16.mxu0 0
        %1445 = vmatpush1.bf16.msra.mxu0 %v1106
        %1446 = vmatprep.subr.bf16.mxu0 0
        %1447 = vmatpush1.bf16.msra.mxu0 %v1107
        %1448 = vmatprep.subr.bf16.mxu0 0
        %1449 = vmatpush1.bf16.msra.mxu0 %v1108
        %1450 = vmatprep.subr.bf16.mxu0 0
        %1451 = vmatpush1.bf16.msra.mxu0 %v1109
        %1452 = vmatprep.subr.bf16.mxu0 0
        %1453 = vmatpush1.bf16.msra.mxu0 %v1110
        %1454 = vmatprep.subr.bf16.mxu0 0
        %1455 = vmatpush1.bf16.msra.mxu0 %v1111
        %1456 = vmatprep.mubr.bf16.mxu0 %v252
        %1457 = vmatmul.mubr.bf16.gmra.mrb[0].mxu0 %v250
        %v1458 = vpop.f32.mrb[0].mxu0
        %v1459 = vadd.f32 %v1419, %v1458
        %v1460 = vpop.f32.mrb[0].mxu0
        %v1461 = vpop.f32.mrb[0].mxu0
        %v1462 = vpop.f32.mrb[0].mxu0
        %1463 = vdwg.mxu0
        %1464 = vmatprep.subr.bf16.mxu0 0
        %1465 = vmatpush1.bf16.msra.mxu0 %v1112
        %1466 = vmatprep.subr.bf16.mxu0 0
        %1467 = vmatpush1.bf16.msra.mxu0 %v1113
        %1468 = vmatprep.subr.bf16.mxu0 0
        %1469 = vmatpush1.bf16.msra.mxu0 %v1114
        %1470 = vmatprep.subr.bf16.mxu0 0
        %1471 = vmatpush1.bf16.msra.mxu0 %v1115
        %1472 = vmatprep.subr.bf16.mxu0 0
        %1473 = vmatpush1.bf16.msra.mxu0 %v1116
        %1474 = vmatprep.subr.bf16.mxu0 0
        %1475 = vmatpush1.bf16.msra.mxu0 %v1117
        %1476 = vmatprep.subr.bf16.mxu0 0
        %1477 = vmatpush1.bf16.msra.mxu0 %v1118
        %1478 = vmatprep.subr.bf16.mxu0 0
        %1479 = vmatpush1.bf16.msra.mxu0 %v1119
        %1480 = vmatprep.subr.bf16.mxu0 0
        %1481 = vmatpush1.bf16.msra.mxu0 %v1120
        %1482 = vmatprep.subr.bf16.mxu0 0
        %1483 = vmatpush1.bf16.msra.mxu0 %v1121
        %1484 = vmatprep.subr.bf16.mxu0 0
        %1485 = vmatpush1.bf16.msra.mxu0 %v1122
        %1486 = vmatprep.subr.bf16.mxu0 0
        %1487 = vmatpush1.bf16.msra.mxu0 %v1123
        %1488 = vmatprep.subr.bf16.mxu0 0
        %1489 = vmatpush1.bf16.msra.mxu0 %v1124
        %1490 = vmatprep.subr.bf16.mxu0 0
        %1491 = vmatpush1.bf16.msra.mxu0 %v1125
        %1492 = vmatprep.subr.bf16.mxu0 0
        %1493 = vmatpush1.bf16.msra.mxu0 %v1126
        %1494 = vmatprep.subr.bf16.mxu0 0
        %1495 = vmatpush1.bf16.msra.mxu0 %v1127
        %1496 = vmatprep.mubr.bf16.mxu0 %v262
        %1497 = vmatmul.mubr.bf16.gmra.mrb[0].mxu0 %v227
        %v1498 = vpop.f32.mrb[0].mxu0
        %v1499 = vadd.f32 %v1459, %v1498
        %v1500 = vpop.f32.mrb[0].mxu0
        %v1501 = vpop.f32.mrb[0].mxu0
        %v1502 = vpop.f32.mrb[0].mxu0
        %1503 = vdwg.mxu0
        %1504 = vmatprep.subr.bf16.mxu0 0
        %1505 = vmatpush1.bf16.msra.mxu0 %v1128
        %1506 = vmatprep.subr.bf16.mxu0 0
        %1507 = vmatpush1.bf16.msra.mxu0 %v1129
        %1508 = vmatprep.subr.bf16.mxu0 0
        %1509 = vmatpush1.bf16.msra.mxu0 %v1130
        %1510 = vmatprep.subr.bf16.mxu0 0
        %1511 = vmatpush1.bf16.msra.mxu0 %v1131
        %1512 = vmatprep.subr.bf16.mxu0 0
        %1513 = vmatpush1.bf16.msra.mxu0 %v1132
        %1514 = vmatprep.subr.bf16.mxu0 0
        %1515 = vmatpush1.bf16.msra.mxu0 %v1133
        %1516 = vmatprep.subr.bf16.mxu0 0
        %1517 = vmatpush1.bf16.msra.mxu0 %v1134
        %1518 = vmatprep.subr.bf16.mxu0 0
        %1519 = vmatpush1.bf16.msra.mxu0 %v1135
        %1520 = vmatprep.subr.bf16.mxu0 0
        %1521 = vmatpush1.bf16.msra.mxu0 %v1136
        %1522 = vmatprep.subr.bf16.mxu0 0
        %1523 = vmatpush1.bf16.msra.mxu0 %v1137
        %1524 = vmatprep.subr.bf16.mxu0 0
        %1525 = vmatpush1.bf16.msra.mxu0 %v1138
        %1526 = vmatprep.subr.bf16.mxu0 0
        %1527 = vmatpush1.bf16.msra.mxu0 %v1139
        %1528 = vmatprep.subr.bf16.mxu0 0
        %1529 = vmatpush1.bf16.msra.mxu0 %v1140
        %1530 = vmatprep.subr.bf16.mxu0 0
        %1531 = vmatpush1.bf16.msra.mxu0 %v1141
        %1532 = vmatprep.subr.bf16.mxu0 0
        %1533 = vmatpush1.bf16.msra.mxu0 %v1142
        %1534 = vmatprep.subr.bf16.mxu0 0
        %1535 = vmatpush1.bf16.msra.mxu0 %v1143
        %1536 = vmatprep.mubr.bf16.mxu0 %v269
        %1537 = vmatmul.mubr.bf16.gmra.mrb[0].mxu0 %v265
        %v1538 = vpop.f32.mrb[0].mxu0
        %v1539 = vadd.f32 %v1499, %v1538
        %v1540 = vpop.f32.mrb[0].mxu0
        %v1541 = vpop.f32.mrb[0].mxu0
        %v1542 = vpop.f32.mrb[0].mxu0
        %1543 = vdwg.mxu0
        %1544 = vmatprep.subr.bf16.mxu0 0
        %1545 = vmatpush1.bf16.msra.mxu0 %v1144
        %1546 = vmatprep.subr.bf16.mxu0 0
        %1547 = vmatpush1.bf16.msra.mxu0 %v1145
        %1548 = vmatprep.subr.bf16.mxu0 0
        %1549 = vmatpush1.bf16.msra.mxu0 %v1146
        %1550 = vmatprep.subr.bf16.mxu0 0
        %1551 = vmatpush1.bf16.msra.mxu0 %v1147
        %1552 = vmatprep.subr.bf16.mxu0 0
        %1553 = vmatpush1.bf16.msra.mxu0 %v1148
        %1554 = vmatprep.subr.bf16.mxu0 0
        %1555 = vmatpush1.bf16.msra.mxu0 %v1149
        %1556 = vmatprep.subr.bf16.mxu0 0
        %1557 = vmatpush1.bf16.msra.mxu0 %v1150
        %1558 = vmatprep.subr.bf16.mxu0 0
        %1559 = vmatpush1.bf16.msra.mxu0 %v1151
        %1560 = vmatprep.subr.bf16.mxu0 0
        %1561 = vmatpush1.bf16.msra.mxu0 %v1152
        %1562 = vmatprep.subr.bf16.mxu0 0
        %1563 = vmatpush1.bf16.msra.mxu0 %v1153
        %1564 = vmatprep.subr.bf16.mxu0 0
        %1565 = vmatpush1.bf16.msra.mxu0 %v1154
        %1566 = vmatprep.subr.bf16.mxu0 0
        %1567 = vmatpush1.bf16.msra.mxu0 %v1155
        %1568 = vmatprep.subr.bf16.mxu0 0
        %1569 = vmatpush1.bf16.msra.mxu0 %v1156
        %1570 = vmatprep.subr.bf16.mxu0 0
        %1571 = vmatpush1.bf16.msra.mxu0 %v1157
        %1572 = vmatprep.subr.bf16.mxu0 0
        %1573 = vmatpush1.bf16.msra.mxu0 %v1158
        %1574 = vmatprep.subr.bf16.mxu0 0
        %1575 = vmatpush1.bf16.msra.mxu0 %v1159
        %1576 = vmatprep.mubr.bf16.mxu0 %v274
        %1577 = vmatmul.mubr.bf16.gmra.mrb[0].mxu0 %v272
        %v1578 = vpop.f32.mrb[0].mxu0
        %v1579 = vadd.f32 %v1539, %v1578
        %v1580 = vpop.f32.mrb[0].mxu0
        %v1581 = vpop.f32.mrb[0].mxu0
        %v1582 = vpop.f32.mrb[0].mxu0
        %1583 = vdwg.mxu0
        %1584 = vmatprep.subr.bf16.mxu0 0
        %1585 = vmatpush1.bf16.msra.mxu0 %v1160
        %1586 = vmatprep.subr.bf16.mxu0 0
        %1587 = vmatpush1.bf16.msra.mxu0 %v1161
        %1588 = vmatprep.subr.bf16.mxu0 0
        %1589 = vmatpush1.bf16.msra.mxu0 %v1162
        %1590 = vmatprep.subr.bf16.mxu0 0
        %1591 = vmatpush1.bf16.msra.mxu0 %v1163
        %1592 = vmatprep.subr.bf16.mxu0 0
        %1593 = vmatpush1.bf16.msra.mxu0 %v1164
        %1594 = vmatprep.subr.bf16.mxu0 0
        %1595 = vmatpush1.bf16.msra.mxu0 %v1165
        %1596 = vmatprep.subr.bf16.mxu0 0
        %1597 = vmatpush1.bf16.msra.mxu0 %v1166
        %1598 = vmatprep.subr.bf16.mxu0 0
        %1599 = vmatpush1.bf16.msra.mxu0 %v1167
        %1600 = vmatprep.subr.bf16.mxu0 0
        %1601 = vmatpush1.bf16.msra.mxu0 %v1168
        %1602 = vmatprep.subr.bf16.mxu0 0
        %1603 = vmatpush1.bf16.msra.mxu0 %v1169
        %1604 = vmatprep.subr.bf16.mxu0 0
        %1605 = vmatpush1.bf16.msra.mxu0 %v1170
        %1606 = vmatprep.subr.bf16.mxu0 0
        %1607 = vmatpush1.bf16.msra.mxu0 %v1171
        %1608 = vmatprep.subr.bf16.mxu0 0
        %1609 = vmatpush1.bf16.msra.mxu0 %v1172
        %1610 = vmatprep.subr.bf16.mxu0 0
        %1611 = vmatpush1.bf16.msra.mxu0 %v1173
        %1612 = vmatprep.subr.bf16.mxu0 0
        %1613 = vmatpush1.bf16.msra.mxu0 %v1174
        %1614 = vmatprep.subr.bf16.mxu0 0
        %1615 = vmatpush1.bf16.msra.mxu0 %v1175
        %1616 = vmatprep.mubr.bf16.mxu0 %v278
        %1617 = vmatmul.mubr.bf16.gmra.mrb[0].mxu0 %v276
        %v1618 = vpop.f32.mrb[0].mxu0
        %v1619 = vadd.f32 %v1579, %v1618
        %v1620 = vpop.f32.mrb[0].mxu0
        %v1621 = vpop.f32.mrb[0].mxu0
        %v1622 = vpop.f32.mrb[0].mxu0
        %1623 = vdwg.mxu0
        %v1624 = vld [vmem:[#allocation2] sm:$0x1]
        %s1625 = vtos %v1624
        %v1626 = vstv %s1625
        %v1627 = vadd.f32 %v1619, %v1626
        %v1628 = vld [vmem:[%s4] sm:$0x1]
        %vm1629 = vcmask 7168
        %v1631 = vsel %vm1629, %v1627, 0
        %vm1633 = vcmask 1040384
        %v1635 = vsel %vm1633, %v1628, 0
        %1637 = vmatprep.subr.mxu0 0.0
        %1638 = vmatpush1.msra.mxu0 %v1635
        %1639 = vmatprep.subr.mxu0 0.0
        %1640 = vmatpush1.msra.mxu0 0.0
        %1641 = vmatprep.subr.mxu0 0.0
        %1642 = vmatpush1.msra.mxu0 0.0
        %1643 = vmatprep.subr.mxu0 0.0
        %1644 = vmatpush1.msra.mxu0 0.0
        %1645 = vmatprep.subr.mxu0 0.0
        %1646 = vmatpush1.msra.mxu0 0.0
        %1647 = vmatprep.subr.mxu0 0.0
        %1648 = vmatpush1.msra.mxu0 0.0
        %1649 = vmatprep.subr.mxu0 0.0
        %1650 = vmatpush1.msra.mxu0 0.0
        %1651 = vmatprep.subr.mxu0 0.0
        %1652 = vmatpush1.msra.mxu0 0.0
        %1653 = vmatprep.subr.mxu0 0.0
        %1654 = vmatpush1.msra.mxu0 0.0
        %1655 = vmatprep.subr.mxu0 0.0
        %1656 = vmatpush1.msra.mxu0 0.0
        %1657 = vmatprep.subr.mxu0 0.0
        %1658 = vmatpush1.msra.mxu0 0.0
        %1659 = vmatprep.subr.mxu0 0.0
        %1660 = vmatpush1.msra.mxu0 0.0
        %1661 = vmatprep.subr.mxu0 0.0
        %1662 = vmatpush1.msra.mxu0 0.0
        %1663 = vmatprep.subr.mxu0 0.0
        %1664 = vmatpush1.msra.mxu0 0.0
        %1665 = vmatprep.subr.mxu0 0.0
        %1666 = vmatpush1.msra.mxu0 0.0
        %1667 = vmatprep.subr.mxu0 0.0
        %1668 = vmatpush1.msra.mxu0 0.0
        %1669 = vmatprep.subr.mxu0 0.0
        %1670 = vmatpush1.msra.mxu0 0.0
        %1671 = vmatprep.subr.mxu0 0.0
        %1672 = vmatpush1.msra.mxu0 0.0
        %1673 = vmatprep.subr.mxu0 0.0
        %1674 = vmatpush1.msra.mxu0 0.0
        %1675 = vmatprep.subr.mxu0 0.0
        %1676 = vmatpush1.msra.mxu0 0.0
        %1677 = vmatprep.subr.mxu0 0.0
        %1678 = vmatpush1.msra.mxu0 0.0
        %1679 = vmatprep.subr.mxu0 0.0
        %1680 = vmatpush1.msra.mxu0 0.0
        %1681 = vmatprep.subr.mxu0 0.0
        %1682 = vmatpush1.msra.mxu0 0.0
        %1683 = vmatprep.subr.mxu0 0.0
        %1684 = vmatpush1.msra.mxu0 0.0
        %1685 = vmatprep.subr.mxu0 0.0
        %1686 = vmatpush1.msra.mxu0 0.0
        %1687 = vmatprep.subr.mxu0 0.0
        %1688 = vmatpush1.msra.mxu0 0.0
        %1689 = vmatprep.subr.mxu0 0.0
        %1690 = vmatpush1.msra.mxu0 0.0
        %1691 = vmatprep.subr.mxu0 0.0
        %1692 = vmatpush1.msra.mxu0 0.0
        %1693 = vmatprep.subr.mxu0 0.0
        %1694 = vmatpush1.msra.mxu0 0.0
        %1695 = vmatprep.subr.mxu0 0.0
        %1696 = vmatpush1.msra.mxu0 0.0
        %1697 = vmatprep.subr.mxu0 0.0
        %1698 = vmatpush1.msra.mxu0 0.0
        %1699 = vmatprep.subr.mxu0 0.0
        %1700 = vmatpush1.msra.mxu0 0.0
        %1701 = vmatprep.mubr.f32.mxu0 0.0
        %1702 = vmatmul.mubr.f32.gmra.mrb[0].mxu0 %v1631
        %v1703 = vpop.f32.mrb[0].mxu0
        %v1704 = vadd.f32 0.0, %v1703
        %v1705 = vpop.f32.mrb[0].mxu0
        %1706 = vdwg.mxu0
        %v1707 = vld [vmem:[%s3] sm:$0xff]
        %v1708 = vld [vmem:[%s3 + $0x8] sm:$0xff]
        %v1709 = vld [vmem:[%s3 + $0x10] sm:$0xff]
        %v1710 = vld [vmem:[%s3 + $0x18] sm:$0xff]
        %v1712 = vsel %vm1629, %v1707, 0
        %v1715 = vsel %vm1629, %v1708, 0
        %v1718 = vsel %vm1629, %v1709, 0
        %v1721 = vsel %vm1629, %v1710, 0
        %v1724 = vsel %vm1633, %v1704, 0
        %1726 = vmatprep.subr.mxu0 0.0
        %1727 = vmatpush1.msra.mxu0 %v1724
        %1728 = vmatprep.subr.mxu0 0.0
        %1729 = vmatpush1.msra.mxu0 0.0
        %1730 = vmatprep.subr.mxu0 0.0
        %1731 = vmatpush1.msra.mxu0 0.0
        %1732 = vmatprep.subr.mxu0 0.0
        %1733 = vmatpush1.msra.mxu0 0.0
        %1734 = vmatprep.subr.mxu0 0.0
        %1735 = vmatpush1.msra.mxu0 0.0
        %1736 = vmatprep.subr.mxu0 0.0
        %1737 = vmatpush1.msra.mxu0 0.0
        %1738 = vmatprep.subr.mxu0 0.0
        %1739 = vmatpush1.msra.mxu0 0.0
        %1740 = vmatprep.subr.mxu0 0.0
        %1741 = vmatpush1.msra.mxu0 0.0
        %1742 = vmatprep.subr.mxu0 0.0
        %1743 = vmatpush1.msra.mxu0 0.0
        %1744 = vmatprep.subr.mxu0 0.0
        %1745 = vmatpush1.msra.mxu0 0.0
        %1746 = vmatprep.subr.mxu0 0.0
        %1747 = vmatpush1.msra.mxu0 0.0
        %1748 = vmatprep.subr.mxu0 0.0
        %1749 = vmatpush1.msra.mxu0 0.0
        %1750 = vmatprep.subr.mxu0 0.0
        %1751 = vmatpush1.msra.mxu0 0.0
        %1752 = vmatprep.subr.mxu0 0.0
        %1753 = vmatpush1.msra.mxu0 0.0
        %1754 = vmatprep.subr.mxu0 0.0
        %1755 = vmatpush1.msra.mxu0 0.0
        %1756 = vmatprep.subr.mxu0 0.0
        %1757 = vmatpush1.msra.mxu0 0.0
        %1758 = vmatprep.subr.mxu0 0.0
        %1759 = vmatpush1.msra.mxu0 0.0
        %1760 = vmatprep.subr.mxu0 0.0
        %1761 = vmatpush1.msra.mxu0 0.0
        %1762 = vmatprep.subr.mxu0 0.0
        %1763 = vmatpush1.msra.mxu0 0.0
        %1764 = vmatprep.subr.mxu0 0.0
        %1765 = vmatpush1.msra.mxu0 0.0
        %1766 = vmatprep.subr.mxu0 0.0
        %1767 = vmatpush1.msra.mxu0 0.0
        %1768 = vmatprep.subr.mxu0 0.0
        %1769 = vmatpush1.msra.mxu0 0.0
        %1770 = vmatprep.subr.mxu0 0.0
        %1771 = vmatpush1.msra.mxu0 0.0
        %1772 = vmatprep.subr.mxu0 0.0
        %1773 = vmatpush1.msra.mxu0 0.0
        %1774 = vmatprep.subr.mxu0 0.0
        %1775 = vmatpush1.msra.mxu0 0.0
        %1776 = vmatprep.subr.mxu0 0.0
        %1777 = vmatpush1.msra.mxu0 0.0
        %1778 = vmatprep.subr.mxu0 0.0
        %1779 = vmatpush1.msra.mxu0 0.0
        %1780 = vmatprep.subr.mxu0 0.0
        %1781 = vmatpush1.msra.mxu0 0.0
        %1782 = vmatprep.subr.mxu0 0.0
        %1783 = vmatpush1.msra.mxu0 0.0
        %1784 = vmatprep.subr.mxu0 0.0
        %1785 = vmatpush1.msra.mxu0 0.0
        %1786 = vmatprep.subr.mxu0 0.0
        %1787 = vmatpush1.msra.mxu0 0.0
        %1788 = vmatprep.subr.mxu0 0.0
        %1789 = vmatpush1.msra.mxu0 0.0
        %1790 = vmatprep.mubr.f32.mxu0 0.0
        %1791 = vmatmul.mubr.f32.gmra.mrb[0].mxu0 %v1712
        %v1792 = vpop.f32.mrb[0].mxu0
        %v1793 = vadd.f32 0.0, %v1792
        %v1794 = vpop.f32.mrb[0].mxu0
        %1795 = vmatprep.mubr.f32.mxu0 0.0
        %1796 = vmatmul.mubr.f32.gmra.mrb[0].mxu0 %v1715
        %v1797 = vpop.f32.mrb[0].mxu0
        %v1798 = vadd.f32 0.0, %v1797
        %v1799 = vpop.f32.mrb[0].mxu0
        %1800 = vmatprep.mubr.f32.mxu0 0.0
        %1801 = vmatmul.mubr.f32.gmra.mrb[0].mxu0 %v1718
        %v1802 = vpop.f32.mrb[0].mxu0
        %v1803 = vadd.f32 0.0, %v1802
        %v1804 = vpop.f32.mrb[0].mxu0
        %1805 = vmatprep.mubr.f32.mxu0 0.0
        %1806 = vmatmul.mubr.f32.gmra.mrb[0].mxu0 %v1721
        %v1807 = vpop.f32.mrb[0].mxu0
        %v1808 = vadd.f32 0.0, %v1807
        %v1809 = vpop.f32.mrb[0].mxu0
        %1810 = vdwg.mxu0
        %v1811 = vxor.u32 %v1793, 2147483648
        %v1812 = vxor.u32 %v1798, 2147483648
        %v1813 = vxor.u32 %v1803, 2147483648
        %v1814 = vxor.u32 %v1808, 2147483648
        %v1815 = vmul.f32 %v1811, 1.442695
        %v1816 = vpow.pop %v1815
        %v1817 = vmul.f32 %v1812, 1.442695
        %v1818 = vpow.pop %v1817
        %v1819 = vmul.f32 %v1813, 1.442695
        %v1820 = vpow.pop %v1819
        %v1821 = vmul.f32 %v1814, 1.442695
        %v1822 = vpow.pop %v1821
        %v1823 = vadd.f32 %v1816, 1.0
        %v1824 = vadd.f32 %v1818, 1.0
        %v1825 = vadd.f32 %v1820, 1.0
        %v1826 = vadd.f32 %v1822, 1.0
        %v1827 = vrcp.pop %v1823
        %v1828 = vmul.f32 1.0, %v1827
        %v1829 = vrcp.pop %v1824
        %v1830 = vmul.f32 1.0, %v1829
        %v1831 = vrcp.pop %v1825
        %v1832 = vmul.f32 1.0, %v1831
        %v1833 = vrcp.pop %v1826
        %v1834 = vmul.f32 1.0, %v1833
        %vm1835 = vcmask 261120
        %1836 = vst.msk [vmem:[%s219] sm:$0xff] %vm1835, %v1828
        %1837 = vst.msk [vmem:[%s219 + $0x8] sm:$0xff] %vm1835, %v1830
        %1838 = vst.msk [vmem:[%s219 + $0x10] sm:$0xff] %vm1835, %v1832
        %1839 = vst.msk [vmem:[%s219 + $0x18] sm:$0xff] %vm1835, %v1834
        %s1840 = sand.u32 %s139, 1
        %s1841 = scalar_lea.sflag [#allocation4], %s1840
        %s1842 = sand.u32 %s139, 1
        %s1843 = smul.addr %s1842, 32
        %s1844 = scalar_lea.vmem [#allocation3], %s1843
        // Predicated region
        $region41: #{discriminator_forward.9} parent=39 // pred_check
          %p1845 = pneg %p149
        $region42: #{discriminator_forward.9} parent=39 // pred_check_branch
          %1847 = sbr.rel (%p1845) target = $region44
        $region43: #{discriminator_forward.9} parent=39 // pred_region
          %s1849 = ssub.s32 512, 512
          %1850 = vsyncadd %s1841, %s1849
          %s1851 = smul.addr %s21, 4
          %s1852 = smul.addr %s1851, 128
          %s1853 = scalar_lea.hbm %s5, %s1852
          %s1854 = sshll.u32 %s1844, 4
          %s1855 = int_to_ptr.vmem [resolvable:$true] %s1854
          %1860 = dma.vmem_to_hbm [thread:$0]  %s1855, 512, %s1853, %s1841, 128, 128, 8
        $region44: #{discriminator_forward.9} parent=39 // pred_fallthru
          _
      $region40: #{discriminator_forward.9} parent=5 // pred_fallthru
        _
      %p1861 = scmp.le.s32.totalorder 2, %s16
      // Predicated region
      $region45: #{discriminator_forward.9} parent=5 // pred_check
        %p1862 = pneg %p1861
      $region46: #{discriminator_forward.9} parent=5 // pred_check_branch
        %1864 = sbr.rel (%p1862) target = $region48
      $region47: #{discriminator_forward.9} parent=5 // pred_region
        %s1865 = ssub.s32 %s16, 2
        // Predicated region
        $region49: #{discriminator_forward.9} parent=47 // pred_check
          %p1866 = pneg %p155
        $region50: #{discriminator_forward.9} parent=47 // pred_check_branch
          %1868 = sbr.rel (%p1866) target = $region52
        $region51: #{discriminator_forward.9} parent=47 // pred_region
          %s1869 = sand.u32 %s140, 1
          %s1870 = scalar_lea.sflag [#allocation4], %s1869
          %s1871 = sand.u32 %s140, 1
          %s1872 = smul.addr %s1871, 32
          %s1873 = scalar_lea.vmem [#allocation3], %s1872
          %1874 = dma.done %s1870, 512
        $region52: #{discriminator_forward.9} parent=47 // pred_fallthru
          _
      $region48: #{discriminator_forward.9} parent=5 // pred_fallthru
        _
    $region6: #{discriminator_forward.9} parent=1 // loop_footer
      %s20 = sadd.s32 1, %s16
    $region7: #{discriminator_forward.9} parent=1 // loop_footer_branch
      %15 = sbr.rel target = $region3
    $region8: #{discriminator_forward.9} parent=1 // loop_exit
      _
    %1875 = vsyncpa [#allocation4], 1
    %s1876 = scalar_lea.sflag [#allocation4], 1
    %1877 = vsyncpa %s1876, 1

</llo_original>
